<compile_context>
chip_gen: v6e
topology: v6e:2x2x1
jax: 0.10.0
libtpu: 0.0.40
codegen_flags: <defaults>
</compile_context>

<pallas_src>
import functools

import jax
import jax.numpy as jnp
from jax import lax
from jax.experimental import pallas as pl
from jax.experimental.pallas import tpu as pltpu

EPS = 1e-5
LANE = 128
MATMUL_DTYPE = jnp.bfloat16      # MXU-native matmul inputs; accumulation stays f32.


def _round_up(x, m):
    return (x + m - 1) // m * m


def _pad_last(a, target):
    pad = [(0, 0)] * a.ndim
    pad[-1] = (0, target - a.shape[-1])
    return jnp.pad(a, pad)


def _pad2(a, rows, cols):
    pad = [(0, 0)] * a.ndim
    pad[-2] = (0, rows - a.shape[-2])
    pad[-1] = (0, cols - a.shape[-1])
    return jnp.pad(a, pad)


# ---------------------------------------------------------------------------
# Kernels
# ---------------------------------------------------------------------------
def _stats_rows(y):
    """Per-channel (sum, sum_sq) packed into an (8, C) slab (rows 2..7 zero)."""
    s = jnp.sum(y, axis=0, keepdims=True)
    ss = jnp.sum(y * y, axis=0, keepdims=True)
    zeros = jnp.zeros((6, y.shape[-1]), jnp.float32)
    return jnp.concatenate([s, ss, zeros], axis=0)


def conv1_kernel(x_ref, w1_ref, y_ref, st_ref):
    # x_ref: (H*W, CIN_P) f32 block ; w1_ref: (CIN_P, C_P) bf16 (whole weight)
    x = x_ref[...].astype(MATMUL_DTYPE)
    y = jnp.dot(x, w1_ref[...], preferred_element_type=jnp.float32)
    y_ref[...] = y
    st_ref[...] = _stats_rows(y)


def conv2_kernel(y1_ref, s1_ref, b1_ref, w2_ref, y2_ref, st_ref,
                 pad_ref, acc_ref, *, height, width):
    # y1_ref: (H*W, C_P) raw conv1 output ; s1/b1: (1, C_P) folded bn1 affine
    # w2_ref: (3, 3, C_P, C_P) bf16 HWIO ; pad_ref: (H+2, W+2, C_P) bf16 scratch
    c = y1_ref.shape[-1]
    # bn1 (affine with global stats) + relu, in f32.
    z = jnp.maximum(y1_ref[...] * s1_ref[...] + b1_ref[...], 0.0)
    # Zero the padded scratch, then write the activated tile into its interior;
    # the border rows/cols stay zero => "same" padding for the 3x3 conv.
    pad_ref[...] = jnp.zeros(pad_ref.shape, pad_ref.dtype)
    pad_ref[1:height + 1, 1:width + 1, :] = (
        z.reshape(height, width, c).astype(MATMUL_DTYPE))
    # 3x3 conv = 9 shifted-window matmuls accumulated into a VMEM f32 scratch.
    acc_ref[...] = jnp.zeros(acc_ref.shape, acc_ref.dtype)
    for dy in range(3):
        for dx in range(3):
            patch = pad_ref[dy:dy + height, dx:dx + width, :]
            acc_ref[...] += jnp.dot(patch.reshape(height * width, c),
                                    w2_ref[dy, dx],
                                    preferred_element_type=jnp.float32)
    acc = acc_ref[...]
    y2_ref[...] = acc
    st_ref[...] = _stats_rows(acc)


def conv3_kernel(y2_ref, s2_ref, b2_ref, w3_ref, y3_ref, st_ref):
    z = jnp.maximum(y2_ref[...] * s2_ref[...] + b2_ref[...], 0.0)
    y = jnp.dot(z.astype(MATMUL_DTYPE), w3_ref[...],
                preferred_element_type=jnp.float32)
    y3_ref[...] = y
    st_ref[...] = _stats_rows(y)


def epilogue_kernel(y3_ref, x_ref, s3_ref, b3_ref, o_ref):
    # bn3 affine + identity residual + relu.  x is re-read here (kept out of the
    # conv stages so it never stays live across them).
    o = y3_ref[...] * s3_ref[...] + b3_ref[...] + x_ref[...]
    o_ref[...] = jnp.maximum(o, 0.0)


# ---------------------------------------------------------------------------
# Wrapper
# ---------------------------------------------------------------------------
def _fold_bn(stats, count, gamma, beta):
    """Reduce per-image (sum, sum_sq) partials; fold BN into a per-channel affine."""
    st = stats.reshape(-1, 8, stats.shape[-1])
    total = jnp.sum(st[:, 0, :], axis=0)
    total_sq = jnp.sum(st[:, 1, :], axis=0)
    mean = total / count
    var = total_sq / count - mean * mean      # biased variance (PyTorch normalization)
    scale = gamma * lax.rsqrt(var + EPS)
    shift = beta - mean * scale
    return scale[None, :], shift[None, :]


def bottleneck_pallas(x_nchw, params):
    n, cin, height, width = x_nchw.shape
    cmid = params['w1'].shape[0]                 # outchannel
    cout = params['w3'].shape[0]                 # 4 * outchannel
    assert cout == cin, "identity shortcut requires inchannel == 4 * outchannel"
    hw = height * width
    m = n * hw
    assert hw % 8 == 0, "H*W must be a multiple of 8 (sublane granularity)"

    c_p = _round_up(cmid, LANE)                  # lane-dense mid channels
    cin_p = _round_up(cin, LANE)                 # lane-dense in/out channels

    # ---- layout: NCHW -> flat (N*H*W, C) slabs, channels zero-padded ----
    x_nhwc = jnp.transpose(x_nchw, (0, 2, 3, 1))
    x_flat = _pad_last(x_nhwc.reshape(m, cin), cin_p)

    # conv weights -> channels-last matmul form, zero-padded, bf16 for the MXU
    w1 = _pad2(jnp.transpose(params['w1'][:, :, 0, 0]), cin_p, c_p).astype(MATMUL_DTYPE)
    w2 = _pad2(jnp.transpose(params['w2'], (2, 3, 1, 0)), c_p, c_p).astype(MATMUL_DTYPE)
    w3 = _pad2(jnp.transpose(params['w3'][:, :, 0, 0]), c_p, cin_p).astype(MATMUL_DTYPE)

    g1, b1 = _pad_last(params['g1'], c_p), _pad_last(params['b1'], c_p)
    g2, b2 = _pad_last(params['g2'], c_p), _pad_last(params['b2'], c_p)
    g3, b3 = _pad_last(params['g3'], cin_p), _pad_last(params['b3'], cin_p)

    cparams = pltpu.CompilerParams(
        dimension_semantics=("parallel",),       # v7x: shard images over the 2 TCs
        vmem_limit_bytes=32 * 1024 * 1024,       # explicit, with headroom on 64 MiB v7x
    )

    def row_spec(c):
        return pl.BlockSpec((hw, c), lambda i: (i, 0))

    def stat_spec(c):
        return pl.BlockSpec((8, c), lambda i: (i, 0))

    def full_spec(shape):
        nd = len(shape)
        return pl.BlockSpec(shape, lambda i: (0,) * nd)

    # ---- stage 1: conv1 (1x1 as channel matmul) + per-image bn1 partial stats ----
    y1_raw, st1 = pl.pallas_call(
        conv1_kernel,
        grid=(n,),
        in_specs=[row_spec(cin_p), full_spec(w1.shape)],
        out_specs=(row_spec(c_p), stat_spec(c_p)),
        out_shape=(jax.ShapeDtypeStruct((m, c_p), jnp.float32),
                   jax.ShapeDtypeStruct((n * 8, c_p), jnp.float32)),
        compiler_params=cparams,
    )(x_flat, w1)
    s1, sh1 = _fold_bn(st1, m, g1, b1)

    # ---- stage 2: bn1+relu -> conv2 (3x3 via padded VMEM scratch) + bn2 partial stats ----
    y2_raw, st2 = pl.pallas_call(
        functools.partial(conv2_kernel, height=height, width=width),
        grid=(n,),
        in_specs=[row_spec(c_p), full_spec(s1.shape), full_spec(sh1.shape),
                  full_spec(w2.shape)],
        out_specs=(row_spec(c_p), stat_spec(c_p)),
        out_shape=(jax.ShapeDtypeStruct((m, c_p), jnp.float32),
                   jax.ShapeDtypeStruct((n * 8, c_p), jnp.float32)),
        scratch_shapes=[
            pltpu.VMEM((height + 2, width + 2, c_p), MATMUL_DTYPE),
            pltpu.VMEM((hw, c_p), jnp.float32),
        ],
        compiler_params=cparams,
    )(y1_raw, s1, sh1, w2)
    s2, sh2 = _fold_bn(st2, m, g2, b2)

    # ---- stage 3: bn2+relu -> conv3 (1x1) + bn3 partial stats ----
    y3_raw, st3 = pl.pallas_call(
        conv3_kernel,
        grid=(n,),
        in_specs=[row_spec(c_p), full_spec(s2.shape), full_spec(sh2.shape),
                  full_spec(w3.shape)],
        out_specs=(row_spec(cin_p), stat_spec(cin_p)),
        out_shape=(jax.ShapeDtypeStruct((m, cin_p), jnp.float32),
                   jax.ShapeDtypeStruct((n * 8, cin_p), jnp.float32)),
        compiler_params=cparams,
    )(y2_raw, s2, sh2, w3)
    s3, sh3 = _fold_bn(st3, m, g3, b3)

    # ---- stage 4: bn3 affine + identity residual + relu (lane-dense flat output) ----
    out_flat = pl.pallas_call(
        epilogue_kernel,
        grid=(n,),
        in_specs=[row_spec(cin_p), row_spec(cin_p),
                  full_spec(s3.shape), full_spec(sh3.shape)],
        out_specs=row_spec(cin_p),
        out_shape=jax.ShapeDtypeStruct((m, cin_p), jnp.float32),
        compiler_params=cparams,
    )(y3_raw, x_flat, s3, sh3)

    # flat lane-dense slab -> NHWC -> strip channel padding -> NCHW
    out = out_flat.reshape(n, height, width, cin_p)[..., :cin]
    return jnp.transpose(out, (0, 3, 1, 2))


# ---------------------------------------------------------------------------
# Pure-JAX reference
# ---------------------------------------------------------------------------
def bottleneck_reference(x_nchw, params, matmul_dtype=jnp.float32):
    """Reference Bottleneck forward.  `matmul_dtype` sets the conv-input quantization
    so the kernel's bf16 MXU path can be validated apples-to-apples."""
    def q(a):
        return a.astype(matmul_dtype).astype(jnp.float32)

    def conv(a, w_hwio, pad):
        return lax.conv_general_dilated(
            q(a), q(w_hwio), (1, 1), pad,
            dimension_numbers=('NHWC', 'HWIO', 'NHWC'),
            precision=lax.Precision.HIGHEST)

    def bn(a, g, b):
        mean = jnp.mean(a, axis=(0, 1, 2), keepdims=True)
        var = jnp.mean((a - mean) ** 2, axis=(0, 1, 2), keepdims=True)
        return (a - mean) * lax.rsqrt(var + EPS) * g + b

    x = jnp.transpose(x_nchw, (0, 2, 3, 1))                        # NHWC
    w1 = jnp.transpose(params['w1'][:, :, 0, 0])[None, None]       # (1,1,Cin,C)
    w2 = jnp.transpose(params['w2'], (2, 3, 1, 0))                 # (3,3,C,C)
    w3 = jnp.transpose(params['w3'][:, :, 0, 0])[None, None]       # (1,1,C,4C)
    y = jax.nn.relu(bn(conv(x, w1, 'VALID'), params['g1'], params['b1']))
    y = jax.nn.relu(bn(conv(y, w2, 'SAME'), params['g2'], params['b2']))
    y = bn(conv(y, w3, 'VALID'), params['g3'], params['b3'])
    return jnp.transpose(jax.nn.relu(y + x), (0, 3, 1, 2))         # back to NCHW


if __name__ == "__main__":
    # Small test config (identity shortcut: stride=1, inchannel == 4 * outchannel).
    # TODO(synk): stride != 1 and the downsample ("right") branch are not implemented
    # (the module's defaults are stride=1, downsample=None).
    batch, outc, height, width = 2, 4, 16, 16
    inc = outc * 4                                   # 16

    key = jax.random.PRNGKey(0)
    ks = jax.random.split(key, 10)
    x = jax.random.normal(ks[0], (batch, inc, height, width), jnp.float32)

    params = {
        # PyTorch-layout conv weights (bias=False) and BatchNorm affine params.
        'w1': 0.1 * jax.random.normal(ks[1], (outc, inc, 1, 1), jnp.float32),
        'w2': 0.1 * jax.random.normal(ks[2], (outc, outc, 3, 3), jnp.float32),
        'w3': 0.1 * jax.random.normal(ks[3], (inc, outc, 1, 1), jnp.float32),
        'g1': 1.0 + 0.1 * jax.random.normal(ks[4], (outc,), jnp.float32),
        'b1': 0.1 * jax.random.normal(ks[5], (outc,), jnp.float32),
        'g2': 1.0 + 0.1 * jax.random.normal(ks[6], (outc,), jnp.float32),
        'b2': 0.1 * jax.random.normal(ks[7], (outc,), jnp.float32),
        'g3': 1.0 + 0.1 * jax.random.normal(ks[8], (inc,), jnp.float32),
        'b3': 0.1 * jax.random.normal(ks[9], (inc,), jnp.float32),
    }

    fwd = jax.jit(bottleneck_pallas)
    out = jax.block_until_ready(fwd(x, params))
    assert out.shape == x.shape, out.shape

    # Structural correctness: reference with matched bf16 quantization points.
    ref_matched = jax.block_until_ready(bottleneck_reference(x, params, MATMUL_DTYPE))
    err = float(jnp.max(jnp.abs(out - ref_matched)))
    assert err < 3e-2, f"max abs err vs matched-precision reference: {err}"

    # Deliberate bf16-matmul precision tradeoff vs a pure-f32 reference (loose sanity bound).
    ref_f32 = jax.block_until_ready(bottleneck_reference(x, params, jnp.float32))
    err_f32 = float(jnp.max(jnp.abs(out - ref_f32)))
    assert err_f32 < 0.5, f"max abs err vs f32 reference unexpectedly large: {err_f32}"

    print("KERNEL_OK")
</pallas_src>

<mosaic_0001>
module attributes {stable_mosaic.version = 11 : i64} {
  func.func @conv1_kernel(%arg0: i32, %arg1: memref<256x128xf32, #tpu.memory_space<vmem>>, %arg2: memref<128x128xbf16, #tpu.memory_space<vmem>>, %arg3: memref<256x128xf32, #tpu.memory_space<vmem>>, %arg4: memref<8x128xf32, #tpu.memory_space<vmem>>) attributes {dimension_semantics = [#tpu.dimension_semantics<parallel>], iteration_bounds = array<i64: 2>, scalar_prefetch = 0 : i64, scratch_operands = 0 : i64, tpu.core_type = #tpu.core_type<tc>, window_params = [{transform_indices = @transform_0, window_bounds = array<i64: 256, 128>}, {pipeline_mode = #tpu.pipeline_mode<synchronous>, transform_indices = @transform_1, window_bounds = array<i64: 128, 128>}, {transform_indices = @transform_2, window_bounds = array<i64: 256, 128>}, {transform_indices = @transform_3, window_bounds = array<i64: 8, 128>}]} {
    %c0 = arith.constant 0 : index
    %c0_0 = arith.constant 0 : index
    %0 = vector.load %arg1[%c0, %c0_0] : memref<256x128xf32, #tpu.memory_space<vmem>>, vector<256x128xf32>
    %1 = arith.truncf %0 : vector<256x128xf32> to vector<256x128xbf16>
    %c0_1 = arith.constant 0 : index
    %c0_2 = arith.constant 0 : index
    %2 = vector.load %arg2[%c0_1, %c0_2] : memref<128x128xbf16, #tpu.memory_space<vmem>>, vector<128x128xbf16>
    %cst = arith.constant dense<0.000000e+00> : vector<256x128xf32>
    %3 = tpu.matmul %1, %2, %cst {dimension_numbers = #tpu.dot_dimension_numbers<[1], [0], [0], [1], [0, 0, 1, 1], [], []>} : vector<256x128xbf16>, vector<128x128xbf16>, vector<256x128xf32> -> vector<256x128xf32>
    %c0_3 = arith.constant 0 : index
    %c0_4 = arith.constant 0 : index
    %4 = vector.load %arg3[%c0_3, %c0_4] : memref<256x128xf32, #tpu.memory_space<vmem>>, vector<256x128xf32>
    tpu.vector_store %arg3[%c0_3, %c0_4], %3 {strides = array<i32>} : memref<256x128xf32, #tpu.memory_space<vmem>>, vector<256x128xf32>,
    %cst_5 = arith.constant dense<0.000000e+00> : vector<128xf32>
    %5 = vector.multi_reduction <add>, %3, %cst_5 [0] : vector<256x128xf32> to vector<128xf32>
    %6 = vector.shape_cast %5 : vector<128xf32> to vector<1x128xf32>
    %7 = arith.mulf %3, %3 : vector<256x128xf32>
    %cst_6 = arith.constant dense<0.000000e+00> : vector<128xf32>
    %8 = vector.multi_reduction <add>, %7, %cst_6 [0] : vector<256x128xf32> to vector<128xf32>
    %9 = vector.shape_cast %8 : vector<128xf32> to vector<1x128xf32>
    %cst_7 = arith.constant 0.000000e+00 : f32
    %10 = vector.broadcast %cst_7 : f32 to vector<6x128xf32>
    %11 = tpu.concatenate %6, %9, %10 in 0 : vector<1x128xf32>, vector<1x128xf32>, vector<6x128xf32> -> vector<8x128xf32>
    %c0_8 = arith.constant 0 : index
    %c0_9 = arith.constant 0 : index
    %12 = vector.load %arg4[%c0_8, %c0_9] : memref<8x128xf32, #tpu.memory_space<vmem>>, vector<8x128xf32>
    tpu.vector_store %arg4[%c0_8, %c0_9], %11 {strides = array<i32>} : memref<8x128xf32, #tpu.memory_space<vmem>>, vector<8x128xf32>,
    return
  }
  func.func @transform_0(%arg0: i32) -> (i32, i32) {
    %c0_i32 = arith.constant 0 : i32
    %c0_i32_0 = arith.constant 0 : i32
    return %arg0, %c0_i32 : i32, i32
  }
  func.func @transform_1(%arg0: i32) -> (i32, i32) {
    %c0_i32 = arith.constant 0 : i32
    %c0_i32_0 = arith.constant 0 : i32
    %c0_i32_1 = arith.constant 0 : i32
    return %c0_i32, %c0_i32_0 : i32, i32
  }
  func.func @transform_2(%arg0: i32) -> (i32, i32) {
    %c0_i32 = arith.constant 0 : i32
    %c0_i32_0 = arith.constant 0 : i32
    return %arg0, %c0_i32 : i32, i32
  }
  func.func @transform_3(%arg0: i32) -> (i32, i32) {
    %c0_i32 = arith.constant 0 : i32
    %c0_i32_0 = arith.constant 0 : i32
    return %arg0, %c0_i32 : i32, i32
  }
}

module attributes {stable_mosaic.version = 11 : i64} {
  func.func @conv2_kernel(%arg0: i32, %arg1: memref<256x128xf32, #tpu.memory_space<vmem>>, %arg2: memref<1x128xf32, #tpu.memory_space<vmem>>, %arg3: memref<1x128xf32, #tpu.memory_space<vmem>>, %arg4: memref<3x3x128x128xbf16, #tpu.memory_space<vmem>>, %arg5: memref<256x128xf32, #tpu.memory_space<vmem>>, %arg6: memref<8x128xf32, #tpu.memory_space<vmem>>, %arg7: memref<18x18x128xbf16, #tpu.memory_space<vmem>>, %arg8: memref<256x128xf32, #tpu.memory_space<vmem>>) attributes {dimension_semantics = [#tpu.dimension_semantics<parallel>], iteration_bounds = array<i64: 2>, scalar_prefetch = 0 : i64, scratch_operands = 2 : i64, tpu.core_type = #tpu.core_type<tc>, window_params = [{transform_indices = @transform_0, window_bounds = array<i64: 256, 128>}, {pipeline_mode = #tpu.pipeline_mode<synchronous>, transform_indices = @transform_1, window_bounds = array<i64: 1, 128>}, {pipeline_mode = #tpu.pipeline_mode<synchronous>, transform_indices = @transform_2, window_bounds = array<i64: 1, 128>}, {pipeline_mode = #tpu.pipeline_mode<synchronous>, transform_indices = @transform_3, window_bounds = array<i64: 3, 3, 128, 128>}, {transform_indices = @transform_4, window_bounds = array<i64: 256, 128>}, {transform_indices = @transform_5, window_bounds = array<i64: 8, 128>}]} {
    %c0 = arith.constant 0 : index
    %c0_0 = arith.constant 0 : index
    %0 = vector.load %arg1[%c0, %c0_0] : memref<256x128xf32, #tpu.memory_space<vmem>>, vector<256x128xf32>
    %c0_1 = arith.constant 0 : index
    %c0_2 = arith.constant 0 : index
    %1 = vector.load %arg2[%c0_1, %c0_2] : memref<1x128xf32, #tpu.memory_space<vmem>>, vector<1x128xf32>
    %2 = vector.broadcast %1 : vector<1x128xf32> to vector<256x128xf32>
    %3 = arith.mulf %0, %2 : vector<256x128xf32>
    %c0_3 = arith.constant 0 : index
    %c0_4 = arith.constant 0 : index
    %4 = vector.load %arg3[%c0_3, %c0_4] : memref<1x128xf32, #tpu.memory_space<vmem>>, vector<1x128xf32>
    %5 = vector.broadcast %4 : vector<1x128xf32> to vector<256x128xf32>
    %6 = arith.addf %3, %5 : vector<256x128xf32>
    %cst = arith.constant 0.000000e+00 : f32
    %7 = vector.broadcast %cst : f32 to vector<256x128xf32>
    %8 = arith.maximumf %6, %7 : vector<256x128xf32>
    %cst_5 = arith.constant 0.000000e+00 : bf16
    %9 = vector.broadcast %cst_5 : bf16 to vector<18x18x128xbf16>
    %c0_6 = arith.constant 0 : index
    %c0_7 = arith.constant 0 : index
    %c0_8 = arith.constant 0 : index
    %10 = vector.load %arg7[%c0_6, %c0_7, %c0_8] : memref<18x18x128xbf16, #tpu.memory_space<vmem>>, vector<18x18x128xbf16>
    tpu.vector_store %arg7[%c0_6, %c0_7, %c0_8], %9 {strides = array<i32>} : memref<18x18x128xbf16, #tpu.memory_space<vmem>>, vector<18x18x128xbf16>,
    %11 = vector.shape_cast %8 : vector<256x128xf32> to vector<16x16x128xf32>
    %12 = arith.truncf %11 : vector<16x16x128xf32> to vector<16x16x128xbf16>
    %c1 = arith.constant 1 : index
    %c1_9 = arith.constant 1 : index
    %c0_10 = arith.constant 0 : index
    %13 = vector.load %arg7[%c1, %c1_9, %c0_10] : memref<18x18x128xbf16, #tpu.memory_space<vmem>>, vector<16x16x128xbf16>
    tpu.vector_store %arg7[%c1, %c1_9, %c0_10], %12 {strides = array<i32>} : memref<18x18x128xbf16, #tpu.memory_space<vmem>>, vector<16x16x128xbf16>,
    %cst_11 = arith.constant 0.000000e+00 : f32
    %14 = vector.broadcast %cst_11 : f32 to vector<256x128xf32>
    %c0_12 = arith.constant 0 : index
    %c0_13 = arith.constant 0 : index
    %15 = vector.load %arg8[%c0_12, %c0_13] : memref<256x128xf32, #tpu.memory_space<vmem>>, vector<256x128xf32>
    tpu.vector_store %arg8[%c0_12, %c0_13], %14 {strides = array<i32>} : memref<256x128xf32, #tpu.memory_space<vmem>>, vector<256x128xf32>,
    %c0_14 = arith.constant 0 : index
    %c0_15 = arith.constant 0 : index
    %c0_16 = arith.constant 0 : index
    %16 = vector.load %arg7[%c0_14, %c0_15, %c0_16] : memref<18x18x128xbf16, #tpu.memory_space<vmem>>, vector<16x16x128xbf16>
    %c0_17 = arith.constant 0 : index
    %c0_18 = arith.constant 0 : index
    %17 = vector.load %arg8[%c0_17, %c0_18] : memref<256x128xf32, #tpu.memory_space<vmem>>, vector<256x128xf32>
    %18 = vector.shape_cast %16 : vector<16x16x128xbf16> to vector<256x128xbf16>
    %c0_19 = arith.constant 0 : index
    %c0_20 = arith.constant 0 : index
    %c0_21 = arith.constant 0 : index
    %c0_22 = arith.constant 0 : index
    %19 = vector.load %arg4[%c0_19, %c0_20, %c0_21, %c0_22] : memref<3x3x128x128xbf16, #tpu.memory_space<vmem>>, vector<1x1x128x128xbf16>
    %20 = vector.shape_cast %19 : vector<1x1x128x128xbf16> to vector<128x128xbf16>
    %cst_23 = arith.constant dense<0.000000e+00> : vector<256x128xf32>
    %21 = tpu.matmul %18, %20, %cst_23 {dimension_numbers = #tpu.dot_dimension_numbers<[1], [0], [0], [1], [0, 0, 1, 1], [], []>} : vector<256x128xbf16>, vector<128x128xbf16>, vector<256x128xf32> -> vector<256x128xf32>
    %22 = arith.addf %17, %21 : vector<256x128xf32>
    %c0_24 = arith.constant 0 : index
    %c0_25 = arith.constant 0 : index
    %23 = vector.load %arg8[%c0_24, %c0_25] : memref<256x128xf32, #tpu.memory_space<vmem>>, vector<256x128xf32>
    tpu.vector_store %arg8[%c0_24, %c0_25], %22 {strides = array<i32>} : memref<256x128xf32, #tpu.memory_space<vmem>>, vector<256x128xf32>,
    %c0_26 = arith.constant 0 : index
    %c1_27 = arith.constant 1 : index
    %c0_28 = arith.constant 0 : index
    %24 = vector.load %arg7[%c0_26, %c1_27, %c0_28] : memref<18x18x128xbf16, #tpu.memory_space<vmem>>, vector<16x16x128xbf16>
    %c0_29 = arith.constant 0 : index
    %c0_30 = arith.constant 0 : index
    %25 = vector.load %arg8[%c0_29, %c0_30] : memref<256x128xf32, #tpu.memory_space<vmem>>, vector<256x128xf32>
    %26 = vector.shape_cast %24 : vector<16x16x128xbf16> to vector<256x128xbf16>
    %c0_31 = arith.constant 0 : index
    %c1_32 = arith.constant 1 : index
    %c0_33 = arith.constant 0 : index
    %c0_34 = arith.constant 0 : index
    %27 = vector.load %arg4[%c0_31, %c1_32, %c0_33, %c0_34] : memref<3x3x128x128xbf16, #tpu.memory_space<vmem>>, vector<1x1x128x128xbf16>
    %28 = vector.shape_cast %27 : vector<1x1x128x128xbf16> to vector<128x128xbf16>
    %cst_35 = arith.constant dense<0.000000e+00> : vector<256x128xf32>
    %29 = tpu.matmul %26, %28, %cst_35 {dimension_numbers = #tpu.dot_dimension_numbers<[1], [0], [0], [1], [0, 0, 1, 1], [], []>} : vector<256x128xbf16>, vector<128x128xbf16>, vector<256x128xf32> -> vector<256x128xf32>
    %30 = arith.addf %25, %29 : vector<256x128xf32>
    %c0_36 = arith.constant 0 : index
    %c0_37 = arith.constant 0 : index
    %31 = vector.load %arg8[%c0_36, %c0_37] : memref<256x128xf32, #tpu.memory_space<vmem>>, vector<256x128xf32>
    tpu.vector_store %arg8[%c0_36, %c0_37], %30 {strides = array<i32>} : memref<256x128xf32, #tpu.memory_space<vmem>>, vector<256x128xf32>,
    %c0_38 = arith.constant 0 : index
    %c2 = arith.constant 2 : index
    %c0_39 = arith.constant 0 : index
    %32 = vector.load %arg7[%c0_38, %c2, %c0_39] : memref<18x18x128xbf16, #tpu.memory_space<vmem>>, vector<16x16x128xbf16>
    %c0_40 = arith.constant 0 : index
    %c0_41 = arith.constant 0 : index
    %33 = vector.load %arg8[%c0_40, %c0_41] : memref<256x128xf32, #tpu.memory_space<vmem>>, vector<256x128xf32>
    %34 = vector.shape_cast %32 : vector<16x16x128xbf16> to vector<256x128xbf16>
    %c0_42 = arith.constant 0 : index
    %c2_43 = arith.constant 2 : index
    %c0_44 = arith.constant 0 : index
    %c0_45 = arith.constant 0 : index
    %35 = vector.load %arg4[%c0_42, %c2_43, %c0_44, %c0_45] : memref<3x3x128x128xbf16, #tpu.memory_space<vmem>>, vector<1x1x128x128xbf16>
    %36 = vector.shape_cast %35 : vector<1x1x128x128xbf16> to vector<128x128xbf16>
    %cst_46 = arith.constant dense<0.000000e+00> : vector<256x128xf32>
    %37 = tpu.matmul %34, %36, %cst_46 {dimension_numbers = #tpu.dot_dimension_numbers<[1], [0], [0], [1], [0, 0, 1, 1], [], []>} : vector<256x128xbf16>, vector<128x128xbf16>, vector<256x128xf32> -> vector<256x128xf32>
    %38 = arith.addf %33, %37 : vector<256x128xf32>
    %c0_47 = arith.constant 0 : index
    %c0_48 = arith.constant 0 : index
    %39 = vector.load %arg8[%c0_47, %c0_48] : memref<256x128xf32, #tpu.memory_space<vmem>>, vector<256x128xf32>
    tpu.vector_store %arg8[%c0_47, %c0_48], %38 {strides = array<i32>} : memref<256x128xf32, #tpu.memory_space<vmem>>, vector<256x128xf32>,
    %c1_49 = arith.constant 1 : index
    %c0_50 = arith.constant 0 : index
    %c0_51 = arith.constant 0 : index
    %40 = vector.load %arg7[%c1_49, %c0_50, %c0_51] : memref<18x18x128xbf16, #tpu.memory_space<vmem>>, vector<16x16x128xbf16>
    %c0_52 = arith.constant 0 : index
    %c0_53 = arith.constant 0 : index
    %41 = vector.load %arg8[%c0_52, %c0_53] : memref<256x128xf32, #tpu.memory_space<vmem>>, vector<256x128xf32>
    %42 = vector.shape_cast %40 : vector<16x16x128xbf16> to vector<256x128xbf16>
    %c1_54 = arith.constant 1 : index
    %c0_55 = arith.constant 0 : index
    %c0_56 = arith.constant 0 : index
    %c0_57 = arith.constant 0 : index
    %43 = vector.load %arg4[%c1_54, %c0_55, %c0_56, %c0_57] : memref<3x3x128x128xbf16, #tpu.memory_space<vmem>>, vector<1x1x128x128xbf16>
    %44 = vector.shape_cast %43 : vector<1x1x128x128xbf16> to vector<128x128xbf16>
    %cst_58 = arith.constant dense<0.000000e+00> : vector<256x128xf32>
    %45 = tpu.matmul %42, %44, %cst_58 {dimension_numbers = #tpu.dot_dimension_numbers<[1], [0], [0], [1], [0, 0, 1, 1], [], []>} : vector<256x128xbf16>, vector<128x128xbf16>, vector<256x128xf32> -> vector<256x128xf32>
    %46 = arith.addf %41, %45 : vector<256x128xf32>
    %c0_59 = arith.constant 0 : index
    %c0_60 = arith.constant 0 : index
    %47 = vector.load %arg8[%c0_59, %c0_60] : memref<256x128xf32, #tpu.memory_space<vmem>>, vector<256x128xf32>
    tpu.vector_store %arg8[%c0_59, %c0_60], %46 {strides = array<i32>} : memref<256x128xf32, #tpu.memory_space<vmem>>, vector<256x128xf32>,
    %c1_61 = arith.constant 1 : index
    %c1_62 = arith.constant 1 : index
    %c0_63 = arith.constant 0 : index
    %48 = vector.load %arg7[%c1_61, %c1_62, %c0_63] : memref<18x18x128xbf16, #tpu.memory_space<vmem>>, vector<16x16x128xbf16>
    %c0_64 = arith.constant 0 : index
    %c0_65 = arith.constant 0 : index
    %49 = vector.load %arg8[%c0_64, %c0_65] : memref<256x128xf32, #tpu.memory_space<vmem>>, vector<256x128xf32>
    %50 = vector.shape_cast %48 : vector<16x16x128xbf16> to vector<256x128xbf16>
    %c1_66 = arith.constant 1 : index
    %c1_67 = arith.constant 1 : index
    %c0_68 = arith.constant 0 : index
    %c0_69 = arith.constant 0 : index
    %51 = vector.load %arg4[%c1_66, %c1_67, %c0_68, %c0_69] : memref<3x3x128x128xbf16, #tpu.memory_space<vmem>>, vector<1x1x128x128xbf16>
    %52 = vector.shape_cast %51 : vector<1x1x128x128xbf16> to vector<128x128xbf16>
    %cst_70 = arith.constant dense<0.000000e+00> : vector<256x128xf32>
    %53 = tpu.matmul %50, %52, %cst_70 {dimension_numbers = #tpu.dot_dimension_numbers<[1], [0], [0], [1], [0, 0, 1, 1], [], []>} : vector<256x128xbf16>, vector<128x128xbf16>, vector<256x128xf32> -> vector<256x128xf32>
    %54 = arith.addf %49, %53 : vector<256x128xf32>
    %c0_71 = arith.constant 0 : index
    %c0_72 = arith.constant 0 : index
    %55 = vector.load %arg8[%c0_71, %c0_72] : memref<256x128xf32, #tpu.memory_space<vmem>>, vector<256x128xf32>
    tpu.vector_store %arg8[%c0_71, %c0_72], %54 {strides = array<i32>} : memref<256x128xf32, #tpu.memory_space<vmem>>, vector<256x128xf32>,
    %c1_73 = arith.constant 1 : index
    %c2_74 = arith.constant 2 : index
    %c0_75 = arith.constant 0 : index
    %56 = vector.load %arg7[%c1_73, %c2_74, %c0_75] : memref<18x18x128xbf16, #tpu.memory_space<vmem>>, vector<16x16x128xbf16>
    %c0_76 = arith.constant 0 : index
    %c0_77 = arith.constant 0 : index
    %57 = vector.load %arg8[%c0_76, %c0_77] : memref<256x128xf32, #tpu.memory_space<vmem>>, vector<256x128xf32>
    %58 = vector.shape_cast %56 : vector<16x16x128xbf16> to vector<256x128xbf16>
    %c1_78 = arith.constant 1 : index
    %c2_79 = arith.constant 2 : index
    %c0_80 = arith.constant 0 : index
    %c0_81 = arith.constant 0 : index
    %59 = vector.load %arg4[%c1_78, %c2_79, %c0_80, %c0_81] : memref<3x3x128x128xbf16, #tpu.memory_space<vmem>>, vector<1x1x128x128xbf16>
    %60 = vector.shape_cast %59 : vector<1x1x128x128xbf16> to vector<128x128xbf16>
    %cst_82 = arith.constant dense<0.000000e+00> : vector<256x128xf32>
    %61 = tpu.matmul %58, %60, %cst_82 {dimension_numbers = #tpu.dot_dimension_numbers<[1], [0], [0], [1], [0, 0, 1, 1], [], []>} : vector<256x128xbf16>, vector<128x128xbf16>, vector<256x128xf32> -> vector<256x128xf32>
    %62 = arith.addf %57, %61 : vector<256x128xf32>
    %c0_83 = arith.constant 0 : index
    %c0_84 = arith.constant 0 : index
    %63 = vector.load %arg8[%c0_83, %c0_84] : memref<256x128xf32, #tpu.memory_space<vmem>>, vector<256x128xf32>
    tpu.vector_store %arg8[%c0_83, %c0_84], %62 {strides = array<i32>} : memref<256x128xf32, #tpu.memory_space<vmem>>, vector<256x128xf32>,
    %c2_85 = arith.constant 2 : index
    %c0_86 = arith.constant 0 : index
    %c0_87 = arith.constant 0 : index
    %64 = vector.load %arg7[%c2_85, %c0_86, %c0_87] : memref<18x18x128xbf16, #tpu.memory_space<vmem>>, vector<16x16x128xbf16>
    %c0_88 = arith.constant 0 : index
    %c0_89 = arith.constant 0 : index
    %65 = vector.load %arg8[%c0_88, %c0_89] : memref<256x128xf32, #tpu.memory_space<vmem>>, vector<256x128xf32>
    %66 = vector.shape_cast %64 : vector<16x16x128xbf16> to vector<256x128xbf16>
    %c2_90 = arith.constant 2 : index
    %c0_91 = arith.constant 0 : index
    %c0_92 = arith.constant 0 : index
    %c0_93 = arith.constant 0 : index
    %67 = vector.load %arg4[%c2_90, %c0_91, %c0_92, %c0_93] : memref<3x3x128x128xbf16, #tpu.memory_space<vmem>>, vector<1x1x128x128xbf16>
    %68 = vector.shape_cast %67 : vector<1x1x128x128xbf16> to vector<128x128xbf16>
    %cst_94 = arith.constant dense<0.000000e+00> : vector<256x128xf32>
    %69 = tpu.matmul %66, %68, %cst_94 {dimension_numbers = #tpu.dot_dimension_numbers<[1], [0], [0], [1], [0, 0, 1, 1], [], []>} : vector<256x128xbf16>, vector<128x128xbf16>, vector<256x128xf32> -> vector<256x128xf32>
    %70 = arith.addf %65, %69 : vector<256x128xf32>
    %c0_95 = arith.constant 0 : index
    %c0_96 = arith.constant 0 : index
    %71 = vector.load %arg8[%c0_95, %c0_96] : memref<256x128xf32, #tpu.memory_space<vmem>>, vector<256x128xf32>
    tpu.vector_store %arg8[%c0_95, %c0_96], %70 {strides = array<i32>} : memref<256x128xf32, #tpu.memory_space<vmem>>, vector<256x128xf32>,
    %c2_97 = arith.constant 2 : index
    %c1_98 = arith.constant 1 : index
    %c0_99 = arith.constant 0 : index
    %72 = vector.load %arg7[%c2_97, %c1_98, %c0_99] : memref<18x18x128xbf16, #tpu.memory_space<vmem>>, vector<16x16x128xbf16>
    %c0_100 = arith.constant 0 : index
    %c0_101 = arith.constant 0 : index
    %73 = vector.load %arg8[%c0_100, %c0_101] : memref<256x128xf32, #tpu.memory_space<vmem>>, vector<256x128xf32>
    %74 = vector.shape_cast %72 : vector<16x16x128xbf16> to vector<256x128xbf16>
    %c2_102 = arith.constant 2 : index
    %c1_103 = arith.constant 1 : index
    %c0_104 = arith.constant 0 : index
    %c0_105 = arith.constant 0 : index
    %75 = vector.load %arg4[%c2_102, %c1_103, %c0_104, %c0_105] : memref<3x3x128x128xbf16, #tpu.memory_space<vmem>>, vector<1x1x128x128xbf16>
    %76 = vector.shape_cast %75 : vector<1x1x128x128xbf16> to vector<128x128xbf16>
    %cst_106 = arith.constant dense<0.000000e+00> : vector<256x128xf32>
    %77 = tpu.matmul %74, %76, %cst_106 {dimension_numbers = #tpu.dot_dimension_numbers<[1], [0], [0], [1], [0, 0, 1, 1], [], []>} : vector<256x128xbf16>, vector<128x128xbf16>, vector<256x128xf32> -> vector<256x128xf32>
    %78 = arith.addf %73, %77 : vector<256x128xf32>
    %c0_107 = arith.constant 0 : index
    %c0_108 = arith.constant 0 : index
    %79 = vector.load %arg8[%c0_107, %c0_108] : memref<256x128xf32, #tpu.memory_space<vmem>>, vector<256x128xf32>
    tpu.vector_store %arg8[%c0_107, %c0_108], %78 {strides = array<i32>} : memref<256x128xf32, #tpu.memory_space<vmem>>, vector<256x128xf32>,
    %c2_109 = arith.constant 2 : index
    %c2_110 = arith.constant 2 : index
    %c0_111 = arith.constant 0 : index
    %80 = vector.load %arg7[%c2_109, %c2_110, %c0_111] : memref<18x18x128xbf16, #tpu.memory_space<vmem>>, vector<16x16x128xbf16>
    %c0_112 = arith.constant 0 : index
    %c0_113 = arith.constant 0 : index
    %81 = vector.load %arg8[%c0_112, %c0_113] : memref<256x128xf32, #tpu.memory_space<vmem>>, vector<256x128xf32>
    %82 = vector.shape_cast %80 : vector<16x16x128xbf16> to vector<256x128xbf16>
    %c2_114 = arith.constant 2 : index
    %c2_115 = arith.constant 2 : index
    %c0_116 = arith.constant 0 : index
    %c0_117 = arith.constant 0 : index
    %83 = vector.load %arg4[%c2_114, %c2_115, %c0_116, %c0_117] : memref<3x3x128x128xbf16, #tpu.memory_space<vmem>>, vector<1x1x128x128xbf16>
    %84 = vector.shape_cast %83 : vector<1x1x128x128xbf16> to vector<128x128xbf16>
    %cst_118 = arith.constant dense<0.000000e+00> : vector<256x128xf32>
    %85 = tpu.matmul %82, %84, %cst_118 {dimension_numbers = #tpu.dot_dimension_numbers<[1], [0], [0], [1], [0, 0, 1, 1], [], []>} : vector<256x128xbf16>, vector<128x128xbf16>, vector<256x128xf32> -> vector<256x128xf32>
    %86 = arith.addf %81, %85 : vector<256x128xf32>
    %c0_119 = arith.constant 0 : index
    %c0_120 = arith.constant 0 : index
    %87 = vector.load %arg8[%c0_119, %c0_120] : memref<256x128xf32, #tpu.memory_space<vmem>>, vector<256x128xf32>
    tpu.vector_store %arg8[%c0_119, %c0_120], %86 {strides = array<i32>} : memref<256x128xf32, #tpu.memory_space<vmem>>, vector<256x128xf32>,
    %c0_121 = arith.constant 0 : index
    %c0_122 = arith.constant 0 : index
    %88 = vector.load %arg8[%c0_121, %c0_122] : memref<256x128xf32, #tpu.memory_space<vmem>>, vector<256x128xf32>
    %c0_123 = arith.constant 0 : index
    %c0_124 = arith.constant 0 : index
    %89 = vector.load %arg5[%c0_123, %c0_124] : memref<256x128xf32, #tpu.memory_space<vmem>>, vector<256x128xf32>
    tpu.vector_store %arg5[%c0_123, %c0_124], %88 {strides = array<i32>} : memref<256x128xf32, #tpu.memory_space<vmem>>, vector<256x128xf32>,
    %cst_125 = arith.constant dense<0.000000e+00> : vector<128xf32>
    %90 = vector.multi_reduction <add>, %88, %cst_125 [0] : vector<256x128xf32> to vector<128xf32>
    %91 = vector.shape_cast %90 : vector<128xf32> to vector<1x128xf32>
    %92 = arith.mulf %88, %88 : vector<256x128xf32>
    %cst_126 = arith.constant dense<0.000000e+00> : vector<128xf32>
    %93 = vector.multi_reduction <add>, %92, %cst_126 [0] : vector<256x128xf32> to vector<128xf32>
    %94 = vector.shape_cast %93 : vector<128xf32> to vector<1x128xf32>
    %cst_127 = arith.constant 0.000000e+00 : f32
    %95 = vector.broadcast %cst_127 : f32 to vector<6x128xf32>
    %96 = tpu.concatenate %91, %94, %95 in 0 : vector<1x128xf32>, vector<1x128xf32>, vector<6x128xf32> -> vector<8x128xf32>
    %c0_128 = arith.constant 0 : index
    %c0_129 = arith.constant 0 : index
    %97 = vector.load %arg6[%c0_128, %c0_129] : memref<8x128xf32, #tpu.memory_space<vmem>>, vector<8x128xf32>
    tpu.vector_store %arg6[%c0_128, %c0_129], %96 {strides = array<i32>} : memref<8x128xf32, #tpu.memory_space<vmem>>, vector<8x128xf32>,
    return
  }
  func.func @transform_0(%arg0: i32) -> (i32, i32) {
    %c0_i32 = arith.constant 0 : i32
    %c0_i32_0 = arith.constant 0 : i32
    return %arg0, %c0_i32 : i32, i32
  }
  func.func @transform_1(%arg0: i32) -> (i32, i32) {
    %c0_i32 = arith.constant 0 : i32
    %c0_i32_0 = arith.constant 0 : i32
    %c0_i32_1 = arith.constant 0 : i32
    return %c0_i32, %c0_i32_0 : i32, i32
  }
  func.func @transform_2(%arg0: i32) -> (i32, i32) {
    %c0_i32 = arith.constant 0 : i32
    %c0_i32_0 = arith.constant 0 : i32
    %c0_i32_1 = arith.constant 0 : i32
    return %c0_i32, %c0_i32_0 : i32, i32
  }
  func.func @transform_3(%arg0: i32) -> (i32, i32, i32, i32) {
    %c0_i32 = arith.constant 0 : i32
    %c0_i32_0 = arith.constant 0 : i32
    %c0_i32_1 = arith.constant 0 : i32
    %c0_i32_2 = arith.constant 0 : i32
    %c0_i32_3 = arith.constant 0 : i32
    return %c0_i32, %c0_i32_0, %c0_i32_1, %c0_i32_2 : i32, i32, i32, i32
  }
  func.func @transform_4(%arg0: i32) -> (i32, i32) {
    %c0_i32 = arith.constant 0 : i32
    %c0_i32_0 = arith.constant 0 : i32
    return %arg0, %c0_i32 : i32, i32
  }
  func.func @transform_5(%arg0: i32) -> (i32, i32) {
    %c0_i32 = arith.constant 0 : i32
    %c0_i32_0 = arith.constant 0 : i32
    return %arg0, %c0_i32 : i32, i32
  }
}

module attributes {stable_mosaic.version = 11 : i64} {
  func.func @conv3_kernel(%arg0: i32, %arg1: memref<256x128xf32, #tpu.memory_space<vmem>>, %arg2: memref<1x128xf32, #tpu.memory_space<vmem>>, %arg3: memref<1x128xf32, #tpu.memory_space<vmem>>, %arg4: memref<128x128xbf16, #tpu.memory_space<vmem>>, %arg5: memref<256x128xf32, #tpu.memory_space<vmem>>, %arg6: memref<8x128xf32, #tpu.memory_space<vmem>>) attributes {dimension_semantics = [#tpu.dimension_semantics<parallel>], iteration_bounds = array<i64: 2>, scalar_prefetch = 0 : i64, scratch_operands = 0 : i64, tpu.core_type = #tpu.core_type<tc>, window_params = [{transform_indices = @transform_0, window_bounds = array<i64: 256, 128>}, {pipeline_mode = #tpu.pipeline_mode<synchronous>, transform_indices = @transform_1, window_bounds = array<i64: 1, 128>}, {pipeline_mode = #tpu.pipeline_mode<synchronous>, transform_indices = @transform_2, window_bounds = array<i64: 1, 128>}, {pipeline_mode = #tpu.pipeline_mode<synchronous>, transform_indices = @transform_3, window_bounds = array<i64: 128, 128>}, {transform_indices = @transform_4, window_bounds = array<i64: 256, 128>}, {transform_indices = @transform_5, window_bounds = array<i64: 8, 128>}]} {
    %c0 = arith.constant 0 : index
    %c0_0 = arith.constant 0 : index
    %0 = vector.load %arg1[%c0, %c0_0] : memref<256x128xf32, #tpu.memory_space<vmem>>, vector<256x128xf32>
    %c0_1 = arith.constant 0 : index
    %c0_2 = arith.constant 0 : index
    %1 = vector.load %arg2[%c0_1, %c0_2] : memref<1x128xf32, #tpu.memory_space<vmem>>, vector<1x128xf32>
    %2 = vector.broadcast %1 : vector<1x128xf32> to vector<256x128xf32>
    %3 = arith.mulf %0, %2 : vector<256x128xf32>
    %c0_3 = arith.constant 0 : index
    %c0_4 = arith.constant 0 : index
    %4 = vector.load %arg3[%c0_3, %c0_4] : memref<1x128xf32, #tpu.memory_space<vmem>>, vector<1x128xf32>
    %5 = vector.broadcast %4 : vector<1x128xf32> to vector<256x128xf32>
    %6 = arith.addf %3, %5 : vector<256x128xf32>
    %cst = arith.constant 0.000000e+00 : f32
    %7 = vector.broadcast %cst : f32 to vector<256x128xf32>
    %8 = arith.maximumf %6, %7 : vector<256x128xf32>
    %9 = arith.truncf %8 : vector<256x128xf32> to vector<256x128xbf16>
    %c0_5 = arith.constant 0 : index
    %c0_6 = arith.constant 0 : index
    %10 = vector.load %arg4[%c0_5, %c0_6] : memref<128x128xbf16, #tpu.memory_space<vmem>>, vector<128x128xbf16>
    %cst_7 = arith.constant dense<0.000000e+00> : vector<256x128xf32>
    %11 = tpu.matmul %9, %10, %cst_7 {dimension_numbers = #tpu.dot_dimension_numbers<[1], [0], [0], [1], [0, 0, 1, 1], [], []>} : vector<256x128xbf16>, vector<128x128xbf16>, vector<256x128xf32> -> vector<256x128xf32>
    %c0_8 = arith.constant 0 : index
    %c0_9 = arith.constant 0 : index
    %12 = vector.load %arg5[%c0_8, %c0_9] : memref<256x128xf32, #tpu.memory_space<vmem>>, vector<256x128xf32>
    tpu.vector_store %arg5[%c0_8, %c0_9], %11 {strides = array<i32>} : memref<256x128xf32, #tpu.memory_space<vmem>>, vector<256x128xf32>,
    %cst_10 = arith.constant dense<0.000000e+00> : vector<128xf32>
    %13 = vector.multi_reduction <add>, %11, %cst_10 [0] : vector<256x128xf32> to vector<128xf32>
    %14 = vector.shape_cast %13 : vector<128xf32> to vector<1x128xf32>
    %15 = arith.mulf %11, %11 : vector<256x128xf32>
    %cst_11 = arith.constant dense<0.000000e+00> : vector<128xf32>
    %16 = vector.multi_reduction <add>, %15, %cst_11 [0] : vector<256x128xf32> to vector<128xf32>
    %17 = vector.shape_cast %16 : vector<128xf32> to vector<1x128xf32>
    %cst_12 = arith.constant 0.000000e+00 : f32
    %18 = vector.broadcast %cst_12 : f32 to vector<6x128xf32>
    %19 = tpu.concatenate %14, %17, %18 in 0 : vector<1x128xf32>, vector<1x128xf32>, vector<6x128xf32> -> vector<8x128xf32>
    %c0_13 = arith.constant 0 : index
    %c0_14 = arith.constant 0 : index
    %20 = vector.load %arg6[%c0_13, %c0_14] : memref<8x128xf32, #tpu.memory_space<vmem>>, vector<8x128xf32>
    tpu.vector_store %arg6[%c0_13, %c0_14], %19 {strides = array<i32>} : memref<8x128xf32, #tpu.memory_space<vmem>>, vector<8x128xf32>,
    return
  }
  func.func @transform_0(%arg0: i32) -> (i32, i32) {
    %c0_i32 = arith.constant 0 : i32
    %c0_i32_0 = arith.constant 0 : i32
    return %arg0, %c0_i32 : i32, i32
  }
  func.func @transform_1(%arg0: i32) -> (i32, i32) {
    %c0_i32 = arith.constant 0 : i32
    %c0_i32_0 = arith.constant 0 : i32
    %c0_i32_1 = arith.constant 0 : i32
    return %c0_i32, %c0_i32_0 : i32, i32
  }
  func.func @transform_2(%arg0: i32) -> (i32, i32) {
    %c0_i32 = arith.constant 0 : i32
    %c0_i32_0 = arith.constant 0 : i32
    %c0_i32_1 = arith.constant 0 : i32
    return %c0_i32, %c0_i32_0 : i32, i32
  }
  func.func @transform_3(%arg0: i32) -> (i32, i32) {
    %c0_i32 = arith.constant 0 : i32
    %c0_i32_0 = arith.constant 0 : i32
    %c0_i32_1 = arith.constant 0 : i32
    return %c0_i32, %c0_i32_0 : i32, i32
  }
  func.func @transform_4(%arg0: i32) -> (i32, i32) {
    %c0_i32 = arith.constant 0 : i32
    %c0_i32_0 = arith.constant 0 : i32
    return %arg0, %c0_i32 : i32, i32
  }
  func.func @transform_5(%arg0: i32) -> (i32, i32) {
    %c0_i32 = arith.constant 0 : i32
    %c0_i32_0 = arith.constant 0 : i32
    return %arg0, %c0_i32 : i32, i32
  }
}

module attributes {stable_mosaic.version = 11 : i64} {
  func.func @epilogue_kernel(%arg0: i32, %arg1: memref<256x128xf32, #tpu.memory_space<vmem>>, %arg2: memref<256x128xf32, #tpu.memory_space<vmem>>, %arg3: memref<1x128xf32, #tpu.memory_space<vmem>>, %arg4: memref<1x128xf32, #tpu.memory_space<vmem>>, %arg5: memref<256x128xf32, #tpu.memory_space<vmem>>) attributes {dimension_semantics = [#tpu.dimension_semantics<parallel>], iteration_bounds = array<i64: 2>, scalar_prefetch = 0 : i64, scratch_operands = 0 : i64, tpu.core_type = #tpu.core_type<tc>, window_params = [{transform_indices = @transform_0, window_bounds = array<i64: 256, 128>}, {transform_indices = @transform_1, window_bounds = array<i64: 256, 128>}, {pipeline_mode = #tpu.pipeline_mode<synchronous>, transform_indices = @transform_2, window_bounds = array<i64: 1, 128>}, {pipeline_mode = #tpu.pipeline_mode<synchronous>, transform_indices = @transform_3, window_bounds = array<i64: 1, 128>}, {transform_indices = @transform_4, window_bounds = array<i64: 256, 128>}]} {
    %c0 = arith.constant 0 : index
    %c0_0 = arith.constant 0 : index
    %0 = vector.load %arg1[%c0, %c0_0] : memref<256x128xf32, #tpu.memory_space<vmem>>, vector<256x128xf32>
    %c0_1 = arith.constant 0 : index
    %c0_2 = arith.constant 0 : index
    %1 = vector.load %arg3[%c0_1, %c0_2] : memref<1x128xf32, #tpu.memory_space<vmem>>, vector<1x128xf32>
    %2 = vector.broadcast %1 : vector<1x128xf32> to vector<256x128xf32>
    %3 = arith.mulf %0, %2 : vector<256x128xf32>
    %c0_3 = arith.constant 0 : index
    %c0_4 = arith.constant 0 : index
    %4 = vector.load %arg4[%c0_3, %c0_4] : memref<1x128xf32, #tpu.memory_space<vmem>>, vector<1x128xf32>
    %5 = vector.broadcast %4 : vector<1x128xf32> to vector<256x128xf32>
    %6 = arith.addf %3, %5 : vector<256x128xf32>
    %c0_5 = arith.constant 0 : index
    %c0_6 = arith.constant 0 : index
    %7 = vector.load %arg2[%c0_5, %c0_6] : memref<256x128xf32, #tpu.memory_space<vmem>>, vector<256x128xf32>
    %8 = arith.addf %6, %7 : vector<256x128xf32>
    %cst = arith.constant 0.000000e+00 : f32
    %9 = vector.broadcast %cst : f32 to vector<256x128xf32>
    %10 = arith.maximumf %8, %9 : vector<256x128xf32>
    %c0_7 = arith.constant 0 : index
    %c0_8 = arith.constant 0 : index
    %11 = vector.load %arg5[%c0_7, %c0_8] : memref<256x128xf32, #tpu.memory_space<vmem>>, vector<256x128xf32>
    tpu.vector_store %arg5[%c0_7, %c0_8], %10 {strides = array<i32>} : memref<256x128xf32, #tpu.memory_space<vmem>>, vector<256x128xf32>,
    return
  }
  func.func @transform_0(%arg0: i32) -> (i32, i32) {
    %c0_i32 = arith.constant 0 : i32
    %c0_i32_0 = arith.constant 0 : i32
    return %arg0, %c0_i32 : i32, i32
  }
  func.func @transform_1(%arg0: i32) -> (i32, i32) {
    %c0_i32 = arith.constant 0 : i32
    %c0_i32_0 = arith.constant 0 : i32
    return %arg0, %c0_i32 : i32, i32
  }
  func.func @transform_2(%arg0: i32) -> (i32, i32) {
    %c0_i32 = arith.constant 0 : i32
    %c0_i32_0 = arith.constant 0 : i32
    %c0_i32_1 = arith.constant 0 : i32
    return %c0_i32, %c0_i32_0 : i32, i32
  }
  func.func @transform_3(%arg0: i32) -> (i32, i32) {
    %c0_i32 = arith.constant 0 : i32
    %c0_i32_0 = arith.constant 0 : i32
    %c0_i32_1 = arith.constant 0 : i32
    return %c0_i32, %c0_i32_0 : i32, i32
  }
  func.func @transform_4(%arg0: i32) -> (i32, i32) {
    %c0_i32 = arith.constant 0 : i32
    %c0_i32_0 = arith.constant 0 : i32
    return %arg0, %c0_i32 : i32, i32
  }
}

</mosaic_0001>

<llo_original>
// kernel: bottleneck_pallas.7
$region0: #{bottleneck_pallas.7}
  #allocation0 [shape = 'u32[]', space=smem, size = 0x4, offset = 0x4, fixed_abs, tag = 'smem constant byte address 0x4 - core index']
  #allocation1 [shape = 'u32[144,128]{1,0:T(1,128)}', space=vmem, size = 0x12000, scoped, tag = 'internal scratch']
  %s0 = inlined_call_operand.vmem [shape: f32[512,128], index: 0, kind: input, shape index: {}]
  %s1 = inlined_call_operand.vmem [shape: f32[512,128], index: 1, kind: input, shape index: {}]
  %s2 = inlined_call_operand.vmem [shape: f32[1,128], index: 2, kind: input, shape index: {}]
  %s3 = inlined_call_operand.vmem [shape: f32[1,128], index: 3, kind: input, shape index: {}]
  %s4 = inlined_call_operand.vmem [shape: f32[512,128], index: 4, kind: output, shape index: {}]
  %s5 = sld [smem:[#allocation0]]
  $region49: #{bottleneck_pallas.7} parent=0
    _
  %s7 = ssub.s32 1, %s5
  %s8 = scalar_select 0, %s7, %s5
  loop: start=0, step=1, limit=4
  $region2: #{bottleneck_pallas.7} parent=0 // loop_pre_header
    _
  $region3: #{bottleneck_pallas.7} parent=0 // loop_header
    %s10 = sphi 0, %s14
    %p11 = scmp.ge.s32.totalorder %s10, 4
    %s20 = sphi 0, %s22
    %s23 = sphi 0, %s20
    %s24 = sphi 0, %s23
    %s40 = sphi 0, %s24
    %s46 = sphi 0, %s48
    %s49 = sphi 0, %s46
    %s50 = sphi 0, %s49
    %s66 = sphi 0, %s50
    %s70 = sphi 0, %s70
    %s72 = sphi 0, %s70
    %s73 = sphi 0, %s72
    %s87 = sphi 0, %s73
    %s91 = sphi 0, %s91
    %s93 = sphi 0, %s91
    %s94 = sphi 0, %s93
    %s108 = sphi 0, %s94
    %s114 = sphi 0, %s116
    %s117 = sphi 0, %s114
    %s118 = sphi 0, %s117
    %s134 = sphi 0, %s118
  $region4: #{bottleneck_pallas.7} parent=0 // loop_header_branch
    %13 = sbr.rel (%p11) target = $region8
  $region5: #{bottleneck_pallas.7} parent=0 // loop_body
    %s15 = ssub.s32 %s10, 1
    %s16 = ssub.s32 %s10, 2
    %s17 = sadd.s32 %s10, 1
    %s18 = ssub.s32 %s10, %s17
    %p19 = scmp.eq.s32.totalorder %s18, 0
    %s21 = sadd.s32 %s20, 1
    %s22 = scalar_select %p19, %s20, %s21
    %p25 = pneg %p19
    %p26 = scmp.eq.s32.totalorder %s10, 1
    %p27 = por %p25, %p26
    %p28 = scmp.ne.s32.totalorder %s20, %s23
    %p29 = scmp.eq.s32.totalorder %s10, 0
    %p30 = por %p28, %p29
    %p31 = scmp.ne.s32.totalorder %s20, %s23
    %p32 = scmp.eq.s32.totalorder %s15, 1
    %p33 = por %p31, %p32
    %p34 = scmp.ne.s32.totalorder %s23, %s24
    %p35 = scmp.eq.s32.totalorder %s15, 0
    %p36 = por %p34, %p35
    %p37 = scmp.ne.s32.totalorder %s23, %s24
    %p38 = scmp.eq.s32.totalorder %s16, 1
    %p39 = por %p37, %p38
    %p41 = scmp.ne.s32.totalorder %s24, %s40
    %p42 = scmp.eq.s32.totalorder %s16, 0
    %p43 = por %p41, %p42
    %s44 = ssub.s32 %s10, %s17
    %p45 = scmp.eq.s32.totalorder %s44, 0
    %s47 = sadd.s32 %s46, 1
    %s48 = scalar_select %p45, %s46, %s47
    %p51 = pneg %p45
    %p52 = scmp.eq.s32.totalorder %s10, 1
    %p53 = por %p51, %p52
    %p54 = scmp.ne.s32.totalorder %s46, %s49
    %p55 = scmp.eq.s32.totalorder %s10, 0
    %p56 = por %p54, %p55
    %p57 = scmp.ne.s32.totalorder %s46, %s49
    %p58 = scmp.eq.s32.totalorder %s15, 1
    %p59 = por %p57, %p58
    %p60 = scmp.ne.s32.totalorder %s49, %s50
    %p61 = scmp.eq.s32.totalorder %s15, 0
    %p62 = por %p60, %p61
    %p63 = scmp.ne.s32.totalorder %s49, %s50
    %p64 = scmp.eq.s32.totalorder %s16, 1
    %p65 = por %p63, %p64
    %p67 = scmp.ne.s32.totalorder %s50, %s66
    %p68 = scmp.eq.s32.totalorder %s16, 0
    %p69 = por %p67, %p68
    %s71 = sadd.s32 %s70, 1
    %p74 = scmp.eq.s32.totalorder %s10, 1
    %p75 = scmp.ne.s32.totalorder %s70, %s72
    %p76 = scmp.eq.s32.totalorder %s10, 0
    %p77 = por %p75, %p76
    %p78 = scmp.ne.s32.totalorder %s70, %s72
    %p79 = scmp.eq.s32.totalorder %s15, 1
    %p80 = por %p78, %p79
    %p81 = scmp.ne.s32.totalorder %s72, %s73
    %p82 = scmp.eq.s32.totalorder %s15, 0
    %p83 = por %p81, %p82
    %p84 = scmp.ne.s32.totalorder %s72, %s73
    %p85 = scmp.eq.s32.totalorder %s16, 1
    %p86 = por %p84, %p85
    %p88 = scmp.ne.s32.totalorder %s73, %s87
    %p89 = scmp.eq.s32.totalorder %s16, 0
    %p90 = por %p88, %p89
    %s92 = sadd.s32 %s91, 1
    %p95 = scmp.eq.s32.totalorder %s10, 1
    %p96 = scmp.ne.s32.totalorder %s91, %s93
    %p97 = scmp.eq.s32.totalorder %s10, 0
    %p98 = por %p96, %p97
    %p99 = scmp.ne.s32.totalorder %s91, %s93
    %p100 = scmp.eq.s32.totalorder %s15, 1
    %p101 = por %p99, %p100
    %p102 = scmp.ne.s32.totalorder %s93, %s94
    %p103 = scmp.eq.s32.totalorder %s15, 0
    %p104 = por %p102, %p103
    %p105 = scmp.ne.s32.totalorder %s93, %s94
    %p106 = scmp.eq.s32.totalorder %s16, 1
    %p107 = por %p105, %p106
    %p109 = scmp.ne.s32.totalorder %s94, %s108
    %p110 = scmp.eq.s32.totalorder %s16, 0
    %p111 = por %p109, %p110
    %s112 = ssub.s32 %s10, %s17
    %p113 = scmp.eq.s32.totalorder %s112, 0
    %s115 = sadd.s32 %s114, 1
    %s116 = scalar_select %p113, %s114, %s115
    %p119 = pneg %p113
    %p120 = scmp.eq.s32.totalorder %s10, 1
    %p121 = por %p119, %p120
    %p122 = scmp.ne.s32.totalorder %s114, %s117
    %p123 = scmp.eq.s32.totalorder %s10, 0
    %p124 = por %p122, %p123
    %p125 = scmp.ne.s32.totalorder %s114, %s117
    %p126 = scmp.eq.s32.totalorder %s15, 1
    %p127 = por %p125, %p126
    %p128 = scmp.ne.s32.totalorder %s117, %s118
    %p129 = scmp.eq.s32.totalorder %s15, 0
    %p130 = por %p128, %p129
    %p131 = scmp.ne.s32.totalorder %s117, %s118
    %p132 = scmp.eq.s32.totalorder %s16, 1
    %p133 = por %p131, %p132
    %p135 = scmp.ne.s32.totalorder %s118, %s134
    %p136 = scmp.eq.s32.totalorder %s16, 0
    %p137 = por %p135, %p136
    %p138 = scmp.le.s32.totalorder 1, %s10
    %p139 = scmp.lt.s32.totalorder %s10, 3
    %p140 = pnand %p138, %p139
    %p141 = pneg %p140
    // Predicated region
    $region9: #{bottleneck_pallas.7} parent=5 // pred_check
      _
    $region10: #{bottleneck_pallas.7} parent=5 // pred_check_branch
      %143 = sbr.rel (%p140) target = $region12
    $region11: #{bottleneck_pallas.7} parent=5 // pred_region
      %s144 = ssub.s32 %s10, 1
      // Predicated region
      $region13: #{bottleneck_pallas.7} parent=11 // pred_check
        %p145 = pneg %p83
      $region14: #{bottleneck_pallas.7} parent=11 // pred_check_branch
        %147 = sbr.rel (%p145) target = $region16
      $region15: #{bottleneck_pallas.7} parent=11 // pred_region
        _
      $region16: #{bottleneck_pallas.7} parent=11 // pred_fallthru
        _
      // Predicated region
      $region17: #{bottleneck_pallas.7} parent=11 // pred_check
        %p148 = pneg %p104
      $region18: #{bottleneck_pallas.7} parent=11 // pred_check_branch
        %150 = sbr.rel (%p148) target = $region20
      $region19: #{bottleneck_pallas.7} parent=11 // pred_region
        _
      $region20: #{bottleneck_pallas.7} parent=11 // pred_fallthru
        _
    $region12: #{bottleneck_pallas.7} parent=5 // pred_fallthru
      _
    %p151 = scmp.lt.s32.totalorder %s10, 2
    // Predicated region
    $region21: #{bottleneck_pallas.7} parent=5 // pred_check
      %p152 = pneg %p151
    $region22: #{bottleneck_pallas.7} parent=5 // pred_check_branch
      %154 = sbr.rel (%p152) target = $region24
    $region23: #{bottleneck_pallas.7} parent=5 // pred_region
      // Predicated region
      $region25: #{bottleneck_pallas.7} parent=23 // pred_check
        %p155 = pneg %p30
      $region26: #{bottleneck_pallas.7} parent=23 // pred_check_branch
        %157 = sbr.rel (%p155) target = $region28
      $region27: #{bottleneck_pallas.7} parent=23 // pred_region
        %s158 = smul.u32 32, %s10
        %p159 = scmp.lt.s32.totalorder %s158, 63
        %s160 = scalar_select %p159, %s158, 63
        %s161 = smul.addr %s160, 8
        %s162 = scalar_lea.vmem %s0, %s161
        %s163 = smul.u32 32, %s10
      $region28: #{bottleneck_pallas.7} parent=23 // pred_fallthru
        _
      // Predicated region
      $region29: #{bottleneck_pallas.7} parent=23 // pred_check
        %p164 = pneg %p56
      $region30: #{bottleneck_pallas.7} parent=23 // pred_check_branch
        %166 = sbr.rel (%p164) target = $region32
      $region31: #{bottleneck_pallas.7} parent=23 // pred_region
        %s167 = smul.u32 32, %s10
        %p168 = scmp.lt.s32.totalorder %s167, 63
        %s169 = scalar_select %p168, %s167, 63
        %s170 = smul.addr %s169, 8
        %s171 = scalar_lea.vmem %s1, %s170
        %s172 = smul.u32 32, %s10
      $region32: #{bottleneck_pallas.7} parent=23 // pred_fallthru
        _
    $region24: #{bottleneck_pallas.7} parent=5 // pred_fallthru
      _
    %p173 = scmp.le.s32.totalorder 1, %s10
    %p174 = scmp.lt.s32.totalorder %s10, 3
    %p175 = pnand %p173, %p174
    %p176 = pneg %p175
    // Predicated region
    $region33: #{bottleneck_pallas.7} parent=5 // pred_check
      _
    $region34: #{bottleneck_pallas.7} parent=5 // pred_check_branch
      %178 = sbr.rel (%p175) target = $region36
    $region35: #{bottleneck_pallas.7} parent=5 // pred_region
      %s179 = ssub.s32 %s10, 1
      %s180 = smul.u32 32, %s15
      %p181 = scmp.lt.s32.totalorder %s180, 63
      %s182 = scalar_select %p181, %s180, 63
      %s183 = smul.addr %s182, 8
      %s184 = scalar_lea.vmem %s0, %s183
      %p185 = pneg %p36
      %p186 = pneg %p33
      %s187 = smul.u32 32, %s15
      %p188 = scmp.lt.s32.totalorder %s187, 63
      %s189 = scalar_select %p188, %s187, 63
      %s190 = smul.addr %s189, 8
      %s191 = scalar_lea.vmem %s1, %s190
      %p192 = pneg %p62
      %p193 = pneg %p59
      %p194 = pneg %p83
      %p195 = pneg %p80
      %p196 = pneg %p104
      %p197 = pneg %p101
      %p198 = pneg %p130
      %p199 = pneg %p127
      %s200 = smul.u32 32, %s15
      %p201 = scmp.lt.s32.totalorder %s200, 63
      %s202 = scalar_select %p201, %s200, 63
      %s203 = smul.addr %s202, 8
      %s204 = scalar_lea.vmem %s4, %s203
      %s205 = smul.u32 32, %s15
      %p206 = scmp.lt.s32.totalorder %s205, 63
      %s207 = scalar_select %p206, %s205, 63
      %s208 = smul.addr %s207, 8
      %s209 = scalar_lea.vmem %s0, %s208
      %s210 = smul.u32 32, %s15
      %s211 = smul.u32 32, %s15
      %p212 = scmp.lt.s32.totalorder %s211, 63
      %s213 = scalar_select %p212, %s211, 63
      %s214 = smul.addr %s213, 8
      %s215 = scalar_lea.vmem %s1, %s214
      %s216 = smul.u32 32, %s15
      %s217 = smul.u32 32, %s15
      %p218 = scmp.lt.s32.totalorder %s217, 63
      %s219 = scalar_select %p218, %s217, 63
      %s220 = smul.addr %s219, 8
      %s221 = scalar_lea.vmem %s4, %s220
      %s222 = smul.u32 32, %s15
      %v223 = vld [vmem:[%s209] sm:$0xff]
      %v224 = vld [vmem:[%s209 + $0x8] sm:$0xff]
      %v225 = vld [vmem:[%s209 + $0x10] sm:$0xff]
      %v226 = vld [vmem:[%s209 + $0x18] sm:$0xff]
      %v227 = vld [vmem:[%s209 + $0x20] sm:$0xff]
      %v228 = vld [vmem:[%s209 + $0x28] sm:$0xff]
      %v229 = vld [vmem:[%s209 + $0x30] sm:$0xff]
      %v230 = vld [vmem:[%s209 + $0x38] sm:$0xff]
      %v231 = vld [vmem:[%s209 + $0x40] sm:$0xff]
      %v232 = vld [vmem:[%s209 + $0x48] sm:$0xff]
      %v233 = vld [vmem:[%s209 + $0x50] sm:$0xff]
      %v234 = vld [vmem:[%s209 + $0x58] sm:$0xff]
      %v235 = vld [vmem:[%s209 + $0x60] sm:$0xff]
      %v236 = vld [vmem:[%s209 + $0x68] sm:$0xff]
      %v237 = vld [vmem:[%s209 + $0x70] sm:$0xff]
      %v238 = vld [vmem:[%s209 + $0x78] sm:$0xff]
      %v239 = vld [vmem:[%s209 + $0x80] sm:$0xff]
      %v240 = vld [vmem:[%s209 + $0x88] sm:$0xff]
      %v241 = vld [vmem:[%s209 + $0x90] sm:$0xff]
      %v242 = vld [vmem:[%s209 + $0x98] sm:$0xff]
      %v243 = vld [vmem:[%s209 + $0xa0] sm:$0xff]
      %v244 = vld [vmem:[%s209 + $0xa8] sm:$0xff]
      %v245 = vld [vmem:[%s209 + $0xb0] sm:$0xff]
      %v246 = vld [vmem:[%s209 + $0xb8] sm:$0xff]
      %v247 = vld [vmem:[%s209 + $0xc0] sm:$0xff]
      %v248 = vld [vmem:[%s209 + $0xc8] sm:$0xff]
      %v249 = vld [vmem:[%s209 + $0xd0] sm:$0xff]
      %v250 = vld [vmem:[%s209 + $0xd8] sm:$0xff]
      %v251 = vld [vmem:[%s209 + $0xe0] sm:$0xff]
      %v252 = vld [vmem:[%s209 + $0xe8] sm:$0xff]
      %v253 = vld [vmem:[%s209 + $0xf0] sm:$0xff]
      %v254 = vld [vmem:[%s209 + $0xf8] sm:$0xff]
      %v255 = vld [vmem:[%s2] sm:$0x1]
      %v257 = vlaneseq
      %v258 = vshrl.u32 %v257, 7
      %v259 = vsub.s32 0, %v258
      %v260 = vrot.slane %v255, %v259
      %v262 = vmul.f32 %v223, %v260
      %v263 = vmul.f32 %v224, %v260
      %v264 = vmul.f32 %v225, %v260
      %v265 = vmul.f32 %v226, %v260
      %v266 = vmul.f32 %v227, %v260
      %v267 = vmul.f32 %v228, %v260
      %v268 = vmul.f32 %v229, %v260
      %v269 = vmul.f32 %v230, %v260
      %v270 = vmul.f32 %v231, %v260
      %v271 = vmul.f32 %v232, %v260
      %v272 = vmul.f32 %v233, %v260
      %v273 = vmul.f32 %v234, %v260
      %v274 = vmul.f32 %v235, %v260
      %v275 = vmul.f32 %v236, %v260
      %v276 = vmul.f32 %v237, %v260
      %v277 = vmul.f32 %v238, %v260
      %v278 = vmul.f32 %v239, %v260
      %v279 = vmul.f32 %v240, %v260
      %v280 = vmul.f32 %v241, %v260
      %v281 = vmul.f32 %v242, %v260
      %v282 = vmul.f32 %v243, %v260
      %v283 = vmul.f32 %v244, %v260
      %v284 = vmul.f32 %v245, %v260
      %v285 = vmul.f32 %v246, %v260
      %v286 = vmul.f32 %v247, %v260
      %v287 = vmul.f32 %v248, %v260
      %v288 = vmul.f32 %v249, %v260
      %v289 = vmul.f32 %v250, %v260
      %v290 = vmul.f32 %v251, %v260
      %v291 = vmul.f32 %v252, %v260
      %v292 = vmul.f32 %v253, %v260
      %v293 = vmul.f32 %v254, %v260
      %v294 = vld [vmem:[%s3] sm:$0x1]
      %v296 = vlaneseq
      %v297 = vshrl.u32 %v296, 7
      %v298 = vsub.s32 0, %v297
      %v299 = vrot.slane %v294, %v298
      %v301 = vadd.f32 %v262, %v299
      %v302 = vadd.f32 %v263, %v299
      %v303 = vadd.f32 %v264, %v299
      %v304 = vadd.f32 %v265, %v299
      %v305 = vadd.f32 %v266, %v299
      %v306 = vadd.f32 %v267, %v299
      %v307 = vadd.f32 %v268, %v299
      %v308 = vadd.f32 %v269, %v299
      %v309 = vadd.f32 %v270, %v299
      %v310 = vadd.f32 %v271, %v299
      %v311 = vadd.f32 %v272, %v299
      %v312 = vadd.f32 %v273, %v299
      %v313 = vadd.f32 %v274, %v299
      %v314 = vadd.f32 %v275, %v299
      %v315 = vadd.f32 %v276, %v299
      %v316 = vadd.f32 %v277, %v299
      %v317 = vadd.f32 %v278, %v299
      %v318 = vadd.f32 %v279, %v299
      %v319 = vadd.f32 %v280, %v299
      %v320 = vadd.f32 %v281, %v299
      %v321 = vadd.f32 %v282, %v299
      %v322 = vadd.f32 %v283, %v299
      %v323 = vadd.f32 %v284, %v299
      %v324 = vadd.f32 %v285, %v299
      %v325 = vadd.f32 %v286, %v299
      %v326 = vadd.f32 %v287, %v299
      %v327 = vadd.f32 %v288, %v299
      %v328 = vadd.f32 %v289, %v299
      %v329 = vadd.f32 %v290, %v299
      %v330 = vadd.f32 %v291, %v299
      %v331 = vadd.f32 %v292, %v299
      %v332 = vadd.f32 %v293, %v299
      %v333 = vld [vmem:[%s215] sm:$0xff]
      %v334 = vld [vmem:[%s215 + $0x8] sm:$0xff]
      %v335 = vld [vmem:[%s215 + $0x10] sm:$0xff]
      %v336 = vld [vmem:[%s215 + $0x18] sm:$0xff]
      %v337 = vld [vmem:[%s215 + $0x20] sm:$0xff]
      %v338 = vld [vmem:[%s215 + $0x28] sm:$0xff]
      %v339 = vld [vmem:[%s215 + $0x30] sm:$0xff]
      %v340 = vld [vmem:[%s215 + $0x38] sm:$0xff]
      %v341 = vld [vmem:[%s215 + $0x40] sm:$0xff]
      %v342 = vld [vmem:[%s215 + $0x48] sm:$0xff]
      %v343 = vld [vmem:[%s215 + $0x50] sm:$0xff]
      %v344 = vld [vmem:[%s215 + $0x58] sm:$0xff]
      %v345 = vld [vmem:[%s215 + $0x60] sm:$0xff]
      %v346 = vld [vmem:[%s215 + $0x68] sm:$0xff]
      %v347 = vld [vmem:[%s215 + $0x70] sm:$0xff]
      %v348 = vld [vmem:[%s215 + $0x78] sm:$0xff]
      %v349 = vld [vmem:[%s215 + $0x80] sm:$0xff]
      %v350 = vld [vmem:[%s215 + $0x88] sm:$0xff]
      %v351 = vld [vmem:[%s215 + $0x90] sm:$0xff]
      %v352 = vld [vmem:[%s215 + $0x98] sm:$0xff]
      %v353 = vld [vmem:[%s215 + $0xa0] sm:$0xff]
      %v354 = vld [vmem:[%s215 + $0xa8] sm:$0xff]
      %v355 = vld [vmem:[%s215 + $0xb0] sm:$0xff]
      %v356 = vld [vmem:[%s215 + $0xb8] sm:$0xff]
      %v357 = vld [vmem:[%s215 + $0xc0] sm:$0xff]
      %v358 = vld [vmem:[%s215 + $0xc8] sm:$0xff]
      %v359 = vld [vmem:[%s215 + $0xd0] sm:$0xff]
      %v360 = vld [vmem:[%s215 + $0xd8] sm:$0xff]
      %v361 = vld [vmem:[%s215 + $0xe0] sm:$0xff]
      %v362 = vld [vmem:[%s215 + $0xe8] sm:$0xff]
      %v363 = vld [vmem:[%s215 + $0xf0] sm:$0xff]
      %v364 = vld [vmem:[%s215 + $0xf8] sm:$0xff]
      %v365 = vadd.f32 %v301, %v333
      %v366 = vadd.f32 %v302, %v334
      %v367 = vadd.f32 %v303, %v335
      %v368 = vadd.f32 %v304, %v336
      %v369 = vadd.f32 %v305, %v337
      %v370 = vadd.f32 %v306, %v338
      %v371 = vadd.f32 %v307, %v339
      %v372 = vadd.f32 %v308, %v340
      %v373 = vadd.f32 %v309, %v341
      %v374 = vadd.f32 %v310, %v342
      %v375 = vadd.f32 %v311, %v343
      %v376 = vadd.f32 %v312, %v344
      %v377 = vadd.f32 %v313, %v345
      %v378 = vadd.f32 %v314, %v346
      %v379 = vadd.f32 %v315, %v347
      %v380 = vadd.f32 %v316, %v348
      %v381 = vadd.f32 %v317, %v349
      %v382 = vadd.f32 %v318, %v350
      %v383 = vadd.f32 %v319, %v351
      %v384 = vadd.f32 %v320, %v352
      %v385 = vadd.f32 %v321, %v353
      %v386 = vadd.f32 %v322, %v354
      %v387 = vadd.f32 %v323, %v355
      %v388 = vadd.f32 %v324, %v356
      %v389 = vadd.f32 %v325, %v357
      %v390 = vadd.f32 %v326, %v358
      %v391 = vadd.f32 %v327, %v359
      %v392 = vadd.f32 %v328, %v360
      %v393 = vadd.f32 %v329, %v361
      %v394 = vadd.f32 %v330, %v362
      %v395 = vadd.f32 %v331, %v363
      %v396 = vadd.f32 %v332, %v364
      %v397 = vmax.f32 %v365, 0.0
      %v398 = vmax.f32 %v366, 0.0
      %v399 = vmax.f32 %v367, 0.0
      %v400 = vmax.f32 %v368, 0.0
      %v401 = vmax.f32 %v369, 0.0
      %v402 = vmax.f32 %v370, 0.0
      %v403 = vmax.f32 %v371, 0.0
      %v404 = vmax.f32 %v372, 0.0
      %v405 = vmax.f32 %v373, 0.0
      %v406 = vmax.f32 %v374, 0.0
      %v407 = vmax.f32 %v375, 0.0
      %v408 = vmax.f32 %v376, 0.0
      %v409 = vmax.f32 %v377, 0.0
      %v410 = vmax.f32 %v378, 0.0
      %v411 = vmax.f32 %v379, 0.0
      %v412 = vmax.f32 %v380, 0.0
      %v413 = vmax.f32 %v381, 0.0
      %v414 = vmax.f32 %v382, 0.0
      %v415 = vmax.f32 %v383, 0.0
      %v416 = vmax.f32 %v384, 0.0
      %v417 = vmax.f32 %v385, 0.0
      %v418 = vmax.f32 %v386, 0.0
      %v419 = vmax.f32 %v387, 0.0
      %v420 = vmax.f32 %v388, 0.0
      %v421 = vmax.f32 %v389, 0.0
      %v422 = vmax.f32 %v390, 0.0
      %v423 = vmax.f32 %v391, 0.0
      %v424 = vmax.f32 %v392, 0.0
      %v425 = vmax.f32 %v393, 0.0
      %v426 = vmax.f32 %v394, 0.0
      %v427 = vmax.f32 %v395, 0.0
      %v428 = vmax.f32 %v396, 0.0
      %429 = vst [vmem:[%s221] sm:$0xff] %v397
      %430 = vst [vmem:[%s221 + $0x8] sm:$0xff] %v398
      %431 = vst [vmem:[%s221 + $0x10] sm:$0xff] %v399
      %432 = vst [vmem:[%s221 + $0x18] sm:$0xff] %v400
      %433 = vst [vmem:[%s221 + $0x20] sm:$0xff] %v401
      %434 = vst [vmem:[%s221 + $0x28] sm:$0xff] %v402
      %435 = vst [vmem:[%s221 + $0x30] sm:$0xff] %v403
      %436 = vst [vmem:[%s221 + $0x38] sm:$0xff] %v404
      %437 = vst [vmem:[%s221 + $0x40] sm:$0xff] %v405
      %438 = vst [vmem:[%s221 + $0x48] sm:$0xff] %v406
      %439 = vst [vmem:[%s221 + $0x50] sm:$0xff] %v407
      %440 = vst [vmem:[%s221 + $0x58] sm:$0xff] %v408
      %441 = vst [vmem:[%s221 + $0x60] sm:$0xff] %v409
      %442 = vst [vmem:[%s221 + $0x68] sm:$0xff] %v410
      %443 = vst [vmem:[%s221 + $0x70] sm:$0xff] %v411
      %444 = vst [vmem:[%s221 + $0x78] sm:$0xff] %v412
      %445 = vst [vmem:[%s221 + $0x80] sm:$0xff] %v413
      %446 = vst [vmem:[%s221 + $0x88] sm:$0xff] %v414
      %447 = vst [vmem:[%s221 + $0x90] sm:$0xff] %v415
      %448 = vst [vmem:[%s221 + $0x98] sm:$0xff] %v416
      %449 = vst [vmem:[%s221 + $0xa0] sm:$0xff] %v417
      %450 = vst [vmem:[%s221 + $0xa8] sm:$0xff] %v418
      %451 = vst [vmem:[%s221 + $0xb0] sm:$0xff] %v419
      %452 = vst [vmem:[%s221 + $0xb8] sm:$0xff] %v420
      %453 = vst [vmem:[%s221 + $0xc0] sm:$0xff] %v421
      %454 = vst [vmem:[%s221 + $0xc8] sm:$0xff] %v422
      %455 = vst [vmem:[%s221 + $0xd0] sm:$0xff] %v423
      %456 = vst [vmem:[%s221 + $0xd8] sm:$0xff] %v424
      %457 = vst [vmem:[%s221 + $0xe0] sm:$0xff] %v425
      %458 = vst [vmem:[%s221 + $0xe8] sm:$0xff] %v426
      %459 = vst [vmem:[%s221 + $0xf0] sm:$0xff] %v427
      %460 = vst [vmem:[%s221 + $0xf8] sm:$0xff] %v428
      %s461 = smul.u32 32, %s15
      %p462 = scmp.lt.s32.totalorder %s461, 63
      %s463 = scalar_select %p462, %s461, 63
      %s464 = smul.addr %s463, 8
      %s465 = scalar_lea.vmem %s4, %s464
      // Predicated region
      $region37: #{bottleneck_pallas.7} parent=35 // pred_check
        %p466 = pneg %p127
      $region38: #{bottleneck_pallas.7} parent=35 // pred_check_branch
        %468 = sbr.rel (%p466) target = $region40
      $region39: #{bottleneck_pallas.7} parent=35 // pred_region
        %s469 = smul.u32 32, %s15
      $region40: #{bottleneck_pallas.7} parent=35 // pred_fallthru
        _
    $region36: #{bottleneck_pallas.7} parent=5 // pred_fallthru
      _
    %p470 = scmp.le.s32.totalorder 2, %s10
    // Predicated region
    $region41: #{bottleneck_pallas.7} parent=5 // pred_check
      %p471 = pneg %p470
    $region42: #{bottleneck_pallas.7} parent=5 // pred_check_branch
      %473 = sbr.rel (%p471) target = $region44
    $region43: #{bottleneck_pallas.7} parent=5 // pred_region
      %s474 = ssub.s32 %s10, 2
      // Predicated region
      $region45: #{bottleneck_pallas.7} parent=43 // pred_check
        %p475 = pneg %p133
      $region46: #{bottleneck_pallas.7} parent=43 // pred_check_branch
        %477 = sbr.rel (%p475) target = $region48
      $region47: #{bottleneck_pallas.7} parent=43 // pred_region
        %s478 = smul.u32 32, %s16
        %p479 = scmp.lt.s32.totalorder %s478, 63
        %s480 = scalar_select %p479, %s478, 63
        %s481 = smul.addr %s480, 8
        %s482 = scalar_lea.vmem %s4, %s481
      $region48: #{bottleneck_pallas.7} parent=43 // pred_fallthru
        _
    $region44: #{bottleneck_pallas.7} parent=5 // pred_fallthru
      _
  $region6: #{bottleneck_pallas.7} parent=0 // loop_footer
    %s14 = sadd.s32 1, %s10
  $region7: #{bottleneck_pallas.7} parent=0 // loop_footer_branch
    %9 = sbr.rel target = $region3
  $region8: #{bottleneck_pallas.7} parent=0 // loop_exit
    _

// kernel: bottleneck_pallas.4
$region0: #{bottleneck_pallas.4}
  #allocation0 [shape = 'u32[]', space=smem, size = 0x4, offset = 0x4, fixed_abs, tag = 'smem constant byte address 0x4 - core index']
  #allocation1 [shape = 'u32[144,128]{1,0:T(1,128)}', space=vmem, size = 0x12000, scoped, tag = 'internal scratch']
  %s0 = inlined_call_operand.vmem [shape: f32[512,128], index: 0, kind: input, shape index: {}]
  %s1 = inlined_call_operand.vmem [shape: bf16[128,128], index: 1, kind: input, shape index: {}]
  %s2 = inlined_call_operand.vmem [shape: f32[512,128], index: 2, kind: output, shape index: {0}]
  %s3 = inlined_call_operand.vmem [shape: f32[16,128], index: 3, kind: output, shape index: {1}]
  %4 = xla_tuple %s2, %s3
  %s5 = sld [smem:[#allocation0]]
  $region49: #{bottleneck_pallas.4} parent=0
    _
  %s7 = ssub.s32 1, %s5
  %s8 = scalar_select 0, %s7, %s5
  loop: start=0, step=1, limit=4
  $region2: #{bottleneck_pallas.4} parent=0 // loop_pre_header
    _
  $region3: #{bottleneck_pallas.4} parent=0 // loop_header
    %s10 = sphi 0, %s14
    %p11 = scmp.ge.s32.totalorder %s10, 4
    %s20 = sphi 0, %s22
    %s23 = sphi 0, %s20
    %s24 = sphi 0, %s23
    %s40 = sphi 0, %s24
    %s44 = sphi 0, %s44
    %s46 = sphi 0, %s44
    %s47 = sphi 0, %s46
    %s61 = sphi 0, %s47
    %s67 = sphi 0, %s69
    %s70 = sphi 0, %s67
    %s71 = sphi 0, %s70
    %s87 = sphi 0, %s71
    %s93 = sphi 0, %s95
    %s96 = sphi 0, %s93
    %s97 = sphi 0, %s96
    %s113 = sphi 0, %s97
  $region4: #{bottleneck_pallas.4} parent=0 // loop_header_branch
    %13 = sbr.rel (%p11) target = $region8
  $region5: #{bottleneck_pallas.4} parent=0 // loop_body
    %s15 = ssub.s32 %s10, 1
    %s16 = ssub.s32 %s10, 2
    %s17 = sadd.s32 %s10, 1
    %s18 = ssub.s32 %s10, %s17
    %p19 = scmp.eq.s32.totalorder %s18, 0
    %s21 = sadd.s32 %s20, 1
    %s22 = scalar_select %p19, %s20, %s21
    %p25 = pneg %p19
    %p26 = scmp.eq.s32.totalorder %s10, 1
    %p27 = por %p25, %p26
    %p28 = scmp.ne.s32.totalorder %s20, %s23
    %p29 = scmp.eq.s32.totalorder %s10, 0
    %p30 = por %p28, %p29
    %p31 = scmp.ne.s32.totalorder %s20, %s23
    %p32 = scmp.eq.s32.totalorder %s15, 1
    %p33 = por %p31, %p32
    %p34 = scmp.ne.s32.totalorder %s23, %s24
    %p35 = scmp.eq.s32.totalorder %s15, 0
    %p36 = por %p34, %p35
    %p37 = scmp.ne.s32.totalorder %s23, %s24
    %p38 = scmp.eq.s32.totalorder %s16, 1
    %p39 = por %p37, %p38
    %p41 = scmp.ne.s32.totalorder %s24, %s40
    %p42 = scmp.eq.s32.totalorder %s16, 0
    %p43 = por %p41, %p42
    %s45 = sadd.s32 %s44, 1
    %p48 = scmp.eq.s32.totalorder %s10, 1
    %p49 = scmp.ne.s32.totalorder %s44, %s46
    %p50 = scmp.eq.s32.totalorder %s10, 0
    %p51 = por %p49, %p50
    %p52 = scmp.ne.s32.totalorder %s44, %s46
    %p53 = scmp.eq.s32.totalorder %s15, 1
    %p54 = por %p52, %p53
    %p55 = scmp.ne.s32.totalorder %s46, %s47
    %p56 = scmp.eq.s32.totalorder %s15, 0
    %p57 = por %p55, %p56
    %p58 = scmp.ne.s32.totalorder %s46, %s47
    %p59 = scmp.eq.s32.totalorder %s16, 1
    %p60 = por %p58, %p59
    %p62 = scmp.ne.s32.totalorder %s47, %s61
    %p63 = scmp.eq.s32.totalorder %s16, 0
    %p64 = por %p62, %p63
    %s65 = ssub.s32 %s10, %s17
    %p66 = scmp.eq.s32.totalorder %s65, 0
    %s68 = sadd.s32 %s67, 1
    %s69 = scalar_select %p66, %s67, %s68
    %p72 = pneg %p66
    %p73 = scmp.eq.s32.totalorder %s10, 1
    %p74 = por %p72, %p73
    %p75 = scmp.ne.s32.totalorder %s67, %s70
    %p76 = scmp.eq.s32.totalorder %s10, 0
    %p77 = por %p75, %p76
    %p78 = scmp.ne.s32.totalorder %s67, %s70
    %p79 = scmp.eq.s32.totalorder %s15, 1
    %p80 = por %p78, %p79
    %p81 = scmp.ne.s32.totalorder %s70, %s71
    %p82 = scmp.eq.s32.totalorder %s15, 0
    %p83 = por %p81, %p82
    %p84 = scmp.ne.s32.totalorder %s70, %s71
    %p85 = scmp.eq.s32.totalorder %s16, 1
    %p86 = por %p84, %p85
    %p88 = scmp.ne.s32.totalorder %s71, %s87
    %p89 = scmp.eq.s32.totalorder %s16, 0
    %p90 = por %p88, %p89
    %s91 = ssub.s32 %s10, %s17
    %p92 = scmp.eq.s32.totalorder %s91, 0
    %s94 = sadd.s32 %s93, 1
    %s95 = scalar_select %p92, %s93, %s94
    %p98 = pneg %p92
    %p99 = scmp.eq.s32.totalorder %s10, 1
    %p100 = por %p98, %p99
    %p101 = scmp.ne.s32.totalorder %s93, %s96
    %p102 = scmp.eq.s32.totalorder %s10, 0
    %p103 = por %p101, %p102
    %p104 = scmp.ne.s32.totalorder %s93, %s96
    %p105 = scmp.eq.s32.totalorder %s15, 1
    %p106 = por %p104, %p105
    %p107 = scmp.ne.s32.totalorder %s96, %s97
    %p108 = scmp.eq.s32.totalorder %s15, 0
    %p109 = por %p107, %p108
    %p110 = scmp.ne.s32.totalorder %s96, %s97
    %p111 = scmp.eq.s32.totalorder %s16, 1
    %p112 = por %p110, %p111
    %p114 = scmp.ne.s32.totalorder %s97, %s113
    %p115 = scmp.eq.s32.totalorder %s16, 0
    %p116 = por %p114, %p115
    %p117 = scmp.le.s32.totalorder 1, %s10
    %p118 = scmp.lt.s32.totalorder %s10, 3
    %p119 = pnand %p117, %p118
    %p120 = pneg %p119
    // Predicated region
    $region9: #{bottleneck_pallas.4} parent=5 // pred_check
      _
    $region10: #{bottleneck_pallas.4} parent=5 // pred_check_branch
      %122 = sbr.rel (%p119) target = $region12
    $region11: #{bottleneck_pallas.4} parent=5 // pred_region
      %s123 = ssub.s32 %s10, 1
      // Predicated region
      $region13: #{bottleneck_pallas.4} parent=11 // pred_check
        %p124 = pneg %p57
      $region14: #{bottleneck_pallas.4} parent=11 // pred_check_branch
        %126 = sbr.rel (%p124) target = $region16
      $region15: #{bottleneck_pallas.4} parent=11 // pred_region
        _
      $region16: #{bottleneck_pallas.4} parent=11 // pred_fallthru
        _
    $region12: #{bottleneck_pallas.4} parent=5 // pred_fallthru
      _
    %p127 = scmp.lt.s32.totalorder %s10, 2
    // Predicated region
    $region17: #{bottleneck_pallas.4} parent=5 // pred_check
      %p128 = pneg %p127
    $region18: #{bottleneck_pallas.4} parent=5 // pred_check_branch
      %130 = sbr.rel (%p128) target = $region20
    $region19: #{bottleneck_pallas.4} parent=5 // pred_region
      // Predicated region
      $region21: #{bottleneck_pallas.4} parent=19 // pred_check
        %p131 = pneg %p30
      $region22: #{bottleneck_pallas.4} parent=19 // pred_check_branch
        %133 = sbr.rel (%p131) target = $region24
      $region23: #{bottleneck_pallas.4} parent=19 // pred_region
        %s134 = smul.u32 32, %s10
        %p135 = scmp.lt.s32.totalorder %s134, 63
        %s136 = scalar_select %p135, %s134, 63
        %s137 = smul.addr %s136, 8
        %s138 = scalar_lea.vmem %s0, %s137
        %s139 = smul.u32 32, %s10
      $region24: #{bottleneck_pallas.4} parent=19 // pred_fallthru
        _
    $region20: #{bottleneck_pallas.4} parent=5 // pred_fallthru
      _
    %p140 = scmp.le.s32.totalorder 1, %s10
    %p141 = scmp.lt.s32.totalorder %s10, 3
    %p142 = pnand %p140, %p141
    %p143 = pneg %p142
    // Predicated region
    $region25: #{bottleneck_pallas.4} parent=5 // pred_check
      _
    $region26: #{bottleneck_pallas.4} parent=5 // pred_check_branch
      %145 = sbr.rel (%p142) target = $region28
    $region27: #{bottleneck_pallas.4} parent=5 // pred_region
      %s146 = ssub.s32 %s10, 1
      %s147 = smul.u32 32, %s15
      %p148 = scmp.lt.s32.totalorder %s147, 63
      %s149 = scalar_select %p148, %s147, 63
      %s150 = smul.addr %s149, 8
      %s151 = scalar_lea.vmem %s0, %s150
      %p152 = pneg %p36
      %p153 = pneg %p33
      %p154 = pneg %p57
      %p155 = pneg %p54
      %p156 = pneg %p83
      %p157 = pneg %p80
      %s158 = smul.u32 32, %s15
      %p159 = scmp.lt.s32.totalorder %s158, 63
      %s160 = scalar_select %p159, %s158, 63
      %s161 = smul.addr %s160, 8
      %s162 = scalar_lea.vmem %s2, %s161
      %p163 = pneg %p109
      %p164 = pneg %p106
      %p165 = scmp.lt.s32.totalorder %s15, 1
      %s166 = scalar_select %p165, %s15, 1
      %s167 = smul.addr %s166, 8
      %s168 = scalar_lea.vmem %s3, %s167
      %s169 = smul.u32 32, %s15
      %p170 = scmp.lt.s32.totalorder %s169, 63
      %s171 = scalar_select %p170, %s169, 63
      %s172 = smul.addr %s171, 8
      %s173 = scalar_lea.vmem %s0, %s172
      %s174 = smul.u32 32, %s15
      %s175 = smul.u32 32, %s15
      %p176 = scmp.lt.s32.totalorder %s175, 63
      %s177 = scalar_select %p176, %s175, 63
      %s178 = smul.addr %s177, 8
      %s179 = scalar_lea.vmem %s2, %s178
      %s180 = smul.u32 32, %s15
      %p181 = scmp.lt.s32.totalorder %s15, 1
      %s182 = scalar_select %p181, %s15, 1
      %s183 = smul.addr %s182, 8
      %s184 = scalar_lea.vmem %s3, %s183
      %v186 = vld [vmem:[%s173] sm:$0xff]
      %v187 = vld [vmem:[%s173 + $0x8] sm:$0xff]
      %v188 = vld [vmem:[%s173 + $0x10] sm:$0xff]
      %v189 = vld [vmem:[%s173 + $0x18] sm:$0xff]
      %v190 = vld [vmem:[%s173 + $0x20] sm:$0xff]
      %v191 = vld [vmem:[%s173 + $0x28] sm:$0xff]
      %v192 = vld [vmem:[%s173 + $0x30] sm:$0xff]
      %v193 = vld [vmem:[%s173 + $0x38] sm:$0xff]
      %v194 = vld [vmem:[%s173 + $0x40] sm:$0xff]
      %v195 = vld [vmem:[%s173 + $0x48] sm:$0xff]
      %v196 = vld [vmem:[%s173 + $0x50] sm:$0xff]
      %v197 = vld [vmem:[%s173 + $0x58] sm:$0xff]
      %v198 = vld [vmem:[%s173 + $0x60] sm:$0xff]
      %v199 = vld [vmem:[%s173 + $0x68] sm:$0xff]
      %v200 = vld [vmem:[%s173 + $0x70] sm:$0xff]
      %v201 = vld [vmem:[%s173 + $0x78] sm:$0xff]
      %v202 = vld [vmem:[%s173 + $0x80] sm:$0xff]
      %v203 = vld [vmem:[%s173 + $0x88] sm:$0xff]
      %v204 = vld [vmem:[%s173 + $0x90] sm:$0xff]
      %v205 = vld [vmem:[%s173 + $0x98] sm:$0xff]
      %v206 = vld [vmem:[%s173 + $0xa0] sm:$0xff]
      %v207 = vld [vmem:[%s173 + $0xa8] sm:$0xff]
      %v208 = vld [vmem:[%s173 + $0xb0] sm:$0xff]
      %v209 = vld [vmem:[%s173 + $0xb8] sm:$0xff]
      %v210 = vld [vmem:[%s173 + $0xc0] sm:$0xff]
      %v211 = vld [vmem:[%s173 + $0xc8] sm:$0xff]
      %v212 = vld [vmem:[%s173 + $0xd0] sm:$0xff]
      %v213 = vld [vmem:[%s173 + $0xd8] sm:$0xff]
      %v214 = vld [vmem:[%s173 + $0xe0] sm:$0xff]
      %v215 = vld [vmem:[%s173 + $0xe8] sm:$0xff]
      %v216 = vld [vmem:[%s173 + $0xf0] sm:$0xff]
      %v217 = vld [vmem:[%s173 + $0xf8] sm:$0xff]
      %v218 = vpack.c.bf16 %v187, %v186
      %v219 = vpack.c.bf16 %v189, %v188
      %v220 = vpack.c.bf16 %v191, %v190
      %v221 = vpack.c.bf16 %v193, %v192
      %v222 = vpack.c.bf16 %v195, %v194
      %v223 = vpack.c.bf16 %v197, %v196
      %v224 = vpack.c.bf16 %v199, %v198
      %v225 = vpack.c.bf16 %v201, %v200
      %v226 = vpack.c.bf16 %v203, %v202
      %v227 = vpack.c.bf16 %v205, %v204
      %v228 = vpack.c.bf16 %v207, %v206
      %v229 = vpack.c.bf16 %v209, %v208
      %v230 = vpack.c.bf16 %v211, %v210
      %v231 = vpack.c.bf16 %v213, %v212
      %v232 = vpack.c.bf16 %v215, %v214
      %v233 = vpack.c.bf16 %v217, %v216
      %v234 = vld [vmem:[%s1] sm:$0xf]
      %v235 = vld [vmem:[%s1 + $0x4] sm:$0xf]
      %v236 = vld [vmem:[%s1 + $0x8] sm:$0xf]
      %v237 = vld [vmem:[%s1 + $0xc] sm:$0xf]
      %v238 = vld [vmem:[%s1 + $0x10] sm:$0xf]
      %v239 = vld [vmem:[%s1 + $0x14] sm:$0xf]
      %v240 = vld [vmem:[%s1 + $0x18] sm:$0xf]
      %v241 = vld [vmem:[%s1 + $0x1c] sm:$0xf]
      %v242 = vld [vmem:[%s1 + $0x20] sm:$0xf]
      %v243 = vld [vmem:[%s1 + $0x24] sm:$0xf]
      %v244 = vld [vmem:[%s1 + $0x28] sm:$0xf]
      %v245 = vld [vmem:[%s1 + $0x2c] sm:$0xf]
      %v246 = vld [vmem:[%s1 + $0x30] sm:$0xf]
      %v247 = vld [vmem:[%s1 + $0x34] sm:$0xf]
      %v248 = vld [vmem:[%s1 + $0x38] sm:$0xf]
      %v249 = vld [vmem:[%s1 + $0x3c] sm:$0xf]
      %v266 = vunpack.c.l.b16 %v234
      %v267 = vunpack.c.l.b16 %v235
      %v268 = vunpack.c.l.b16 %v236
      %v269 = vunpack.c.l.b16 %v237
      %v270 = vunpack.c.l.b16 %v238
      %v271 = vunpack.c.l.b16 %v239
      %v272 = vunpack.c.l.b16 %v240
      %v273 = vunpack.c.l.b16 %v241
      %v274 = vunpack.c.l.b16 %v242
      %v275 = vunpack.c.l.b16 %v243
      %v276 = vunpack.c.l.b16 %v244
      %v277 = vunpack.c.l.b16 %v245
      %v278 = vunpack.c.l.b16 %v246
      %v279 = vunpack.c.l.b16 %v247
      %v280 = vunpack.c.l.b16 %v248
      %v281 = vunpack.c.l.b16 %v249
      %v282 = vpack.c.b16 %v267, %v266
      %v283 = vpack.c.b16 %v269, %v268
      %v284 = vpack.c.b16 %v271, %v270
      %v285 = vpack.c.b16 %v273, %v272
      %v286 = vpack.c.b16 %v275, %v274
      %v287 = vpack.c.b16 %v277, %v276
      %v288 = vpack.c.b16 %v279, %v278
      %v289 = vpack.c.b16 %v281, %v280
      %298 = vmatprep.subr.bf16.mxu0 0
      %299 = vmatpush1.bf16.msra.mxu0 %v289
      %300 = vmatprep.subr.bf16.mxu0 0
      %301 = vmatpush1.bf16.msra.mxu0 %v288
      %302 = vmatprep.subr.bf16.mxu0 0
      %303 = vmatpush1.bf16.msra.mxu0 %v287
      %304 = vmatprep.subr.bf16.mxu0 0
      %305 = vmatpush1.bf16.msra.mxu0 %v286
      %306 = vmatprep.subr.bf16.mxu0 0
      %307 = vmatpush1.bf16.msra.mxu0 %v285
      %308 = vmatprep.subr.bf16.mxu0 0
      %309 = vmatpush1.bf16.msra.mxu0 %v284
      %310 = vmatprep.subr.bf16.mxu0 0
      %311 = vmatpush1.bf16.msra.mxu0 %v283
      %312 = vmatprep.subr.bf16.mxu0 0
      %313 = vmatpush1.bf16.msra.mxu0 %v282
      %314 = vmatprep.subr.bf16.mxu0 0
      %315 = vmatpush2.bf16.msra.mxu0 0
      %316 = vmatprep.subr.bf16.mxu0 0
      %317 = vmatpush2.bf16.msra.mxu0 0
      %318 = vmatprep.subr.bf16.mxu0 0
      %319 = vmatpush2.bf16.msra.mxu0 0
      %320 = vmatprep.subr.bf16.mxu0 0
      %321 = vmatpush2.bf16.msra.mxu0 0
      %322 = vmatprep.subr.bf16.mxu0 0
      %323 = vmatpush2.bf16.msra.mxu0 0
      %324 = vmatprep.subr.bf16.mxu0 0
      %325 = vmatpush2.bf16.msra.mxu0 0
      %326 = vmatprep.subr.bf16.mxu0 0
      %327 = vmatpush2.bf16.msra.mxu0 0
      %328 = vmatprep.subr.bf16.mxu0 0
      %329 = vmatpush2.bf16.msra.mxu0 0
      %330 = vmatprep.mubr.bf16.mxu0 0
      %331 = vmatmul.mubr.bf16.gmra.mxu0 %v218
      %v332 = vpop.f32.mrf.mxu0
      %v333 = vadd.f32 0.0, %v332
      %v334 = vpop.f32.mrf.mxu0
      %v335 = vpop.f32.mrf.mxu0
      %v336 = vadd.f32 0.0, %v335
      %v337 = vpop.f32.mrf.mxu0
      %338 = vmatprep.mubr.bf16.mxu0 0
      %339 = vmatmul.mubr.bf16.gmra.mxu0 %v219
      %v340 = vpop.f32.mrf.mxu0
      %v341 = vadd.f32 0.0, %v340
      %v342 = vpop.f32.mrf.mxu0
      %v343 = vpop.f32.mrf.mxu0
      %v344 = vadd.f32 0.0, %v343
      %v345 = vpop.f32.mrf.mxu0
      %346 = vmatprep.mubr.bf16.mxu0 0
      %347 = vmatmul.mubr.bf16.gmra.mxu0 %v220
      %v348 = vpop.f32.mrf.mxu0
      %v349 = vadd.f32 0.0, %v348
      %v350 = vpop.f32.mrf.mxu0
      %v351 = vpop.f32.mrf.mxu0
      %v352 = vadd.f32 0.0, %v351
      %v353 = vpop.f32.mrf.mxu0
      %354 = vmatprep.mubr.bf16.mxu0 0
      %355 = vmatmul.mubr.bf16.gmra.mxu0 %v221
      %v356 = vpop.f32.mrf.mxu0
      %v357 = vadd.f32 0.0, %v356
      %v358 = vpop.f32.mrf.mxu0
      %v359 = vpop.f32.mrf.mxu0
      %v360 = vadd.f32 0.0, %v359
      %v361 = vpop.f32.mrf.mxu0
      %362 = vmatprep.mubr.bf16.mxu0 0
      %363 = vmatmul.mubr.bf16.gmra.mxu0 %v222
      %v364 = vpop.f32.mrf.mxu0
      %v365 = vadd.f32 0.0, %v364
      %v366 = vpop.f32.mrf.mxu0
      %v367 = vpop.f32.mrf.mxu0
      %v368 = vadd.f32 0.0, %v367
      %v369 = vpop.f32.mrf.mxu0
      %370 = vmatprep.mubr.bf16.mxu0 0
      %371 = vmatmul.mubr.bf16.gmra.mxu0 %v223
      %v372 = vpop.f32.mrf.mxu0
      %v373 = vadd.f32 0.0, %v372
      %v374 = vpop.f32.mrf.mxu0
      %v375 = vpop.f32.mrf.mxu0
      %v376 = vadd.f32 0.0, %v375
      %v377 = vpop.f32.mrf.mxu0
      %378 = vmatprep.mubr.bf16.mxu0 0
      %379 = vmatmul.mubr.bf16.gmra.mxu0 %v224
      %v380 = vpop.f32.mrf.mxu0
      %v381 = vadd.f32 0.0, %v380
      %v382 = vpop.f32.mrf.mxu0
      %v383 = vpop.f32.mrf.mxu0
      %v384 = vadd.f32 0.0, %v383
      %v385 = vpop.f32.mrf.mxu0
      %386 = vmatprep.mubr.bf16.mxu0 0
      %387 = vmatmul.mubr.bf16.gmra.mxu0 %v225
      %v388 = vpop.f32.mrf.mxu0
      %v389 = vadd.f32 0.0, %v388
      %v390 = vpop.f32.mrf.mxu0
      %v391 = vpop.f32.mrf.mxu0
      %v392 = vadd.f32 0.0, %v391
      %v393 = vpop.f32.mrf.mxu0
      %394 = vmatprep.mubr.bf16.mxu0 0
      %395 = vmatmul.mubr.bf16.gmra.mxu0 %v226
      %v396 = vpop.f32.mrf.mxu0
      %v397 = vadd.f32 0.0, %v396
      %v398 = vpop.f32.mrf.mxu0
      %v399 = vpop.f32.mrf.mxu0
      %v400 = vadd.f32 0.0, %v399
      %v401 = vpop.f32.mrf.mxu0
      %402 = vmatprep.mubr.bf16.mxu0 0
      %403 = vmatmul.mubr.bf16.gmra.mxu0 %v227
      %v404 = vpop.f32.mrf.mxu0
      %v405 = vadd.f32 0.0, %v404
      %v406 = vpop.f32.mrf.mxu0
      %v407 = vpop.f32.mrf.mxu0
      %v408 = vadd.f32 0.0, %v407
      %v409 = vpop.f32.mrf.mxu0
      %410 = vmatprep.mubr.bf16.mxu0 0
      %411 = vmatmul.mubr.bf16.gmra.mxu0 %v228
      %v412 = vpop.f32.mrf.mxu0
      %v413 = vadd.f32 0.0, %v412
      %v414 = vpop.f32.mrf.mxu0
      %v415 = vpop.f32.mrf.mxu0
      %v416 = vadd.f32 0.0, %v415
      %v417 = vpop.f32.mrf.mxu0
      %418 = vmatprep.mubr.bf16.mxu0 0
      %419 = vmatmul.mubr.bf16.gmra.mxu0 %v229
      %v420 = vpop.f32.mrf.mxu0
      %v421 = vadd.f32 0.0, %v420
      %v422 = vpop.f32.mrf.mxu0
      %v423 = vpop.f32.mrf.mxu0
      %v424 = vadd.f32 0.0, %v423
      %v425 = vpop.f32.mrf.mxu0
      %426 = vmatprep.mubr.bf16.mxu0 0
      %427 = vmatmul.mubr.bf16.gmra.mxu0 %v230
      %v428 = vpop.f32.mrf.mxu0
      %v429 = vadd.f32 0.0, %v428
      %v430 = vpop.f32.mrf.mxu0
      %v431 = vpop.f32.mrf.mxu0
      %v432 = vadd.f32 0.0, %v431
      %v433 = vpop.f32.mrf.mxu0
      %434 = vmatprep.mubr.bf16.mxu0 0
      %435 = vmatmul.mubr.bf16.gmra.mxu0 %v231
      %v436 = vpop.f32.mrf.mxu0
      %v437 = vadd.f32 0.0, %v436
      %v438 = vpop.f32.mrf.mxu0
      %v439 = vpop.f32.mrf.mxu0
      %v440 = vadd.f32 0.0, %v439
      %v441 = vpop.f32.mrf.mxu0
      %442 = vmatprep.mubr.bf16.mxu0 0
      %443 = vmatmul.mubr.bf16.gmra.mxu0 %v232
      %v444 = vpop.f32.mrf.mxu0
      %v445 = vadd.f32 0.0, %v444
      %v446 = vpop.f32.mrf.mxu0
      %v447 = vpop.f32.mrf.mxu0
      %v448 = vadd.f32 0.0, %v447
      %v449 = vpop.f32.mrf.mxu0
      %450 = vmatprep.mubr.bf16.mxu0 0
      %451 = vmatmul.mubr.bf16.gmra.mxu0 %v233
      %v452 = vpop.f32.mrf.mxu0
      %v453 = vadd.f32 0.0, %v452
      %v454 = vpop.f32.mrf.mxu0
      %v455 = vpop.f32.mrf.mxu0
      %v456 = vadd.f32 0.0, %v455
      %v457 = vpop.f32.mrf.mxu0
      %458 = vdwg.mxu0
      %459 = vst [vmem:[%s179] sm:$0xff] %v333
      %460 = vst [vmem:[%s179 + $0x8] sm:$0xff] %v336
      %461 = vst [vmem:[%s179 + $0x10] sm:$0xff] %v341
      %462 = vst [vmem:[%s179 + $0x18] sm:$0xff] %v344
      %463 = vst [vmem:[%s179 + $0x20] sm:$0xff] %v349
      %464 = vst [vmem:[%s179 + $0x28] sm:$0xff] %v352
      %465 = vst [vmem:[%s179 + $0x30] sm:$0xff] %v357
      %466 = vst [vmem:[%s179 + $0x38] sm:$0xff] %v360
      %467 = vst [vmem:[%s179 + $0x40] sm:$0xff] %v365
      %468 = vst [vmem:[%s179 + $0x48] sm:$0xff] %v368
      %469 = vst [vmem:[%s179 + $0x50] sm:$0xff] %v373
      %470 = vst [vmem:[%s179 + $0x58] sm:$0xff] %v376
      %471 = vst [vmem:[%s179 + $0x60] sm:$0xff] %v381
      %472 = vst [vmem:[%s179 + $0x68] sm:$0xff] %v384
      %473 = vst [vmem:[%s179 + $0x70] sm:$0xff] %v389
      %474 = vst [vmem:[%s179 + $0x78] sm:$0xff] %v392
      %475 = vst [vmem:[%s179 + $0x80] sm:$0xff] %v397
      %476 = vst [vmem:[%s179 + $0x88] sm:$0xff] %v400
      %477 = vst [vmem:[%s179 + $0x90] sm:$0xff] %v405
      %478 = vst [vmem:[%s179 + $0x98] sm:$0xff] %v408
      %479 = vst [vmem:[%s179 + $0xa0] sm:$0xff] %v413
      %480 = vst [vmem:[%s179 + $0xa8] sm:$0xff] %v416
      %481 = vst [vmem:[%s179 + $0xb0] sm:$0xff] %v421
      %482 = vst [vmem:[%s179 + $0xb8] sm:$0xff] %v424
      %483 = vst [vmem:[%s179 + $0xc0] sm:$0xff] %v429
      %484 = vst [vmem:[%s179 + $0xc8] sm:$0xff] %v432
      %485 = vst [vmem:[%s179 + $0xd0] sm:$0xff] %v437
      %486 = vst [vmem:[%s179 + $0xd8] sm:$0xff] %v440
      %487 = vst [vmem:[%s179 + $0xe0] sm:$0xff] %v445
      %488 = vst [vmem:[%s179 + $0xe8] sm:$0xff] %v448
      %489 = vst [vmem:[%s179 + $0xf0] sm:$0xff] %v453
      %490 = vst [vmem:[%s179 + $0xf8] sm:$0xff] %v456
      %v491 = vadd.f32 %v333, %v336
      %v492 = vadd.f32 %v491, %v341
      %v493 = vadd.f32 %v492, %v344
      %v494 = vadd.f32 %v493, %v349
      %v495 = vadd.f32 %v494, %v352
      %v496 = vadd.f32 %v495, %v357
      %v497 = vadd.f32 %v496, %v360
      %v498 = vadd.f32 %v497, %v365
      %v499 = vadd.f32 %v498, %v368
      %v500 = vadd.f32 %v499, %v373
      %v501 = vadd.f32 %v500, %v376
      %v502 = vadd.f32 %v501, %v381
      %v503 = vadd.f32 %v502, %v384
      %v504 = vadd.f32 %v503, %v389
      %v505 = vadd.f32 %v504, %v392
      %v506 = vadd.f32 %v505, %v397
      %v507 = vadd.f32 %v506, %v400
      %v508 = vadd.f32 %v507, %v405
      %v509 = vadd.f32 %v508, %v408
      %v510 = vadd.f32 %v509, %v413
      %v511 = vadd.f32 %v510, %v416
      %v512 = vadd.f32 %v511, %v421
      %v513 = vadd.f32 %v512, %v424
      %v514 = vadd.f32 %v513, %v429
      %v515 = vadd.f32 %v514, %v432
      %v516 = vadd.f32 %v515, %v437
      %v517 = vadd.f32 %v516, %v440
      %v518 = vadd.f32 %v517, %v445
      %v519 = vadd.f32 %v518, %v448
      %v520 = vadd.f32 %v519, %v453
      %v521 = vadd.f32 %v520, %v456
      %v522 = vrot.slane %v521, 4
      %v523 = vadd.f32 %v521, %v522
      %v524 = vrot.slane %v523, 2
      %v525 = vadd.f32 %v523, %v524
      %v526 = vrot.slane %v525, 1
      %v527 = vadd.f32 %v525, %v526
      %v528 = vmul.f32 %v333, %v333
      %v529 = vmul.f32 %v336, %v336
      %v530 = vmul.f32 %v341, %v341
      %v531 = vmul.f32 %v344, %v344
      %v532 = vmul.f32 %v349, %v349
      %v533 = vmul.f32 %v352, %v352
      %v534 = vmul.f32 %v357, %v357
      %v535 = vmul.f32 %v360, %v360
      %v536 = vmul.f32 %v365, %v365
      %v537 = vmul.f32 %v368, %v368
      %v538 = vmul.f32 %v373, %v373
      %v539 = vmul.f32 %v376, %v376
      %v540 = vmul.f32 %v381, %v381
      %v541 = vmul.f32 %v384, %v384
      %v542 = vmul.f32 %v389, %v389
      %v543 = vmul.f32 %v392, %v392
      %v544 = vmul.f32 %v397, %v397
      %v545 = vmul.f32 %v400, %v400
      %v546 = vmul.f32 %v405, %v405
      %v547 = vmul.f32 %v408, %v408
      %v548 = vmul.f32 %v413, %v413
      %v549 = vmul.f32 %v416, %v416
      %v550 = vmul.f32 %v421, %v421
      %v551 = vmul.f32 %v424, %v424
      %v552 = vmul.f32 %v429, %v429
      %v553 = vmul.f32 %v432, %v432
      %v554 = vmul.f32 %v437, %v437
      %v555 = vmul.f32 %v440, %v440
      %v556 = vmul.f32 %v445, %v445
      %v557 = vmul.f32 %v448, %v448
      %v558 = vmul.f32 %v453, %v453
      %v559 = vmul.f32 %v456, %v456
      %v560 = vadd.f32 %v528, %v529
      %v561 = vadd.f32 %v560, %v530
      %v562 = vadd.f32 %v561, %v531
      %v563 = vadd.f32 %v562, %v532
      %v564 = vadd.f32 %v563, %v533
      %v565 = vadd.f32 %v564, %v534
      %v566 = vadd.f32 %v565, %v535
      %v567 = vadd.f32 %v566, %v536
      %v568 = vadd.f32 %v567, %v537
      %v569 = vadd.f32 %v568, %v538
      %v570 = vadd.f32 %v569, %v539
      %v571 = vadd.f32 %v570, %v540
      %v572 = vadd.f32 %v571, %v541
      %v573 = vadd.f32 %v572, %v542
      %v574 = vadd.f32 %v573, %v543
      %v575 = vadd.f32 %v574, %v544
      %v576 = vadd.f32 %v575, %v545
      %v577 = vadd.f32 %v576, %v546
      %v578 = vadd.f32 %v577, %v547
      %v579 = vadd.f32 %v578, %v548
      %v580 = vadd.f32 %v579, %v549
      %v581 = vadd.f32 %v580, %v550
      %v582 = vadd.f32 %v581, %v551
      %v583 = vadd.f32 %v582, %v552
      %v584 = vadd.f32 %v583, %v553
      %v585 = vadd.f32 %v584, %v554
      %v586 = vadd.f32 %v585, %v555
      %v587 = vadd.f32 %v586, %v556
      %v588 = vadd.f32 %v587, %v557
      %v589 = vadd.f32 %v588, %v558
      %v590 = vadd.f32 %v589, %v559
      %v591 = vrot.slane %v590, 4
      %v592 = vadd.f32 %v590, %v591
      %v593 = vrot.slane %v592, 2
      %v594 = vadd.f32 %v592, %v593
      %v595 = vrot.slane %v594, 1
      %v596 = vadd.f32 %v594, %v595
      %vm597 = vcmask 1040384
      %v598 = vsel %vm597, %v527, %v596
      %vm599 = vcmask 1041408
      %v600 = vsel %vm599, %v598, 0.0
      %601 = vst [vmem:[%s184] sm:$0xff] %v600
      %s602 = smul.u32 32, %s15
      %p603 = scmp.lt.s32.totalorder %s602, 63
      %s604 = scalar_select %p603, %s602, 63
      %s605 = smul.addr %s604, 8
      %s606 = scalar_lea.vmem %s2, %s605
      %p607 = scmp.lt.s32.totalorder %s15, 1
      %s608 = scalar_select %p607, %s15, 1
      %s609 = smul.addr %s608, 8
      %s610 = scalar_lea.vmem %s3, %s609
      // Predicated region
      $region29: #{bottleneck_pallas.4} parent=27 // pred_check
        %p611 = pneg %p80
      $region30: #{bottleneck_pallas.4} parent=27 // pred_check_branch
        %613 = sbr.rel (%p611) target = $region32
      $region31: #{bottleneck_pallas.4} parent=27 // pred_region
        %s614 = smul.u32 32, %s15
      $region32: #{bottleneck_pallas.4} parent=27 // pred_fallthru
        _
      // Predicated region
      $region33: #{bottleneck_pallas.4} parent=27 // pred_check
        %p615 = pneg %p106
      $region34: #{bottleneck_pallas.4} parent=27 // pred_check_branch
        %617 = sbr.rel (%p615) target = $region36
      $region35: #{bottleneck_pallas.4} parent=27 // pred_region
        _
      $region36: #{bottleneck_pallas.4} parent=27 // pred_fallthru
        _
    $region28: #{bottleneck_pallas.4} parent=5 // pred_fallthru
      _
    %p618 = scmp.le.s32.totalorder 2, %s10
    // Predicated region
    $region37: #{bottleneck_pallas.4} parent=5 // pred_check
      %p619 = pneg %p618
    $region38: #{bottleneck_pallas.4} parent=5 // pred_check_branch
      %621 = sbr.rel (%p619) target = $region40
    $region39: #{bottleneck_pallas.4} parent=5 // pred_region
      %s622 = ssub.s32 %s10, 2
      // Predicated region
      $region41: #{bottleneck_pallas.4} parent=39 // pred_check
        %p623 = pneg %p86
      $region42: #{bottleneck_pallas.4} parent=39 // pred_check_branch
        %625 = sbr.rel (%p623) target = $region44
      $region43: #{bottleneck_pallas.4} parent=39 // pred_region
        %s626 = smul.u32 32, %s16
        %p627 = scmp.lt.s32.totalorder %s626, 63
        %s628 = scalar_select %p627, %s626, 63
        %s629 = smul.addr %s628, 8
        %s630 = scalar_lea.vmem %s2, %s629
      $region44: #{bottleneck_pallas.4} parent=39 // pred_fallthru
        _
      // Predicated region
      $region45: #{bottleneck_pallas.4} parent=39 // pred_check
        %p631 = pneg %p112
      $region46: #{bottleneck_pallas.4} parent=39 // pred_check_branch
        %633 = sbr.rel (%p631) target = $region48
      $region47: #{bottleneck_pallas.4} parent=39 // pred_region
        %p634 = scmp.lt.s32.totalorder %s16, 1
        %s635 = scalar_select %p634, %s16, 1
        %s636 = smul.addr %s635, 8
        %s637 = scalar_lea.vmem %s3, %s636
      $region48: #{bottleneck_pallas.4} parent=39 // pred_fallthru
        _
    $region40: #{bottleneck_pallas.4} parent=5 // pred_fallthru
      _
  $region6: #{bottleneck_pallas.4} parent=0 // loop_footer
    %s14 = sadd.s32 1, %s10
  $region7: #{bottleneck_pallas.4} parent=0 // loop_footer_branch
    %9 = sbr.rel target = $region3
  $region8: #{bottleneck_pallas.4} parent=0 // loop_exit
    _

// kernel: bottleneck_pallas.6
$region0: #{bottleneck_pallas.6}
  #allocation0 [shape = 'u32[]', space=smem, size = 0x4, offset = 0x4, fixed_abs, tag = 'smem constant byte address 0x4 - core index']
  #allocation1 [shape = 'u32[144,128]{1,0:T(1,128)}', space=vmem, size = 0x12000, scoped, tag = 'internal scratch']
  %s0 = inlined_call_operand.vmem [shape: f32[512,128], index: 0, kind: input, shape index: {}]
  %s1 = inlined_call_operand.vmem [shape: f32[1,128], index: 1, kind: input, shape index: {}]
  %s2 = inlined_call_operand.vmem [shape: f32[1,128], index: 2, kind: input, shape index: {}]
  %s3 = inlined_call_operand.vmem [shape: bf16[128,128], index: 3, kind: input, shape index: {}]
  %s4 = inlined_call_operand.vmem [shape: f32[512,128], index: 4, kind: output, shape index: {0}]
  %s5 = inlined_call_operand.vmem [shape: f32[16,128], index: 5, kind: output, shape index: {1}]
  %6 = xla_tuple %s4, %s5
  %s7 = sld [smem:[#allocation0]]
  $region57: #{bottleneck_pallas.6} parent=0
    _
  %s9 = ssub.s32 1, %s7
  %s10 = scalar_select 0, %s9, %s7
  loop: start=0, step=1, limit=4
  $region2: #{bottleneck_pallas.6} parent=0 // loop_pre_header
    _
  $region3: #{bottleneck_pallas.6} parent=0 // loop_header
    %s12 = sphi 0, %s16
    %p13 = scmp.ge.s32.totalorder %s12, 4
    %s22 = sphi 0, %s24
    %s25 = sphi 0, %s22
    %s26 = sphi 0, %s25
    %s42 = sphi 0, %s26
    %s46 = sphi 0, %s46
    %s48 = sphi 0, %s46
    %s49 = sphi 0, %s48
    %s63 = sphi 0, %s49
    %s67 = sphi 0, %s67
    %s69 = sphi 0, %s67
    %s70 = sphi 0, %s69
    %s84 = sphi 0, %s70
    %s88 = sphi 0, %s88
    %s90 = sphi 0, %s88
    %s91 = sphi 0, %s90
    %s105 = sphi 0, %s91
    %s111 = sphi 0, %s113
    %s114 = sphi 0, %s111
    %s115 = sphi 0, %s114
    %s131 = sphi 0, %s115
    %s137 = sphi 0, %s139
    %s140 = sphi 0, %s137
    %s141 = sphi 0, %s140
    %s157 = sphi 0, %s141
  $region4: #{bottleneck_pallas.6} parent=0 // loop_header_branch
    %15 = sbr.rel (%p13) target = $region8
  $region5: #{bottleneck_pallas.6} parent=0 // loop_body
    %s17 = ssub.s32 %s12, 1
    %s18 = ssub.s32 %s12, 2
    %s19 = sadd.s32 %s12, 1
    %s20 = ssub.s32 %s12, %s19
    %p21 = scmp.eq.s32.totalorder %s20, 0
    %s23 = sadd.s32 %s22, 1
    %s24 = scalar_select %p21, %s22, %s23
    %p27 = pneg %p21
    %p28 = scmp.eq.s32.totalorder %s12, 1
    %p29 = por %p27, %p28
    %p30 = scmp.ne.s32.totalorder %s22, %s25
    %p31 = scmp.eq.s32.totalorder %s12, 0
    %p32 = por %p30, %p31
    %p33 = scmp.ne.s32.totalorder %s22, %s25
    %p34 = scmp.eq.s32.totalorder %s17, 1
    %p35 = por %p33, %p34
    %p36 = scmp.ne.s32.totalorder %s25, %s26
    %p37 = scmp.eq.s32.totalorder %s17, 0
    %p38 = por %p36, %p37
    %p39 = scmp.ne.s32.totalorder %s25, %s26
    %p40 = scmp.eq.s32.totalorder %s18, 1
    %p41 = por %p39, %p40
    %p43 = scmp.ne.s32.totalorder %s26, %s42
    %p44 = scmp.eq.s32.totalorder %s18, 0
    %p45 = por %p43, %p44
    %s47 = sadd.s32 %s46, 1
    %p50 = scmp.eq.s32.totalorder %s12, 1
    %p51 = scmp.ne.s32.totalorder %s46, %s48
    %p52 = scmp.eq.s32.totalorder %s12, 0
    %p53 = por %p51, %p52
    %p54 = scmp.ne.s32.totalorder %s46, %s48
    %p55 = scmp.eq.s32.totalorder %s17, 1
    %p56 = por %p54, %p55
    %p57 = scmp.ne.s32.totalorder %s48, %s49
    %p58 = scmp.eq.s32.totalorder %s17, 0
    %p59 = por %p57, %p58
    %p60 = scmp.ne.s32.totalorder %s48, %s49
    %p61 = scmp.eq.s32.totalorder %s18, 1
    %p62 = por %p60, %p61
    %p64 = scmp.ne.s32.totalorder %s49, %s63
    %p65 = scmp.eq.s32.totalorder %s18, 0
    %p66 = por %p64, %p65
    %s68 = sadd.s32 %s67, 1
    %p71 = scmp.eq.s32.totalorder %s12, 1
    %p72 = scmp.ne.s32.totalorder %s67, %s69
    %p73 = scmp.eq.s32.totalorder %s12, 0
    %p74 = por %p72, %p73
    %p75 = scmp.ne.s32.totalorder %s67, %s69
    %p76 = scmp.eq.s32.totalorder %s17, 1
    %p77 = por %p75, %p76
    %p78 = scmp.ne.s32.totalorder %s69, %s70
    %p79 = scmp.eq.s32.totalorder %s17, 0
    %p80 = por %p78, %p79
    %p81 = scmp.ne.s32.totalorder %s69, %s70
    %p82 = scmp.eq.s32.totalorder %s18, 1
    %p83 = por %p81, %p82
    %p85 = scmp.ne.s32.totalorder %s70, %s84
    %p86 = scmp.eq.s32.totalorder %s18, 0
    %p87 = por %p85, %p86
    %s89 = sadd.s32 %s88, 1
    %p92 = scmp.eq.s32.totalorder %s12, 1
    %p93 = scmp.ne.s32.totalorder %s88, %s90
    %p94 = scmp.eq.s32.totalorder %s12, 0
    %p95 = por %p93, %p94
    %p96 = scmp.ne.s32.totalorder %s88, %s90
    %p97 = scmp.eq.s32.totalorder %s17, 1
    %p98 = por %p96, %p97
    %p99 = scmp.ne.s32.totalorder %s90, %s91
    %p100 = scmp.eq.s32.totalorder %s17, 0
    %p101 = por %p99, %p100
    %p102 = scmp.ne.s32.totalorder %s90, %s91
    %p103 = scmp.eq.s32.totalorder %s18, 1
    %p104 = por %p102, %p103
    %p106 = scmp.ne.s32.totalorder %s91, %s105
    %p107 = scmp.eq.s32.totalorder %s18, 0
    %p108 = por %p106, %p107
    %s109 = ssub.s32 %s12, %s19
    %p110 = scmp.eq.s32.totalorder %s109, 0
    %s112 = sadd.s32 %s111, 1
    %s113 = scalar_select %p110, %s111, %s112
    %p116 = pneg %p110
    %p117 = scmp.eq.s32.totalorder %s12, 1
    %p118 = por %p116, %p117
    %p119 = scmp.ne.s32.totalorder %s111, %s114
    %p120 = scmp.eq.s32.totalorder %s12, 0
    %p121 = por %p119, %p120
    %p122 = scmp.ne.s32.totalorder %s111, %s114
    %p123 = scmp.eq.s32.totalorder %s17, 1
    %p124 = por %p122, %p123
    %p125 = scmp.ne.s32.totalorder %s114, %s115
    %p126 = scmp.eq.s32.totalorder %s17, 0
    %p127 = por %p125, %p126
    %p128 = scmp.ne.s32.totalorder %s114, %s115
    %p129 = scmp.eq.s32.totalorder %s18, 1
    %p130 = por %p128, %p129
    %p132 = scmp.ne.s32.totalorder %s115, %s131
    %p133 = scmp.eq.s32.totalorder %s18, 0
    %p134 = por %p132, %p133
    %s135 = ssub.s32 %s12, %s19
    %p136 = scmp.eq.s32.totalorder %s135, 0
    %s138 = sadd.s32 %s137, 1
    %s139 = scalar_select %p136, %s137, %s138
    %p142 = pneg %p136
    %p143 = scmp.eq.s32.totalorder %s12, 1
    %p144 = por %p142, %p143
    %p145 = scmp.ne.s32.totalorder %s137, %s140
    %p146 = scmp.eq.s32.totalorder %s12, 0
    %p147 = por %p145, %p146
    %p148 = scmp.ne.s32.totalorder %s137, %s140
    %p149 = scmp.eq.s32.totalorder %s17, 1
    %p150 = por %p148, %p149
    %p151 = scmp.ne.s32.totalorder %s140, %s141
    %p152 = scmp.eq.s32.totalorder %s17, 0
    %p153 = por %p151, %p152
    %p154 = scmp.ne.s32.totalorder %s140, %s141
    %p155 = scmp.eq.s32.totalorder %s18, 1
    %p156 = por %p154, %p155
    %p158 = scmp.ne.s32.totalorder %s141, %s157
    %p159 = scmp.eq.s32.totalorder %s18, 0
    %p160 = por %p158, %p159
    %p161 = scmp.le.s32.totalorder 1, %s12
    %p162 = scmp.lt.s32.totalorder %s12, 3
    %p163 = pnand %p161, %p162
    %p164 = pneg %p163
    // Predicated region
    $region9: #{bottleneck_pallas.6} parent=5 // pred_check
      _
    $region10: #{bottleneck_pallas.6} parent=5 // pred_check_branch
      %166 = sbr.rel (%p163) target = $region12
    $region11: #{bottleneck_pallas.6} parent=5 // pred_region
      %s167 = ssub.s32 %s12, 1
      // Predicated region
      $region13: #{bottleneck_pallas.6} parent=11 // pred_check
        %p168 = pneg %p59
      $region14: #{bottleneck_pallas.6} parent=11 // pred_check_branch
        %170 = sbr.rel (%p168) target = $region16
      $region15: #{bottleneck_pallas.6} parent=11 // pred_region
        _
      $region16: #{bottleneck_pallas.6} parent=11 // pred_fallthru
        _
      // Predicated region
      $region17: #{bottleneck_pallas.6} parent=11 // pred_check
        %p171 = pneg %p80
      $region18: #{bottleneck_pallas.6} parent=11 // pred_check_branch
        %173 = sbr.rel (%p171) target = $region20
      $region19: #{bottleneck_pallas.6} parent=11 // pred_region
        _
      $region20: #{bottleneck_pallas.6} parent=11 // pred_fallthru
        _
      // Predicated region
      $region21: #{bottleneck_pallas.6} parent=11 // pred_check
        %p174 = pneg %p101
      $region22: #{bottleneck_pallas.6} parent=11 // pred_check_branch
        %176 = sbr.rel (%p174) target = $region24
      $region23: #{bottleneck_pallas.6} parent=11 // pred_region
        _
      $region24: #{bottleneck_pallas.6} parent=11 // pred_fallthru
        _
    $region12: #{bottleneck_pallas.6} parent=5 // pred_fallthru
      _
    %p177 = scmp.lt.s32.totalorder %s12, 2
    // Predicated region
    $region25: #{bottleneck_pallas.6} parent=5 // pred_check
      %p178 = pneg %p177
    $region26: #{bottleneck_pallas.6} parent=5 // pred_check_branch
      %180 = sbr.rel (%p178) target = $region28
    $region27: #{bottleneck_pallas.6} parent=5 // pred_region
      // Predicated region
      $region29: #{bottleneck_pallas.6} parent=27 // pred_check
        %p181 = pneg %p32
      $region30: #{bottleneck_pallas.6} parent=27 // pred_check_branch
        %183 = sbr.rel (%p181) target = $region32
      $region31: #{bottleneck_pallas.6} parent=27 // pred_region
        %s184 = smul.u32 32, %s12
        %p185 = scmp.lt.s32.totalorder %s184, 63
        %s186 = scalar_select %p185, %s184, 63
        %s187 = smul.addr %s186, 8
        %s188 = scalar_lea.vmem %s0, %s187
        %s189 = smul.u32 32, %s12
      $region32: #{bottleneck_pallas.6} parent=27 // pred_fallthru
        _
    $region28: #{bottleneck_pallas.6} parent=5 // pred_fallthru
      _
    %p190 = scmp.le.s32.totalorder 1, %s12
    %p191 = scmp.lt.s32.totalorder %s12, 3
    %p192 = pnand %p190, %p191
    %p193 = pneg %p192
    // Predicated region
    $region33: #{bottleneck_pallas.6} parent=5 // pred_check
      _
    $region34: #{bottleneck_pallas.6} parent=5 // pred_check_branch
      %195 = sbr.rel (%p192) target = $region36
    $region35: #{bottleneck_pallas.6} parent=5 // pred_region
      %s196 = ssub.s32 %s12, 1
      %s197 = smul.u32 32, %s17
      %p198 = scmp.lt.s32.totalorder %s197, 63
      %s199 = scalar_select %p198, %s197, 63
      %s200 = smul.addr %s199, 8
      %s201 = scalar_lea.vmem %s0, %s200
      %p202 = pneg %p38
      %p203 = pneg %p35
      %p204 = pneg %p59
      %p205 = pneg %p56
      %p206 = pneg %p80
      %p207 = pneg %p77
      %p208 = pneg %p101
      %p209 = pneg %p98
      %p210 = pneg %p127
      %p211 = pneg %p124
      %s212 = smul.u32 32, %s17
      %p213 = scmp.lt.s32.totalorder %s212, 63
      %s214 = scalar_select %p213, %s212, 63
      %s215 = smul.addr %s214, 8
      %s216 = scalar_lea.vmem %s4, %s215
      %p217 = pneg %p153
      %p218 = pneg %p150
      %p219 = scmp.lt.s32.totalorder %s17, 1
      %s220 = scalar_select %p219, %s17, 1
      %s221 = smul.addr %s220, 8
      %s222 = scalar_lea.vmem %s5, %s221
      %s223 = smul.u32 32, %s17
      %p224 = scmp.lt.s32.totalorder %s223, 63
      %s225 = scalar_select %p224, %s223, 63
      %s226 = smul.addr %s225, 8
      %s227 = scalar_lea.vmem %s0, %s226
      %s228 = smul.u32 32, %s17
      %s229 = smul.u32 32, %s17
      %p230 = scmp.lt.s32.totalorder %s229, 63
      %s231 = scalar_select %p230, %s229, 63
      %s232 = smul.addr %s231, 8
      %s233 = scalar_lea.vmem %s4, %s232
      %s234 = smul.u32 32, %s17
      %p235 = scmp.lt.s32.totalorder %s17, 1
      %s236 = scalar_select %p235, %s17, 1
      %s237 = smul.addr %s236, 8
      %s238 = scalar_lea.vmem %s5, %s237
      %v240 = vld [vmem:[%s227] sm:$0xff]
      %v241 = vld [vmem:[%s227 + $0x8] sm:$0xff]
      %v242 = vld [vmem:[%s227 + $0x10] sm:$0xff]
      %v243 = vld [vmem:[%s227 + $0x18] sm:$0xff]
      %v244 = vld [vmem:[%s227 + $0x20] sm:$0xff]
      %v245 = vld [vmem:[%s227 + $0x28] sm:$0xff]
      %v246 = vld [vmem:[%s227 + $0x30] sm:$0xff]
      %v247 = vld [vmem:[%s227 + $0x38] sm:$0xff]
      %v248 = vld [vmem:[%s227 + $0x40] sm:$0xff]
      %v249 = vld [vmem:[%s227 + $0x48] sm:$0xff]
      %v250 = vld [vmem:[%s227 + $0x50] sm:$0xff]
      %v251 = vld [vmem:[%s227 + $0x58] sm:$0xff]
      %v252 = vld [vmem:[%s227 + $0x60] sm:$0xff]
      %v253 = vld [vmem:[%s227 + $0x68] sm:$0xff]
      %v254 = vld [vmem:[%s227 + $0x70] sm:$0xff]
      %v255 = vld [vmem:[%s227 + $0x78] sm:$0xff]
      %v256 = vld [vmem:[%s227 + $0x80] sm:$0xff]
      %v257 = vld [vmem:[%s227 + $0x88] sm:$0xff]
      %v258 = vld [vmem:[%s227 + $0x90] sm:$0xff]
      %v259 = vld [vmem:[%s227 + $0x98] sm:$0xff]
      %v260 = vld [vmem:[%s227 + $0xa0] sm:$0xff]
      %v261 = vld [vmem:[%s227 + $0xa8] sm:$0xff]
      %v262 = vld [vmem:[%s227 + $0xb0] sm:$0xff]
      %v263 = vld [vmem:[%s227 + $0xb8] sm:$0xff]
      %v264 = vld [vmem:[%s227 + $0xc0] sm:$0xff]
      %v265 = vld [vmem:[%s227 + $0xc8] sm:$0xff]
      %v266 = vld [vmem:[%s227 + $0xd0] sm:$0xff]
      %v267 = vld [vmem:[%s227 + $0xd8] sm:$0xff]
      %v268 = vld [vmem:[%s227 + $0xe0] sm:$0xff]
      %v269 = vld [vmem:[%s227 + $0xe8] sm:$0xff]
      %v270 = vld [vmem:[%s227 + $0xf0] sm:$0xff]
      %v271 = vld [vmem:[%s227 + $0xf8] sm:$0xff]
      %v272 = vld [vmem:[%s1] sm:$0x1]
      %v274 = vlaneseq
      %v275 = vshrl.u32 %v274, 7
      %v276 = vsub.s32 0, %v275
      %v277 = vrot.slane %v272, %v276
      %v279 = vmul.f32 %v240, %v277
      %v280 = vmul.f32 %v241, %v277
      %v281 = vmul.f32 %v242, %v277
      %v282 = vmul.f32 %v243, %v277
      %v283 = vmul.f32 %v244, %v277
      %v284 = vmul.f32 %v245, %v277
      %v285 = vmul.f32 %v246, %v277
      %v286 = vmul.f32 %v247, %v277
      %v287 = vmul.f32 %v248, %v277
      %v288 = vmul.f32 %v249, %v277
      %v289 = vmul.f32 %v250, %v277
      %v290 = vmul.f32 %v251, %v277
      %v291 = vmul.f32 %v252, %v277
      %v292 = vmul.f32 %v253, %v277
      %v293 = vmul.f32 %v254, %v277
      %v294 = vmul.f32 %v255, %v277
      %v295 = vmul.f32 %v256, %v277
      %v296 = vmul.f32 %v257, %v277
      %v297 = vmul.f32 %v258, %v277
      %v298 = vmul.f32 %v259, %v277
      %v299 = vmul.f32 %v260, %v277
      %v300 = vmul.f32 %v261, %v277
      %v301 = vmul.f32 %v262, %v277
      %v302 = vmul.f32 %v263, %v277
      %v303 = vmul.f32 %v264, %v277
      %v304 = vmul.f32 %v265, %v277
      %v305 = vmul.f32 %v266, %v277
      %v306 = vmul.f32 %v267, %v277
      %v307 = vmul.f32 %v268, %v277
      %v308 = vmul.f32 %v269, %v277
      %v309 = vmul.f32 %v270, %v277
      %v310 = vmul.f32 %v271, %v277
      %v311 = vld [vmem:[%s2] sm:$0x1]
      %v313 = vlaneseq
      %v314 = vshrl.u32 %v313, 7
      %v315 = vsub.s32 0, %v314
      %v316 = vrot.slane %v311, %v315
      %v318 = vadd.f32 %v279, %v316
      %v319 = vadd.f32 %v280, %v316
      %v320 = vadd.f32 %v281, %v316
      %v321 = vadd.f32 %v282, %v316
      %v322 = vadd.f32 %v283, %v316
      %v323 = vadd.f32 %v284, %v316
      %v324 = vadd.f32 %v285, %v316
      %v325 = vadd.f32 %v286, %v316
      %v326 = vadd.f32 %v287, %v316
      %v327 = vadd.f32 %v288, %v316
      %v328 = vadd.f32 %v289, %v316
      %v329 = vadd.f32 %v290, %v316
      %v330 = vadd.f32 %v291, %v316
      %v331 = vadd.f32 %v292, %v316
      %v332 = vadd.f32 %v293, %v316
      %v333 = vadd.f32 %v294, %v316
      %v334 = vadd.f32 %v295, %v316
      %v335 = vadd.f32 %v296, %v316
      %v336 = vadd.f32 %v297, %v316
      %v337 = vadd.f32 %v298, %v316
      %v338 = vadd.f32 %v299, %v316
      %v339 = vadd.f32 %v300, %v316
      %v340 = vadd.f32 %v301, %v316
      %v341 = vadd.f32 %v302, %v316
      %v342 = vadd.f32 %v303, %v316
      %v343 = vadd.f32 %v304, %v316
      %v344 = vadd.f32 %v305, %v316
      %v345 = vadd.f32 %v306, %v316
      %v346 = vadd.f32 %v307, %v316
      %v347 = vadd.f32 %v308, %v316
      %v348 = vadd.f32 %v309, %v316
      %v349 = vadd.f32 %v310, %v316
      %v350 = vmax.f32 %v318, 0.0
      %v351 = vmax.f32 %v319, 0.0
      %v352 = vmax.f32 %v320, 0.0
      %v353 = vmax.f32 %v321, 0.0
      %v354 = vmax.f32 %v322, 0.0
      %v355 = vmax.f32 %v323, 0.0
      %v356 = vmax.f32 %v324, 0.0
      %v357 = vmax.f32 %v325, 0.0
      %v358 = vmax.f32 %v326, 0.0
      %v359 = vmax.f32 %v327, 0.0
      %v360 = vmax.f32 %v328, 0.0
      %v361 = vmax.f32 %v329, 0.0
      %v362 = vmax.f32 %v330, 0.0
      %v363 = vmax.f32 %v331, 0.0
      %v364 = vmax.f32 %v332, 0.0
      %v365 = vmax.f32 %v333, 0.0
      %v366 = vmax.f32 %v334, 0.0
      %v367 = vmax.f32 %v335, 0.0
      %v368 = vmax.f32 %v336, 0.0
      %v369 = vmax.f32 %v337, 0.0
      %v370 = vmax.f32 %v338, 0.0
      %v371 = vmax.f32 %v339, 0.0
      %v372 = vmax.f32 %v340, 0.0
      %v373 = vmax.f32 %v341, 0.0
      %v374 = vmax.f32 %v342, 0.0
      %v375 = vmax.f32 %v343, 0.0
      %v376 = vmax.f32 %v344, 0.0
      %v377 = vmax.f32 %v345, 0.0
      %v378 = vmax.f32 %v346, 0.0
      %v379 = vmax.f32 %v347, 0.0
      %v380 = vmax.f32 %v348, 0.0
      %v381 = vmax.f32 %v349, 0.0
      %v382 = vpack.c.bf16 %v351, %v350
      %v383 = vpack.c.bf16 %v353, %v352
      %v384 = vpack.c.bf16 %v355, %v354
      %v385 = vpack.c.bf16 %v357, %v356
      %v386 = vpack.c.bf16 %v359, %v358
      %v387 = vpack.c.bf16 %v361, %v360
      %v388 = vpack.c.bf16 %v363, %v362
      %v389 = vpack.c.bf16 %v365, %v364
      %v390 = vpack.c.bf16 %v367, %v366
      %v391 = vpack.c.bf16 %v369, %v368
      %v392 = vpack.c.bf16 %v371, %v370
      %v393 = vpack.c.bf16 %v373, %v372
      %v394 = vpack.c.bf16 %v375, %v374
      %v395 = vpack.c.bf16 %v377, %v376
      %v396 = vpack.c.bf16 %v379, %v378
      %v397 = vpack.c.bf16 %v381, %v380
      %v398 = vld [vmem:[%s3] sm:$0xf]
      %v399 = vld [vmem:[%s3 + $0x4] sm:$0xf]
      %v400 = vld [vmem:[%s3 + $0x8] sm:$0xf]
      %v401 = vld [vmem:[%s3 + $0xc] sm:$0xf]
      %v402 = vld [vmem:[%s3 + $0x10] sm:$0xf]
      %v403 = vld [vmem:[%s3 + $0x14] sm:$0xf]
      %v404 = vld [vmem:[%s3 + $0x18] sm:$0xf]
      %v405 = vld [vmem:[%s3 + $0x1c] sm:$0xf]
      %v406 = vld [vmem:[%s3 + $0x20] sm:$0xf]
      %v407 = vld [vmem:[%s3 + $0x24] sm:$0xf]
      %v408 = vld [vmem:[%s3 + $0x28] sm:$0xf]
      %v409 = vld [vmem:[%s3 + $0x2c] sm:$0xf]
      %v410 = vld [vmem:[%s3 + $0x30] sm:$0xf]
      %v411 = vld [vmem:[%s3 + $0x34] sm:$0xf]
      %v412 = vld [vmem:[%s3 + $0x38] sm:$0xf]
      %v413 = vld [vmem:[%s3 + $0x3c] sm:$0xf]
      %v430 = vunpack.c.l.b16 %v398
      %v431 = vunpack.c.l.b16 %v399
      %v432 = vunpack.c.l.b16 %v400
      %v433 = vunpack.c.l.b16 %v401
      %v434 = vunpack.c.l.b16 %v402
      %v435 = vunpack.c.l.b16 %v403
      %v436 = vunpack.c.l.b16 %v404
      %v437 = vunpack.c.l.b16 %v405
      %v438 = vunpack.c.l.b16 %v406
      %v439 = vunpack.c.l.b16 %v407
      %v440 = vunpack.c.l.b16 %v408
      %v441 = vunpack.c.l.b16 %v409
      %v442 = vunpack.c.l.b16 %v410
      %v443 = vunpack.c.l.b16 %v411
      %v444 = vunpack.c.l.b16 %v412
      %v445 = vunpack.c.l.b16 %v413
      %v446 = vpack.c.b16 %v431, %v430
      %v447 = vpack.c.b16 %v433, %v432
      %v448 = vpack.c.b16 %v435, %v434
      %v449 = vpack.c.b16 %v437, %v436
      %v450 = vpack.c.b16 %v439, %v438
      %v451 = vpack.c.b16 %v441, %v440
      %v452 = vpack.c.b16 %v443, %v442
      %v453 = vpack.c.b16 %v445, %v444
      %462 = vmatprep.subr.bf16.mxu0 0
      %463 = vmatpush1.bf16.msra.mxu0 %v453
      %464 = vmatprep.subr.bf16.mxu0 0
      %465 = vmatpush1.bf16.msra.mxu0 %v452
      %466 = vmatprep.subr.bf16.mxu0 0
      %467 = vmatpush1.bf16.msra.mxu0 %v451
      %468 = vmatprep.subr.bf16.mxu0 0
      %469 = vmatpush1.bf16.msra.mxu0 %v450
      %470 = vmatprep.subr.bf16.mxu0 0
      %471 = vmatpush1.bf16.msra.mxu0 %v449
      %472 = vmatprep.subr.bf16.mxu0 0
      %473 = vmatpush1.bf16.msra.mxu0 %v448
      %474 = vmatprep.subr.bf16.mxu0 0
      %475 = vmatpush1.bf16.msra.mxu0 %v447
      %476 = vmatprep.subr.bf16.mxu0 0
      %477 = vmatpush1.bf16.msra.mxu0 %v446
      %478 = vmatprep.subr.bf16.mxu0 0
      %479 = vmatpush2.bf16.msra.mxu0 0
      %480 = vmatprep.subr.bf16.mxu0 0
      %481 = vmatpush2.bf16.msra.mxu0 0
      %482 = vmatprep.subr.bf16.mxu0 0
      %483 = vmatpush2.bf16.msra.mxu0 0
      %484 = vmatprep.subr.bf16.mxu0 0
      %485 = vmatpush2.bf16.msra.mxu0 0
      %486 = vmatprep.subr.bf16.mxu0 0
      %487 = vmatpush2.bf16.msra.mxu0 0
      %488 = vmatprep.subr.bf16.mxu0 0
      %489 = vmatpush2.bf16.msra.mxu0 0
      %490 = vmatprep.subr.bf16.mxu0 0
      %491 = vmatpush2.bf16.msra.mxu0 0
      %492 = vmatprep.subr.bf16.mxu0 0
      %493 = vmatpush2.bf16.msra.mxu0 0
      %494 = vmatprep.mubr.bf16.mxu0 0
      %495 = vmatmul.mubr.bf16.gmra.mxu0 %v382
      %v496 = vpop.f32.mrf.mxu0
      %v497 = vadd.f32 0.0, %v496
      %v498 = vpop.f32.mrf.mxu0
      %v499 = vpop.f32.mrf.mxu0
      %v500 = vadd.f32 0.0, %v499
      %v501 = vpop.f32.mrf.mxu0
      %502 = vmatprep.mubr.bf16.mxu0 0
      %503 = vmatmul.mubr.bf16.gmra.mxu0 %v383
      %v504 = vpop.f32.mrf.mxu0
      %v505 = vadd.f32 0.0, %v504
      %v506 = vpop.f32.mrf.mxu0
      %v507 = vpop.f32.mrf.mxu0
      %v508 = vadd.f32 0.0, %v507
      %v509 = vpop.f32.mrf.mxu0
      %510 = vmatprep.mubr.bf16.mxu0 0
      %511 = vmatmul.mubr.bf16.gmra.mxu0 %v384
      %v512 = vpop.f32.mrf.mxu0
      %v513 = vadd.f32 0.0, %v512
      %v514 = vpop.f32.mrf.mxu0
      %v515 = vpop.f32.mrf.mxu0
      %v516 = vadd.f32 0.0, %v515
      %v517 = vpop.f32.mrf.mxu0
      %518 = vmatprep.mubr.bf16.mxu0 0
      %519 = vmatmul.mubr.bf16.gmra.mxu0 %v385
      %v520 = vpop.f32.mrf.mxu0
      %v521 = vadd.f32 0.0, %v520
      %v522 = vpop.f32.mrf.mxu0
      %v523 = vpop.f32.mrf.mxu0
      %v524 = vadd.f32 0.0, %v523
      %v525 = vpop.f32.mrf.mxu0
      %526 = vmatprep.mubr.bf16.mxu0 0
      %527 = vmatmul.mubr.bf16.gmra.mxu0 %v386
      %v528 = vpop.f32.mrf.mxu0
      %v529 = vadd.f32 0.0, %v528
      %v530 = vpop.f32.mrf.mxu0
      %v531 = vpop.f32.mrf.mxu0
      %v532 = vadd.f32 0.0, %v531
      %v533 = vpop.f32.mrf.mxu0
      %534 = vmatprep.mubr.bf16.mxu0 0
      %535 = vmatmul.mubr.bf16.gmra.mxu0 %v387
      %v536 = vpop.f32.mrf.mxu0
      %v537 = vadd.f32 0.0, %v536
      %v538 = vpop.f32.mrf.mxu0
      %v539 = vpop.f32.mrf.mxu0
      %v540 = vadd.f32 0.0, %v539
      %v541 = vpop.f32.mrf.mxu0
      %542 = vmatprep.mubr.bf16.mxu0 0
      %543 = vmatmul.mubr.bf16.gmra.mxu0 %v388
      %v544 = vpop.f32.mrf.mxu0
      %v545 = vadd.f32 0.0, %v544
      %v546 = vpop.f32.mrf.mxu0
      %v547 = vpop.f32.mrf.mxu0
      %v548 = vadd.f32 0.0, %v547
      %v549 = vpop.f32.mrf.mxu0
      %550 = vmatprep.mubr.bf16.mxu0 0
      %551 = vmatmul.mubr.bf16.gmra.mxu0 %v389
      %v552 = vpop.f32.mrf.mxu0
      %v553 = vadd.f32 0.0, %v552
      %v554 = vpop.f32.mrf.mxu0
      %v555 = vpop.f32.mrf.mxu0
      %v556 = vadd.f32 0.0, %v555
      %v557 = vpop.f32.mrf.mxu0
      %558 = vmatprep.mubr.bf16.mxu0 0
      %559 = vmatmul.mubr.bf16.gmra.mxu0 %v390
      %v560 = vpop.f32.mrf.mxu0
      %v561 = vadd.f32 0.0, %v560
      %v562 = vpop.f32.mrf.mxu0
      %v563 = vpop.f32.mrf.mxu0
      %v564 = vadd.f32 0.0, %v563
      %v565 = vpop.f32.mrf.mxu0
      %566 = vmatprep.mubr.bf16.mxu0 0
      %567 = vmatmul.mubr.bf16.gmra.mxu0 %v391
      %v568 = vpop.f32.mrf.mxu0
      %v569 = vadd.f32 0.0, %v568
      %v570 = vpop.f32.mrf.mxu0
      %v571 = vpop.f32.mrf.mxu0
      %v572 = vadd.f32 0.0, %v571
      %v573 = vpop.f32.mrf.mxu0
      %574 = vmatprep.mubr.bf16.mxu0 0
      %575 = vmatmul.mubr.bf16.gmra.mxu0 %v392
      %v576 = vpop.f32.mrf.mxu0
      %v577 = vadd.f32 0.0, %v576
      %v578 = vpop.f32.mrf.mxu0
      %v579 = vpop.f32.mrf.mxu0
      %v580 = vadd.f32 0.0, %v579
      %v581 = vpop.f32.mrf.mxu0
      %582 = vmatprep.mubr.bf16.mxu0 0
      %583 = vmatmul.mubr.bf16.gmra.mxu0 %v393
      %v584 = vpop.f32.mrf.mxu0
      %v585 = vadd.f32 0.0, %v584
      %v586 = vpop.f32.mrf.mxu0
      %v587 = vpop.f32.mrf.mxu0
      %v588 = vadd.f32 0.0, %v587
      %v589 = vpop.f32.mrf.mxu0
      %590 = vmatprep.mubr.bf16.mxu0 0
      %591 = vmatmul.mubr.bf16.gmra.mxu0 %v394
      %v592 = vpop.f32.mrf.mxu0
      %v593 = vadd.f32 0.0, %v592
      %v594 = vpop.f32.mrf.mxu0
      %v595 = vpop.f32.mrf.mxu0
      %v596 = vadd.f32 0.0, %v595
      %v597 = vpop.f32.mrf.mxu0
      %598 = vmatprep.mubr.bf16.mxu0 0
      %599 = vmatmul.mubr.bf16.gmra.mxu0 %v395
      %v600 = vpop.f32.mrf.mxu0
      %v601 = vadd.f32 0.0, %v600
      %v602 = vpop.f32.mrf.mxu0
      %v603 = vpop.f32.mrf.mxu0
      %v604 = vadd.f32 0.0, %v603
      %v605 = vpop.f32.mrf.mxu0
      %606 = vmatprep.mubr.bf16.mxu0 0
      %607 = vmatmul.mubr.bf16.gmra.mxu0 %v396
      %v608 = vpop.f32.mrf.mxu0
      %v609 = vadd.f32 0.0, %v608
      %v610 = vpop.f32.mrf.mxu0
      %v611 = vpop.f32.mrf.mxu0
      %v612 = vadd.f32 0.0, %v611
      %v613 = vpop.f32.mrf.mxu0
      %614 = vmatprep.mubr.bf16.mxu0 0
      %615 = vmatmul.mubr.bf16.gmra.mxu0 %v397
      %v616 = vpop.f32.mrf.mxu0
      %v617 = vadd.f32 0.0, %v616
      %v618 = vpop.f32.mrf.mxu0
      %v619 = vpop.f32.mrf.mxu0
      %v620 = vadd.f32 0.0, %v619
      %v621 = vpop.f32.mrf.mxu0
      %622 = vdwg.mxu0
      %623 = vst [vmem:[%s233] sm:$0xff] %v497
      %624 = vst [vmem:[%s233 + $0x8] sm:$0xff] %v500
      %625 = vst [vmem:[%s233 + $0x10] sm:$0xff] %v505
      %626 = vst [vmem:[%s233 + $0x18] sm:$0xff] %v508
      %627 = vst [vmem:[%s233 + $0x20] sm:$0xff] %v513
      %628 = vst [vmem:[%s233 + $0x28] sm:$0xff] %v516
      %629 = vst [vmem:[%s233 + $0x30] sm:$0xff] %v521
      %630 = vst [vmem:[%s233 + $0x38] sm:$0xff] %v524
      %631 = vst [vmem:[%s233 + $0x40] sm:$0xff] %v529
      %632 = vst [vmem:[%s233 + $0x48] sm:$0xff] %v532
      %633 = vst [vmem:[%s233 + $0x50] sm:$0xff] %v537
      %634 = vst [vmem:[%s233 + $0x58] sm:$0xff] %v540
      %635 = vst [vmem:[%s233 + $0x60] sm:$0xff] %v545
      %636 = vst [vmem:[%s233 + $0x68] sm:$0xff] %v548
      %637 = vst [vmem:[%s233 + $0x70] sm:$0xff] %v553
      %638 = vst [vmem:[%s233 + $0x78] sm:$0xff] %v556
      %639 = vst [vmem:[%s233 + $0x80] sm:$0xff] %v561
      %640 = vst [vmem:[%s233 + $0x88] sm:$0xff] %v564
      %641 = vst [vmem:[%s233 + $0x90] sm:$0xff] %v569
      %642 = vst [vmem:[%s233 + $0x98] sm:$0xff] %v572
      %643 = vst [vmem:[%s233 + $0xa0] sm:$0xff] %v577
      %644 = vst [vmem:[%s233 + $0xa8] sm:$0xff] %v580
      %645 = vst [vmem:[%s233 + $0xb0] sm:$0xff] %v585
      %646 = vst [vmem:[%s233 + $0xb8] sm:$0xff] %v588
      %647 = vst [vmem:[%s233 + $0xc0] sm:$0xff] %v593
      %648 = vst [vmem:[%s233 + $0xc8] sm:$0xff] %v596
      %649 = vst [vmem:[%s233 + $0xd0] sm:$0xff] %v601
      %650 = vst [vmem:[%s233 + $0xd8] sm:$0xff] %v604
      %651 = vst [vmem:[%s233 + $0xe0] sm:$0xff] %v609
      %652 = vst [vmem:[%s233 + $0xe8] sm:$0xff] %v612
      %653 = vst [vmem:[%s233 + $0xf0] sm:$0xff] %v617
      %654 = vst [vmem:[%s233 + $0xf8] sm:$0xff] %v620
      %v655 = vadd.f32 %v497, %v500
      %v656 = vadd.f32 %v655, %v505
      %v657 = vadd.f32 %v656, %v508
      %v658 = vadd.f32 %v657, %v513
      %v659 = vadd.f32 %v658, %v516
      %v660 = vadd.f32 %v659, %v521
      %v661 = vadd.f32 %v660, %v524
      %v662 = vadd.f32 %v661, %v529
      %v663 = vadd.f32 %v662, %v532
      %v664 = vadd.f32 %v663, %v537
      %v665 = vadd.f32 %v664, %v540
      %v666 = vadd.f32 %v665, %v545
      %v667 = vadd.f32 %v666, %v548
      %v668 = vadd.f32 %v667, %v553
      %v669 = vadd.f32 %v668, %v556
      %v670 = vadd.f32 %v669, %v561
      %v671 = vadd.f32 %v670, %v564
      %v672 = vadd.f32 %v671, %v569
      %v673 = vadd.f32 %v672, %v572
      %v674 = vadd.f32 %v673, %v577
      %v675 = vadd.f32 %v674, %v580
      %v676 = vadd.f32 %v675, %v585
      %v677 = vadd.f32 %v676, %v588
      %v678 = vadd.f32 %v677, %v593
      %v679 = vadd.f32 %v678, %v596
      %v680 = vadd.f32 %v679, %v601
      %v681 = vadd.f32 %v680, %v604
      %v682 = vadd.f32 %v681, %v609
      %v683 = vadd.f32 %v682, %v612
      %v684 = vadd.f32 %v683, %v617
      %v685 = vadd.f32 %v684, %v620
      %v686 = vrot.slane %v685, 4
      %v687 = vadd.f32 %v685, %v686
      %v688 = vrot.slane %v687, 2
      %v689 = vadd.f32 %v687, %v688
      %v690 = vrot.slane %v689, 1
      %v691 = vadd.f32 %v689, %v690
      %v692 = vmul.f32 %v497, %v497
      %v693 = vmul.f32 %v500, %v500
      %v694 = vmul.f32 %v505, %v505
      %v695 = vmul.f32 %v508, %v508
      %v696 = vmul.f32 %v513, %v513
      %v697 = vmul.f32 %v516, %v516
      %v698 = vmul.f32 %v521, %v521
      %v699 = vmul.f32 %v524, %v524
      %v700 = vmul.f32 %v529, %v529
      %v701 = vmul.f32 %v532, %v532
      %v702 = vmul.f32 %v537, %v537
      %v703 = vmul.f32 %v540, %v540
      %v704 = vmul.f32 %v545, %v545
      %v705 = vmul.f32 %v548, %v548
      %v706 = vmul.f32 %v553, %v553
      %v707 = vmul.f32 %v556, %v556
      %v708 = vmul.f32 %v561, %v561
      %v709 = vmul.f32 %v564, %v564
      %v710 = vmul.f32 %v569, %v569
      %v711 = vmul.f32 %v572, %v572
      %v712 = vmul.f32 %v577, %v577
      %v713 = vmul.f32 %v580, %v580
      %v714 = vmul.f32 %v585, %v585
      %v715 = vmul.f32 %v588, %v588
      %v716 = vmul.f32 %v593, %v593
      %v717 = vmul.f32 %v596, %v596
      %v718 = vmul.f32 %v601, %v601
      %v719 = vmul.f32 %v604, %v604
      %v720 = vmul.f32 %v609, %v609
      %v721 = vmul.f32 %v612, %v612
      %v722 = vmul.f32 %v617, %v617
      %v723 = vmul.f32 %v620, %v620
      %v724 = vadd.f32 %v692, %v693
      %v725 = vadd.f32 %v724, %v694
      %v726 = vadd.f32 %v725, %v695
      %v727 = vadd.f32 %v726, %v696
      %v728 = vadd.f32 %v727, %v697
      %v729 = vadd.f32 %v728, %v698
      %v730 = vadd.f32 %v729, %v699
      %v731 = vadd.f32 %v730, %v700
      %v732 = vadd.f32 %v731, %v701
      %v733 = vadd.f32 %v732, %v702
      %v734 = vadd.f32 %v733, %v703
      %v735 = vadd.f32 %v734, %v704
      %v736 = vadd.f32 %v735, %v705
      %v737 = vadd.f32 %v736, %v706
      %v738 = vadd.f32 %v737, %v707
      %v739 = vadd.f32 %v738, %v708
      %v740 = vadd.f32 %v739, %v709
      %v741 = vadd.f32 %v740, %v710
      %v742 = vadd.f32 %v741, %v711
      %v743 = vadd.f32 %v742, %v712
      %v744 = vadd.f32 %v743, %v713
      %v745 = vadd.f32 %v744, %v714
      %v746 = vadd.f32 %v745, %v715
      %v747 = vadd.f32 %v746, %v716
      %v748 = vadd.f32 %v747, %v717
      %v749 = vadd.f32 %v748, %v718
      %v750 = vadd.f32 %v749, %v719
      %v751 = vadd.f32 %v750, %v720
      %v752 = vadd.f32 %v751, %v721
      %v753 = vadd.f32 %v752, %v722
      %v754 = vadd.f32 %v753, %v723
      %v755 = vrot.slane %v754, 4
      %v756 = vadd.f32 %v754, %v755
      %v757 = vrot.slane %v756, 2
      %v758 = vadd.f32 %v756, %v757
      %v759 = vrot.slane %v758, 1
      %v760 = vadd.f32 %v758, %v759
      %vm761 = vcmask 1040384
      %v762 = vsel %vm761, %v691, %v760
      %vm763 = vcmask 1041408
      %v764 = vsel %vm763, %v762, 0.0
      %765 = vst [vmem:[%s238] sm:$0xff] %v764
      %s766 = smul.u32 32, %s17
      %p767 = scmp.lt.s32.totalorder %s766, 63
      %s768 = scalar_select %p767, %s766, 63
      %s769 = smul.addr %s768, 8
      %s770 = scalar_lea.vmem %s4, %s769
      %p771 = scmp.lt.s32.totalorder %s17, 1
      %s772 = scalar_select %p771, %s17, 1
      %s773 = smul.addr %s772, 8
      %s774 = scalar_lea.vmem %s5, %s773
      // Predicated region
      $region37: #{bottleneck_pallas.6} parent=35 // pred_check
        %p775 = pneg %p124
      $region38: #{bottleneck_pallas.6} parent=35 // pred_check_branch
        %777 = sbr.rel (%p775) target = $region40
      $region39: #{bottleneck_pallas.6} parent=35 // pred_region
        %s778 = smul.u32 32, %s17
      $region40: #{bottleneck_pallas.6} parent=35 // pred_fallthru
        _
      // Predicated region
      $region41: #{bottleneck_pallas.6} parent=35 // pred_check
        %p779 = pneg %p150
      $region42: #{bottleneck_pallas.6} parent=35 // pred_check_branch
        %781 = sbr.rel (%p779) target = $region44
      $region43: #{bottleneck_pallas.6} parent=35 // pred_region
        _
      $region44: #{bottleneck_pallas.6} parent=35 // pred_fallthru
        _
    $region36: #{bottleneck_pallas.6} parent=5 // pred_fallthru
      _
    %p782 = scmp.le.s32.totalorder 2, %s12
    // Predicated region
    $region45: #{bottleneck_pallas.6} parent=5 // pred_check
      %p783 = pneg %p782
    $region46: #{bottleneck_pallas.6} parent=5 // pred_check_branch
      %785 = sbr.rel (%p783) target = $region48
    $region47: #{bottleneck_pallas.6} parent=5 // pred_region
      %s786 = ssub.s32 %s12, 2
      // Predicated region
      $region49: #{bottleneck_pallas.6} parent=47 // pred_check
        %p787 = pneg %p130
      $region50: #{bottleneck_pallas.6} parent=47 // pred_check_branch
        %789 = sbr.rel (%p787) target = $region52
      $region51: #{bottleneck_pallas.6} parent=47 // pred_region
        %s790 = smul.u32 32, %s18
        %p791 = scmp.lt.s32.totalorder %s790, 63
        %s792 = scalar_select %p791, %s790, 63
        %s793 = smul.addr %s792, 8
        %s794 = scalar_lea.vmem %s4, %s793
      $region52: #{bottleneck_pallas.6} parent=47 // pred_fallthru
        _
      // Predicated region
      $region53: #{bottleneck_pallas.6} parent=47 // pred_check
        %p795 = pneg %p156
      $region54: #{bottleneck_pallas.6} parent=47 // pred_check_branch
        %797 = sbr.rel (%p795) target = $region56
      $region55: #{bottleneck_pallas.6} parent=47 // pred_region
        %p798 = scmp.lt.s32.totalorder %s18, 1
        %s799 = scalar_select %p798, %s18, 1
        %s800 = smul.addr %s799, 8
        %s801 = scalar_lea.vmem %s5, %s800
      $region56: #{bottleneck_pallas.6} parent=47 // pred_fallthru
        _
    $region48: #{bottleneck_pallas.6} parent=5 // pred_fallthru
      _
  $region6: #{bottleneck_pallas.6} parent=0 // loop_footer
    %s16 = sadd.s32 1, %s12
  $region7: #{bottleneck_pallas.6} parent=0 // loop_footer_branch
    %11 = sbr.rel target = $region3
  $region8: #{bottleneck_pallas.6} parent=0 // loop_exit
    _

// kernel: bottleneck_pallas.5
$region0: #{bottleneck_pallas.5}
  #allocation0 [shape = 'u32[]', space=smem, size = 0x4, offset = 0x4, fixed_abs, tag = 'smem constant byte address 0x4 - core index']
  #allocation1 [shape = 'u32[144,128]{1,0:T(1,128)}', space=vmem, size = 0x12000, scoped, tag = 'internal scratch']
  #allocation2 [shape = 'bf16[18,18,128]{2,1,0:T(8,128)(2,1)}', space=vmem, size = 0x1b000, scoped, tag = 'scratch operand']
  #allocation3 [shape = 'f32[256,128]{1,0:T(8,128)}', space=vmem, size = 0x20000, scoped, tag = 'scratch operand']
  %s0 = inlined_call_operand.vmem [shape: f32[512,128], index: 0, kind: input, shape index: {}]
  %s1 = inlined_call_operand.vmem [shape: f32[1,128], index: 1, kind: input, shape index: {}]
  %s2 = inlined_call_operand.vmem [shape: f32[1,128], index: 2, kind: input, shape index: {}]
  %s3 = inlined_call_operand.vmem [shape: bf16[3,3,128,128], index: 3, kind: input, shape index: {}]
  %s4 = inlined_call_operand.vmem [shape: f32[512,128], index: 4, kind: output, shape index: {0}]
  %s5 = inlined_call_operand.vmem [shape: f32[16,128], index: 5, kind: output, shape index: {1}]
  %6 = xla_tuple %s4, %s5
  %s7 = sld [smem:[#allocation0]]
  $region57: #{bottleneck_pallas.5} parent=0
    _
  %s9 = ssub.s32 1, %s7
  %s10 = scalar_select 0, %s9, %s7
  loop: start=0, step=1, limit=4
  $region2: #{bottleneck_pallas.5} parent=0 // loop_pre_header
    _
  $region3: #{bottleneck_pallas.5} parent=0 // loop_header
    %s12 = sphi 0, %s16
    %p13 = scmp.ge.s32.totalorder %s12, 4
    %s22 = sphi 0, %s24
    %s25 = sphi 0, %s22
    %s26 = sphi 0, %s25
    %s42 = sphi 0, %s26
    %s46 = sphi 0, %s46
    %s48 = sphi 0, %s46
    %s49 = sphi 0, %s48
    %s63 = sphi 0, %s49
    %s67 = sphi 0, %s67
    %s69 = sphi 0, %s67
    %s70 = sphi 0, %s69
    %s84 = sphi 0, %s70
    %s88 = sphi 0, %s88
    %s90 = sphi 0, %s88
    %s91 = sphi 0, %s90
    %s105 = sphi 0, %s91
    %s111 = sphi 0, %s113
    %s114 = sphi 0, %s111
    %s115 = sphi 0, %s114
    %s131 = sphi 0, %s115
    %s137 = sphi 0, %s139
    %s140 = sphi 0, %s137
    %s141 = sphi 0, %s140
    %s157 = sphi 0, %s141
  $region4: #{bottleneck_pallas.5} parent=0 // loop_header_branch
    %15 = sbr.rel (%p13) target = $region8
  $region5: #{bottleneck_pallas.5} parent=0 // loop_body
    %s17 = ssub.s32 %s12, 1
    %s18 = ssub.s32 %s12, 2
    %s19 = sadd.s32 %s12, 1
    %s20 = ssub.s32 %s12, %s19
    %p21 = scmp.eq.s32.totalorder %s20, 0
    %s23 = sadd.s32 %s22, 1
    %s24 = scalar_select %p21, %s22, %s23
    %p27 = pneg %p21
    %p28 = scmp.eq.s32.totalorder %s12, 1
    %p29 = por %p27, %p28
    %p30 = scmp.ne.s32.totalorder %s22, %s25
    %p31 = scmp.eq.s32.totalorder %s12, 0
    %p32 = por %p30, %p31
    %p33 = scmp.ne.s32.totalorder %s22, %s25
    %p34 = scmp.eq.s32.totalorder %s17, 1
    %p35 = por %p33, %p34
    %p36 = scmp.ne.s32.totalorder %s25, %s26
    %p37 = scmp.eq.s32.totalorder %s17, 0
    %p38 = por %p36, %p37
    %p39 = scmp.ne.s32.totalorder %s25, %s26
    %p40 = scmp.eq.s32.totalorder %s18, 1
    %p41 = por %p39, %p40
    %p43 = scmp.ne.s32.totalorder %s26, %s42
    %p44 = scmp.eq.s32.totalorder %s18, 0
    %p45 = por %p43, %p44
    %s47 = sadd.s32 %s46, 1
    %p50 = scmp.eq.s32.totalorder %s12, 1
    %p51 = scmp.ne.s32.totalorder %s46, %s48
    %p52 = scmp.eq.s32.totalorder %s12, 0
    %p53 = por %p51, %p52
    %p54 = scmp.ne.s32.totalorder %s46, %s48
    %p55 = scmp.eq.s32.totalorder %s17, 1
    %p56 = por %p54, %p55
    %p57 = scmp.ne.s32.totalorder %s48, %s49
    %p58 = scmp.eq.s32.totalorder %s17, 0
    %p59 = por %p57, %p58
    %p60 = scmp.ne.s32.totalorder %s48, %s49
    %p61 = scmp.eq.s32.totalorder %s18, 1
    %p62 = por %p60, %p61
    %p64 = scmp.ne.s32.totalorder %s49, %s63
    %p65 = scmp.eq.s32.totalorder %s18, 0
    %p66 = por %p64, %p65
    %s68 = sadd.s32 %s67, 1
    %p71 = scmp.eq.s32.totalorder %s12, 1
    %p72 = scmp.ne.s32.totalorder %s67, %s69
    %p73 = scmp.eq.s32.totalorder %s12, 0
    %p74 = por %p72, %p73
    %p75 = scmp.ne.s32.totalorder %s67, %s69
    %p76 = scmp.eq.s32.totalorder %s17, 1
    %p77 = por %p75, %p76
    %p78 = scmp.ne.s32.totalorder %s69, %s70
    %p79 = scmp.eq.s32.totalorder %s17, 0
    %p80 = por %p78, %p79
    %p81 = scmp.ne.s32.totalorder %s69, %s70
    %p82 = scmp.eq.s32.totalorder %s18, 1
    %p83 = por %p81, %p82
    %p85 = scmp.ne.s32.totalorder %s70, %s84
    %p86 = scmp.eq.s32.totalorder %s18, 0
    %p87 = por %p85, %p86
    %s89 = sadd.s32 %s88, 1
    %p92 = scmp.eq.s32.totalorder %s12, 1
    %p93 = scmp.ne.s32.totalorder %s88, %s90
    %p94 = scmp.eq.s32.totalorder %s12, 0
    %p95 = por %p93, %p94
    %p96 = scmp.ne.s32.totalorder %s88, %s90
    %p97 = scmp.eq.s32.totalorder %s17, 1
    %p98 = por %p96, %p97
    %p99 = scmp.ne.s32.totalorder %s90, %s91
    %p100 = scmp.eq.s32.totalorder %s17, 0
    %p101 = por %p99, %p100
    %p102 = scmp.ne.s32.totalorder %s90, %s91
    %p103 = scmp.eq.s32.totalorder %s18, 1
    %p104 = por %p102, %p103
    %p106 = scmp.ne.s32.totalorder %s91, %s105
    %p107 = scmp.eq.s32.totalorder %s18, 0
    %p108 = por %p106, %p107
    %s109 = ssub.s32 %s12, %s19
    %p110 = scmp.eq.s32.totalorder %s109, 0
    %s112 = sadd.s32 %s111, 1
    %s113 = scalar_select %p110, %s111, %s112
    %p116 = pneg %p110
    %p117 = scmp.eq.s32.totalorder %s12, 1
    %p118 = por %p116, %p117
    %p119 = scmp.ne.s32.totalorder %s111, %s114
    %p120 = scmp.eq.s32.totalorder %s12, 0
    %p121 = por %p119, %p120
    %p122 = scmp.ne.s32.totalorder %s111, %s114
    %p123 = scmp.eq.s32.totalorder %s17, 1
    %p124 = por %p122, %p123
    %p125 = scmp.ne.s32.totalorder %s114, %s115
    %p126 = scmp.eq.s32.totalorder %s17, 0
    %p127 = por %p125, %p126
    %p128 = scmp.ne.s32.totalorder %s114, %s115
    %p129 = scmp.eq.s32.totalorder %s18, 1
    %p130 = por %p128, %p129
    %p132 = scmp.ne.s32.totalorder %s115, %s131
    %p133 = scmp.eq.s32.totalorder %s18, 0
    %p134 = por %p132, %p133
    %s135 = ssub.s32 %s12, %s19
    %p136 = scmp.eq.s32.totalorder %s135, 0
    %s138 = sadd.s32 %s137, 1
    %s139 = scalar_select %p136, %s137, %s138
    %p142 = pneg %p136
    %p143 = scmp.eq.s32.totalorder %s12, 1
    %p144 = por %p142, %p143
    %p145 = scmp.ne.s32.totalorder %s137, %s140
    %p146 = scmp.eq.s32.totalorder %s12, 0
    %p147 = por %p145, %p146
    %p148 = scmp.ne.s32.totalorder %s137, %s140
    %p149 = scmp.eq.s32.totalorder %s17, 1
    %p150 = por %p148, %p149
    %p151 = scmp.ne.s32.totalorder %s140, %s141
    %p152 = scmp.eq.s32.totalorder %s17, 0
    %p153 = por %p151, %p152
    %p154 = scmp.ne.s32.totalorder %s140, %s141
    %p155 = scmp.eq.s32.totalorder %s18, 1
    %p156 = por %p154, %p155
    %p158 = scmp.ne.s32.totalorder %s141, %s157
    %p159 = scmp.eq.s32.totalorder %s18, 0
    %p160 = por %p158, %p159
    %p161 = scmp.le.s32.totalorder 1, %s12
    %p162 = scmp.lt.s32.totalorder %s12, 3
    %p163 = pnand %p161, %p162
    %p164 = pneg %p163
    // Predicated region
    $region9: #{bottleneck_pallas.5} parent=5 // pred_check
      _
    $region10: #{bottleneck_pallas.5} parent=5 // pred_check_branch
      %166 = sbr.rel (%p163) target = $region12
    $region11: #{bottleneck_pallas.5} parent=5 // pred_region
      %s167 = ssub.s32 %s12, 1
      // Predicated region
      $region13: #{bottleneck_pallas.5} parent=11 // pred_check
        %p168 = pneg %p59
      $region14: #{bottleneck_pallas.5} parent=11 // pred_check_branch
        %170 = sbr.rel (%p168) target = $region16
      $region15: #{bottleneck_pallas.5} parent=11 // pred_region
        _
      $region16: #{bottleneck_pallas.5} parent=11 // pred_fallthru
        _
      // Predicated region
      $region17: #{bottleneck_pallas.5} parent=11 // pred_check
        %p171 = pneg %p80
      $region18: #{bottleneck_pallas.5} parent=11 // pred_check_branch
        %173 = sbr.rel (%p171) target = $region20
      $region19: #{bottleneck_pallas.5} parent=11 // pred_region
        _
      $region20: #{bottleneck_pallas.5} parent=11 // pred_fallthru
        _
      // Predicated region
      $region21: #{bottleneck_pallas.5} parent=11 // pred_check
        %p174 = pneg %p101
      $region22: #{bottleneck_pallas.5} parent=11 // pred_check_branch
        %176 = sbr.rel (%p174) target = $region24
      $region23: #{bottleneck_pallas.5} parent=11 // pred_region
        _
      $region24: #{bottleneck_pallas.5} parent=11 // pred_fallthru
        _
    $region12: #{bottleneck_pallas.5} parent=5 // pred_fallthru
      _
    %p177 = scmp.lt.s32.totalorder %s12, 2
    // Predicated region
    $region25: #{bottleneck_pallas.5} parent=5 // pred_check
      %p178 = pneg %p177
    $region26: #{bottleneck_pallas.5} parent=5 // pred_check_branch
      %180 = sbr.rel (%p178) target = $region28
    $region27: #{bottleneck_pallas.5} parent=5 // pred_region
      // Predicated region
      $region29: #{bottleneck_pallas.5} parent=27 // pred_check
        %p181 = pneg %p32
      $region30: #{bottleneck_pallas.5} parent=27 // pred_check_branch
        %183 = sbr.rel (%p181) target = $region32
      $region31: #{bottleneck_pallas.5} parent=27 // pred_region
        %s184 = smul.u32 32, %s12
        %p185 = scmp.lt.s32.totalorder %s184, 63
        %s186 = scalar_select %p185, %s184, 63
        %s187 = smul.addr %s186, 8
        %s188 = scalar_lea.vmem %s0, %s187
        %s189 = smul.u32 32, %s12
      $region32: #{bottleneck_pallas.5} parent=27 // pred_fallthru
        _
    $region28: #{bottleneck_pallas.5} parent=5 // pred_fallthru
      _
    %p190 = scmp.le.s32.totalorder 1, %s12
    %p191 = scmp.lt.s32.totalorder %s12, 3
    %p192 = pnand %p190, %p191
    %p193 = pneg %p192
    // Predicated region
    $region33: #{bottleneck_pallas.5} parent=5 // pred_check
      _
    $region34: #{bottleneck_pallas.5} parent=5 // pred_check_branch
      %195 = sbr.rel (%p192) target = $region36
    $region35: #{bottleneck_pallas.5} parent=5 // pred_region
      %s196 = ssub.s32 %s12, 1
      %s197 = smul.u32 32, %s17
      %p198 = scmp.lt.s32.totalorder %s197, 63
      %s199 = scalar_select %p198, %s197, 63
      %s200 = smul.addr %s199, 8
      %s201 = scalar_lea.vmem %s0, %s200
      %p202 = pneg %p38
      %p203 = pneg %p35
      %p204 = pneg %p59
      %p205 = pneg %p56
      %p206 = pneg %p80
      %p207 = pneg %p77
      %p208 = pneg %p101
      %p209 = pneg %p98
      %p210 = pneg %p127
      %p211 = pneg %p124
      %s212 = smul.u32 32, %s17
      %p213 = scmp.lt.s32.totalorder %s212, 63
      %s214 = scalar_select %p213, %s212, 63
      %s215 = smul.addr %s214, 8
      %s216 = scalar_lea.vmem %s4, %s215
      %p217 = pneg %p153
      %p218 = pneg %p150
      %p219 = scmp.lt.s32.totalorder %s17, 1
      %s220 = scalar_select %p219, %s17, 1
      %s221 = smul.addr %s220, 8
      %s222 = scalar_lea.vmem %s5, %s221
      %s223 = smul.u32 32, %s17
      %p224 = scmp.lt.s32.totalorder %s223, 63
      %s225 = scalar_select %p224, %s223, 63
      %s226 = smul.addr %s225, 8
      %s227 = scalar_lea.vmem %s0, %s226
      %s228 = smul.u32 32, %s17
      %s229 = smul.u32 32, %s17
      %p230 = scmp.lt.s32.totalorder %s229, 63
      %s231 = scalar_select %p230, %s229, 63
      %s232 = smul.addr %s231, 8
      %s233 = scalar_lea.vmem %s4, %s232
      %s234 = smul.u32 32, %s17
      %p235 = scmp.lt.s32.totalorder %s17, 1
      %s236 = scalar_select %p235, %s17, 1
      %s237 = smul.addr %s236, 8
      %s238 = scalar_lea.vmem %s5, %s237
      %v240 = vld [vmem:[%s227] sm:$0xff]
      %v241 = vld [vmem:[%s227 + $0x8] sm:$0xff]
      %v242 = vld [vmem:[%s227 + $0x10] sm:$0xff]
      %v243 = vld [vmem:[%s227 + $0x18] sm:$0xff]
      %v244 = vld [vmem:[%s227 + $0x20] sm:$0xff]
      %v245 = vld [vmem:[%s227 + $0x28] sm:$0xff]
      %v246 = vld [vmem:[%s227 + $0x30] sm:$0xff]
      %v247 = vld [vmem:[%s227 + $0x38] sm:$0xff]
      %v248 = vld [vmem:[%s227 + $0x40] sm:$0xff]
      %v249 = vld [vmem:[%s227 + $0x48] sm:$0xff]
      %v250 = vld [vmem:[%s227 + $0x50] sm:$0xff]
      %v251 = vld [vmem:[%s227 + $0x58] sm:$0xff]
      %v252 = vld [vmem:[%s227 + $0x60] sm:$0xff]
      %v253 = vld [vmem:[%s227 + $0x68] sm:$0xff]
      %v254 = vld [vmem:[%s227 + $0x70] sm:$0xff]
      %v255 = vld [vmem:[%s227 + $0x78] sm:$0xff]
      %v256 = vld [vmem:[%s227 + $0x80] sm:$0xff]
      %v257 = vld [vmem:[%s227 + $0x88] sm:$0xff]
      %v258 = vld [vmem:[%s227 + $0x90] sm:$0xff]
      %v259 = vld [vmem:[%s227 + $0x98] sm:$0xff]
      %v260 = vld [vmem:[%s227 + $0xa0] sm:$0xff]
      %v261 = vld [vmem:[%s227 + $0xa8] sm:$0xff]
      %v262 = vld [vmem:[%s227 + $0xb0] sm:$0xff]
      %v263 = vld [vmem:[%s227 + $0xb8] sm:$0xff]
      %v264 = vld [vmem:[%s227 + $0xc0] sm:$0xff]
      %v265 = vld [vmem:[%s227 + $0xc8] sm:$0xff]
      %v266 = vld [vmem:[%s227 + $0xd0] sm:$0xff]
      %v267 = vld [vmem:[%s227 + $0xd8] sm:$0xff]
      %v268 = vld [vmem:[%s227 + $0xe0] sm:$0xff]
      %v269 = vld [vmem:[%s227 + $0xe8] sm:$0xff]
      %v270 = vld [vmem:[%s227 + $0xf0] sm:$0xff]
      %v271 = vld [vmem:[%s227 + $0xf8] sm:$0xff]
      %v272 = vld [vmem:[%s1] sm:$0x1]
      %v274 = vlaneseq
      %v275 = vshrl.u32 %v274, 7
      %v276 = vsub.s32 0, %v275
      %v277 = vrot.slane %v272, %v276
      %v279 = vmul.f32 %v240, %v277
      %v280 = vmul.f32 %v241, %v277
      %v281 = vmul.f32 %v242, %v277
      %v282 = vmul.f32 %v243, %v277
      %v283 = vmul.f32 %v244, %v277
      %v284 = vmul.f32 %v245, %v277
      %v285 = vmul.f32 %v246, %v277
      %v286 = vmul.f32 %v247, %v277
      %v287 = vmul.f32 %v248, %v277
      %v288 = vmul.f32 %v249, %v277
      %v289 = vmul.f32 %v250, %v277
      %v290 = vmul.f32 %v251, %v277
      %v291 = vmul.f32 %v252, %v277
      %v292 = vmul.f32 %v253, %v277
      %v293 = vmul.f32 %v254, %v277
      %v294 = vmul.f32 %v255, %v277
      %v295 = vmul.f32 %v256, %v277
      %v296 = vmul.f32 %v257, %v277
      %v297 = vmul.f32 %v258, %v277
      %v298 = vmul.f32 %v259, %v277
      %v299 = vmul.f32 %v260, %v277
      %v300 = vmul.f32 %v261, %v277
      %v301 = vmul.f32 %v262, %v277
      %v302 = vmul.f32 %v263, %v277
      %v303 = vmul.f32 %v264, %v277
      %v304 = vmul.f32 %v265, %v277
      %v305 = vmul.f32 %v266, %v277
      %v306 = vmul.f32 %v267, %v277
      %v307 = vmul.f32 %v268, %v277
      %v308 = vmul.f32 %v269, %v277
      %v309 = vmul.f32 %v270, %v277
      %v310 = vmul.f32 %v271, %v277
      %v311 = vld [vmem:[%s2] sm:$0x1]
      %v313 = vlaneseq
      %v314 = vshrl.u32 %v313, 7
      %v315 = vsub.s32 0, %v314
      %v316 = vrot.slane %v311, %v315
      %v318 = vadd.f32 %v279, %v316
      %v319 = vadd.f32 %v280, %v316
      %v320 = vadd.f32 %v281, %v316
      %v321 = vadd.f32 %v282, %v316
      %v322 = vadd.f32 %v283, %v316
      %v323 = vadd.f32 %v284, %v316
      %v324 = vadd.f32 %v285, %v316
      %v325 = vadd.f32 %v286, %v316
      %v326 = vadd.f32 %v287, %v316
      %v327 = vadd.f32 %v288, %v316
      %v328 = vadd.f32 %v289, %v316
      %v329 = vadd.f32 %v290, %v316
      %v330 = vadd.f32 %v291, %v316
      %v331 = vadd.f32 %v292, %v316
      %v332 = vadd.f32 %v293, %v316
      %v333 = vadd.f32 %v294, %v316
      %v334 = vadd.f32 %v295, %v316
      %v335 = vadd.f32 %v296, %v316
      %v336 = vadd.f32 %v297, %v316
      %v337 = vadd.f32 %v298, %v316
      %v338 = vadd.f32 %v299, %v316
      %v339 = vadd.f32 %v300, %v316
      %v340 = vadd.f32 %v301, %v316
      %v341 = vadd.f32 %v302, %v316
      %v342 = vadd.f32 %v303, %v316
      %v343 = vadd.f32 %v304, %v316
      %v344 = vadd.f32 %v305, %v316
      %v345 = vadd.f32 %v306, %v316
      %v346 = vadd.f32 %v307, %v316
      %v347 = vadd.f32 %v308, %v316
      %v348 = vadd.f32 %v309, %v316
      %v349 = vadd.f32 %v310, %v316
      %v350 = vmax.f32 %v318, 0.0
      %v351 = vmax.f32 %v319, 0.0
      %v352 = vmax.f32 %v320, 0.0
      %v353 = vmax.f32 %v321, 0.0
      %v354 = vmax.f32 %v322, 0.0
      %v355 = vmax.f32 %v323, 0.0
      %v356 = vmax.f32 %v324, 0.0
      %v357 = vmax.f32 %v325, 0.0
      %v358 = vmax.f32 %v326, 0.0
      %v359 = vmax.f32 %v327, 0.0
      %v360 = vmax.f32 %v328, 0.0
      %v361 = vmax.f32 %v329, 0.0
      %v362 = vmax.f32 %v330, 0.0
      %v363 = vmax.f32 %v331, 0.0
      %v364 = vmax.f32 %v332, 0.0
      %v365 = vmax.f32 %v333, 0.0
      %v366 = vmax.f32 %v334, 0.0
      %v367 = vmax.f32 %v335, 0.0
      %v368 = vmax.f32 %v336, 0.0
      %v369 = vmax.f32 %v337, 0.0
      %v370 = vmax.f32 %v338, 0.0
      %v371 = vmax.f32 %v339, 0.0
      %v372 = vmax.f32 %v340, 0.0
      %v373 = vmax.f32 %v341, 0.0
      %v374 = vmax.f32 %v342, 0.0
      %v375 = vmax.f32 %v343, 0.0
      %v376 = vmax.f32 %v344, 0.0
      %v377 = vmax.f32 %v345, 0.0
      %v378 = vmax.f32 %v346, 0.0
      %v379 = vmax.f32 %v347, 0.0
      %v380 = vmax.f32 %v348, 0.0
      %v381 = vmax.f32 %v349, 0.0
      %382 = vst [vmem:[#allocation2] sm:$0xf] 0
      %383 = vst [vmem:[#allocation2 + $0x4] sm:$0xf] 0
      %384 = vst [vmem:[#allocation2 + $0x8] sm:$0x1] 0
      %385 = vst [vmem:[#allocation2 + $0xc] sm:$0xf] 0
      %386 = vst [vmem:[#allocation2 + $0x10] sm:$0xf] 0
      %387 = vst [vmem:[#allocation2 + $0x14] sm:$0x1] 0
      %388 = vst [vmem:[#allocation2 + $0x18] sm:$0xf] 0
      %389 = vst [vmem:[#allocation2 + $0x1c] sm:$0xf] 0
      %390 = vst [vmem:[#allocation2 + $0x20] sm:$0x1] 0
      %391 = vst [vmem:[#allocation2 + $0x24] sm:$0xf] 0
      %392 = vst [vmem:[#allocation2 + $0x28] sm:$0xf] 0
      %393 = vst [vmem:[#allocation2 + $0x2c] sm:$0x1] 0
      %394 = vst [vmem:[#allocation2 + $0x30] sm:$0xf] 0
      %395 = vst [vmem:[#allocation2 + $0x34] sm:$0xf] 0
      %396 = vst [vmem:[#allocation2 + $0x38] sm:$0x1] 0
      %397 = vst [vmem:[#allocation2 + $0x3c] sm:$0xf] 0
      %398 = vst [vmem:[#allocation2 + $0x40] sm:$0xf] 0
      %399 = vst [vmem:[#allocation2 + $0x44] sm:$0x1] 0
      %400 = vst [vmem:[#allocation2 + $0x48] sm:$0xf] 0
      %401 = vst [vmem:[#allocation2 + $0x4c] sm:$0xf] 0
      %402 = vst [vmem:[#allocation2 + $0x50] sm:$0x1] 0
      %403 = vst [vmem:[#allocation2 + $0x54] sm:$0xf] 0
      %404 = vst [vmem:[#allocation2 + $0x58] sm:$0xf] 0
      %405 = vst [vmem:[#allocation2 + $0x5c] sm:$0x1] 0
      %406 = vst [vmem:[#allocation2 + $0x60] sm:$0xf] 0
      %407 = vst [vmem:[#allocation2 + $0x64] sm:$0xf] 0
      %408 = vst [vmem:[#allocation2 + $0x68] sm:$0x1] 0
      %409 = vst [vmem:[#allocation2 + $0x6c] sm:$0xf] 0
      %410 = vst [vmem:[#allocation2 + $0x70] sm:$0xf] 0
      %411 = vst [vmem:[#allocation2 + $0x74] sm:$0x1] 0
      %412 = vst [vmem:[#allocation2 + $0x78] sm:$0xf] 0
      %413 = vst [vmem:[#allocation2 + $0x7c] sm:$0xf] 0
      %414 = vst [vmem:[#allocation2 + $0x80] sm:$0x1] 0
      %415 = vst [vmem:[#allocation2 + $0x84] sm:$0xf] 0
      %416 = vst [vmem:[#allocation2 + $0x88] sm:$0xf] 0
      %417 = vst [vmem:[#allocation2 + $0x8c] sm:$0x1] 0
      %418 = vst [vmem:[#allocation2 + $0x90] sm:$0xf] 0
      %419 = vst [vmem:[#allocation2 + $0x94] sm:$0xf] 0
      %420 = vst [vmem:[#allocation2 + $0x98] sm:$0x1] 0
      %421 = vst [vmem:[#allocation2 + $0x9c] sm:$0xf] 0
      %422 = vst [vmem:[#allocation2 + $0xa0] sm:$0xf] 0
      %423 = vst [vmem:[#allocation2 + $0xa4] sm:$0x1] 0
      %424 = vst [vmem:[#allocation2 + $0xa8] sm:$0xf] 0
      %425 = vst [vmem:[#allocation2 + $0xac] sm:$0xf] 0
      %426 = vst [vmem:[#allocation2 + $0xb0] sm:$0x1] 0
      %427 = vst [vmem:[#allocation2 + $0xb4] sm:$0xf] 0
      %428 = vst [vmem:[#allocation2 + $0xb8] sm:$0xf] 0
      %429 = vst [vmem:[#allocation2 + $0xbc] sm:$0x1] 0
      %430 = vst [vmem:[#allocation2 + $0xc0] sm:$0xf] 0
      %431 = vst [vmem:[#allocation2 + $0xc4] sm:$0xf] 0
      %432 = vst [vmem:[#allocation2 + $0xc8] sm:$0x1] 0
      %433 = vst [vmem:[#allocation2 + $0xcc] sm:$0xf] 0
      %434 = vst [vmem:[#allocation2 + $0xd0] sm:$0xf] 0
      %435 = vst [vmem:[#allocation2 + $0xd4] sm:$0x1] 0
      %v436 = vpack.c.bf16 %v351, %v350
      %v437 = vpack.c.bf16 %v353, %v352
      %v438 = vpack.c.bf16 %v355, %v354
      %v439 = vpack.c.bf16 %v357, %v356
      %v440 = vpack.c.bf16 %v359, %v358
      %v441 = vpack.c.bf16 %v361, %v360
      %v442 = vpack.c.bf16 %v363, %v362
      %v443 = vpack.c.bf16 %v365, %v364
      %v444 = vpack.c.bf16 %v367, %v366
      %v445 = vpack.c.bf16 %v369, %v368
      %v446 = vpack.c.bf16 %v371, %v370
      %v447 = vpack.c.bf16 %v373, %v372
      %v448 = vpack.c.bf16 %v375, %v374
      %v449 = vpack.c.bf16 %v377, %v376
      %v450 = vpack.c.bf16 %v379, %v378
      %v451 = vpack.c.bf16 %v381, %v380
      %v468 = vunpack.c.l.b16 %v436
      %v469 = vunpack.c.h.b16 %v436
      %v470 = vunpack.c.l.b16 %v437
      %v471 = vunpack.c.h.b16 %v437
      %v472 = vunpack.c.l.b16 %v438
      %v473 = vunpack.c.h.b16 %v438
      %v474 = vunpack.c.l.b16 %v439
      %v475 = vunpack.c.h.b16 %v439
      %v476 = vunpack.c.l.b16 %v440
      %v477 = vunpack.c.h.b16 %v440
      %v478 = vunpack.c.l.b16 %v441
      %v479 = vunpack.c.h.b16 %v441
      %v480 = vunpack.c.l.b16 %v442
      %v481 = vunpack.c.h.b16 %v442
      %v482 = vunpack.c.l.b16 %v443
      %v483 = vunpack.c.h.b16 %v443
      %v484 = vunpack.c.l.b16 %v444
      %v485 = vunpack.c.h.b16 %v444
      %v486 = vunpack.c.l.b16 %v445
      %v487 = vunpack.c.h.b16 %v445
      %v488 = vunpack.c.l.b16 %v446
      %v489 = vunpack.c.h.b16 %v446
      %v490 = vunpack.c.l.b16 %v447
      %v491 = vunpack.c.h.b16 %v447
      %v492 = vunpack.c.l.b16 %v448
      %v493 = vunpack.c.h.b16 %v448
      %v494 = vunpack.c.l.b16 %v449
      %v495 = vunpack.c.h.b16 %v449
      %v496 = vunpack.c.l.b16 %v450
      %v497 = vunpack.c.h.b16 %v450
      %v498 = vunpack.c.l.b16 %v451
      %v499 = vunpack.c.h.b16 %v451
      %v500 = vpack.c.b16 %v468, %v468
      %v501 = vpack.c.b16 %v469, %v469
      %v502 = vpack.c.b16 %v470, %v470
      %v503 = vpack.c.b16 %v471, %v471
      %v504 = vpack.c.b16 %v472, %v472
      %v505 = vpack.c.b16 %v473, %v473
      %v506 = vpack.c.b16 %v474, %v474
      %v507 = vpack.c.b16 %v475, %v475
      %v508 = vpack.c.b16 %v476, %v476
      %v509 = vpack.c.b16 %v477, %v477
      %v510 = vpack.c.b16 %v478, %v478
      %v511 = vpack.c.b16 %v479, %v479
      %v512 = vpack.c.b16 %v480, %v480
      %v513 = vpack.c.b16 %v481, %v481
      %v514 = vpack.c.b16 %v482, %v482
      %v515 = vpack.c.b16 %v483, %v483
      %v516 = vpack.c.b16 %v484, %v484
      %v517 = vpack.c.b16 %v485, %v485
      %v518 = vpack.c.b16 %v486, %v486
      %v519 = vpack.c.b16 %v487, %v487
      %v520 = vpack.c.b16 %v488, %v488
      %v521 = vpack.c.b16 %v489, %v489
      %v522 = vpack.c.b16 %v490, %v490
      %v523 = vpack.c.b16 %v491, %v491
      %v524 = vpack.c.b16 %v492, %v492
      %v525 = vpack.c.b16 %v493, %v493
      %v526 = vpack.c.b16 %v494, %v494
      %v527 = vpack.c.b16 %v495, %v495
      %v528 = vpack.c.b16 %v496, %v496
      %v529 = vpack.c.b16 %v497, %v497
      %v530 = vpack.c.b16 %v498, %v498
      %v531 = vpack.c.b16 %v499, %v499
      %vm532 = vsmask.f32 256
      %vm533 = vsmask.f32 4368
      %vm534 = vmor %vm532, %vm533
      %v536 = vshrl.u32 %v500, 16
      %v538 = vrot.slane %v536, 7
      %v539 = vshll.u32 %v500, 16
      %v541 = vor.u32 %v538, %v539
      %v542 = vrot.slane %v538, 4
      %v544 = vshrl.u32 %v501, 16
      %v546 = vrot.slane %v544, 7
      %v547 = vshll.u32 %v501, 16
      %v549 = vor.u32 %v546, %v547
      %v550 = vsel %vm534, %v542, %v549
      %v551 = vrot.slane %v546, 4
      %v553 = vshrl.u32 %v502, 16
      %v555 = vrot.slane %v553, 7
      %v556 = vshll.u32 %v502, 16
      %v558 = vor.u32 %v555, %v556
      %v559 = vrot.slane %v555, 4
      %v561 = vshrl.u32 %v503, 16
      %v563 = vrot.slane %v561, 7
      %v564 = vshll.u32 %v503, 16
      %v566 = vor.u32 %v563, %v564
      %v567 = vsel %vm534, %v559, %v566
      %v568 = vrot.slane %v563, 4
      %v570 = vshrl.u32 %v504, 16
      %v572 = vrot.slane %v570, 7
      %v573 = vshll.u32 %v504, 16
      %v575 = vor.u32 %v572, %v573
      %v576 = vrot.slane %v572, 4
      %v578 = vshrl.u32 %v505, 16
      %v580 = vrot.slane %v578, 7
      %v581 = vshll.u32 %v505, 16
      %v583 = vor.u32 %v580, %v581
      %v584 = vsel %vm534, %v576, %v583
      %v585 = vrot.slane %v580, 4
      %v587 = vshrl.u32 %v506, 16
      %v589 = vrot.slane %v587, 7
      %v590 = vshll.u32 %v506, 16
      %v592 = vor.u32 %v589, %v590
      %v593 = vrot.slane %v589, 4
      %v595 = vshrl.u32 %v507, 16
      %v597 = vrot.slane %v595, 7
      %v598 = vshll.u32 %v507, 16
      %v600 = vor.u32 %v597, %v598
      %v601 = vsel %vm534, %v593, %v600
      %v602 = vrot.slane %v597, 4
      %v604 = vshrl.u32 %v508, 16
      %v606 = vrot.slane %v604, 7
      %v607 = vshll.u32 %v508, 16
      %v609 = vor.u32 %v606, %v607
      %v610 = vrot.slane %v606, 4
      %v612 = vshrl.u32 %v509, 16
      %v614 = vrot.slane %v612, 7
      %v615 = vshll.u32 %v509, 16
      %v617 = vor.u32 %v614, %v615
      %v618 = vsel %vm534, %v610, %v617
      %v619 = vrot.slane %v614, 4
      %v621 = vshrl.u32 %v510, 16
      %v623 = vrot.slane %v621, 7
      %v624 = vshll.u32 %v510, 16
      %v626 = vor.u32 %v623, %v624
      %v627 = vrot.slane %v623, 4
      %v629 = vshrl.u32 %v511, 16
      %v631 = vrot.slane %v629, 7
      %v632 = vshll.u32 %v511, 16
      %v634 = vor.u32 %v631, %v632
      %v635 = vsel %vm534, %v627, %v634
      %v636 = vrot.slane %v631, 4
      %v638 = vshrl.u32 %v512, 16
      %v640 = vrot.slane %v638, 7
      %v641 = vshll.u32 %v512, 16
      %v643 = vor.u32 %v640, %v641
      %v644 = vrot.slane %v640, 4
      %v646 = vshrl.u32 %v513, 16
      %v648 = vrot.slane %v646, 7
      %v649 = vshll.u32 %v513, 16
      %v651 = vor.u32 %v648, %v649
      %v652 = vsel %vm534, %v644, %v651
      %v653 = vrot.slane %v648, 4
      %v655 = vshrl.u32 %v514, 16
      %v657 = vrot.slane %v655, 7
      %v658 = vshll.u32 %v514, 16
      %v660 = vor.u32 %v657, %v658
      %v661 = vrot.slane %v657, 4
      %v663 = vshrl.u32 %v515, 16
      %v665 = vrot.slane %v663, 7
      %v666 = vshll.u32 %v515, 16
      %v668 = vor.u32 %v665, %v666
      %v669 = vsel %vm534, %v661, %v668
      %v670 = vrot.slane %v665, 4
      %v672 = vshrl.u32 %v516, 16
      %v674 = vrot.slane %v672, 7
      %v675 = vshll.u32 %v516, 16
      %v677 = vor.u32 %v674, %v675
      %v678 = vrot.slane %v674, 4
      %v680 = vshrl.u32 %v517, 16
      %v682 = vrot.slane %v680, 7
      %v683 = vshll.u32 %v517, 16
      %v685 = vor.u32 %v682, %v683
      %v686 = vsel %vm534, %v678, %v685
      %v687 = vrot.slane %v682, 4
      %v689 = vshrl.u32 %v518, 16
      %v691 = vrot.slane %v689, 7
      %v692 = vshll.u32 %v518, 16
      %v694 = vor.u32 %v691, %v692
      %v695 = vrot.slane %v691, 4
      %v697 = vshrl.u32 %v519, 16
      %v699 = vrot.slane %v697, 7
      %v700 = vshll.u32 %v519, 16
      %v702 = vor.u32 %v699, %v700
      %v703 = vsel %vm534, %v695, %v702
      %v704 = vrot.slane %v699, 4
      %v706 = vshrl.u32 %v520, 16
      %v708 = vrot.slane %v706, 7
      %v709 = vshll.u32 %v520, 16
      %v711 = vor.u32 %v708, %v709
      %v712 = vrot.slane %v708, 4
      %v714 = vshrl.u32 %v521, 16
      %v716 = vrot.slane %v714, 7
      %v717 = vshll.u32 %v521, 16
      %v719 = vor.u32 %v716, %v717
      %v720 = vsel %vm534, %v712, %v719
      %v721 = vrot.slane %v716, 4
      %v723 = vshrl.u32 %v522, 16
      %v725 = vrot.slane %v723, 7
      %v726 = vshll.u32 %v522, 16
      %v728 = vor.u32 %v725, %v726
      %v729 = vrot.slane %v725, 4
      %v731 = vshrl.u32 %v523, 16
      %v733 = vrot.slane %v731, 7
      %v734 = vshll.u32 %v523, 16
      %v736 = vor.u32 %v733, %v734
      %v737 = vsel %vm534, %v729, %v736
      %v738 = vrot.slane %v733, 4
      %v740 = vshrl.u32 %v524, 16
      %v742 = vrot.slane %v740, 7
      %v743 = vshll.u32 %v524, 16
      %v745 = vor.u32 %v742, %v743
      %v746 = vrot.slane %v742, 4
      %v748 = vshrl.u32 %v525, 16
      %v750 = vrot.slane %v748, 7
      %v751 = vshll.u32 %v525, 16
      %v753 = vor.u32 %v750, %v751
      %v754 = vsel %vm534, %v746, %v753
      %v755 = vrot.slane %v750, 4
      %v757 = vshrl.u32 %v526, 16
      %v759 = vrot.slane %v757, 7
      %v760 = vshll.u32 %v526, 16
      %v762 = vor.u32 %v759, %v760
      %v763 = vrot.slane %v759, 4
      %v765 = vshrl.u32 %v527, 16
      %v767 = vrot.slane %v765, 7
      %v768 = vshll.u32 %v527, 16
      %v770 = vor.u32 %v767, %v768
      %v771 = vsel %vm534, %v763, %v770
      %v772 = vrot.slane %v767, 4
      %v774 = vshrl.u32 %v528, 16
      %v776 = vrot.slane %v774, 7
      %v777 = vshll.u32 %v528, 16
      %v779 = vor.u32 %v776, %v777
      %v780 = vrot.slane %v776, 4
      %v782 = vshrl.u32 %v529, 16
      %v784 = vrot.slane %v782, 7
      %v785 = vshll.u32 %v529, 16
      %v787 = vor.u32 %v784, %v785
      %v788 = vsel %vm534, %v780, %v787
      %v789 = vrot.slane %v784, 4
      %v791 = vshrl.u32 %v530, 16
      %v793 = vrot.slane %v791, 7
      %v794 = vshll.u32 %v530, 16
      %v796 = vor.u32 %v793, %v794
      %v797 = vrot.slane %v793, 4
      %v799 = vshrl.u32 %v531, 16
      %v801 = vrot.slane %v799, 7
      %v802 = vshll.u32 %v531, 16
      %v804 = vor.u32 %v801, %v802
      %v805 = vsel %vm534, %v797, %v804
      %v806 = vrot.slane %v801, 4
      %s855 = scalar_lea.vmem [#allocation2], 12
      %vm856 = vcmask 1043456
      %vm857 = vsmask.f32 7938
      %vm858 = vmand %vm856, %vm857
      %v859 = vld [vmem:[%s855] sm:$0xf]
      %v860 = vsel %vm858, %v541, %v859
      %861 = vst [vmem:[%s855] sm:$0xf] %v860
      %862 = vst [vmem:[%s855 + $0x4] sm:$0xf] %v550
      %vm863 = vcmask 1040384
      %vm864 = vmand %vm863, %vm532
      %v865 = vld [vmem:[%s855 + $0x8] sm:$0x1]
      %v866 = vsel %vm864, %v551, %v865
      %867 = vst [vmem:[%s855 + $0x8] sm:$0x1] %v866
      %v868 = vld [vmem:[%s855 + $0xc] sm:$0xf]
      %v869 = vsel %vm858, %v558, %v868
      %870 = vst [vmem:[%s855 + $0xc] sm:$0xf] %v869
      %871 = vst [vmem:[%s855 + $0x10] sm:$0xf] %v567
      %v872 = vld [vmem:[%s855 + $0x14] sm:$0x1]
      %v873 = vsel %vm864, %v568, %v872
      %874 = vst [vmem:[%s855 + $0x14] sm:$0x1] %v873
      %v875 = vld [vmem:[%s855 + $0x18] sm:$0xf]
      %v876 = vsel %vm858, %v575, %v875
      %877 = vst [vmem:[%s855 + $0x18] sm:$0xf] %v876
      %878 = vst [vmem:[%s855 + $0x1c] sm:$0xf] %v584
      %v879 = vld [vmem:[%s855 + $0x20] sm:$0x1]
      %v880 = vsel %vm864, %v585, %v879
      %881 = vst [vmem:[%s855 + $0x20] sm:$0x1] %v880
      %v882 = vld [vmem:[%s855 + $0x24] sm:$0xf]
      %v883 = vsel %vm858, %v592, %v882
      %884 = vst [vmem:[%s855 + $0x24] sm:$0xf] %v883
      %885 = vst [vmem:[%s855 + $0x28] sm:$0xf] %v601
      %v886 = vld [vmem:[%s855 + $0x2c] sm:$0x1]
      %v887 = vsel %vm864, %v602, %v886
      %888 = vst [vmem:[%s855 + $0x2c] sm:$0x1] %v887
      %v889 = vld [vmem:[%s855 + $0x30] sm:$0xf]
      %v890 = vsel %vm858, %v609, %v889
      %891 = vst [vmem:[%s855 + $0x30] sm:$0xf] %v890
      %892 = vst [vmem:[%s855 + $0x34] sm:$0xf] %v618
      %v893 = vld [vmem:[%s855 + $0x38] sm:$0x1]
      %v894 = vsel %vm864, %v619, %v893
      %895 = vst [vmem:[%s855 + $0x38] sm:$0x1] %v894
      %v896 = vld [vmem:[%s855 + $0x3c] sm:$0xf]
      %v897 = vsel %vm858, %v626, %v896
      %898 = vst [vmem:[%s855 + $0x3c] sm:$0xf] %v897
      %899 = vst [vmem:[%s855 + $0x40] sm:$0xf] %v635
      %v900 = vld [vmem:[%s855 + $0x44] sm:$0x1]
      %v901 = vsel %vm864, %v636, %v900
      %902 = vst [vmem:[%s855 + $0x44] sm:$0x1] %v901
      %v903 = vld [vmem:[%s855 + $0x48] sm:$0xf]
      %v904 = vsel %vm858, %v643, %v903
      %905 = vst [vmem:[%s855 + $0x48] sm:$0xf] %v904
      %906 = vst [vmem:[%s855 + $0x4c] sm:$0xf] %v652
      %v907 = vld [vmem:[%s855 + $0x50] sm:$0x1]
      %v908 = vsel %vm864, %v653, %v907
      %909 = vst [vmem:[%s855 + $0x50] sm:$0x1] %v908
      %v910 = vld [vmem:[%s855 + $0x54] sm:$0xf]
      %v911 = vsel %vm858, %v660, %v910
      %912 = vst [vmem:[%s855 + $0x54] sm:$0xf] %v911
      %913 = vst [vmem:[%s855 + $0x58] sm:$0xf] %v669
      %v914 = vld [vmem:[%s855 + $0x5c] sm:$0x1]
      %v915 = vsel %vm864, %v670, %v914
      %916 = vst [vmem:[%s855 + $0x5c] sm:$0x1] %v915
      %v917 = vld [vmem:[%s855 + $0x60] sm:$0xf]
      %v918 = vsel %vm858, %v677, %v917
      %919 = vst [vmem:[%s855 + $0x60] sm:$0xf] %v918
      %920 = vst [vmem:[%s855 + $0x64] sm:$0xf] %v686
      %v921 = vld [vmem:[%s855 + $0x68] sm:$0x1]
      %v922 = vsel %vm864, %v687, %v921
      %923 = vst [vmem:[%s855 + $0x68] sm:$0x1] %v922
      %v924 = vld [vmem:[%s855 + $0x6c] sm:$0xf]
      %v925 = vsel %vm858, %v694, %v924
      %926 = vst [vmem:[%s855 + $0x6c] sm:$0xf] %v925
      %927 = vst [vmem:[%s855 + $0x70] sm:$0xf] %v703
      %v928 = vld [vmem:[%s855 + $0x74] sm:$0x1]
      %v929 = vsel %vm864, %v704, %v928
      %930 = vst [vmem:[%s855 + $0x74] sm:$0x1] %v929
      %v931 = vld [vmem:[%s855 + $0x78] sm:$0xf]
      %v932 = vsel %vm858, %v711, %v931
      %933 = vst [vmem:[%s855 + $0x78] sm:$0xf] %v932
      %934 = vst [vmem:[%s855 + $0x7c] sm:$0xf] %v720
      %v935 = vld [vmem:[%s855 + $0x80] sm:$0x1]
      %v936 = vsel %vm864, %v721, %v935
      %937 = vst [vmem:[%s855 + $0x80] sm:$0x1] %v936
      %v938 = vld [vmem:[%s855 + $0x84] sm:$0xf]
      %v939 = vsel %vm858, %v728, %v938
      %940 = vst [vmem:[%s855 + $0x84] sm:$0xf] %v939
      %941 = vst [vmem:[%s855 + $0x88] sm:$0xf] %v737
      %v942 = vld [vmem:[%s855 + $0x8c] sm:$0x1]
      %v943 = vsel %vm864, %v738, %v942
      %944 = vst [vmem:[%s855 + $0x8c] sm:$0x1] %v943
      %v945 = vld [vmem:[%s855 + $0x90] sm:$0xf]
      %v946 = vsel %vm858, %v745, %v945
      %947 = vst [vmem:[%s855 + $0x90] sm:$0xf] %v946
      %948 = vst [vmem:[%s855 + $0x94] sm:$0xf] %v754
      %v949 = vld [vmem:[%s855 + $0x98] sm:$0x1]
      %v950 = vsel %vm864, %v755, %v949
      %951 = vst [vmem:[%s855 + $0x98] sm:$0x1] %v950
      %v952 = vld [vmem:[%s855 + $0x9c] sm:$0xf]
      %v953 = vsel %vm858, %v762, %v952
      %954 = vst [vmem:[%s855 + $0x9c] sm:$0xf] %v953
      %955 = vst [vmem:[%s855 + $0xa0] sm:$0xf] %v771
      %v956 = vld [vmem:[%s855 + $0xa4] sm:$0x1]
      %v957 = vsel %vm864, %v772, %v956
      %958 = vst [vmem:[%s855 + $0xa4] sm:$0x1] %v957
      %v959 = vld [vmem:[%s855 + $0xa8] sm:$0xf]
      %v960 = vsel %vm858, %v779, %v959
      %961 = vst [vmem:[%s855 + $0xa8] sm:$0xf] %v960
      %962 = vst [vmem:[%s855 + $0xac] sm:$0xf] %v788
      %v963 = vld [vmem:[%s855 + $0xb0] sm:$0x1]
      %v964 = vsel %vm864, %v789, %v963
      %965 = vst [vmem:[%s855 + $0xb0] sm:$0x1] %v964
      %v966 = vld [vmem:[%s855 + $0xb4] sm:$0xf]
      %v967 = vsel %vm858, %v796, %v966
      %968 = vst [vmem:[%s855 + $0xb4] sm:$0xf] %v967
      %969 = vst [vmem:[%s855 + $0xb8] sm:$0xf] %v805
      %v970 = vld [vmem:[%s855 + $0xbc] sm:$0x1]
      %v971 = vsel %vm864, %v806, %v970
      %972 = vst [vmem:[%s855 + $0xbc] sm:$0x1] %v971
      %973 = vst [vmem:[#allocation3] sm:$0xff] 0.0
      %974 = vst [vmem:[#allocation3 + $0x8] sm:$0xff] 0.0
      %975 = vst [vmem:[#allocation3 + $0x10] sm:$0xff] 0.0
      %976 = vst [vmem:[#allocation3 + $0x18] sm:$0xff] 0.0
      %977 = vst [vmem:[#allocation3 + $0x20] sm:$0xff] 0.0
      %978 = vst [vmem:[#allocation3 + $0x28] sm:$0xff] 0.0
      %979 = vst [vmem:[#allocation3 + $0x30] sm:$0xff] 0.0
      %980 = vst [vmem:[#allocation3 + $0x38] sm:$0xff] 0.0
      %981 = vst [vmem:[#allocation3 + $0x40] sm:$0xff] 0.0
      %982 = vst [vmem:[#allocation3 + $0x48] sm:$0xff] 0.0
      %983 = vst [vmem:[#allocation3 + $0x50] sm:$0xff] 0.0
      %984 = vst [vmem:[#allocation3 + $0x58] sm:$0xff] 0.0
      %985 = vst [vmem:[#allocation3 + $0x60] sm:$0xff] 0.0
      %986 = vst [vmem:[#allocation3 + $0x68] sm:$0xff] 0.0
      %987 = vst [vmem:[#allocation3 + $0x70] sm:$0xff] 0.0
      %988 = vst [vmem:[#allocation3 + $0x78] sm:$0xff] 0.0
      %989 = vst [vmem:[#allocation3 + $0x80] sm:$0xff] 0.0
      %990 = vst [vmem:[#allocation3 + $0x88] sm:$0xff] 0.0
      %991 = vst [vmem:[#allocation3 + $0x90] sm:$0xff] 0.0
      %992 = vst [vmem:[#allocation3 + $0x98] sm:$0xff] 0.0
      %993 = vst [vmem:[#allocation3 + $0xa0] sm:$0xff] 0.0
      %994 = vst [vmem:[#allocation3 + $0xa8] sm:$0xff] 0.0
      %995 = vst [vmem:[#allocation3 + $0xb0] sm:$0xff] 0.0
      %996 = vst [vmem:[#allocation3 + $0xb8] sm:$0xff] 0.0
      %997 = vst [vmem:[#allocation3 + $0xc0] sm:$0xff] 0.0
      %998 = vst [vmem:[#allocation3 + $0xc8] sm:$0xff] 0.0
      %999 = vst [vmem:[#allocation3 + $0xd0] sm:$0xff] 0.0
      %1000 = vst [vmem:[#allocation3 + $0xd8] sm:$0xff] 0.0
      %1001 = vst [vmem:[#allocation3 + $0xe0] sm:$0xff] 0.0
      %1002 = vst [vmem:[#allocation3 + $0xe8] sm:$0xff] 0.0
      %1003 = vst [vmem:[#allocation3 + $0xf0] sm:$0xff] 0.0
      %1004 = vst [vmem:[#allocation3 + $0xf8] sm:$0xff] 0.0
      %v1005 = vld [vmem:[#allocation2] sm:$0xf]
      %v1006 = vld [vmem:[#allocation2 + $0x4] sm:$0xf]
      %v1007 = vld [vmem:[#allocation2 + $0xc] sm:$0xf]
      %v1008 = vld [vmem:[#allocation2 + $0x10] sm:$0xf]
      %v1009 = vld [vmem:[#allocation2 + $0x18] sm:$0xf]
      %v1010 = vld [vmem:[#allocation2 + $0x1c] sm:$0xf]
      %v1011 = vld [vmem:[#allocation2 + $0x24] sm:$0xf]
      %v1012 = vld [vmem:[#allocation2 + $0x28] sm:$0xf]
      %v1013 = vld [vmem:[#allocation2 + $0x30] sm:$0xf]
      %v1014 = vld [vmem:[#allocation2 + $0x34] sm:$0xf]
      %v1015 = vld [vmem:[#allocation2 + $0x3c] sm:$0xf]
      %v1016 = vld [vmem:[#allocation2 + $0x40] sm:$0xf]
      %v1017 = vld [vmem:[#allocation2 + $0x48] sm:$0xf]
      %v1018 = vld [vmem:[#allocation2 + $0x4c] sm:$0xf]
      %v1019 = vld [vmem:[#allocation2 + $0x54] sm:$0xf]
      %v1020 = vld [vmem:[#allocation2 + $0x58] sm:$0xf]
      %v1021 = vld [vmem:[#allocation2 + $0x60] sm:$0xf]
      %v1022 = vld [vmem:[#allocation2 + $0x64] sm:$0xf]
      %v1023 = vld [vmem:[#allocation2 + $0x6c] sm:$0xf]
      %v1024 = vld [vmem:[#allocation2 + $0x70] sm:$0xf]
      %v1025 = vld [vmem:[#allocation2 + $0x78] sm:$0xf]
      %v1026 = vld [vmem:[#allocation2 + $0x7c] sm:$0xf]
      %v1027 = vld [vmem:[#allocation2 + $0x84] sm:$0xf]
      %v1028 = vld [vmem:[#allocation2 + $0x88] sm:$0xf]
      %v1029 = vld [vmem:[#allocation2 + $0x90] sm:$0xf]
      %v1030 = vld [vmem:[#allocation2 + $0x94] sm:$0xf]
      %v1031 = vld [vmem:[#allocation2 + $0x9c] sm:$0xf]
      %v1032 = vld [vmem:[#allocation2 + $0xa0] sm:$0xf]
      %v1033 = vld [vmem:[#allocation2 + $0xa8] sm:$0xf]
      %v1034 = vld [vmem:[#allocation2 + $0xac] sm:$0xf]
      %v1035 = vld [vmem:[#allocation2 + $0xb4] sm:$0xf]
      %v1036 = vld [vmem:[#allocation2 + $0xb8] sm:$0xf]
      %v1037 = vld [vmem:[#allocation3] sm:$0xff]
      %v1038 = vld [vmem:[#allocation3 + $0x8] sm:$0xff]
      %v1039 = vld [vmem:[#allocation3 + $0x10] sm:$0xff]
      %v1040 = vld [vmem:[#allocation3 + $0x18] sm:$0xff]
      %v1041 = vld [vmem:[#allocation3 + $0x20] sm:$0xff]
      %v1042 = vld [vmem:[#allocation3 + $0x28] sm:$0xff]
      %v1043 = vld [vmem:[#allocation3 + $0x30] sm:$0xff]
      %v1044 = vld [vmem:[#allocation3 + $0x38] sm:$0xff]
      %v1045 = vld [vmem:[#allocation3 + $0x40] sm:$0xff]
      %v1046 = vld [vmem:[#allocation3 + $0x48] sm:$0xff]
      %v1047 = vld [vmem:[#allocation3 + $0x50] sm:$0xff]
      %v1048 = vld [vmem:[#allocation3 + $0x58] sm:$0xff]
      %v1049 = vld [vmem:[#allocation3 + $0x60] sm:$0xff]
      %v1050 = vld [vmem:[#allocation3 + $0x68] sm:$0xff]
      %v1051 = vld [vmem:[#allocation3 + $0x70] sm:$0xff]
      %v1052 = vld [vmem:[#allocation3 + $0x78] sm:$0xff]
      %v1053 = vld [vmem:[#allocation3 + $0x80] sm:$0xff]
      %v1054 = vld [vmem:[#allocation3 + $0x88] sm:$0xff]
      %v1055 = vld [vmem:[#allocation3 + $0x90] sm:$0xff]
      %v1056 = vld [vmem:[#allocation3 + $0x98] sm:$0xff]
      %v1057 = vld [vmem:[#allocation3 + $0xa0] sm:$0xff]
      %v1058 = vld [vmem:[#allocation3 + $0xa8] sm:$0xff]
      %v1059 = vld [vmem:[#allocation3 + $0xb0] sm:$0xff]
      %v1060 = vld [vmem:[#allocation3 + $0xb8] sm:$0xff]
      %v1061 = vld [vmem:[#allocation3 + $0xc0] sm:$0xff]
      %v1062 = vld [vmem:[#allocation3 + $0xc8] sm:$0xff]
      %v1063 = vld [vmem:[#allocation3 + $0xd0] sm:$0xff]
      %v1064 = vld [vmem:[#allocation3 + $0xd8] sm:$0xff]
      %v1065 = vld [vmem:[#allocation3 + $0xe0] sm:$0xff]
      %v1066 = vld [vmem:[#allocation3 + $0xe8] sm:$0xff]
      %v1067 = vld [vmem:[#allocation3 + $0xf0] sm:$0xff]
      %v1068 = vld [vmem:[#allocation3 + $0xf8] sm:$0xff]
      %v1069 = vld [vmem:[%s3] sm:$0xf]
      %v1070 = vld [vmem:[%s3 + $0x4] sm:$0xf]
      %v1071 = vld [vmem:[%s3 + $0x8] sm:$0xf]
      %v1072 = vld [vmem:[%s3 + $0xc] sm:$0xf]
      %v1073 = vld [vmem:[%s3 + $0x10] sm:$0xf]
      %v1074 = vld [vmem:[%s3 + $0x14] sm:$0xf]
      %v1075 = vld [vmem:[%s3 + $0x18] sm:$0xf]
      %v1076 = vld [vmem:[%s3 + $0x1c] sm:$0xf]
      %v1077 = vld [vmem:[%s3 + $0x20] sm:$0xf]
      %v1078 = vld [vmem:[%s3 + $0x24] sm:$0xf]
      %v1079 = vld [vmem:[%s3 + $0x28] sm:$0xf]
      %v1080 = vld [vmem:[%s3 + $0x2c] sm:$0xf]
      %v1081 = vld [vmem:[%s3 + $0x30] sm:$0xf]
      %v1082 = vld [vmem:[%s3 + $0x34] sm:$0xf]
      %v1083 = vld [vmem:[%s3 + $0x38] sm:$0xf]
      %v1084 = vld [vmem:[%s3 + $0x3c] sm:$0xf]
      %v1117 = vunpack.c.l.b16 %v1005
      %v1118 = vunpack.c.l.b16 %v1006
      %v1119 = vunpack.c.l.b16 %v1007
      %v1120 = vunpack.c.l.b16 %v1008
      %v1121 = vunpack.c.l.b16 %v1009
      %v1122 = vunpack.c.l.b16 %v1010
      %v1123 = vunpack.c.l.b16 %v1011
      %v1124 = vunpack.c.l.b16 %v1012
      %v1125 = vunpack.c.l.b16 %v1013
      %v1126 = vunpack.c.l.b16 %v1014
      %v1127 = vunpack.c.l.b16 %v1015
      %v1128 = vunpack.c.l.b16 %v1016
      %v1129 = vunpack.c.l.b16 %v1017
      %v1130 = vunpack.c.l.b16 %v1018
      %v1131 = vunpack.c.l.b16 %v1019
      %v1132 = vunpack.c.l.b16 %v1020
      %v1133 = vunpack.c.l.b16 %v1021
      %v1134 = vunpack.c.l.b16 %v1022
      %v1135 = vunpack.c.l.b16 %v1023
      %v1136 = vunpack.c.l.b16 %v1024
      %v1137 = vunpack.c.l.b16 %v1025
      %v1138 = vunpack.c.l.b16 %v1026
      %v1139 = vunpack.c.l.b16 %v1027
      %v1140 = vunpack.c.l.b16 %v1028
      %v1141 = vunpack.c.l.b16 %v1029
      %v1142 = vunpack.c.l.b16 %v1030
      %v1143 = vunpack.c.l.b16 %v1031
      %v1144 = vunpack.c.l.b16 %v1032
      %v1145 = vunpack.c.l.b16 %v1033
      %v1146 = vunpack.c.l.b16 %v1034
      %v1147 = vunpack.c.l.b16 %v1035
      %v1148 = vunpack.c.l.b16 %v1036
      %v1149 = vpack.c.b16 %v1118, %v1117
      %v1150 = vpack.c.b16 %v1120, %v1119
      %v1151 = vpack.c.b16 %v1122, %v1121
      %v1152 = vpack.c.b16 %v1124, %v1123
      %v1153 = vpack.c.b16 %v1126, %v1125
      %v1154 = vpack.c.b16 %v1128, %v1127
      %v1155 = vpack.c.b16 %v1130, %v1129
      %v1156 = vpack.c.b16 %v1132, %v1131
      %v1157 = vpack.c.b16 %v1134, %v1133
      %v1158 = vpack.c.b16 %v1136, %v1135
      %v1159 = vpack.c.b16 %v1138, %v1137
      %v1160 = vpack.c.b16 %v1140, %v1139
      %v1161 = vpack.c.b16 %v1142, %v1141
      %v1162 = vpack.c.b16 %v1144, %v1143
      %v1163 = vpack.c.b16 %v1146, %v1145
      %v1164 = vpack.c.b16 %v1148, %v1147
      %v1197 = vunpack.c.l.b16 %v1069
      %v1198 = vunpack.c.l.b16 %v1070
      %v1199 = vunpack.c.l.b16 %v1071
      %v1200 = vunpack.c.l.b16 %v1072
      %v1201 = vunpack.c.l.b16 %v1073
      %v1202 = vunpack.c.l.b16 %v1074
      %v1203 = vunpack.c.l.b16 %v1075
      %v1204 = vunpack.c.l.b16 %v1076
      %v1205 = vunpack.c.l.b16 %v1077
      %v1206 = vunpack.c.l.b16 %v1078
      %v1207 = vunpack.c.l.b16 %v1079
      %v1208 = vunpack.c.l.b16 %v1080
      %v1209 = vunpack.c.l.b16 %v1081
      %v1210 = vunpack.c.l.b16 %v1082
      %v1211 = vunpack.c.l.b16 %v1083
      %v1212 = vunpack.c.l.b16 %v1084
      %v1213 = vpack.c.b16 %v1198, %v1197
      %v1214 = vpack.c.b16 %v1200, %v1199
      %v1215 = vpack.c.b16 %v1202, %v1201
      %v1216 = vpack.c.b16 %v1204, %v1203
      %v1217 = vpack.c.b16 %v1206, %v1205
      %v1218 = vpack.c.b16 %v1208, %v1207
      %v1219 = vpack.c.b16 %v1210, %v1209
      %v1220 = vpack.c.b16 %v1212, %v1211
      %1229 = vmatprep.subr.bf16.mxu0 0
      %1230 = vmatpush1.bf16.msra.mxu0 %v1220
      %1231 = vmatprep.subr.bf16.mxu0 0
      %1232 = vmatpush1.bf16.msra.mxu0 %v1219
      %1233 = vmatprep.subr.bf16.mxu0 0
      %1234 = vmatpush1.bf16.msra.mxu0 %v1218
      %1235 = vmatprep.subr.bf16.mxu0 0
      %1236 = vmatpush1.bf16.msra.mxu0 %v1217
      %1237 = vmatprep.subr.bf16.mxu0 0
      %1238 = vmatpush1.bf16.msra.mxu0 %v1216
      %1239 = vmatprep.subr.bf16.mxu0 0
      %1240 = vmatpush1.bf16.msra.mxu0 %v1215
      %1241 = vmatprep.subr.bf16.mxu0 0
      %1242 = vmatpush1.bf16.msra.mxu0 %v1214
      %1243 = vmatprep.subr.bf16.mxu0 0
      %1244 = vmatpush1.bf16.msra.mxu0 %v1213
      %1245 = vmatprep.subr.bf16.mxu0 0
      %1246 = vmatpush2.bf16.msra.mxu0 0
      %1247 = vmatprep.subr.bf16.mxu0 0
      %1248 = vmatpush2.bf16.msra.mxu0 0
      %1249 = vmatprep.subr.bf16.mxu0 0
      %1250 = vmatpush2.bf16.msra.mxu0 0
      %1251 = vmatprep.subr.bf16.mxu0 0
      %1252 = vmatpush2.bf16.msra.mxu0 0
      %1253 = vmatprep.subr.bf16.mxu0 0
      %1254 = vmatpush2.bf16.msra.mxu0 0
      %1255 = vmatprep.subr.bf16.mxu0 0
      %1256 = vmatpush2.bf16.msra.mxu0 0
      %1257 = vmatprep.subr.bf16.mxu0 0
      %1258 = vmatpush2.bf16.msra.mxu0 0
      %1259 = vmatprep.subr.bf16.mxu0 0
      %1260 = vmatpush2.bf16.msra.mxu0 0
      %1261 = vmatprep.mubr.bf16.mxu0 0
      %1262 = vmatmul.mubr.bf16.gmra.mxu0 %v1149
      %v1263 = vpop.f32.mrf.mxu0
      %v1264 = vadd.f32 0.0, %v1263
      %v1265 = vpop.f32.mrf.mxu0
      %v1266 = vpop.f32.mrf.mxu0
      %v1267 = vadd.f32 0.0, %v1266
      %v1268 = vpop.f32.mrf.mxu0
      %1269 = vmatprep.mubr.bf16.mxu0 0
      %1270 = vmatmul.mubr.bf16.gmra.mxu0 %v1150
      %v1271 = vpop.f32.mrf.mxu0
      %v1272 = vadd.f32 0.0, %v1271
      %v1273 = vpop.f32.mrf.mxu0
      %v1274 = vpop.f32.mrf.mxu0
      %v1275 = vadd.f32 0.0, %v1274
      %v1276 = vpop.f32.mrf.mxu0
      %1277 = vmatprep.mubr.bf16.mxu0 0
      %1278 = vmatmul.mubr.bf16.gmra.mxu0 %v1151
      %v1279 = vpop.f32.mrf.mxu0
      %v1280 = vadd.f32 0.0, %v1279
      %v1281 = vpop.f32.mrf.mxu0
      %v1282 = vpop.f32.mrf.mxu0
      %v1283 = vadd.f32 0.0, %v1282
      %v1284 = vpop.f32.mrf.mxu0
      %1285 = vmatprep.mubr.bf16.mxu0 0
      %1286 = vmatmul.mubr.bf16.gmra.mxu0 %v1152
      %v1287 = vpop.f32.mrf.mxu0
      %v1288 = vadd.f32 0.0, %v1287
      %v1289 = vpop.f32.mrf.mxu0
      %v1290 = vpop.f32.mrf.mxu0
      %v1291 = vadd.f32 0.0, %v1290
      %v1292 = vpop.f32.mrf.mxu0
      %1293 = vmatprep.mubr.bf16.mxu0 0
      %1294 = vmatmul.mubr.bf16.gmra.mxu0 %v1153
      %v1295 = vpop.f32.mrf.mxu0
      %v1296 = vadd.f32 0.0, %v1295
      %v1297 = vpop.f32.mrf.mxu0
      %v1298 = vpop.f32.mrf.mxu0
      %v1299 = vadd.f32 0.0, %v1298
      %v1300 = vpop.f32.mrf.mxu0
      %1301 = vmatprep.mubr.bf16.mxu0 0
      %1302 = vmatmul.mubr.bf16.gmra.mxu0 %v1154
      %v1303 = vpop.f32.mrf.mxu0
      %v1304 = vadd.f32 0.0, %v1303
      %v1305 = vpop.f32.mrf.mxu0
      %v1306 = vpop.f32.mrf.mxu0
      %v1307 = vadd.f32 0.0, %v1306
      %v1308 = vpop.f32.mrf.mxu0
      %1309 = vmatprep.mubr.bf16.mxu0 0
      %1310 = vmatmul.mubr.bf16.gmra.mxu0 %v1155
      %v1311 = vpop.f32.mrf.mxu0
      %v1312 = vadd.f32 0.0, %v1311
      %v1313 = vpop.f32.mrf.mxu0
      %v1314 = vpop.f32.mrf.mxu0
      %v1315 = vadd.f32 0.0, %v1314
      %v1316 = vpop.f32.mrf.mxu0
      %1317 = vmatprep.mubr.bf16.mxu0 0
      %1318 = vmatmul.mubr.bf16.gmra.mxu0 %v1156
      %v1319 = vpop.f32.mrf.mxu0
      %v1320 = vadd.f32 0.0, %v1319
      %v1321 = vpop.f32.mrf.mxu0
      %v1322 = vpop.f32.mrf.mxu0
      %v1323 = vadd.f32 0.0, %v1322
      %v1324 = vpop.f32.mrf.mxu0
      %1325 = vmatprep.mubr.bf16.mxu0 0
      %1326 = vmatmul.mubr.bf16.gmra.mxu0 %v1157
      %v1327 = vpop.f32.mrf.mxu0
      %v1328 = vadd.f32 0.0, %v1327
      %v1329 = vpop.f32.mrf.mxu0
      %v1330 = vpop.f32.mrf.mxu0
      %v1331 = vadd.f32 0.0, %v1330
      %v1332 = vpop.f32.mrf.mxu0
      %1333 = vmatprep.mubr.bf16.mxu0 0
      %1334 = vmatmul.mubr.bf16.gmra.mxu0 %v1158
      %v1335 = vpop.f32.mrf.mxu0
      %v1336 = vadd.f32 0.0, %v1335
      %v1337 = vpop.f32.mrf.mxu0
      %v1338 = vpop.f32.mrf.mxu0
      %v1339 = vadd.f32 0.0, %v1338
      %v1340 = vpop.f32.mrf.mxu0
      %1341 = vmatprep.mubr.bf16.mxu0 0
      %1342 = vmatmul.mubr.bf16.gmra.mxu0 %v1159
      %v1343 = vpop.f32.mrf.mxu0
      %v1344 = vadd.f32 0.0, %v1343
      %v1345 = vpop.f32.mrf.mxu0
      %v1346 = vpop.f32.mrf.mxu0
      %v1347 = vadd.f32 0.0, %v1346
      %v1348 = vpop.f32.mrf.mxu0
      %1349 = vmatprep.mubr.bf16.mxu0 0
      %1350 = vmatmul.mubr.bf16.gmra.mxu0 %v1160
      %v1351 = vpop.f32.mrf.mxu0
      %v1352 = vadd.f32 0.0, %v1351
      %v1353 = vpop.f32.mrf.mxu0
      %v1354 = vpop.f32.mrf.mxu0
      %v1355 = vadd.f32 0.0, %v1354
      %v1356 = vpop.f32.mrf.mxu0
      %1357 = vmatprep.mubr.bf16.mxu0 0
      %1358 = vmatmul.mubr.bf16.gmra.mxu0 %v1161
      %v1359 = vpop.f32.mrf.mxu0
      %v1360 = vadd.f32 0.0, %v1359
      %v1361 = vpop.f32.mrf.mxu0
      %v1362 = vpop.f32.mrf.mxu0
      %v1363 = vadd.f32 0.0, %v1362
      %v1364 = vpop.f32.mrf.mxu0
      %1365 = vmatprep.mubr.bf16.mxu0 0
      %1366 = vmatmul.mubr.bf16.gmra.mxu0 %v1162
      %v1367 = vpop.f32.mrf.mxu0
      %v1368 = vadd.f32 0.0, %v1367
      %v1369 = vpop.f32.mrf.mxu0
      %v1370 = vpop.f32.mrf.mxu0
      %v1371 = vadd.f32 0.0, %v1370
      %v1372 = vpop.f32.mrf.mxu0
      %1373 = vmatprep.mubr.bf16.mxu0 0
      %1374 = vmatmul.mubr.bf16.gmra.mxu0 %v1163
      %v1375 = vpop.f32.mrf.mxu0
      %v1376 = vadd.f32 0.0, %v1375
      %v1377 = vpop.f32.mrf.mxu0
      %v1378 = vpop.f32.mrf.mxu0
      %v1379 = vadd.f32 0.0, %v1378
      %v1380 = vpop.f32.mrf.mxu0
      %1381 = vmatprep.mubr.bf16.mxu0 0
      %1382 = vmatmul.mubr.bf16.gmra.mxu0 %v1164
      %v1383 = vpop.f32.mrf.mxu0
      %v1384 = vadd.f32 0.0, %v1383
      %v1385 = vpop.f32.mrf.mxu0
      %v1386 = vpop.f32.mrf.mxu0
      %v1387 = vadd.f32 0.0, %v1386
      %v1388 = vpop.f32.mrf.mxu0
      %1389 = vdwg.mxu0
      %v1390 = vadd.f32 %v1037, %v1264
      %v1391 = vadd.f32 %v1038, %v1267
      %v1392 = vadd.f32 %v1039, %v1272
      %v1393 = vadd.f32 %v1040, %v1275
      %v1394 = vadd.f32 %v1041, %v1280
      %v1395 = vadd.f32 %v1042, %v1283
      %v1396 = vadd.f32 %v1043, %v1288
      %v1397 = vadd.f32 %v1044, %v1291
      %v1398 = vadd.f32 %v1045, %v1296
      %v1399 = vadd.f32 %v1046, %v1299
      %v1400 = vadd.f32 %v1047, %v1304
      %v1401 = vadd.f32 %v1048, %v1307
      %v1402 = vadd.f32 %v1049, %v1312
      %v1403 = vadd.f32 %v1050, %v1315
      %v1404 = vadd.f32 %v1051, %v1320
      %v1405 = vadd.f32 %v1052, %v1323
      %v1406 = vadd.f32 %v1053, %v1328
      %v1407 = vadd.f32 %v1054, %v1331
      %v1408 = vadd.f32 %v1055, %v1336
      %v1409 = vadd.f32 %v1056, %v1339
      %v1410 = vadd.f32 %v1057, %v1344
      %v1411 = vadd.f32 %v1058, %v1347
      %v1412 = vadd.f32 %v1059, %v1352
      %v1413 = vadd.f32 %v1060, %v1355
      %v1414 = vadd.f32 %v1061, %v1360
      %v1415 = vadd.f32 %v1062, %v1363
      %v1416 = vadd.f32 %v1063, %v1368
      %v1417 = vadd.f32 %v1064, %v1371
      %v1418 = vadd.f32 %v1065, %v1376
      %v1419 = vadd.f32 %v1066, %v1379
      %v1420 = vadd.f32 %v1067, %v1384
      %v1421 = vadd.f32 %v1068, %v1387
      %1422 = vst [vmem:[#allocation3] sm:$0xff] %v1390
      %1423 = vst [vmem:[#allocation3 + $0x8] sm:$0xff] %v1391
      %1424 = vst [vmem:[#allocation3 + $0x10] sm:$0xff] %v1392
      %1425 = vst [vmem:[#allocation3 + $0x18] sm:$0xff] %v1393
      %1426 = vst [vmem:[#allocation3 + $0x20] sm:$0xff] %v1394
      %1427 = vst [vmem:[#allocation3 + $0x28] sm:$0xff] %v1395
      %1428 = vst [vmem:[#allocation3 + $0x30] sm:$0xff] %v1396
      %1429 = vst [vmem:[#allocation3 + $0x38] sm:$0xff] %v1397
      %1430 = vst [vmem:[#allocation3 + $0x40] sm:$0xff] %v1398
      %1431 = vst [vmem:[#allocation3 + $0x48] sm:$0xff] %v1399
      %1432 = vst [vmem:[#allocation3 + $0x50] sm:$0xff] %v1400
      %1433 = vst [vmem:[#allocation3 + $0x58] sm:$0xff] %v1401
      %1434 = vst [vmem:[#allocation3 + $0x60] sm:$0xff] %v1402
      %1435 = vst [vmem:[#allocation3 + $0x68] sm:$0xff] %v1403
      %1436 = vst [vmem:[#allocation3 + $0x70] sm:$0xff] %v1404
      %1437 = vst [vmem:[#allocation3 + $0x78] sm:$0xff] %v1405
      %1438 = vst [vmem:[#allocation3 + $0x80] sm:$0xff] %v1406
      %1439 = vst [vmem:[#allocation3 + $0x88] sm:$0xff] %v1407
      %1440 = vst [vmem:[#allocation3 + $0x90] sm:$0xff] %v1408
      %1441 = vst [vmem:[#allocation3 + $0x98] sm:$0xff] %v1409
      %1442 = vst [vmem:[#allocation3 + $0xa0] sm:$0xff] %v1410
      %1443 = vst [vmem:[#allocation3 + $0xa8] sm:$0xff] %v1411
      %1444 = vst [vmem:[#allocation3 + $0xb0] sm:$0xff] %v1412
      %1445 = vst [vmem:[#allocation3 + $0xb8] sm:$0xff] %v1413
      %1446 = vst [vmem:[#allocation3 + $0xc0] sm:$0xff] %v1414
      %1447 = vst [vmem:[#allocation3 + $0xc8] sm:$0xff] %v1415
      %1448 = vst [vmem:[#allocation3 + $0xd0] sm:$0xff] %v1416
      %1449 = vst [vmem:[#allocation3 + $0xd8] sm:$0xff] %v1417
      %1450 = vst [vmem:[#allocation3 + $0xe0] sm:$0xff] %v1418
      %1451 = vst [vmem:[#allocation3 + $0xe8] sm:$0xff] %v1419
      %1452 = vst [vmem:[#allocation3 + $0xf0] sm:$0xff] %v1420
      %1453 = vst [vmem:[#allocation3 + $0xf8] sm:$0xff] %v1421
      %v1454 = vld [vmem:[#allocation2] sm:$0xf]
      %v1455 = vld [vmem:[#allocation2 + $0x4] sm:$0xf]
      %v1456 = vld [vmem:[#allocation2 + $0x8] sm:$0x1]
      %v1457 = vld [vmem:[#allocation2 + $0xc] sm:$0xf]
      %v1458 = vld [vmem:[#allocation2 + $0x10] sm:$0xf]
      %v1459 = vld [vmem:[#allocation2 + $0x14] sm:$0x1]
      %v1460 = vld [vmem:[#allocation2 + $0x18] sm:$0xf]
      %v1461 = vld [vmem:[#allocation2 + $0x1c] sm:$0xf]
      %v1462 = vld [vmem:[#allocation2 + $0x20] sm:$0x1]
      %v1463 = vld [vmem:[#allocation2 + $0x24] sm:$0xf]
      %v1464 = vld [vmem:[#allocation2 + $0x28] sm:$0xf]
      %v1465 = vld [vmem:[#allocation2 + $0x2c] sm:$0x1]
      %v1466 = vld [vmem:[#allocation2 + $0x30] sm:$0xf]
      %v1467 = vld [vmem:[#allocation2 + $0x34] sm:$0xf]
      %v1468 = vld [vmem:[#allocation2 + $0x38] sm:$0x1]
      %v1469 = vld [vmem:[#allocation2 + $0x3c] sm:$0xf]
      %v1470 = vld [vmem:[#allocation2 + $0x40] sm:$0xf]
      %v1471 = vld [vmem:[#allocation2 + $0x44] sm:$0x1]
      %v1472 = vld [vmem:[#allocation2 + $0x48] sm:$0xf]
      %v1473 = vld [vmem:[#allocation2 + $0x4c] sm:$0xf]
      %v1474 = vld [vmem:[#allocation2 + $0x50] sm:$0x1]
      %v1475 = vld [vmem:[#allocation2 + $0x54] sm:$0xf]
      %v1476 = vld [vmem:[#allocation2 + $0x58] sm:$0xf]
      %v1477 = vld [vmem:[#allocation2 + $0x5c] sm:$0x1]
      %v1478 = vld [vmem:[#allocation2 + $0x60] sm:$0xf]
      %v1479 = vld [vmem:[#allocation2 + $0x64] sm:$0xf]
      %v1480 = vld [vmem:[#allocation2 + $0x68] sm:$0x1]
      %v1481 = vld [vmem:[#allocation2 + $0x6c] sm:$0xf]
      %v1482 = vld [vmem:[#allocation2 + $0x70] sm:$0xf]
      %v1483 = vld [vmem:[#allocation2 + $0x74] sm:$0x1]
      %v1484 = vld [vmem:[#allocation2 + $0x78] sm:$0xf]
      %v1485 = vld [vmem:[#allocation2 + $0x7c] sm:$0xf]
      %v1486 = vld [vmem:[#allocation2 + $0x80] sm:$0x1]
      %v1487 = vld [vmem:[#allocation2 + $0x84] sm:$0xf]
      %v1488 = vld [vmem:[#allocation2 + $0x88] sm:$0xf]
      %v1489 = vld [vmem:[#allocation2 + $0x8c] sm:$0x1]
      %v1490 = vld [vmem:[#allocation2 + $0x90] sm:$0xf]
      %v1491 = vld [vmem:[#allocation2 + $0x94] sm:$0xf]
      %v1492 = vld [vmem:[#allocation2 + $0x98] sm:$0x1]
      %v1493 = vld [vmem:[#allocation2 + $0x9c] sm:$0xf]
      %v1494 = vld [vmem:[#allocation2 + $0xa0] sm:$0xf]
      %v1495 = vld [vmem:[#allocation2 + $0xa4] sm:$0x1]
      %v1496 = vld [vmem:[#allocation2 + $0xa8] sm:$0xf]
      %v1497 = vld [vmem:[#allocation2 + $0xac] sm:$0xf]
      %v1498 = vld [vmem:[#allocation2 + $0xb0] sm:$0x1]
      %v1499 = vld [vmem:[#allocation2 + $0xb4] sm:$0xf]
      %v1500 = vld [vmem:[#allocation2 + $0xb8] sm:$0xf]
      %v1501 = vld [vmem:[#allocation2 + $0xbc] sm:$0x1]
      %v1502 = vld [vmem:[#allocation3] sm:$0xff]
      %v1503 = vld [vmem:[#allocation3 + $0x8] sm:$0xff]
      %v1504 = vld [vmem:[#allocation3 + $0x10] sm:$0xff]
      %v1505 = vld [vmem:[#allocation3 + $0x18] sm:$0xff]
      %v1506 = vld [vmem:[#allocation3 + $0x20] sm:$0xff]
      %v1507 = vld [vmem:[#allocation3 + $0x28] sm:$0xff]
      %v1508 = vld [vmem:[#allocation3 + $0x30] sm:$0xff]
      %v1509 = vld [vmem:[#allocation3 + $0x38] sm:$0xff]
      %v1510 = vld [vmem:[#allocation3 + $0x40] sm:$0xff]
      %v1511 = vld [vmem:[#allocation3 + $0x48] sm:$0xff]
      %v1512 = vld [vmem:[#allocation3 + $0x50] sm:$0xff]
      %v1513 = vld [vmem:[#allocation3 + $0x58] sm:$0xff]
      %v1514 = vld [vmem:[#allocation3 + $0x60] sm:$0xff]
      %v1515 = vld [vmem:[#allocation3 + $0x68] sm:$0xff]
      %v1516 = vld [vmem:[#allocation3 + $0x70] sm:$0xff]
      %v1517 = vld [vmem:[#allocation3 + $0x78] sm:$0xff]
      %v1518 = vld [vmem:[#allocation3 + $0x80] sm:$0xff]
      %v1519 = vld [vmem:[#allocation3 + $0x88] sm:$0xff]
      %v1520 = vld [vmem:[#allocation3 + $0x90] sm:$0xff]
      %v1521 = vld [vmem:[#allocation3 + $0x98] sm:$0xff]
      %v1522 = vld [vmem:[#allocation3 + $0xa0] sm:$0xff]
      %v1523 = vld [vmem:[#allocation3 + $0xa8] sm:$0xff]
      %v1524 = vld [vmem:[#allocation3 + $0xb0] sm:$0xff]
      %v1525 = vld [vmem:[#allocation3 + $0xb8] sm:$0xff]
      %v1526 = vld [vmem:[#allocation3 + $0xc0] sm:$0xff]
      %v1527 = vld [vmem:[#allocation3 + $0xc8] sm:$0xff]
      %v1528 = vld [vmem:[#allocation3 + $0xd0] sm:$0xff]
      %v1529 = vld [vmem:[#allocation3 + $0xd8] sm:$0xff]
      %v1530 = vld [vmem:[#allocation3 + $0xe0] sm:$0xff]
      %v1531 = vld [vmem:[#allocation3 + $0xe8] sm:$0xff]
      %v1532 = vld [vmem:[#allocation3 + $0xf0] sm:$0xff]
      %v1533 = vld [vmem:[#allocation3 + $0xf8] sm:$0xff]
      %vm1534 = vsmask.f32 3328
      %vm1535 = vsmask.f32 7440
      %vm1536 = vmor %vm1534, %vm1535
      %v1538 = vshrl.u32 %v1454, 16
      %v1540 = vrot.slane %v1538, 4
      %v1541 = vshll.u32 %v1454, 16
      %v1543 = vrot.slane %v1541, 5
      %v1544 = vor.u32 %v1540, %v1543
      %v1545 = vrot.slane %v1544, 4
      %v1547 = vshll.u32 %v1455, 16
      %v1549 = vrot.slane %v1547, 5
      %v1550 = vsel %vm1536, %v1545, %v1549
      %v1551 = vshrl.u32 %v1455, 16
      %v1553 = vrot.slane %v1551, 4
      %v1554 = vor.u32 %v1553, %v1549
      %v1555 = vrot.slane %v1554, 4
      %v1557 = vshll.u32 %v1456, 16
      %v1559 = vrot.slane %v1557, 5
      %v1560 = vsel %vm1536, %v1555, %v1559
      %v1562 = vshrl.u32 %v1457, 16
      %v1564 = vrot.slane %v1562, 4
      %v1565 = vshll.u32 %v1457, 16
      %v1567 = vrot.slane %v1565, 5
      %v1568 = vor.u32 %v1564, %v1567
      %v1569 = vrot.slane %v1568, 4
      %v1571 = vshll.u32 %v1458, 16
      %v1573 = vrot.slane %v1571, 5
      %v1574 = vsel %vm1536, %v1569, %v1573
      %v1575 = vshrl.u32 %v1458, 16
      %v1577 = vrot.slane %v1575, 4
      %v1578 = vor.u32 %v1577, %v1573
      %v1579 = vrot.slane %v1578, 4
      %v1581 = vshll.u32 %v1459, 16
      %v1583 = vrot.slane %v1581, 5
      %v1584 = vsel %vm1536, %v1579, %v1583
      %v1586 = vshrl.u32 %v1460, 16
      %v1588 = vrot.slane %v1586, 4
      %v1589 = vshll.u32 %v1460, 16
      %v1591 = vrot.slane %v1589, 5
      %v1592 = vor.u32 %v1588, %v1591
      %v1593 = vrot.slane %v1592, 4
      %v1595 = vshll.u32 %v1461, 16
      %v1597 = vrot.slane %v1595, 5
      %v1598 = vsel %vm1536, %v1593, %v1597
      %v1599 = vshrl.u32 %v1461, 16
      %v1601 = vrot.slane %v1599, 4
      %v1602 = vor.u32 %v1601, %v1597
      %v1603 = vrot.slane %v1602, 4
      %v1605 = vshll.u32 %v1462, 16
      %v1607 = vrot.slane %v1605, 5
      %v1608 = vsel %vm1536, %v1603, %v1607
      %v1610 = vshrl.u32 %v1463, 16
      %v1612 = vrot.slane %v1610, 4
      %v1613 = vshll.u32 %v1463, 16
      %v1615 = vrot.slane %v1613, 5
      %v1616 = vor.u32 %v1612, %v1615
      %v1617 = vrot.slane %v1616, 4
      %v1619 = vshll.u32 %v1464, 16
      %v1621 = vrot.slane %v1619, 5
      %v1622 = vsel %vm1536, %v1617, %v1621
      %v1623 = vshrl.u32 %v1464, 16
      %v1625 = vrot.slane %v1623, 4
      %v1626 = vor.u32 %v1625, %v1621
      %v1627 = vrot.slane %v1626, 4
      %v1629 = vshll.u32 %v1465, 16
      %v1631 = vrot.slane %v1629, 5
      %v1632 = vsel %vm1536, %v1627, %v1631
      %v1634 = vshrl.u32 %v1466, 16
      %v1636 = vrot.slane %v1634, 4
      %v1637 = vshll.u32 %v1466, 16
      %v1639 = vrot.slane %v1637, 5
      %v1640 = vor.u32 %v1636, %v1639
      %v1641 = vrot.slane %v1640, 4
      %v1643 = vshll.u32 %v1467, 16
      %v1645 = vrot.slane %v1643, 5
      %v1646 = vsel %vm1536, %v1641, %v1645
      %v1647 = vshrl.u32 %v1467, 16
      %v1649 = vrot.slane %v1647, 4
      %v1650 = vor.u32 %v1649, %v1645
      %v1651 = vrot.slane %v1650, 4
      %v1653 = vshll.u32 %v1468, 16
      %v1655 = vrot.slane %v1653, 5
      %v1656 = vsel %vm1536, %v1651, %v1655
      %v1658 = vshrl.u32 %v1469, 16
      %v1660 = vrot.slane %v1658, 4
      %v1661 = vshll.u32 %v1469, 16
      %v1663 = vrot.slane %v1661, 5
      %v1664 = vor.u32 %v1660, %v1663
      %v1665 = vrot.slane %v1664, 4
      %v1667 = vshll.u32 %v1470, 16
      %v1669 = vrot.slane %v1667, 5
      %v1670 = vsel %vm1536, %v1665, %v1669
      %v1671 = vshrl.u32 %v1470, 16
      %v1673 = vrot.slane %v1671, 4
      %v1674 = vor.u32 %v1673, %v1669
      %v1675 = vrot.slane %v1674, 4
      %v1677 = vshll.u32 %v1471, 16
      %v1679 = vrot.slane %v1677, 5
      %v1680 = vsel %vm1536, %v1675, %v1679
      %v1682 = vshrl.u32 %v1472, 16
      %v1684 = vrot.slane %v1682, 4
      %v1685 = vshll.u32 %v1472, 16
      %v1687 = vrot.slane %v1685, 5
      %v1688 = vor.u32 %v1684, %v1687
      %v1689 = vrot.slane %v1688, 4
      %v1691 = vshll.u32 %v1473, 16
      %v1693 = vrot.slane %v1691, 5
      %v1694 = vsel %vm1536, %v1689, %v1693
      %v1695 = vshrl.u32 %v1473, 16
      %v1697 = vrot.slane %v1695, 4
      %v1698 = vor.u32 %v1697, %v1693
      %v1699 = vrot.slane %v1698, 4
      %v1701 = vshll.u32 %v1474, 16
      %v1703 = vrot.slane %v1701, 5
      %v1704 = vsel %vm1536, %v1699, %v1703
      %v1706 = vshrl.u32 %v1475, 16
      %v1708 = vrot.slane %v1706, 4
      %v1709 = vshll.u32 %v1475, 16
      %v1711 = vrot.slane %v1709, 5
      %v1712 = vor.u32 %v1708, %v1711
      %v1713 = vrot.slane %v1712, 4
      %v1715 = vshll.u32 %v1476, 16
      %v1717 = vrot.slane %v1715, 5
      %v1718 = vsel %vm1536, %v1713, %v1717
      %v1719 = vshrl.u32 %v1476, 16
      %v1721 = vrot.slane %v1719, 4
      %v1722 = vor.u32 %v1721, %v1717
      %v1723 = vrot.slane %v1722, 4
      %v1725 = vshll.u32 %v1477, 16
      %v1727 = vrot.slane %v1725, 5
      %v1728 = vsel %vm1536, %v1723, %v1727
      %v1730 = vshrl.u32 %v1478, 16
      %v1732 = vrot.slane %v1730, 4
      %v1733 = vshll.u32 %v1478, 16
      %v1735 = vrot.slane %v1733, 5
      %v1736 = vor.u32 %v1732, %v1735
      %v1737 = vrot.slane %v1736, 4
      %v1739 = vshll.u32 %v1479, 16
      %v1741 = vrot.slane %v1739, 5
      %v1742 = vsel %vm1536, %v1737, %v1741
      %v1743 = vshrl.u32 %v1479, 16
      %v1745 = vrot.slane %v1743, 4
      %v1746 = vor.u32 %v1745, %v1741
      %v1747 = vrot.slane %v1746, 4
      %v1749 = vshll.u32 %v1480, 16
      %v1751 = vrot.slane %v1749, 5
      %v1752 = vsel %vm1536, %v1747, %v1751
      %v1754 = vshrl.u32 %v1481, 16
      %v1756 = vrot.slane %v1754, 4
      %v1757 = vshll.u32 %v1481, 16
      %v1759 = vrot.slane %v1757, 5
      %v1760 = vor.u32 %v1756, %v1759
      %v1761 = vrot.slane %v1760, 4
      %v1763 = vshll.u32 %v1482, 16
      %v1765 = vrot.slane %v1763, 5
      %v1766 = vsel %vm1536, %v1761, %v1765
      %v1767 = vshrl.u32 %v1482, 16
      %v1769 = vrot.slane %v1767, 4
      %v1770 = vor.u32 %v1769, %v1765
      %v1771 = vrot.slane %v1770, 4
      %v1773 = vshll.u32 %v1483, 16
      %v1775 = vrot.slane %v1773, 5
      %v1776 = vsel %vm1536, %v1771, %v1775
      %v1778 = vshrl.u32 %v1484, 16
      %v1780 = vrot.slane %v1778, 4
      %v1781 = vshll.u32 %v1484, 16
      %v1783 = vrot.slane %v1781, 5
      %v1784 = vor.u32 %v1780, %v1783
      %v1785 = vrot.slane %v1784, 4
      %v1787 = vshll.u32 %v1485, 16
      %v1789 = vrot.slane %v1787, 5
      %v1790 = vsel %vm1536, %v1785, %v1789
      %v1791 = vshrl.u32 %v1485, 16
      %v1793 = vrot.slane %v1791, 4
      %v1794 = vor.u32 %v1793, %v1789
      %v1795 = vrot.slane %v1794, 4
      %v1797 = vshll.u32 %v1486, 16
      %v1799 = vrot.slane %v1797, 5
      %v1800 = vsel %vm1536, %v1795, %v1799
      %v1802 = vshrl.u32 %v1487, 16
      %v1804 = vrot.slane %v1802, 4
      %v1805 = vshll.u32 %v1487, 16
      %v1807 = vrot.slane %v1805, 5
      %v1808 = vor.u32 %v1804, %v1807
      %v1809 = vrot.slane %v1808, 4
      %v1811 = vshll.u32 %v1488, 16
      %v1813 = vrot.slane %v1811, 5
      %v1814 = vsel %vm1536, %v1809, %v1813
      %v1815 = vshrl.u32 %v1488, 16
      %v1817 = vrot.slane %v1815, 4
      %v1818 = vor.u32 %v1817, %v1813
      %v1819 = vrot.slane %v1818, 4
      %v1821 = vshll.u32 %v1489, 16
      %v1823 = vrot.slane %v1821, 5
      %v1824 = vsel %vm1536, %v1819, %v1823
      %v1826 = vshrl.u32 %v1490, 16
      %v1828 = vrot.slane %v1826, 4
      %v1829 = vshll.u32 %v1490, 16
      %v1831 = vrot.slane %v1829, 5
      %v1832 = vor.u32 %v1828, %v1831
      %v1833 = vrot.slane %v1832, 4
      %v1835 = vshll.u32 %v1491, 16
      %v1837 = vrot.slane %v1835, 5
      %v1838 = vsel %vm1536, %v1833, %v1837
      %v1839 = vshrl.u32 %v1491, 16
      %v1841 = vrot.slane %v1839, 4
      %v1842 = vor.u32 %v1841, %v1837
      %v1843 = vrot.slane %v1842, 4
      %v1845 = vshll.u32 %v1492, 16
      %v1847 = vrot.slane %v1845, 5
      %v1848 = vsel %vm1536, %v1843, %v1847
      %v1850 = vshrl.u32 %v1493, 16
      %v1852 = vrot.slane %v1850, 4
      %v1853 = vshll.u32 %v1493, 16
      %v1855 = vrot.slane %v1853, 5
      %v1856 = vor.u32 %v1852, %v1855
      %v1857 = vrot.slane %v1856, 4
      %v1859 = vshll.u32 %v1494, 16
      %v1861 = vrot.slane %v1859, 5
      %v1862 = vsel %vm1536, %v1857, %v1861
      %v1863 = vshrl.u32 %v1494, 16
      %v1865 = vrot.slane %v1863, 4
      %v1866 = vor.u32 %v1865, %v1861
      %v1867 = vrot.slane %v1866, 4
      %v1869 = vshll.u32 %v1495, 16
      %v1871 = vrot.slane %v1869, 5
      %v1872 = vsel %vm1536, %v1867, %v1871
      %v1874 = vshrl.u32 %v1496, 16
      %v1876 = vrot.slane %v1874, 4
      %v1877 = vshll.u32 %v1496, 16
      %v1879 = vrot.slane %v1877, 5
      %v1880 = vor.u32 %v1876, %v1879
      %v1881 = vrot.slane %v1880, 4
      %v1883 = vshll.u32 %v1497, 16
      %v1885 = vrot.slane %v1883, 5
      %v1886 = vsel %vm1536, %v1881, %v1885
      %v1887 = vshrl.u32 %v1497, 16
      %v1889 = vrot.slane %v1887, 4
      %v1890 = vor.u32 %v1889, %v1885
      %v1891 = vrot.slane %v1890, 4
      %v1893 = vshll.u32 %v1498, 16
      %v1895 = vrot.slane %v1893, 5
      %v1896 = vsel %vm1536, %v1891, %v1895
      %v1898 = vshrl.u32 %v1499, 16
      %v1900 = vrot.slane %v1898, 4
      %v1901 = vshll.u32 %v1499, 16
      %v1903 = vrot.slane %v1901, 5
      %v1904 = vor.u32 %v1900, %v1903
      %v1905 = vrot.slane %v1904, 4
      %v1907 = vshll.u32 %v1500, 16
      %v1909 = vrot.slane %v1907, 5
      %v1910 = vsel %vm1536, %v1905, %v1909
      %v1911 = vshrl.u32 %v1500, 16
      %v1913 = vrot.slane %v1911, 4
      %v1914 = vor.u32 %v1913, %v1909
      %v1915 = vrot.slane %v1914, 4
      %v1917 = vshll.u32 %v1501, 16
      %v1919 = vrot.slane %v1917, 5
      %v1920 = vsel %vm1536, %v1915, %v1919
      %s1921 = scalar_lea.vmem %s3, 64
      %v1922 = vld [vmem:[%s1921] sm:$0xf]
      %v1923 = vld [vmem:[%s1921 + $0x4] sm:$0xf]
      %v1924 = vld [vmem:[%s1921 + $0x8] sm:$0xf]
      %v1925 = vld [vmem:[%s1921 + $0xc] sm:$0xf]
      %v1926 = vld [vmem:[%s1921 + $0x10] sm:$0xf]
      %v1927 = vld [vmem:[%s1921 + $0x14] sm:$0xf]
      %v1928 = vld [vmem:[%s1921 + $0x18] sm:$0xf]
      %v1929 = vld [vmem:[%s1921 + $0x1c] sm:$0xf]
      %v1930 = vld [vmem:[%s1921 + $0x20] sm:$0xf]
      %v1931 = vld [vmem:[%s1921 + $0x24] sm:$0xf]
      %v1932 = vld [vmem:[%s1921 + $0x28] sm:$0xf]
      %v1933 = vld [vmem:[%s1921 + $0x2c] sm:$0xf]
      %v1934 = vld [vmem:[%s1921 + $0x30] sm:$0xf]
      %v1935 = vld [vmem:[%s1921 + $0x34] sm:$0xf]
      %v1936 = vld [vmem:[%s1921 + $0x38] sm:$0xf]
      %v1937 = vld [vmem:[%s1921 + $0x3c] sm:$0xf]
      %v1938 = vunpack.c.l.b16 %v1550
      %v1939 = vunpack.c.l.b16 %v1560
      %v1940 = vunpack.c.l.b16 %v1574
      %v1941 = vunpack.c.l.b16 %v1584
      %v1942 = vunpack.c.l.b16 %v1598
      %v1943 = vunpack.c.l.b16 %v1608
      %v1944 = vunpack.c.l.b16 %v1622
      %v1945 = vunpack.c.l.b16 %v1632
      %v1946 = vunpack.c.l.b16 %v1646
      %v1947 = vunpack.c.l.b16 %v1656
      %v1948 = vunpack.c.l.b16 %v1670
      %v1949 = vunpack.c.l.b16 %v1680
      %v1950 = vunpack.c.l.b16 %v1694
      %v1951 = vunpack.c.l.b16 %v1704
      %v1952 = vunpack.c.l.b16 %v1718
      %v1953 = vunpack.c.l.b16 %v1728
      %v1954 = vunpack.c.l.b16 %v1742
      %v1955 = vunpack.c.l.b16 %v1752
      %v1956 = vunpack.c.l.b16 %v1766
      %v1957 = vunpack.c.l.b16 %v1776
      %v1958 = vunpack.c.l.b16 %v1790
      %v1959 = vunpack.c.l.b16 %v1800
      %v1960 = vunpack.c.l.b16 %v1814
      %v1961 = vunpack.c.l.b16 %v1824
      %v1962 = vunpack.c.l.b16 %v1838
      %v1963 = vunpack.c.l.b16 %v1848
      %v1964 = vunpack.c.l.b16 %v1862
      %v1965 = vunpack.c.l.b16 %v1872
      %v1966 = vunpack.c.l.b16 %v1886
      %v1967 = vunpack.c.l.b16 %v1896
      %v1968 = vunpack.c.l.b16 %v1910
      %v1969 = vunpack.c.l.b16 %v1920
      %v1970 = vpack.c.b16 %v1939, %v1938
      %v1971 = vpack.c.b16 %v1941, %v1940
      %v1972 = vpack.c.b16 %v1943, %v1942
      %v1973 = vpack.c.b16 %v1945, %v1944
      %v1974 = vpack.c.b16 %v1947, %v1946
      %v1975 = vpack.c.b16 %v1949, %v1948
      %v1976 = vpack.c.b16 %v1951, %v1950
      %v1977 = vpack.c.b16 %v1953, %v1952
      %v1978 = vpack.c.b16 %v1955, %v1954
      %v1979 = vpack.c.b16 %v1957, %v1956
      %v1980 = vpack.c.b16 %v1959, %v1958
      %v1981 = vpack.c.b16 %v1961, %v1960
      %v1982 = vpack.c.b16 %v1963, %v1962
      %v1983 = vpack.c.b16 %v1965, %v1964
      %v1984 = vpack.c.b16 %v1967, %v1966
      %v1985 = vpack.c.b16 %v1969, %v1968
      %v2018 = vunpack.c.l.b16 %v1922
      %v2019 = vunpack.c.l.b16 %v1923
      %v2020 = vunpack.c.l.b16 %v1924
      %v2021 = vunpack.c.l.b16 %v1925
      %v2022 = vunpack.c.l.b16 %v1926
      %v2023 = vunpack.c.l.b16 %v1927
      %v2024 = vunpack.c.l.b16 %v1928
      %v2025 = vunpack.c.l.b16 %v1929
      %v2026 = vunpack.c.l.b16 %v1930
      %v2027 = vunpack.c.l.b16 %v1931
      %v2028 = vunpack.c.l.b16 %v1932
      %v2029 = vunpack.c.l.b16 %v1933
      %v2030 = vunpack.c.l.b16 %v1934
      %v2031 = vunpack.c.l.b16 %v1935
      %v2032 = vunpack.c.l.b16 %v1936
      %v2033 = vunpack.c.l.b16 %v1937
      %v2034 = vpack.c.b16 %v2019, %v2018
      %v2035 = vpack.c.b16 %v2021, %v2020
      %v2036 = vpack.c.b16 %v2023, %v2022
      %v2037 = vpack.c.b16 %v2025, %v2024
      %v2038 = vpack.c.b16 %v2027, %v2026
      %v2039 = vpack.c.b16 %v2029, %v2028
      %v2040 = vpack.c.b16 %v2031, %v2030
      %v2041 = vpack.c.b16 %v2033, %v2032
      %2050 = vmatprep.subr.bf16.mxu0 0
      %2051 = vmatpush1.bf16.msra.mxu0 %v2041
      %2052 = vmatprep.subr.bf16.mxu0 0
      %2053 = vmatpush1.bf16.msra.mxu0 %v2040
      %2054 = vmatprep.subr.bf16.mxu0 0
      %2055 = vmatpush1.bf16.msra.mxu0 %v2039
      %2056 = vmatprep.subr.bf16.mxu0 0
      %2057 = vmatpush1.bf16.msra.mxu0 %v2038
      %2058 = vmatprep.subr.bf16.mxu0 0
      %2059 = vmatpush1.bf16.msra.mxu0 %v2037
      %2060 = vmatprep.subr.bf16.mxu0 0
      %2061 = vmatpush1.bf16.msra.mxu0 %v2036
      %2062 = vmatprep.subr.bf16.mxu0 0
      %2063 = vmatpush1.bf16.msra.mxu0 %v2035
      %2064 = vmatprep.subr.bf16.mxu0 0
      %2065 = vmatpush1.bf16.msra.mxu0 %v2034
      %2066 = vmatprep.subr.bf16.mxu0 0
      %2067 = vmatpush2.bf16.msra.mxu0 0
      %2068 = vmatprep.subr.bf16.mxu0 0
      %2069 = vmatpush2.bf16.msra.mxu0 0
      %2070 = vmatprep.subr.bf16.mxu0 0
      %2071 = vmatpush2.bf16.msra.mxu0 0
      %2072 = vmatprep.subr.bf16.mxu0 0
      %2073 = vmatpush2.bf16.msra.mxu0 0
      %2074 = vmatprep.subr.bf16.mxu0 0
      %2075 = vmatpush2.bf16.msra.mxu0 0
      %2076 = vmatprep.subr.bf16.mxu0 0
      %2077 = vmatpush2.bf16.msra.mxu0 0
      %2078 = vmatprep.subr.bf16.mxu0 0
      %2079 = vmatpush2.bf16.msra.mxu0 0
      %2080 = vmatprep.subr.bf16.mxu0 0
      %2081 = vmatpush2.bf16.msra.mxu0 0
      %2082 = vmatprep.mubr.bf16.mxu0 0
      %2083 = vmatmul.mubr.bf16.gmra.mxu0 %v1970
      %v2084 = vpop.f32.mrf.mxu0
      %v2085 = vadd.f32 0.0, %v2084
      %v2086 = vpop.f32.mrf.mxu0
      %v2087 = vpop.f32.mrf.mxu0
      %v2088 = vadd.f32 0.0, %v2087
      %v2089 = vpop.f32.mrf.mxu0
      %2090 = vmatprep.mubr.bf16.mxu0 0
      %2091 = vmatmul.mubr.bf16.gmra.mxu0 %v1971
      %v2092 = vpop.f32.mrf.mxu0
      %v2093 = vadd.f32 0.0, %v2092
      %v2094 = vpop.f32.mrf.mxu0
      %v2095 = vpop.f32.mrf.mxu0
      %v2096 = vadd.f32 0.0, %v2095
      %v2097 = vpop.f32.mrf.mxu0
      %2098 = vmatprep.mubr.bf16.mxu0 0
      %2099 = vmatmul.mubr.bf16.gmra.mxu0 %v1972
      %v2100 = vpop.f32.mrf.mxu0
      %v2101 = vadd.f32 0.0, %v2100
      %v2102 = vpop.f32.mrf.mxu0
      %v2103 = vpop.f32.mrf.mxu0
      %v2104 = vadd.f32 0.0, %v2103
      %v2105 = vpop.f32.mrf.mxu0
      %2106 = vmatprep.mubr.bf16.mxu0 0
      %2107 = vmatmul.mubr.bf16.gmra.mxu0 %v1973
      %v2108 = vpop.f32.mrf.mxu0
      %v2109 = vadd.f32 0.0, %v2108
      %v2110 = vpop.f32.mrf.mxu0
      %v2111 = vpop.f32.mrf.mxu0
      %v2112 = vadd.f32 0.0, %v2111
      %v2113 = vpop.f32.mrf.mxu0
      %2114 = vmatprep.mubr.bf16.mxu0 0
      %2115 = vmatmul.mubr.bf16.gmra.mxu0 %v1974
      %v2116 = vpop.f32.mrf.mxu0
      %v2117 = vadd.f32 0.0, %v2116
      %v2118 = vpop.f32.mrf.mxu0
      %v2119 = vpop.f32.mrf.mxu0
      %v2120 = vadd.f32 0.0, %v2119
      %v2121 = vpop.f32.mrf.mxu0
      %2122 = vmatprep.mubr.bf16.mxu0 0
      %2123 = vmatmul.mubr.bf16.gmra.mxu0 %v1975
      %v2124 = vpop.f32.mrf.mxu0
      %v2125 = vadd.f32 0.0, %v2124
      %v2126 = vpop.f32.mrf.mxu0
      %v2127 = vpop.f32.mrf.mxu0
      %v2128 = vadd.f32 0.0, %v2127
      %v2129 = vpop.f32.mrf.mxu0
      %2130 = vmatprep.mubr.bf16.mxu0 0
      %2131 = vmatmul.mubr.bf16.gmra.mxu0 %v1976
      %v2132 = vpop.f32.mrf.mxu0
      %v2133 = vadd.f32 0.0, %v2132
      %v2134 = vpop.f32.mrf.mxu0
      %v2135 = vpop.f32.mrf.mxu0
      %v2136 = vadd.f32 0.0, %v2135
      %v2137 = vpop.f32.mrf.mxu0
      %2138 = vmatprep.mubr.bf16.mxu0 0
      %2139 = vmatmul.mubr.bf16.gmra.mxu0 %v1977
      %v2140 = vpop.f32.mrf.mxu0
      %v2141 = vadd.f32 0.0, %v2140
      %v2142 = vpop.f32.mrf.mxu0
      %v2143 = vpop.f32.mrf.mxu0
      %v2144 = vadd.f32 0.0, %v2143
      %v2145 = vpop.f32.mrf.mxu0
      %2146 = vmatprep.mubr.bf16.mxu0 0
      %2147 = vmatmul.mubr.bf16.gmra.mxu0 %v1978
      %v2148 = vpop.f32.mrf.mxu0
      %v2149 = vadd.f32 0.0, %v2148
      %v2150 = vpop.f32.mrf.mxu0
      %v2151 = vpop.f32.mrf.mxu0
      %v2152 = vadd.f32 0.0, %v2151
      %v2153 = vpop.f32.mrf.mxu0
      %2154 = vmatprep.mubr.bf16.mxu0 0
      %2155 = vmatmul.mubr.bf16.gmra.mxu0 %v1979
      %v2156 = vpop.f32.mrf.mxu0
      %v2157 = vadd.f32 0.0, %v2156
      %v2158 = vpop.f32.mrf.mxu0
      %v2159 = vpop.f32.mrf.mxu0
      %v2160 = vadd.f32 0.0, %v2159
      %v2161 = vpop.f32.mrf.mxu0
      %2162 = vmatprep.mubr.bf16.mxu0 0
      %2163 = vmatmul.mubr.bf16.gmra.mxu0 %v1980
      %v2164 = vpop.f32.mrf.mxu0
      %v2165 = vadd.f32 0.0, %v2164
      %v2166 = vpop.f32.mrf.mxu0
      %v2167 = vpop.f32.mrf.mxu0
      %v2168 = vadd.f32 0.0, %v2167
      %v2169 = vpop.f32.mrf.mxu0
      %2170 = vmatprep.mubr.bf16.mxu0 0
      %2171 = vmatmul.mubr.bf16.gmra.mxu0 %v1981
      %v2172 = vpop.f32.mrf.mxu0
      %v2173 = vadd.f32 0.0, %v2172
      %v2174 = vpop.f32.mrf.mxu0
      %v2175 = vpop.f32.mrf.mxu0
      %v2176 = vadd.f32 0.0, %v2175
      %v2177 = vpop.f32.mrf.mxu0
      %2178 = vmatprep.mubr.bf16.mxu0 0
      %2179 = vmatmul.mubr.bf16.gmra.mxu0 %v1982
      %v2180 = vpop.f32.mrf.mxu0
      %v2181 = vadd.f32 0.0, %v2180
      %v2182 = vpop.f32.mrf.mxu0
      %v2183 = vpop.f32.mrf.mxu0
      %v2184 = vadd.f32 0.0, %v2183
      %v2185 = vpop.f32.mrf.mxu0
      %2186 = vmatprep.mubr.bf16.mxu0 0
      %2187 = vmatmul.mubr.bf16.gmra.mxu0 %v1983
      %v2188 = vpop.f32.mrf.mxu0
      %v2189 = vadd.f32 0.0, %v2188
      %v2190 = vpop.f32.mrf.mxu0
      %v2191 = vpop.f32.mrf.mxu0
      %v2192 = vadd.f32 0.0, %v2191
      %v2193 = vpop.f32.mrf.mxu0
      %2194 = vmatprep.mubr.bf16.mxu0 0
      %2195 = vmatmul.mubr.bf16.gmra.mxu0 %v1984
      %v2196 = vpop.f32.mrf.mxu0
      %v2197 = vadd.f32 0.0, %v2196
      %v2198 = vpop.f32.mrf.mxu0
      %v2199 = vpop.f32.mrf.mxu0
      %v2200 = vadd.f32 0.0, %v2199
      %v2201 = vpop.f32.mrf.mxu0
      %2202 = vmatprep.mubr.bf16.mxu0 0
      %2203 = vmatmul.mubr.bf16.gmra.mxu0 %v1985
      %v2204 = vpop.f32.mrf.mxu0
      %v2205 = vadd.f32 0.0, %v2204
      %v2206 = vpop.f32.mrf.mxu0
      %v2207 = vpop.f32.mrf.mxu0
      %v2208 = vadd.f32 0.0, %v2207
      %v2209 = vpop.f32.mrf.mxu0
      %2210 = vdwg.mxu0
      %v2211 = vadd.f32 %v1502, %v2085
      %v2212 = vadd.f32 %v1503, %v2088
      %v2213 = vadd.f32 %v1504, %v2093
      %v2214 = vadd.f32 %v1505, %v2096
      %v2215 = vadd.f32 %v1506, %v2101
      %v2216 = vadd.f32 %v1507, %v2104
      %v2217 = vadd.f32 %v1508, %v2109
      %v2218 = vadd.f32 %v1509, %v2112
      %v2219 = vadd.f32 %v1510, %v2117
      %v2220 = vadd.f32 %v1511, %v2120
      %v2221 = vadd.f32 %v1512, %v2125
      %v2222 = vadd.f32 %v1513, %v2128
      %v2223 = vadd.f32 %v1514, %v2133
      %v2224 = vadd.f32 %v1515, %v2136
      %v2225 = vadd.f32 %v1516, %v2141
      %v2226 = vadd.f32 %v1517, %v2144
      %v2227 = vadd.f32 %v1518, %v2149
      %v2228 = vadd.f32 %v1519, %v2152
      %v2229 = vadd.f32 %v1520, %v2157
      %v2230 = vadd.f32 %v1521, %v2160
      %v2231 = vadd.f32 %v1522, %v2165
      %v2232 = vadd.f32 %v1523, %v2168
      %v2233 = vadd.f32 %v1524, %v2173
      %v2234 = vadd.f32 %v1525, %v2176
      %v2235 = vadd.f32 %v1526, %v2181
      %v2236 = vadd.f32 %v1527, %v2184
      %v2237 = vadd.f32 %v1528, %v2189
      %v2238 = vadd.f32 %v1529, %v2192
      %v2239 = vadd.f32 %v1530, %v2197
      %v2240 = vadd.f32 %v1531, %v2200
      %v2241 = vadd.f32 %v1532, %v2205
      %v2242 = vadd.f32 %v1533, %v2208
      %2243 = vst [vmem:[#allocation3] sm:$0xff] %v2211
      %2244 = vst [vmem:[#allocation3 + $0x8] sm:$0xff] %v2212
      %2245 = vst [vmem:[#allocation3 + $0x10] sm:$0xff] %v2213
      %2246 = vst [vmem:[#allocation3 + $0x18] sm:$0xff] %v2214
      %2247 = vst [vmem:[#allocation3 + $0x20] sm:$0xff] %v2215
      %2248 = vst [vmem:[#allocation3 + $0x28] sm:$0xff] %v2216
      %2249 = vst [vmem:[#allocation3 + $0x30] sm:$0xff] %v2217
      %2250 = vst [vmem:[#allocation3 + $0x38] sm:$0xff] %v2218
      %2251 = vst [vmem:[#allocation3 + $0x40] sm:$0xff] %v2219
      %2252 = vst [vmem:[#allocation3 + $0x48] sm:$0xff] %v2220
      %2253 = vst [vmem:[#allocation3 + $0x50] sm:$0xff] %v2221
      %2254 = vst [vmem:[#allocation3 + $0x58] sm:$0xff] %v2222
      %2255 = vst [vmem:[#allocation3 + $0x60] sm:$0xff] %v2223
      %2256 = vst [vmem:[#allocation3 + $0x68] sm:$0xff] %v2224
      %2257 = vst [vmem:[#allocation3 + $0x70] sm:$0xff] %v2225
      %2258 = vst [vmem:[#allocation3 + $0x78] sm:$0xff] %v2226
      %2259 = vst [vmem:[#allocation3 + $0x80] sm:$0xff] %v2227
      %2260 = vst [vmem:[#allocation3 + $0x88] sm:$0xff] %v2228
      %2261 = vst [vmem:[#allocation3 + $0x90] sm:$0xff] %v2229
      %2262 = vst [vmem:[#allocation3 + $0x98] sm:$0xff] %v2230
      %2263 = vst [vmem:[#allocation3 + $0xa0] sm:$0xff] %v2231
      %2264 = vst [vmem:[#allocation3 + $0xa8] sm:$0xff] %v2232
      %2265 = vst [vmem:[#allocation3 + $0xb0] sm:$0xff] %v2233
      %2266 = vst [vmem:[#allocation3 + $0xb8] sm:$0xff] %v2234
      %2267 = vst [vmem:[#allocation3 + $0xc0] sm:$0xff] %v2235
      %2268 = vst [vmem:[#allocation3 + $0xc8] sm:$0xff] %v2236
      %2269 = vst [vmem:[#allocation3 + $0xd0] sm:$0xff] %v2237
      %2270 = vst [vmem:[#allocation3 + $0xd8] sm:$0xff] %v2238
      %2271 = vst [vmem:[#allocation3 + $0xe0] sm:$0xff] %v2239
      %2272 = vst [vmem:[#allocation3 + $0xe8] sm:$0xff] %v2240
      %2273 = vst [vmem:[#allocation3 + $0xf0] sm:$0xff] %v2241
      %2274 = vst [vmem:[#allocation3 + $0xf8] sm:$0xff] %v2242
      %v2275 = vld [vmem:[#allocation2] sm:$0xe]
      %v2276 = vld [vmem:[#allocation2 + $0x4] sm:$0xf]
      %v2277 = vld [vmem:[#allocation2 + $0x8] sm:$0x1]
      %v2278 = vld [vmem:[#allocation2 + $0xc] sm:$0xe]
      %v2279 = vld [vmem:[#allocation2 + $0x10] sm:$0xf]
      %v2280 = vld [vmem:[#allocation2 + $0x14] sm:$0x1]
      %v2281 = vld [vmem:[#allocation2 + $0x18] sm:$0xe]
      %v2282 = vld [vmem:[#allocation2 + $0x1c] sm:$0xf]
      %v2283 = vld [vmem:[#allocation2 + $0x20] sm:$0x1]
      %v2284 = vld [vmem:[#allocation2 + $0x24] sm:$0xe]
      %v2285 = vld [vmem:[#allocation2 + $0x28] sm:$0xf]
      %v2286 = vld [vmem:[#allocation2 + $0x2c] sm:$0x1]
      %v2287 = vld [vmem:[#allocation2 + $0x30] sm:$0xe]
      %v2288 = vld [vmem:[#allocation2 + $0x34] sm:$0xf]
      %v2289 = vld [vmem:[#allocation2 + $0x38] sm:$0x1]
      %v2290 = vld [vmem:[#allocation2 + $0x3c] sm:$0xe]
      %v2291 = vld [vmem:[#allocation2 + $0x40] sm:$0xf]
      %v2292 = vld [vmem:[#allocation2 + $0x44] sm:$0x1]
      %v2293 = vld [vmem:[#allocation2 + $0x48] sm:$0xe]
      %v2294 = vld [vmem:[#allocation2 + $0x4c] sm:$0xf]
      %v2295 = vld [vmem:[#allocation2 + $0x50] sm:$0x1]
      %v2296 = vld [vmem:[#allocation2 + $0x54] sm:$0xe]
      %v2297 = vld [vmem:[#allocation2 + $0x58] sm:$0xf]
      %v2298 = vld [vmem:[#allocation2 + $0x5c] sm:$0x1]
      %v2299 = vld [vmem:[#allocation2 + $0x60] sm:$0xe]
      %v2300 = vld [vmem:[#allocation2 + $0x64] sm:$0xf]
      %v2301 = vld [vmem:[#allocation2 + $0x68] sm:$0x1]
      %v2302 = vld [vmem:[#allocation2 + $0x6c] sm:$0xe]
      %v2303 = vld [vmem:[#allocation2 + $0x70] sm:$0xf]
      %v2304 = vld [vmem:[#allocation2 + $0x74] sm:$0x1]
      %v2305 = vld [vmem:[#allocation2 + $0x78] sm:$0xe]
      %v2306 = vld [vmem:[#allocation2 + $0x7c] sm:$0xf]
      %v2307 = vld [vmem:[#allocation2 + $0x80] sm:$0x1]
      %v2308 = vld [vmem:[#allocation2 + $0x84] sm:$0xe]
      %v2309 = vld [vmem:[#allocation2 + $0x88] sm:$0xf]
      %v2310 = vld [vmem:[#allocation2 + $0x8c] sm:$0x1]
      %v2311 = vld [vmem:[#allocation2 + $0x90] sm:$0xe]
      %v2312 = vld [vmem:[#allocation2 + $0x94] sm:$0xf]
      %v2313 = vld [vmem:[#allocation2 + $0x98] sm:$0x1]
      %v2314 = vld [vmem:[#allocation2 + $0x9c] sm:$0xe]
      %v2315 = vld [vmem:[#allocation2 + $0xa0] sm:$0xf]
      %v2316 = vld [vmem:[#allocation2 + $0xa4] sm:$0x1]
      %v2317 = vld [vmem:[#allocation2 + $0xa8] sm:$0xe]
      %v2318 = vld [vmem:[#allocation2 + $0xac] sm:$0xf]
      %v2319 = vld [vmem:[#allocation2 + $0xb0] sm:$0x1]
      %v2320 = vld [vmem:[#allocation2 + $0xb4] sm:$0xe]
      %v2321 = vld [vmem:[#allocation2 + $0xb8] sm:$0xf]
      %v2322 = vld [vmem:[#allocation2 + $0xbc] sm:$0x1]
      %v2323 = vld [vmem:[#allocation3] sm:$0xff]
      %v2324 = vld [vmem:[#allocation3 + $0x8] sm:$0xff]
      %v2325 = vld [vmem:[#allocation3 + $0x10] sm:$0xff]
      %v2326 = vld [vmem:[#allocation3 + $0x18] sm:$0xff]
      %v2327 = vld [vmem:[#allocation3 + $0x20] sm:$0xff]
      %v2328 = vld [vmem:[#allocation3 + $0x28] sm:$0xff]
      %v2329 = vld [vmem:[#allocation3 + $0x30] sm:$0xff]
      %v2330 = vld [vmem:[#allocation3 + $0x38] sm:$0xff]
      %v2331 = vld [vmem:[#allocation3 + $0x40] sm:$0xff]
      %v2332 = vld [vmem:[#allocation3 + $0x48] sm:$0xff]
      %v2333 = vld [vmem:[#allocation3 + $0x50] sm:$0xff]
      %v2334 = vld [vmem:[#allocation3 + $0x58] sm:$0xff]
      %v2335 = vld [vmem:[#allocation3 + $0x60] sm:$0xff]
      %v2336 = vld [vmem:[#allocation3 + $0x68] sm:$0xff]
      %v2337 = vld [vmem:[#allocation3 + $0x70] sm:$0xff]
      %v2338 = vld [vmem:[#allocation3 + $0x78] sm:$0xff]
      %v2339 = vld [vmem:[#allocation3 + $0x80] sm:$0xff]
      %v2340 = vld [vmem:[#allocation3 + $0x88] sm:$0xff]
      %v2341 = vld [vmem:[#allocation3 + $0x90] sm:$0xff]
      %v2342 = vld [vmem:[#allocation3 + $0x98] sm:$0xff]
      %v2343 = vld [vmem:[#allocation3 + $0xa0] sm:$0xff]
      %v2344 = vld [vmem:[#allocation3 + $0xa8] sm:$0xff]
      %v2345 = vld [vmem:[#allocation3 + $0xb0] sm:$0xff]
      %v2346 = vld [vmem:[#allocation3 + $0xb8] sm:$0xff]
      %v2347 = vld [vmem:[#allocation3 + $0xc0] sm:$0xff]
      %v2348 = vld [vmem:[#allocation3 + $0xc8] sm:$0xff]
      %v2349 = vld [vmem:[#allocation3 + $0xd0] sm:$0xff]
      %v2350 = vld [vmem:[#allocation3 + $0xd8] sm:$0xff]
      %v2351 = vld [vmem:[#allocation3 + $0xe0] sm:$0xff]
      %v2352 = vld [vmem:[#allocation3 + $0xe8] sm:$0xff]
      %v2353 = vld [vmem:[#allocation3 + $0xf0] sm:$0xff]
      %v2354 = vld [vmem:[#allocation3 + $0xf8] sm:$0xff]
      %vm2403 = vcmask 1042432
      %vm2404 = vcmask 1046532
      %vm2405 = vmor %vm2403, %vm2404
      %v2406 = vrot.slane %v2275, 5
      %v2407 = vrot.slane %v2406, 4
      %v2408 = vrot.slane %v2276, 5
      %v2409 = vsel %vm2405, %v2407, %v2408
      %v2410 = vrot.slane %v2408, 4
      %v2411 = vrot.slane %v2277, 5
      %v2412 = vsel %vm2405, %v2410, %v2411
      %v2413 = vrot.slane %v2278, 5
      %v2414 = vrot.slane %v2413, 4
      %v2415 = vrot.slane %v2279, 5
      %v2416 = vsel %vm2405, %v2414, %v2415
      %v2417 = vrot.slane %v2415, 4
      %v2418 = vrot.slane %v2280, 5
      %v2419 = vsel %vm2405, %v2417, %v2418
      %v2420 = vrot.slane %v2281, 5
      %v2421 = vrot.slane %v2420, 4
      %v2422 = vrot.slane %v2282, 5
      %v2423 = vsel %vm2405, %v2421, %v2422
      %v2424 = vrot.slane %v2422, 4
      %v2425 = vrot.slane %v2283, 5
      %v2426 = vsel %vm2405, %v2424, %v2425
      %v2427 = vrot.slane %v2284, 5
      %v2428 = vrot.slane %v2427, 4
      %v2429 = vrot.slane %v2285, 5
      %v2430 = vsel %vm2405, %v2428, %v2429
      %v2431 = vrot.slane %v2429, 4
      %v2432 = vrot.slane %v2286, 5
      %v2433 = vsel %vm2405, %v2431, %v2432
      %v2434 = vrot.slane %v2287, 5
      %v2435 = vrot.slane %v2434, 4
      %v2436 = vrot.slane %v2288, 5
      %v2437 = vsel %vm2405, %v2435, %v2436
      %v2438 = vrot.slane %v2436, 4
      %v2439 = vrot.slane %v2289, 5
      %v2440 = vsel %vm2405, %v2438, %v2439
      %v2441 = vrot.slane %v2290, 5
      %v2442 = vrot.slane %v2441, 4
      %v2443 = vrot.slane %v2291, 5
      %v2444 = vsel %vm2405, %v2442, %v2443
      %v2445 = vrot.slane %v2443, 4
      %v2446 = vrot.slane %v2292, 5
      %v2447 = vsel %vm2405, %v2445, %v2446
      %v2448 = vrot.slane %v2293, 5
      %v2449 = vrot.slane %v2448, 4
      %v2450 = vrot.slane %v2294, 5
      %v2451 = vsel %vm2405, %v2449, %v2450
      %v2452 = vrot.slane %v2450, 4
      %v2453 = vrot.slane %v2295, 5
      %v2454 = vsel %vm2405, %v2452, %v2453
      %v2455 = vrot.slane %v2296, 5
      %v2456 = vrot.slane %v2455, 4
      %v2457 = vrot.slane %v2297, 5
      %v2458 = vsel %vm2405, %v2456, %v2457
      %v2459 = vrot.slane %v2457, 4
      %v2460 = vrot.slane %v2298, 5
      %v2461 = vsel %vm2405, %v2459, %v2460
      %v2462 = vrot.slane %v2299, 5
      %v2463 = vrot.slane %v2462, 4
      %v2464 = vrot.slane %v2300, 5
      %v2465 = vsel %vm2405, %v2463, %v2464
      %v2466 = vrot.slane %v2464, 4
      %v2467 = vrot.slane %v2301, 5
      %v2468 = vsel %vm2405, %v2466, %v2467
      %v2469 = vrot.slane %v2302, 5
      %v2470 = vrot.slane %v2469, 4
      %v2471 = vrot.slane %v2303, 5
      %v2472 = vsel %vm2405, %v2470, %v2471
      %v2473 = vrot.slane %v2471, 4
      %v2474 = vrot.slane %v2304, 5
      %v2475 = vsel %vm2405, %v2473, %v2474
      %v2476 = vrot.slane %v2305, 5
      %v2477 = vrot.slane %v2476, 4
      %v2478 = vrot.slane %v2306, 5
      %v2479 = vsel %vm2405, %v2477, %v2478
      %v2480 = vrot.slane %v2478, 4
      %v2481 = vrot.slane %v2307, 5
      %v2482 = vsel %vm2405, %v2480, %v2481
      %v2483 = vrot.slane %v2308, 5
      %v2484 = vrot.slane %v2483, 4
      %v2485 = vrot.slane %v2309, 5
      %v2486 = vsel %vm2405, %v2484, %v2485
      %v2487 = vrot.slane %v2485, 4
      %v2488 = vrot.slane %v2310, 5
      %v2489 = vsel %vm2405, %v2487, %v2488
      %v2490 = vrot.slane %v2311, 5
      %v2491 = vrot.slane %v2490, 4
      %v2492 = vrot.slane %v2312, 5
      %v2493 = vsel %vm2405, %v2491, %v2492
      %v2494 = vrot.slane %v2492, 4
      %v2495 = vrot.slane %v2313, 5
      %v2496 = vsel %vm2405, %v2494, %v2495
      %v2497 = vrot.slane %v2314, 5
      %v2498 = vrot.slane %v2497, 4
      %v2499 = vrot.slane %v2315, 5
      %v2500 = vsel %vm2405, %v2498, %v2499
      %v2501 = vrot.slane %v2499, 4
      %v2502 = vrot.slane %v2316, 5
      %v2503 = vsel %vm2405, %v2501, %v2502
      %v2504 = vrot.slane %v2317, 5
      %v2505 = vrot.slane %v2504, 4
      %v2506 = vrot.slane %v2318, 5
      %v2507 = vsel %vm2405, %v2505, %v2506
      %v2508 = vrot.slane %v2506, 4
      %v2509 = vrot.slane %v2319, 5
      %v2510 = vsel %vm2405, %v2508, %v2509
      %v2511 = vrot.slane %v2320, 5
      %v2512 = vrot.slane %v2511, 4
      %v2513 = vrot.slane %v2321, 5
      %v2514 = vsel %vm2405, %v2512, %v2513
      %v2515 = vrot.slane %v2513, 4
      %v2516 = vrot.slane %v2322, 5
      %v2517 = vsel %vm2405, %v2515, %v2516
      %s2518 = scalar_lea.vmem %s3, 128
      %v2519 = vld [vmem:[%s2518] sm:$0xf]
      %v2520 = vld [vmem:[%s2518 + $0x4] sm:$0xf]
      %v2521 = vld [vmem:[%s2518 + $0x8] sm:$0xf]
      %v2522 = vld [vmem:[%s2518 + $0xc] sm:$0xf]
      %v2523 = vld [vmem:[%s2518 + $0x10] sm:$0xf]
      %v2524 = vld [vmem:[%s2518 + $0x14] sm:$0xf]
      %v2525 = vld [vmem:[%s2518 + $0x18] sm:$0xf]
      %v2526 = vld [vmem:[%s2518 + $0x1c] sm:$0xf]
      %v2527 = vld [vmem:[%s2518 + $0x20] sm:$0xf]
      %v2528 = vld [vmem:[%s2518 + $0x24] sm:$0xf]
      %v2529 = vld [vmem:[%s2518 + $0x28] sm:$0xf]
      %v2530 = vld [vmem:[%s2518 + $0x2c] sm:$0xf]
      %v2531 = vld [vmem:[%s2518 + $0x30] sm:$0xf]
      %v2532 = vld [vmem:[%s2518 + $0x34] sm:$0xf]
      %v2533 = vld [vmem:[%s2518 + $0x38] sm:$0xf]
      %v2534 = vld [vmem:[%s2518 + $0x3c] sm:$0xf]
      %v2535 = vunpack.c.l.b16 %v2409
      %v2536 = vunpack.c.l.b16 %v2412
      %v2537 = vunpack.c.l.b16 %v2416
      %v2538 = vunpack.c.l.b16 %v2419
      %v2539 = vunpack.c.l.b16 %v2423
      %v2540 = vunpack.c.l.b16 %v2426
      %v2541 = vunpack.c.l.b16 %v2430
      %v2542 = vunpack.c.l.b16 %v2433
      %v2543 = vunpack.c.l.b16 %v2437
      %v2544 = vunpack.c.l.b16 %v2440
      %v2545 = vunpack.c.l.b16 %v2444
      %v2546 = vunpack.c.l.b16 %v2447
      %v2547 = vunpack.c.l.b16 %v2451
      %v2548 = vunpack.c.l.b16 %v2454
      %v2549 = vunpack.c.l.b16 %v2458
      %v2550 = vunpack.c.l.b16 %v2461
      %v2551 = vunpack.c.l.b16 %v2465
      %v2552 = vunpack.c.l.b16 %v2468
      %v2553 = vunpack.c.l.b16 %v2472
      %v2554 = vunpack.c.l.b16 %v2475
      %v2555 = vunpack.c.l.b16 %v2479
      %v2556 = vunpack.c.l.b16 %v2482
      %v2557 = vunpack.c.l.b16 %v2486
      %v2558 = vunpack.c.l.b16 %v2489
      %v2559 = vunpack.c.l.b16 %v2493
      %v2560 = vunpack.c.l.b16 %v2496
      %v2561 = vunpack.c.l.b16 %v2500
      %v2562 = vunpack.c.l.b16 %v2503
      %v2563 = vunpack.c.l.b16 %v2507
      %v2564 = vunpack.c.l.b16 %v2510
      %v2565 = vunpack.c.l.b16 %v2514
      %v2566 = vunpack.c.l.b16 %v2517
      %v2567 = vpack.c.b16 %v2536, %v2535
      %v2568 = vpack.c.b16 %v2538, %v2537
      %v2569 = vpack.c.b16 %v2540, %v2539
      %v2570 = vpack.c.b16 %v2542, %v2541
      %v2571 = vpack.c.b16 %v2544, %v2543
      %v2572 = vpack.c.b16 %v2546, %v2545
      %v2573 = vpack.c.b16 %v2548, %v2547
      %v2574 = vpack.c.b16 %v2550, %v2549
      %v2575 = vpack.c.b16 %v2552, %v2551
      %v2576 = vpack.c.b16 %v2554, %v2553
      %v2577 = vpack.c.b16 %v2556, %v2555
      %v2578 = vpack.c.b16 %v2558, %v2557
      %v2579 = vpack.c.b16 %v2560, %v2559
      %v2580 = vpack.c.b16 %v2562, %v2561
      %v2581 = vpack.c.b16 %v2564, %v2563
      %v2582 = vpack.c.b16 %v2566, %v2565
      %v2615 = vunpack.c.l.b16 %v2519
      %v2616 = vunpack.c.l.b16 %v2520
      %v2617 = vunpack.c.l.b16 %v2521
      %v2618 = vunpack.c.l.b16 %v2522
      %v2619 = vunpack.c.l.b16 %v2523
      %v2620 = vunpack.c.l.b16 %v2524
      %v2621 = vunpack.c.l.b16 %v2525
      %v2622 = vunpack.c.l.b16 %v2526
      %v2623 = vunpack.c.l.b16 %v2527
      %v2624 = vunpack.c.l.b16 %v2528
      %v2625 = vunpack.c.l.b16 %v2529
      %v2626 = vunpack.c.l.b16 %v2530
      %v2627 = vunpack.c.l.b16 %v2531
      %v2628 = vunpack.c.l.b16 %v2532
      %v2629 = vunpack.c.l.b16 %v2533
      %v2630 = vunpack.c.l.b16 %v2534
      %v2631 = vpack.c.b16 %v2616, %v2615
      %v2632 = vpack.c.b16 %v2618, %v2617
      %v2633 = vpack.c.b16 %v2620, %v2619
      %v2634 = vpack.c.b16 %v2622, %v2621
      %v2635 = vpack.c.b16 %v2624, %v2623
      %v2636 = vpack.c.b16 %v2626, %v2625
      %v2637 = vpack.c.b16 %v2628, %v2627
      %v2638 = vpack.c.b16 %v2630, %v2629
      %2647 = vmatprep.subr.bf16.mxu0 0
      %2648 = vmatpush1.bf16.msra.mxu0 %v2638
      %2649 = vmatprep.subr.bf16.mxu0 0
      %2650 = vmatpush1.bf16.msra.mxu0 %v2637
      %2651 = vmatprep.subr.bf16.mxu0 0
      %2652 = vmatpush1.bf16.msra.mxu0 %v2636
      %2653 = vmatprep.subr.bf16.mxu0 0
      %2654 = vmatpush1.bf16.msra.mxu0 %v2635
      %2655 = vmatprep.subr.bf16.mxu0 0
      %2656 = vmatpush1.bf16.msra.mxu0 %v2634
      %2657 = vmatprep.subr.bf16.mxu0 0
      %2658 = vmatpush1.bf16.msra.mxu0 %v2633
      %2659 = vmatprep.subr.bf16.mxu0 0
      %2660 = vmatpush1.bf16.msra.mxu0 %v2632
      %2661 = vmatprep.subr.bf16.mxu0 0
      %2662 = vmatpush1.bf16.msra.mxu0 %v2631
      %2663 = vmatprep.subr.bf16.mxu0 0
      %2664 = vmatpush2.bf16.msra.mxu0 0
      %2665 = vmatprep.subr.bf16.mxu0 0
      %2666 = vmatpush2.bf16.msra.mxu0 0
      %2667 = vmatprep.subr.bf16.mxu0 0
      %2668 = vmatpush2.bf16.msra.mxu0 0
      %2669 = vmatprep.subr.bf16.mxu0 0
      %2670 = vmatpush2.bf16.msra.mxu0 0
      %2671 = vmatprep.subr.bf16.mxu0 0
      %2672 = vmatpush2.bf16.msra.mxu0 0
      %2673 = vmatprep.subr.bf16.mxu0 0
      %2674 = vmatpush2.bf16.msra.mxu0 0
      %2675 = vmatprep.subr.bf16.mxu0 0
      %2676 = vmatpush2.bf16.msra.mxu0 0
      %2677 = vmatprep.subr.bf16.mxu0 0
      %2678 = vmatpush2.bf16.msra.mxu0 0
      %2679 = vmatprep.mubr.bf16.mxu0 0
      %2680 = vmatmul.mubr.bf16.gmra.mxu0 %v2567
      %v2681 = vpop.f32.mrf.mxu0
      %v2682 = vadd.f32 0.0, %v2681
      %v2683 = vpop.f32.mrf.mxu0
      %v2684 = vpop.f32.mrf.mxu0
      %v2685 = vadd.f32 0.0, %v2684
      %v2686 = vpop.f32.mrf.mxu0
      %2687 = vmatprep.mubr.bf16.mxu0 0
      %2688 = vmatmul.mubr.bf16.gmra.mxu0 %v2568
      %v2689 = vpop.f32.mrf.mxu0
      %v2690 = vadd.f32 0.0, %v2689
      %v2691 = vpop.f32.mrf.mxu0
      %v2692 = vpop.f32.mrf.mxu0
      %v2693 = vadd.f32 0.0, %v2692
      %v2694 = vpop.f32.mrf.mxu0
      %2695 = vmatprep.mubr.bf16.mxu0 0
      %2696 = vmatmul.mubr.bf16.gmra.mxu0 %v2569
      %v2697 = vpop.f32.mrf.mxu0
      %v2698 = vadd.f32 0.0, %v2697
      %v2699 = vpop.f32.mrf.mxu0
      %v2700 = vpop.f32.mrf.mxu0
      %v2701 = vadd.f32 0.0, %v2700
      %v2702 = vpop.f32.mrf.mxu0
      %2703 = vmatprep.mubr.bf16.mxu0 0
      %2704 = vmatmul.mubr.bf16.gmra.mxu0 %v2570
      %v2705 = vpop.f32.mrf.mxu0
      %v2706 = vadd.f32 0.0, %v2705
      %v2707 = vpop.f32.mrf.mxu0
      %v2708 = vpop.f32.mrf.mxu0
      %v2709 = vadd.f32 0.0, %v2708
      %v2710 = vpop.f32.mrf.mxu0
      %2711 = vmatprep.mubr.bf16.mxu0 0
      %2712 = vmatmul.mubr.bf16.gmra.mxu0 %v2571
      %v2713 = vpop.f32.mrf.mxu0
      %v2714 = vadd.f32 0.0, %v2713
      %v2715 = vpop.f32.mrf.mxu0
      %v2716 = vpop.f32.mrf.mxu0
      %v2717 = vadd.f32 0.0, %v2716
      %v2718 = vpop.f32.mrf.mxu0
      %2719 = vmatprep.mubr.bf16.mxu0 0
      %2720 = vmatmul.mubr.bf16.gmra.mxu0 %v2572
      %v2721 = vpop.f32.mrf.mxu0
      %v2722 = vadd.f32 0.0, %v2721
      %v2723 = vpop.f32.mrf.mxu0
      %v2724 = vpop.f32.mrf.mxu0
      %v2725 = vadd.f32 0.0, %v2724
      %v2726 = vpop.f32.mrf.mxu0
      %2727 = vmatprep.mubr.bf16.mxu0 0
      %2728 = vmatmul.mubr.bf16.gmra.mxu0 %v2573
      %v2729 = vpop.f32.mrf.mxu0
      %v2730 = vadd.f32 0.0, %v2729
      %v2731 = vpop.f32.mrf.mxu0
      %v2732 = vpop.f32.mrf.mxu0
      %v2733 = vadd.f32 0.0, %v2732
      %v2734 = vpop.f32.mrf.mxu0
      %2735 = vmatprep.mubr.bf16.mxu0 0
      %2736 = vmatmul.mubr.bf16.gmra.mxu0 %v2574
      %v2737 = vpop.f32.mrf.mxu0
      %v2738 = vadd.f32 0.0, %v2737
      %v2739 = vpop.f32.mrf.mxu0
      %v2740 = vpop.f32.mrf.mxu0
      %v2741 = vadd.f32 0.0, %v2740
      %v2742 = vpop.f32.mrf.mxu0
      %2743 = vmatprep.mubr.bf16.mxu0 0
      %2744 = vmatmul.mubr.bf16.gmra.mxu0 %v2575
      %v2745 = vpop.f32.mrf.mxu0
      %v2746 = vadd.f32 0.0, %v2745
      %v2747 = vpop.f32.mrf.mxu0
      %v2748 = vpop.f32.mrf.mxu0
      %v2749 = vadd.f32 0.0, %v2748
      %v2750 = vpop.f32.mrf.mxu0
      %2751 = vmatprep.mubr.bf16.mxu0 0
      %2752 = vmatmul.mubr.bf16.gmra.mxu0 %v2576
      %v2753 = vpop.f32.mrf.mxu0
      %v2754 = vadd.f32 0.0, %v2753
      %v2755 = vpop.f32.mrf.mxu0
      %v2756 = vpop.f32.mrf.mxu0
      %v2757 = vadd.f32 0.0, %v2756
      %v2758 = vpop.f32.mrf.mxu0
      %2759 = vmatprep.mubr.bf16.mxu0 0
      %2760 = vmatmul.mubr.bf16.gmra.mxu0 %v2577
      %v2761 = vpop.f32.mrf.mxu0
      %v2762 = vadd.f32 0.0, %v2761
      %v2763 = vpop.f32.mrf.mxu0
      %v2764 = vpop.f32.mrf.mxu0
      %v2765 = vadd.f32 0.0, %v2764
      %v2766 = vpop.f32.mrf.mxu0
      %2767 = vmatprep.mubr.bf16.mxu0 0
      %2768 = vmatmul.mubr.bf16.gmra.mxu0 %v2578
      %v2769 = vpop.f32.mrf.mxu0
      %v2770 = vadd.f32 0.0, %v2769
      %v2771 = vpop.f32.mrf.mxu0
      %v2772 = vpop.f32.mrf.mxu0
      %v2773 = vadd.f32 0.0, %v2772
      %v2774 = vpop.f32.mrf.mxu0
      %2775 = vmatprep.mubr.bf16.mxu0 0
      %2776 = vmatmul.mubr.bf16.gmra.mxu0 %v2579
      %v2777 = vpop.f32.mrf.mxu0
      %v2778 = vadd.f32 0.0, %v2777
      %v2779 = vpop.f32.mrf.mxu0
      %v2780 = vpop.f32.mrf.mxu0
      %v2781 = vadd.f32 0.0, %v2780
      %v2782 = vpop.f32.mrf.mxu0
      %2783 = vmatprep.mubr.bf16.mxu0 0
      %2784 = vmatmul.mubr.bf16.gmra.mxu0 %v2580
      %v2785 = vpop.f32.mrf.mxu0
      %v2786 = vadd.f32 0.0, %v2785
      %v2787 = vpop.f32.mrf.mxu0
      %v2788 = vpop.f32.mrf.mxu0
      %v2789 = vadd.f32 0.0, %v2788
      %v2790 = vpop.f32.mrf.mxu0
      %2791 = vmatprep.mubr.bf16.mxu0 0
      %2792 = vmatmul.mubr.bf16.gmra.mxu0 %v2581
      %v2793 = vpop.f32.mrf.mxu0
      %v2794 = vadd.f32 0.0, %v2793
      %v2795 = vpop.f32.mrf.mxu0
      %v2796 = vpop.f32.mrf.mxu0
      %v2797 = vadd.f32 0.0, %v2796
      %v2798 = vpop.f32.mrf.mxu0
      %2799 = vmatprep.mubr.bf16.mxu0 0
      %2800 = vmatmul.mubr.bf16.gmra.mxu0 %v2582
      %v2801 = vpop.f32.mrf.mxu0
      %v2802 = vadd.f32 0.0, %v2801
      %v2803 = vpop.f32.mrf.mxu0
      %v2804 = vpop.f32.mrf.mxu0
      %v2805 = vadd.f32 0.0, %v2804
      %v2806 = vpop.f32.mrf.mxu0
      %2807 = vdwg.mxu0
      %v2808 = vadd.f32 %v2323, %v2682
      %v2809 = vadd.f32 %v2324, %v2685
      %v2810 = vadd.f32 %v2325, %v2690
      %v2811 = vadd.f32 %v2326, %v2693
      %v2812 = vadd.f32 %v2327, %v2698
      %v2813 = vadd.f32 %v2328, %v2701
      %v2814 = vadd.f32 %v2329, %v2706
      %v2815 = vadd.f32 %v2330, %v2709
      %v2816 = vadd.f32 %v2331, %v2714
      %v2817 = vadd.f32 %v2332, %v2717
      %v2818 = vadd.f32 %v2333, %v2722
      %v2819 = vadd.f32 %v2334, %v2725
      %v2820 = vadd.f32 %v2335, %v2730
      %v2821 = vadd.f32 %v2336, %v2733
      %v2822 = vadd.f32 %v2337, %v2738
      %v2823 = vadd.f32 %v2338, %v2741
      %v2824 = vadd.f32 %v2339, %v2746
      %v2825 = vadd.f32 %v2340, %v2749
      %v2826 = vadd.f32 %v2341, %v2754
      %v2827 = vadd.f32 %v2342, %v2757
      %v2828 = vadd.f32 %v2343, %v2762
      %v2829 = vadd.f32 %v2344, %v2765
      %v2830 = vadd.f32 %v2345, %v2770
      %v2831 = vadd.f32 %v2346, %v2773
      %v2832 = vadd.f32 %v2347, %v2778
      %v2833 = vadd.f32 %v2348, %v2781
      %v2834 = vadd.f32 %v2349, %v2786
      %v2835 = vadd.f32 %v2350, %v2789
      %v2836 = vadd.f32 %v2351, %v2794
      %v2837 = vadd.f32 %v2352, %v2797
      %v2838 = vadd.f32 %v2353, %v2802
      %v2839 = vadd.f32 %v2354, %v2805
      %2840 = vst [vmem:[#allocation3] sm:$0xff] %v2808
      %2841 = vst [vmem:[#allocation3 + $0x8] sm:$0xff] %v2809
      %2842 = vst [vmem:[#allocation3 + $0x10] sm:$0xff] %v2810
      %2843 = vst [vmem:[#allocation3 + $0x18] sm:$0xff] %v2811
      %2844 = vst [vmem:[#allocation3 + $0x20] sm:$0xff] %v2812
      %2845 = vst [vmem:[#allocation3 + $0x28] sm:$0xff] %v2813
      %2846 = vst [vmem:[#allocation3 + $0x30] sm:$0xff] %v2814
      %2847 = vst [vmem:[#allocation3 + $0x38] sm:$0xff] %v2815
      %2848 = vst [vmem:[#allocation3 + $0x40] sm:$0xff] %v2816
      %2849 = vst [vmem:[#allocation3 + $0x48] sm:$0xff] %v2817
      %2850 = vst [vmem:[#allocation3 + $0x50] sm:$0xff] %v2818
      %2851 = vst [vmem:[#allocation3 + $0x58] sm:$0xff] %v2819
      %2852 = vst [vmem:[#allocation3 + $0x60] sm:$0xff] %v2820
      %2853 = vst [vmem:[#allocation3 + $0x68] sm:$0xff] %v2821
      %2854 = vst [vmem:[#allocation3 + $0x70] sm:$0xff] %v2822
      %2855 = vst [vmem:[#allocation3 + $0x78] sm:$0xff] %v2823
      %2856 = vst [vmem:[#allocation3 + $0x80] sm:$0xff] %v2824
      %2857 = vst [vmem:[#allocation3 + $0x88] sm:$0xff] %v2825
      %2858 = vst [vmem:[#allocation3 + $0x90] sm:$0xff] %v2826
      %2859 = vst [vmem:[#allocation3 + $0x98] sm:$0xff] %v2827
      %2860 = vst [vmem:[#allocation3 + $0xa0] sm:$0xff] %v2828
      %2861 = vst [vmem:[#allocation3 + $0xa8] sm:$0xff] %v2829
      %2862 = vst [vmem:[#allocation3 + $0xb0] sm:$0xff] %v2830
      %2863 = vst [vmem:[#allocation3 + $0xb8] sm:$0xff] %v2831
      %2864 = vst [vmem:[#allocation3 + $0xc0] sm:$0xff] %v2832
      %2865 = vst [vmem:[#allocation3 + $0xc8] sm:$0xff] %v2833
      %2866 = vst [vmem:[#allocation3 + $0xd0] sm:$0xff] %v2834
      %2867 = vst [vmem:[#allocation3 + $0xd8] sm:$0xff] %v2835
      %2868 = vst [vmem:[#allocation3 + $0xe0] sm:$0xff] %v2836
      %2869 = vst [vmem:[#allocation3 + $0xe8] sm:$0xff] %v2837
      %2870 = vst [vmem:[#allocation3 + $0xf0] sm:$0xff] %v2838
      %2871 = vst [vmem:[#allocation3 + $0xf8] sm:$0xff] %v2839
      %v2872 = vld [vmem:[%s855] sm:$0xf]
      %v2873 = vld [vmem:[%s855 + $0x4] sm:$0xf]
      %v2874 = vld [vmem:[%s855 + $0xc] sm:$0xf]
      %v2875 = vld [vmem:[%s855 + $0x10] sm:$0xf]
      %v2876 = vld [vmem:[%s855 + $0x18] sm:$0xf]
      %v2877 = vld [vmem:[%s855 + $0x1c] sm:$0xf]
      %v2878 = vld [vmem:[%s855 + $0x24] sm:$0xf]
      %v2879 = vld [vmem:[%s855 + $0x28] sm:$0xf]
      %v2880 = vld [vmem:[%s855 + $0x30] sm:$0xf]
      %v2881 = vld [vmem:[%s855 + $0x34] sm:$0xf]
      %v2882 = vld [vmem:[%s855 + $0x3c] sm:$0xf]
      %v2883 = vld [vmem:[%s855 + $0x40] sm:$0xf]
      %v2884 = vld [vmem:[%s855 + $0x48] sm:$0xf]
      %v2885 = vld [vmem:[%s855 + $0x4c] sm:$0xf]
      %v2886 = vld [vmem:[%s855 + $0x54] sm:$0xf]
      %v2887 = vld [vmem:[%s855 + $0x58] sm:$0xf]
      %v2888 = vld [vmem:[%s855 + $0x60] sm:$0xf]
      %v2889 = vld [vmem:[%s855 + $0x64] sm:$0xf]
      %v2890 = vld [vmem:[%s855 + $0x6c] sm:$0xf]
      %v2891 = vld [vmem:[%s855 + $0x70] sm:$0xf]
      %v2892 = vld [vmem:[%s855 + $0x78] sm:$0xf]
      %v2893 = vld [vmem:[%s855 + $0x7c] sm:$0xf]
      %v2894 = vld [vmem:[%s855 + $0x84] sm:$0xf]
      %v2895 = vld [vmem:[%s855 + $0x88] sm:$0xf]
      %v2896 = vld [vmem:[%s855 + $0x90] sm:$0xf]
      %v2897 = vld [vmem:[%s855 + $0x94] sm:$0xf]
      %v2898 = vld [vmem:[%s855 + $0x9c] sm:$0xf]
      %v2899 = vld [vmem:[%s855 + $0xa0] sm:$0xf]
      %v2900 = vld [vmem:[%s855 + $0xa8] sm:$0xf]
      %v2901 = vld [vmem:[%s855 + $0xac] sm:$0xf]
      %v2902 = vld [vmem:[%s855 + $0xb4] sm:$0xf]
      %v2903 = vld [vmem:[%s855 + $0xb8] sm:$0xf]
      %v2904 = vld [vmem:[#allocation3] sm:$0xff]
      %v2905 = vld [vmem:[#allocation3 + $0x8] sm:$0xff]
      %v2906 = vld [vmem:[#allocation3 + $0x10] sm:$0xff]
      %v2907 = vld [vmem:[#allocation3 + $0x18] sm:$0xff]
      %v2908 = vld [vmem:[#allocation3 + $0x20] sm:$0xff]
      %v2909 = vld [vmem:[#allocation3 + $0x28] sm:$0xff]
      %v2910 = vld [vmem:[#allocation3 + $0x30] sm:$0xff]
      %v2911 = vld [vmem:[#allocation3 + $0x38] sm:$0xff]
      %v2912 = vld [vmem:[#allocation3 + $0x40] sm:$0xff]
      %v2913 = vld [vmem:[#allocation3 + $0x48] sm:$0xff]
      %v2914 = vld [vmem:[#allocation3 + $0x50] sm:$0xff]
      %v2915 = vld [vmem:[#allocation3 + $0x58] sm:$0xff]
      %v2916 = vld [vmem:[#allocation3 + $0x60] sm:$0xff]
      %v2917 = vld [vmem:[#allocation3 + $0x68] sm:$0xff]
      %v2918 = vld [vmem:[#allocation3 + $0x70] sm:$0xff]
      %v2919 = vld [vmem:[#allocation3 + $0x78] sm:$0xff]
      %v2920 = vld [vmem:[#allocation3 + $0x80] sm:$0xff]
      %v2921 = vld [vmem:[#allocation3 + $0x88] sm:$0xff]
      %v2922 = vld [vmem:[#allocation3 + $0x90] sm:$0xff]
      %v2923 = vld [vmem:[#allocation3 + $0x98] sm:$0xff]
      %v2924 = vld [vmem:[#allocation3 + $0xa0] sm:$0xff]
      %v2925 = vld [vmem:[#allocation3 + $0xa8] sm:$0xff]
      %v2926 = vld [vmem:[#allocation3 + $0xb0] sm:$0xff]
      %v2927 = vld [vmem:[#allocation3 + $0xb8] sm:$0xff]
      %v2928 = vld [vmem:[#allocation3 + $0xc0] sm:$0xff]
      %v2929 = vld [vmem:[#allocation3 + $0xc8] sm:$0xff]
      %v2930 = vld [vmem:[#allocation3 + $0xd0] sm:$0xff]
      %v2931 = vld [vmem:[#allocation3 + $0xd8] sm:$0xff]
      %v2932 = vld [vmem:[#allocation3 + $0xe0] sm:$0xff]
      %v2933 = vld [vmem:[#allocation3 + $0xe8] sm:$0xff]
      %v2934 = vld [vmem:[#allocation3 + $0xf0] sm:$0xff]
      %v2935 = vld [vmem:[#allocation3 + $0xf8] sm:$0xff]
      %s2936 = scalar_lea.vmem %s3, 192
      %v2937 = vld [vmem:[%s2936] sm:$0xf]
      %v2938 = vld [vmem:[%s2936 + $0x4] sm:$0xf]
      %v2939 = vld [vmem:[%s2936 + $0x8] sm:$0xf]
      %v2940 = vld [vmem:[%s2936 + $0xc] sm:$0xf]
      %v2941 = vld [vmem:[%s2936 + $0x10] sm:$0xf]
      %v2942 = vld [vmem:[%s2936 + $0x14] sm:$0xf]
      %v2943 = vld [vmem:[%s2936 + $0x18] sm:$0xf]
      %v2944 = vld [vmem:[%s2936 + $0x1c] sm:$0xf]
      %v2945 = vld [vmem:[%s2936 + $0x20] sm:$0xf]
      %v2946 = vld [vmem:[%s2936 + $0x24] sm:$0xf]
      %v2947 = vld [vmem:[%s2936 + $0x28] sm:$0xf]
      %v2948 = vld [vmem:[%s2936 + $0x2c] sm:$0xf]
      %v2949 = vld [vmem:[%s2936 + $0x30] sm:$0xf]
      %v2950 = vld [vmem:[%s2936 + $0x34] sm:$0xf]
      %v2951 = vld [vmem:[%s2936 + $0x38] sm:$0xf]
      %v2952 = vld [vmem:[%s2936 + $0x3c] sm:$0xf]
      %v2985 = vunpack.c.l.b16 %v2872
      %v2986 = vunpack.c.l.b16 %v2873
      %v2987 = vunpack.c.l.b16 %v2874
      %v2988 = vunpack.c.l.b16 %v2875
      %v2989 = vunpack.c.l.b16 %v2876
      %v2990 = vunpack.c.l.b16 %v2877
      %v2991 = vunpack.c.l.b16 %v2878
      %v2992 = vunpack.c.l.b16 %v2879
      %v2993 = vunpack.c.l.b16 %v2880
      %v2994 = vunpack.c.l.b16 %v2881
      %v2995 = vunpack.c.l.b16 %v2882
      %v2996 = vunpack.c.l.b16 %v2883
      %v2997 = vunpack.c.l.b16 %v2884
      %v2998 = vunpack.c.l.b16 %v2885
      %v2999 = vunpack.c.l.b16 %v2886
      %v3000 = vunpack.c.l.b16 %v2887
      %v3001 = vunpack.c.l.b16 %v2888
      %v3002 = vunpack.c.l.b16 %v2889
      %v3003 = vunpack.c.l.b16 %v2890
      %v3004 = vunpack.c.l.b16 %v2891
      %v3005 = vunpack.c.l.b16 %v2892
      %v3006 = vunpack.c.l.b16 %v2893
      %v3007 = vunpack.c.l.b16 %v2894
      %v3008 = vunpack.c.l.b16 %v2895
      %v3009 = vunpack.c.l.b16 %v2896
      %v3010 = vunpack.c.l.b16 %v2897
      %v3011 = vunpack.c.l.b16 %v2898
      %v3012 = vunpack.c.l.b16 %v2899
      %v3013 = vunpack.c.l.b16 %v2900
      %v3014 = vunpack.c.l.b16 %v2901
      %v3015 = vunpack.c.l.b16 %v2902
      %v3016 = vunpack.c.l.b16 %v2903
      %v3017 = vpack.c.b16 %v2986, %v2985
      %v3018 = vpack.c.b16 %v2988, %v2987
      %v3019 = vpack.c.b16 %v2990, %v2989
      %v3020 = vpack.c.b16 %v2992, %v2991
      %v3021 = vpack.c.b16 %v2994, %v2993
      %v3022 = vpack.c.b16 %v2996, %v2995
      %v3023 = vpack.c.b16 %v2998, %v2997
      %v3024 = vpack.c.b16 %v3000, %v2999
      %v3025 = vpack.c.b16 %v3002, %v3001
      %v3026 = vpack.c.b16 %v3004, %v3003
      %v3027 = vpack.c.b16 %v3006, %v3005
      %v3028 = vpack.c.b16 %v3008, %v3007
      %v3029 = vpack.c.b16 %v3010, %v3009
      %v3030 = vpack.c.b16 %v3012, %v3011
      %v3031 = vpack.c.b16 %v3014, %v3013
      %v3032 = vpack.c.b16 %v3016, %v3015
      %v3065 = vunpack.c.l.b16 %v2937
      %v3066 = vunpack.c.l.b16 %v2938
      %v3067 = vunpack.c.l.b16 %v2939
      %v3068 = vunpack.c.l.b16 %v2940
      %v3069 = vunpack.c.l.b16 %v2941
      %v3070 = vunpack.c.l.b16 %v2942
      %v3071 = vunpack.c.l.b16 %v2943
      %v3072 = vunpack.c.l.b16 %v2944
      %v3073 = vunpack.c.l.b16 %v2945
      %v3074 = vunpack.c.l.b16 %v2946
      %v3075 = vunpack.c.l.b16 %v2947
      %v3076 = vunpack.c.l.b16 %v2948
      %v3077 = vunpack.c.l.b16 %v2949
      %v3078 = vunpack.c.l.b16 %v2950
      %v3079 = vunpack.c.l.b16 %v2951
      %v3080 = vunpack.c.l.b16 %v2952
      %v3081 = vpack.c.b16 %v3066, %v3065
      %v3082 = vpack.c.b16 %v3068, %v3067
      %v3083 = vpack.c.b16 %v3070, %v3069
      %v3084 = vpack.c.b16 %v3072, %v3071
      %v3085 = vpack.c.b16 %v3074, %v3073
      %v3086 = vpack.c.b16 %v3076, %v3075
      %v3087 = vpack.c.b16 %v3078, %v3077
      %v3088 = vpack.c.b16 %v3080, %v3079
      %3097 = vmatprep.subr.bf16.mxu0 0
      %3098 = vmatpush1.bf16.msra.mxu0 %v3088
      %3099 = vmatprep.subr.bf16.mxu0 0
      %3100 = vmatpush1.bf16.msra.mxu0 %v3087
      %3101 = vmatprep.subr.bf16.mxu0 0
      %3102 = vmatpush1.bf16.msra.mxu0 %v3086
      %3103 = vmatprep.subr.bf16.mxu0 0
      %3104 = vmatpush1.bf16.msra.mxu0 %v3085
      %3105 = vmatprep.subr.bf16.mxu0 0
      %3106 = vmatpush1.bf16.msra.mxu0 %v3084
      %3107 = vmatprep.subr.bf16.mxu0 0
      %3108 = vmatpush1.bf16.msra.mxu0 %v3083
      %3109 = vmatprep.subr.bf16.mxu0 0
      %3110 = vmatpush1.bf16.msra.mxu0 %v3082
      %3111 = vmatprep.subr.bf16.mxu0 0
      %3112 = vmatpush1.bf16.msra.mxu0 %v3081
      %3113 = vmatprep.subr.bf16.mxu0 0
      %3114 = vmatpush2.bf16.msra.mxu0 0
      %3115 = vmatprep.subr.bf16.mxu0 0
      %3116 = vmatpush2.bf16.msra.mxu0 0
      %3117 = vmatprep.subr.bf16.mxu0 0
      %3118 = vmatpush2.bf16.msra.mxu0 0
      %3119 = vmatprep.subr.bf16.mxu0 0
      %3120 = vmatpush2.bf16.msra.mxu0 0
      %3121 = vmatprep.subr.bf16.mxu0 0
      %3122 = vmatpush2.bf16.msra.mxu0 0
      %3123 = vmatprep.subr.bf16.mxu0 0
      %3124 = vmatpush2.bf16.msra.mxu0 0
      %3125 = vmatprep.subr.bf16.mxu0 0
      %3126 = vmatpush2.bf16.msra.mxu0 0
      %3127 = vmatprep.subr.bf16.mxu0 0
      %3128 = vmatpush2.bf16.msra.mxu0 0
      %3129 = vmatprep.mubr.bf16.mxu0 0
      %3130 = vmatmul.mubr.bf16.gmra.mxu0 %v3017
      %v3131 = vpop.f32.mrf.mxu0
      %v3132 = vadd.f32 0.0, %v3131
      %v3133 = vpop.f32.mrf.mxu0
      %v3134 = vpop.f32.mrf.mxu0
      %v3135 = vadd.f32 0.0, %v3134
      %v3136 = vpop.f32.mrf.mxu0
      %3137 = vmatprep.mubr.bf16.mxu0 0
      %3138 = vmatmul.mubr.bf16.gmra.mxu0 %v3018
      %v3139 = vpop.f32.mrf.mxu0
      %v3140 = vadd.f32 0.0, %v3139
      %v3141 = vpop.f32.mrf.mxu0
      %v3142 = vpop.f32.mrf.mxu0
      %v3143 = vadd.f32 0.0, %v3142
      %v3144 = vpop.f32.mrf.mxu0
      %3145 = vmatprep.mubr.bf16.mxu0 0
      %3146 = vmatmul.mubr.bf16.gmra.mxu0 %v3019
      %v3147 = vpop.f32.mrf.mxu0
      %v3148 = vadd.f32 0.0, %v3147
      %v3149 = vpop.f32.mrf.mxu0
      %v3150 = vpop.f32.mrf.mxu0
      %v3151 = vadd.f32 0.0, %v3150
      %v3152 = vpop.f32.mrf.mxu0
      %3153 = vmatprep.mubr.bf16.mxu0 0
      %3154 = vmatmul.mubr.bf16.gmra.mxu0 %v3020
      %v3155 = vpop.f32.mrf.mxu0
      %v3156 = vadd.f32 0.0, %v3155
      %v3157 = vpop.f32.mrf.mxu0
      %v3158 = vpop.f32.mrf.mxu0
      %v3159 = vadd.f32 0.0, %v3158
      %v3160 = vpop.f32.mrf.mxu0
      %3161 = vmatprep.mubr.bf16.mxu0 0
      %3162 = vmatmul.mubr.bf16.gmra.mxu0 %v3021
      %v3163 = vpop.f32.mrf.mxu0
      %v3164 = vadd.f32 0.0, %v3163
      %v3165 = vpop.f32.mrf.mxu0
      %v3166 = vpop.f32.mrf.mxu0
      %v3167 = vadd.f32 0.0, %v3166
      %v3168 = vpop.f32.mrf.mxu0
      %3169 = vmatprep.mubr.bf16.mxu0 0
      %3170 = vmatmul.mubr.bf16.gmra.mxu0 %v3022
      %v3171 = vpop.f32.mrf.mxu0
      %v3172 = vadd.f32 0.0, %v3171
      %v3173 = vpop.f32.mrf.mxu0
      %v3174 = vpop.f32.mrf.mxu0
      %v3175 = vadd.f32 0.0, %v3174
      %v3176 = vpop.f32.mrf.mxu0
      %3177 = vmatprep.mubr.bf16.mxu0 0
      %3178 = vmatmul.mubr.bf16.gmra.mxu0 %v3023
      %v3179 = vpop.f32.mrf.mxu0
      %v3180 = vadd.f32 0.0, %v3179
      %v3181 = vpop.f32.mrf.mxu0
      %v3182 = vpop.f32.mrf.mxu0
      %v3183 = vadd.f32 0.0, %v3182
      %v3184 = vpop.f32.mrf.mxu0
      %3185 = vmatprep.mubr.bf16.mxu0 0
      %3186 = vmatmul.mubr.bf16.gmra.mxu0 %v3024
      %v3187 = vpop.f32.mrf.mxu0
      %v3188 = vadd.f32 0.0, %v3187
      %v3189 = vpop.f32.mrf.mxu0
      %v3190 = vpop.f32.mrf.mxu0
      %v3191 = vadd.f32 0.0, %v3190
      %v3192 = vpop.f32.mrf.mxu0
      %3193 = vmatprep.mubr.bf16.mxu0 0
      %3194 = vmatmul.mubr.bf16.gmra.mxu0 %v3025
      %v3195 = vpop.f32.mrf.mxu0
      %v3196 = vadd.f32 0.0, %v3195
      %v3197 = vpop.f32.mrf.mxu0
      %v3198 = vpop.f32.mrf.mxu0
      %v3199 = vadd.f32 0.0, %v3198
      %v3200 = vpop.f32.mrf.mxu0
      %3201 = vmatprep.mubr.bf16.mxu0 0
      %3202 = vmatmul.mubr.bf16.gmra.mxu0 %v3026
      %v3203 = vpop.f32.mrf.mxu0
      %v3204 = vadd.f32 0.0, %v3203
      %v3205 = vpop.f32.mrf.mxu0
      %v3206 = vpop.f32.mrf.mxu0
      %v3207 = vadd.f32 0.0, %v3206
      %v3208 = vpop.f32.mrf.mxu0
      %3209 = vmatprep.mubr.bf16.mxu0 0
      %3210 = vmatmul.mubr.bf16.gmra.mxu0 %v3027
      %v3211 = vpop.f32.mrf.mxu0
      %v3212 = vadd.f32 0.0, %v3211
      %v3213 = vpop.f32.mrf.mxu0
      %v3214 = vpop.f32.mrf.mxu0
      %v3215 = vadd.f32 0.0, %v3214
      %v3216 = vpop.f32.mrf.mxu0
      %3217 = vmatprep.mubr.bf16.mxu0 0
      %3218 = vmatmul.mubr.bf16.gmra.mxu0 %v3028
      %v3219 = vpop.f32.mrf.mxu0
      %v3220 = vadd.f32 0.0, %v3219
      %v3221 = vpop.f32.mrf.mxu0
      %v3222 = vpop.f32.mrf.mxu0
      %v3223 = vadd.f32 0.0, %v3222
      %v3224 = vpop.f32.mrf.mxu0
      %3225 = vmatprep.mubr.bf16.mxu0 0
      %3226 = vmatmul.mubr.bf16.gmra.mxu0 %v3029
      %v3227 = vpop.f32.mrf.mxu0
      %v3228 = vadd.f32 0.0, %v3227
      %v3229 = vpop.f32.mrf.mxu0
      %v3230 = vpop.f32.mrf.mxu0
      %v3231 = vadd.f32 0.0, %v3230
      %v3232 = vpop.f32.mrf.mxu0
      %3233 = vmatprep.mubr.bf16.mxu0 0
      %3234 = vmatmul.mubr.bf16.gmra.mxu0 %v3030
      %v3235 = vpop.f32.mrf.mxu0
      %v3236 = vadd.f32 0.0, %v3235
      %v3237 = vpop.f32.mrf.mxu0
      %v3238 = vpop.f32.mrf.mxu0
      %v3239 = vadd.f32 0.0, %v3238
      %v3240 = vpop.f32.mrf.mxu0
      %3241 = vmatprep.mubr.bf16.mxu0 0
      %3242 = vmatmul.mubr.bf16.gmra.mxu0 %v3031
      %v3243 = vpop.f32.mrf.mxu0
      %v3244 = vadd.f32 0.0, %v3243
      %v3245 = vpop.f32.mrf.mxu0
      %v3246 = vpop.f32.mrf.mxu0
      %v3247 = vadd.f32 0.0, %v3246
      %v3248 = vpop.f32.mrf.mxu0
      %3249 = vmatprep.mubr.bf16.mxu0 0
      %3250 = vmatmul.mubr.bf16.gmra.mxu0 %v3032
      %v3251 = vpop.f32.mrf.mxu0
      %v3252 = vadd.f32 0.0, %v3251
      %v3253 = vpop.f32.mrf.mxu0
      %v3254 = vpop.f32.mrf.mxu0
      %v3255 = vadd.f32 0.0, %v3254
      %v3256 = vpop.f32.mrf.mxu0
      %3257 = vdwg.mxu0
      %v3258 = vadd.f32 %v2904, %v3132
      %v3259 = vadd.f32 %v2905, %v3135
      %v3260 = vadd.f32 %v2906, %v3140
      %v3261 = vadd.f32 %v2907, %v3143
      %v3262 = vadd.f32 %v2908, %v3148
      %v3263 = vadd.f32 %v2909, %v3151
      %v3264 = vadd.f32 %v2910, %v3156
      %v3265 = vadd.f32 %v2911, %v3159
      %v3266 = vadd.f32 %v2912, %v3164
      %v3267 = vadd.f32 %v2913, %v3167
      %v3268 = vadd.f32 %v2914, %v3172
      %v3269 = vadd.f32 %v2915, %v3175
      %v3270 = vadd.f32 %v2916, %v3180
      %v3271 = vadd.f32 %v2917, %v3183
      %v3272 = vadd.f32 %v2918, %v3188
      %v3273 = vadd.f32 %v2919, %v3191
      %v3274 = vadd.f32 %v2920, %v3196
      %v3275 = vadd.f32 %v2921, %v3199
      %v3276 = vadd.f32 %v2922, %v3204
      %v3277 = vadd.f32 %v2923, %v3207
      %v3278 = vadd.f32 %v2924, %v3212
      %v3279 = vadd.f32 %v2925, %v3215
      %v3280 = vadd.f32 %v2926, %v3220
      %v3281 = vadd.f32 %v2927, %v3223
      %v3282 = vadd.f32 %v2928, %v3228
      %v3283 = vadd.f32 %v2929, %v3231
      %v3284 = vadd.f32 %v2930, %v3236
      %v3285 = vadd.f32 %v2931, %v3239
      %v3286 = vadd.f32 %v2932, %v3244
      %v3287 = vadd.f32 %v2933, %v3247
      %v3288 = vadd.f32 %v2934, %v3252
      %v3289 = vadd.f32 %v2935, %v3255
      %3290 = vst [vmem:[#allocation3] sm:$0xff] %v3258
      %3291 = vst [vmem:[#allocation3 + $0x8] sm:$0xff] %v3259
      %3292 = vst [vmem:[#allocation3 + $0x10] sm:$0xff] %v3260
      %3293 = vst [vmem:[#allocation3 + $0x18] sm:$0xff] %v3261
      %3294 = vst [vmem:[#allocation3 + $0x20] sm:$0xff] %v3262
      %3295 = vst [vmem:[#allocation3 + $0x28] sm:$0xff] %v3263
      %3296 = vst [vmem:[#allocation3 + $0x30] sm:$0xff] %v3264
      %3297 = vst [vmem:[#allocation3 + $0x38] sm:$0xff] %v3265
      %3298 = vst [vmem:[#allocation3 + $0x40] sm:$0xff] %v3266
      %3299 = vst [vmem:[#allocation3 + $0x48] sm:$0xff] %v3267
      %3300 = vst [vmem:[#allocation3 + $0x50] sm:$0xff] %v3268
      %3301 = vst [vmem:[#allocation3 + $0x58] sm:$0xff] %v3269
      %3302 = vst [vmem:[#allocation3 + $0x60] sm:$0xff] %v3270
      %3303 = vst [vmem:[#allocation3 + $0x68] sm:$0xff] %v3271
      %3304 = vst [vmem:[#allocation3 + $0x70] sm:$0xff] %v3272
      %3305 = vst [vmem:[#allocation3 + $0x78] sm:$0xff] %v3273
      %3306 = vst [vmem:[#allocation3 + $0x80] sm:$0xff] %v3274
      %3307 = vst [vmem:[#allocation3 + $0x88] sm:$0xff] %v3275
      %3308 = vst [vmem:[#allocation3 + $0x90] sm:$0xff] %v3276
      %3309 = vst [vmem:[#allocation3 + $0x98] sm:$0xff] %v3277
      %3310 = vst [vmem:[#allocation3 + $0xa0] sm:$0xff] %v3278
      %3311 = vst [vmem:[#allocation3 + $0xa8] sm:$0xff] %v3279
      %3312 = vst [vmem:[#allocation3 + $0xb0] sm:$0xff] %v3280
      %3313 = vst [vmem:[#allocation3 + $0xb8] sm:$0xff] %v3281
      %3314 = vst [vmem:[#allocation3 + $0xc0] sm:$0xff] %v3282
      %3315 = vst [vmem:[#allocation3 + $0xc8] sm:$0xff] %v3283
      %3316 = vst [vmem:[#allocation3 + $0xd0] sm:$0xff] %v3284
      %3317 = vst [vmem:[#allocation3 + $0xd8] sm:$0xff] %v3285
      %3318 = vst [vmem:[#allocation3 + $0xe0] sm:$0xff] %v3286
      %3319 = vst [vmem:[#allocation3 + $0xe8] sm:$0xff] %v3287
      %3320 = vst [vmem:[#allocation3 + $0xf0] sm:$0xff] %v3288
      %3321 = vst [vmem:[#allocation3 + $0xf8] sm:$0xff] %v3289
      %v3322 = vld [vmem:[%s855] sm:$0xf]
      %v3323 = vld [vmem:[%s855 + $0x4] sm:$0xf]
      %v3324 = vld [vmem:[%s855 + $0x8] sm:$0x1]
      %v3325 = vld [vmem:[%s855 + $0xc] sm:$0xf]
      %v3326 = vld [vmem:[%s855 + $0x10] sm:$0xf]
      %v3327 = vld [vmem:[%s855 + $0x14] sm:$0x1]
      %v3328 = vld [vmem:[%s855 + $0x18] sm:$0xf]
      %v3329 = vld [vmem:[%s855 + $0x1c] sm:$0xf]
      %v3330 = vld [vmem:[%s855 + $0x20] sm:$0x1]
      %v3331 = vld [vmem:[%s855 + $0x24] sm:$0xf]
      %v3332 = vld [vmem:[%s855 + $0x28] sm:$0xf]
      %v3333 = vld [vmem:[%s855 + $0x2c] sm:$0x1]
      %v3334 = vld [vmem:[%s855 + $0x30] sm:$0xf]
      %v3335 = vld [vmem:[%s855 + $0x34] sm:$0xf]
      %v3336 = vld [vmem:[%s855 + $0x38] sm:$0x1]
      %v3337 = vld [vmem:[%s855 + $0x3c] sm:$0xf]
      %v3338 = vld [vmem:[%s855 + $0x40] sm:$0xf]
      %v3339 = vld [vmem:[%s855 + $0x44] sm:$0x1]
      %v3340 = vld [vmem:[%s855 + $0x48] sm:$0xf]
      %v3341 = vld [vmem:[%s855 + $0x4c] sm:$0xf]
      %v3342 = vld [vmem:[%s855 + $0x50] sm:$0x1]
      %v3343 = vld [vmem:[%s855 + $0x54] sm:$0xf]
      %v3344 = vld [vmem:[%s855 + $0x58] sm:$0xf]
      %v3345 = vld [vmem:[%s855 + $0x5c] sm:$0x1]
      %v3346 = vld [vmem:[%s855 + $0x60] sm:$0xf]
      %v3347 = vld [vmem:[%s855 + $0x64] sm:$0xf]
      %v3348 = vld [vmem:[%s855 + $0x68] sm:$0x1]
      %v3349 = vld [vmem:[%s855 + $0x6c] sm:$0xf]
      %v3350 = vld [vmem:[%s855 + $0x70] sm:$0xf]
      %v3351 = vld [vmem:[%s855 + $0x74] sm:$0x1]
      %v3352 = vld [vmem:[%s855 + $0x78] sm:$0xf]
      %v3353 = vld [vmem:[%s855 + $0x7c] sm:$0xf]
      %v3354 = vld [vmem:[%s855 + $0x80] sm:$0x1]
      %v3355 = vld [vmem:[%s855 + $0x84] sm:$0xf]
      %v3356 = vld [vmem:[%s855 + $0x88] sm:$0xf]
      %v3357 = vld [vmem:[%s855 + $0x8c] sm:$0x1]
      %v3358 = vld [vmem:[%s855 + $0x90] sm:$0xf]
      %v3359 = vld [vmem:[%s855 + $0x94] sm:$0xf]
      %v3360 = vld [vmem:[%s855 + $0x98] sm:$0x1]
      %v3361 = vld [vmem:[%s855 + $0x9c] sm:$0xf]
      %v3362 = vld [vmem:[%s855 + $0xa0] sm:$0xf]
      %v3363 = vld [vmem:[%s855 + $0xa4] sm:$0x1]
      %v3364 = vld [vmem:[%s855 + $0xa8] sm:$0xf]
      %v3365 = vld [vmem:[%s855 + $0xac] sm:$0xf]
      %v3366 = vld [vmem:[%s855 + $0xb0] sm:$0x1]
      %v3367 = vld [vmem:[%s855 + $0xb4] sm:$0xf]
      %v3368 = vld [vmem:[%s855 + $0xb8] sm:$0xf]
      %v3369 = vld [vmem:[%s855 + $0xbc] sm:$0x1]
      %v3370 = vld [vmem:[#allocation3] sm:$0xff]
      %v3371 = vld [vmem:[#allocation3 + $0x8] sm:$0xff]
      %v3372 = vld [vmem:[#allocation3 + $0x10] sm:$0xff]
      %v3373 = vld [vmem:[#allocation3 + $0x18] sm:$0xff]
      %v3374 = vld [vmem:[#allocation3 + $0x20] sm:$0xff]
      %v3375 = vld [vmem:[#allocation3 + $0x28] sm:$0xff]
      %v3376 = vld [vmem:[#allocation3 + $0x30] sm:$0xff]
      %v3377 = vld [vmem:[#allocation3 + $0x38] sm:$0xff]
      %v3378 = vld [vmem:[#allocation3 + $0x40] sm:$0xff]
      %v3379 = vld [vmem:[#allocation3 + $0x48] sm:$0xff]
      %v3380 = vld [vmem:[#allocation3 + $0x50] sm:$0xff]
      %v3381 = vld [vmem:[#allocation3 + $0x58] sm:$0xff]
      %v3382 = vld [vmem:[#allocation3 + $0x60] sm:$0xff]
      %v3383 = vld [vmem:[#allocation3 + $0x68] sm:$0xff]
      %v3384 = vld [vmem:[#allocation3 + $0x70] sm:$0xff]
      %v3385 = vld [vmem:[#allocation3 + $0x78] sm:$0xff]
      %v3386 = vld [vmem:[#allocation3 + $0x80] sm:$0xff]
      %v3387 = vld [vmem:[#allocation3 + $0x88] sm:$0xff]
      %v3388 = vld [vmem:[#allocation3 + $0x90] sm:$0xff]
      %v3389 = vld [vmem:[#allocation3 + $0x98] sm:$0xff]
      %v3390 = vld [vmem:[#allocation3 + $0xa0] sm:$0xff]
      %v3391 = vld [vmem:[#allocation3 + $0xa8] sm:$0xff]
      %v3392 = vld [vmem:[#allocation3 + $0xb0] sm:$0xff]
      %v3393 = vld [vmem:[#allocation3 + $0xb8] sm:$0xff]
      %v3394 = vld [vmem:[#allocation3 + $0xc0] sm:$0xff]
      %v3395 = vld [vmem:[#allocation3 + $0xc8] sm:$0xff]
      %v3396 = vld [vmem:[#allocation3 + $0xd0] sm:$0xff]
      %v3397 = vld [vmem:[#allocation3 + $0xd8] sm:$0xff]
      %v3398 = vld [vmem:[#allocation3 + $0xe0] sm:$0xff]
      %v3399 = vld [vmem:[#allocation3 + $0xe8] sm:$0xff]
      %v3400 = vld [vmem:[#allocation3 + $0xf0] sm:$0xff]
      %v3401 = vld [vmem:[#allocation3 + $0xf8] sm:$0xff]
      %v3403 = vshrl.u32 %v3322, 16
      %v3405 = vrot.slane %v3403, 4
      %v3406 = vshll.u32 %v3322, 16
      %v3408 = vrot.slane %v3406, 5
      %v3409 = vor.u32 %v3405, %v3408
      %v3410 = vrot.slane %v3409, 4
      %v3412 = vshll.u32 %v3323, 16
      %v3414 = vrot.slane %v3412, 5
      %v3415 = vsel %vm1536, %v3410, %v3414
      %v3416 = vshrl.u32 %v3323, 16
      %v3418 = vrot.slane %v3416, 4
      %v3419 = vor.u32 %v3418, %v3414
      %v3420 = vrot.slane %v3419, 4
      %v3422 = vshll.u32 %v3324, 16
      %v3424 = vrot.slane %v3422, 5
      %v3425 = vsel %vm1536, %v3420, %v3424
      %v3427 = vshrl.u32 %v3325, 16
      %v3429 = vrot.slane %v3427, 4
      %v3430 = vshll.u32 %v3325, 16
      %v3432 = vrot.slane %v3430, 5
      %v3433 = vor.u32 %v3429, %v3432
      %v3434 = vrot.slane %v3433, 4
      %v3436 = vshll.u32 %v3326, 16
      %v3438 = vrot.slane %v3436, 5
      %v3439 = vsel %vm1536, %v3434, %v3438
      %v3440 = vshrl.u32 %v3326, 16
      %v3442 = vrot.slane %v3440, 4
      %v3443 = vor.u32 %v3442, %v3438
      %v3444 = vrot.slane %v3443, 4
      %v3446 = vshll.u32 %v3327, 16
      %v3448 = vrot.slane %v3446, 5
      %v3449 = vsel %vm1536, %v3444, %v3448
      %v3451 = vshrl.u32 %v3328, 16
      %v3453 = vrot.slane %v3451, 4
      %v3454 = vshll.u32 %v3328, 16
      %v3456 = vrot.slane %v3454, 5
      %v3457 = vor.u32 %v3453, %v3456
      %v3458 = vrot.slane %v3457, 4
      %v3460 = vshll.u32 %v3329, 16
      %v3462 = vrot.slane %v3460, 5
      %v3463 = vsel %vm1536, %v3458, %v3462
      %v3464 = vshrl.u32 %v3329, 16
      %v3466 = vrot.slane %v3464, 4
      %v3467 = vor.u32 %v3466, %v3462
      %v3468 = vrot.slane %v3467, 4
      %v3470 = vshll.u32 %v3330, 16
      %v3472 = vrot.slane %v3470, 5
      %v3473 = vsel %vm1536, %v3468, %v3472
      %v3475 = vshrl.u32 %v3331, 16
      %v3477 = vrot.slane %v3475, 4
      %v3478 = vshll.u32 %v3331, 16
      %v3480 = vrot.slane %v3478, 5
      %v3481 = vor.u32 %v3477, %v3480
      %v3482 = vrot.slane %v3481, 4
      %v3484 = vshll.u32 %v3332, 16
      %v3486 = vrot.slane %v3484, 5
      %v3487 = vsel %vm1536, %v3482, %v3486
      %v3488 = vshrl.u32 %v3332, 16
      %v3490 = vrot.slane %v3488, 4
      %v3491 = vor.u32 %v3490, %v3486
      %v3492 = vrot.slane %v3491, 4
      %v3494 = vshll.u32 %v3333, 16
      %v3496 = vrot.slane %v3494, 5
      %v3497 = vsel %vm1536, %v3492, %v3496
      %v3499 = vshrl.u32 %v3334, 16
      %v3501 = vrot.slane %v3499, 4
      %v3502 = vshll.u32 %v3334, 16
      %v3504 = vrot.slane %v3502, 5
      %v3505 = vor.u32 %v3501, %v3504
      %v3506 = vrot.slane %v3505, 4
      %v3508 = vshll.u32 %v3335, 16
      %v3510 = vrot.slane %v3508, 5
      %v3511 = vsel %vm1536, %v3506, %v3510
      %v3512 = vshrl.u32 %v3335, 16
      %v3514 = vrot.slane %v3512, 4
      %v3515 = vor.u32 %v3514, %v3510
      %v3516 = vrot.slane %v3515, 4
      %v3518 = vshll.u32 %v3336, 16
      %v3520 = vrot.slane %v3518, 5
      %v3521 = vsel %vm1536, %v3516, %v3520
      %v3523 = vshrl.u32 %v3337, 16
      %v3525 = vrot.slane %v3523, 4
      %v3526 = vshll.u32 %v3337, 16
      %v3528 = vrot.slane %v3526, 5
      %v3529 = vor.u32 %v3525, %v3528
      %v3530 = vrot.slane %v3529, 4
      %v3532 = vshll.u32 %v3338, 16
      %v3534 = vrot.slane %v3532, 5
      %v3535 = vsel %vm1536, %v3530, %v3534
      %v3536 = vshrl.u32 %v3338, 16
      %v3538 = vrot.slane %v3536, 4
      %v3539 = vor.u32 %v3538, %v3534
      %v3540 = vrot.slane %v3539, 4
      %v3542 = vshll.u32 %v3339, 16
      %v3544 = vrot.slane %v3542, 5
      %v3545 = vsel %vm1536, %v3540, %v3544
      %v3547 = vshrl.u32 %v3340, 16
      %v3549 = vrot.slane %v3547, 4
      %v3550 = vshll.u32 %v3340, 16
      %v3552 = vrot.slane %v3550, 5
      %v3553 = vor.u32 %v3549, %v3552
      %v3554 = vrot.slane %v3553, 4
      %v3556 = vshll.u32 %v3341, 16
      %v3558 = vrot.slane %v3556, 5
      %v3559 = vsel %vm1536, %v3554, %v3558
      %v3560 = vshrl.u32 %v3341, 16
      %v3562 = vrot.slane %v3560, 4
      %v3563 = vor.u32 %v3562, %v3558
      %v3564 = vrot.slane %v3563, 4
      %v3566 = vshll.u32 %v3342, 16
      %v3568 = vrot.slane %v3566, 5
      %v3569 = vsel %vm1536, %v3564, %v3568
      %v3571 = vshrl.u32 %v3343, 16
      %v3573 = vrot.slane %v3571, 4
      %v3574 = vshll.u32 %v3343, 16
      %v3576 = vrot.slane %v3574, 5
      %v3577 = vor.u32 %v3573, %v3576
      %v3578 = vrot.slane %v3577, 4
      %v3580 = vshll.u32 %v3344, 16
      %v3582 = vrot.slane %v3580, 5
      %v3583 = vsel %vm1536, %v3578, %v3582
      %v3584 = vshrl.u32 %v3344, 16
      %v3586 = vrot.slane %v3584, 4
      %v3587 = vor.u32 %v3586, %v3582
      %v3588 = vrot.slane %v3587, 4
      %v3590 = vshll.u32 %v3345, 16
      %v3592 = vrot.slane %v3590, 5
      %v3593 = vsel %vm1536, %v3588, %v3592
      %v3595 = vshrl.u32 %v3346, 16
      %v3597 = vrot.slane %v3595, 4
      %v3598 = vshll.u32 %v3346, 16
      %v3600 = vrot.slane %v3598, 5
      %v3601 = vor.u32 %v3597, %v3600
      %v3602 = vrot.slane %v3601, 4
      %v3604 = vshll.u32 %v3347, 16
      %v3606 = vrot.slane %v3604, 5
      %v3607 = vsel %vm1536, %v3602, %v3606
      %v3608 = vshrl.u32 %v3347, 16
      %v3610 = vrot.slane %v3608, 4
      %v3611 = vor.u32 %v3610, %v3606
      %v3612 = vrot.slane %v3611, 4
      %v3614 = vshll.u32 %v3348, 16
      %v3616 = vrot.slane %v3614, 5
      %v3617 = vsel %vm1536, %v3612, %v3616
      %v3619 = vshrl.u32 %v3349, 16
      %v3621 = vrot.slane %v3619, 4
      %v3622 = vshll.u32 %v3349, 16
      %v3624 = vrot.slane %v3622, 5
      %v3625 = vor.u32 %v3621, %v3624
      %v3626 = vrot.slane %v3625, 4
      %v3628 = vshll.u32 %v3350, 16
      %v3630 = vrot.slane %v3628, 5
      %v3631 = vsel %vm1536, %v3626, %v3630
      %v3632 = vshrl.u32 %v3350, 16
      %v3634 = vrot.slane %v3632, 4
      %v3635 = vor.u32 %v3634, %v3630
      %v3636 = vrot.slane %v3635, 4
      %v3638 = vshll.u32 %v3351, 16
      %v3640 = vrot.slane %v3638, 5
      %v3641 = vsel %vm1536, %v3636, %v3640
      %v3643 = vshrl.u32 %v3352, 16
      %v3645 = vrot.slane %v3643, 4
      %v3646 = vshll.u32 %v3352, 16
      %v3648 = vrot.slane %v3646, 5
      %v3649 = vor.u32 %v3645, %v3648
      %v3650 = vrot.slane %v3649, 4
      %v3652 = vshll.u32 %v3353, 16
      %v3654 = vrot.slane %v3652, 5
      %v3655 = vsel %vm1536, %v3650, %v3654
      %v3656 = vshrl.u32 %v3353, 16
      %v3658 = vrot.slane %v3656, 4
      %v3659 = vor.u32 %v3658, %v3654
      %v3660 = vrot.slane %v3659, 4
      %v3662 = vshll.u32 %v3354, 16
      %v3664 = vrot.slane %v3662, 5
      %v3665 = vsel %vm1536, %v3660, %v3664
      %v3667 = vshrl.u32 %v3355, 16
      %v3669 = vrot.slane %v3667, 4
      %v3670 = vshll.u32 %v3355, 16
      %v3672 = vrot.slane %v3670, 5
      %v3673 = vor.u32 %v3669, %v3672
      %v3674 = vrot.slane %v3673, 4
      %v3676 = vshll.u32 %v3356, 16
      %v3678 = vrot.slane %v3676, 5
      %v3679 = vsel %vm1536, %v3674, %v3678
      %v3680 = vshrl.u32 %v3356, 16
      %v3682 = vrot.slane %v3680, 4
      %v3683 = vor.u32 %v3682, %v3678
      %v3684 = vrot.slane %v3683, 4
      %v3686 = vshll.u32 %v3357, 16
      %v3688 = vrot.slane %v3686, 5
      %v3689 = vsel %vm1536, %v3684, %v3688
      %v3691 = vshrl.u32 %v3358, 16
      %v3693 = vrot.slane %v3691, 4
      %v3694 = vshll.u32 %v3358, 16
      %v3696 = vrot.slane %v3694, 5
      %v3697 = vor.u32 %v3693, %v3696
      %v3698 = vrot.slane %v3697, 4
      %v3700 = vshll.u32 %v3359, 16
      %v3702 = vrot.slane %v3700, 5
      %v3703 = vsel %vm1536, %v3698, %v3702
      %v3704 = vshrl.u32 %v3359, 16
      %v3706 = vrot.slane %v3704, 4
      %v3707 = vor.u32 %v3706, %v3702
      %v3708 = vrot.slane %v3707, 4
      %v3710 = vshll.u32 %v3360, 16
      %v3712 = vrot.slane %v3710, 5
      %v3713 = vsel %vm1536, %v3708, %v3712
      %v3715 = vshrl.u32 %v3361, 16
      %v3717 = vrot.slane %v3715, 4
      %v3718 = vshll.u32 %v3361, 16
      %v3720 = vrot.slane %v3718, 5
      %v3721 = vor.u32 %v3717, %v3720
      %v3722 = vrot.slane %v3721, 4
      %v3724 = vshll.u32 %v3362, 16
      %v3726 = vrot.slane %v3724, 5
      %v3727 = vsel %vm1536, %v3722, %v3726
      %v3728 = vshrl.u32 %v3362, 16
      %v3730 = vrot.slane %v3728, 4
      %v3731 = vor.u32 %v3730, %v3726
      %v3732 = vrot.slane %v3731, 4
      %v3734 = vshll.u32 %v3363, 16
      %v3736 = vrot.slane %v3734, 5
      %v3737 = vsel %vm1536, %v3732, %v3736
      %v3739 = vshrl.u32 %v3364, 16
      %v3741 = vrot.slane %v3739, 4
      %v3742 = vshll.u32 %v3364, 16
      %v3744 = vrot.slane %v3742, 5
      %v3745 = vor.u32 %v3741, %v3744
      %v3746 = vrot.slane %v3745, 4
      %v3748 = vshll.u32 %v3365, 16
      %v3750 = vrot.slane %v3748, 5
      %v3751 = vsel %vm1536, %v3746, %v3750
      %v3752 = vshrl.u32 %v3365, 16
      %v3754 = vrot.slane %v3752, 4
      %v3755 = vor.u32 %v3754, %v3750
      %v3756 = vrot.slane %v3755, 4
      %v3758 = vshll.u32 %v3366, 16
      %v3760 = vrot.slane %v3758, 5
      %v3761 = vsel %vm1536, %v3756, %v3760
      %v3763 = vshrl.u32 %v3367, 16
      %v3765 = vrot.slane %v3763, 4
      %v3766 = vshll.u32 %v3367, 16
      %v3768 = vrot.slane %v3766, 5
      %v3769 = vor.u32 %v3765, %v3768
      %v3770 = vrot.slane %v3769, 4
      %v3772 = vshll.u32 %v3368, 16
      %v3774 = vrot.slane %v3772, 5
      %v3775 = vsel %vm1536, %v3770, %v3774
      %v3776 = vshrl.u32 %v3368, 16
      %v3778 = vrot.slane %v3776, 4
      %v3779 = vor.u32 %v3778, %v3774
      %v3780 = vrot.slane %v3779, 4
      %v3782 = vshll.u32 %v3369, 16
      %v3784 = vrot.slane %v3782, 5
      %v3785 = vsel %vm1536, %v3780, %v3784
      %s3786 = scalar_lea.vmem %s3, 256
      %v3787 = vld [vmem:[%s3786] sm:$0xf]
      %v3788 = vld [vmem:[%s3786 + $0x4] sm:$0xf]
      %v3789 = vld [vmem:[%s3786 + $0x8] sm:$0xf]
      %v3790 = vld [vmem:[%s3786 + $0xc] sm:$0xf]
      %v3791 = vld [vmem:[%s3786 + $0x10] sm:$0xf]
      %v3792 = vld [vmem:[%s3786 + $0x14] sm:$0xf]
      %v3793 = vld [vmem:[%s3786 + $0x18] sm:$0xf]
      %v3794 = vld [vmem:[%s3786 + $0x1c] sm:$0xf]
      %v3795 = vld [vmem:[%s3786 + $0x20] sm:$0xf]
      %v3796 = vld [vmem:[%s3786 + $0x24] sm:$0xf]
      %v3797 = vld [vmem:[%s3786 + $0x28] sm:$0xf]
      %v3798 = vld [vmem:[%s3786 + $0x2c] sm:$0xf]
      %v3799 = vld [vmem:[%s3786 + $0x30] sm:$0xf]
      %v3800 = vld [vmem:[%s3786 + $0x34] sm:$0xf]
      %v3801 = vld [vmem:[%s3786 + $0x38] sm:$0xf]
      %v3802 = vld [vmem:[%s3786 + $0x3c] sm:$0xf]
      %v3803 = vunpack.c.l.b16 %v3415
      %v3804 = vunpack.c.l.b16 %v3425
      %v3805 = vunpack.c.l.b16 %v3439
      %v3806 = vunpack.c.l.b16 %v3449
      %v3807 = vunpack.c.l.b16 %v3463
      %v3808 = vunpack.c.l.b16 %v3473
      %v3809 = vunpack.c.l.b16 %v3487
      %v3810 = vunpack.c.l.b16 %v3497
      %v3811 = vunpack.c.l.b16 %v3511
      %v3812 = vunpack.c.l.b16 %v3521
      %v3813 = vunpack.c.l.b16 %v3535
      %v3814 = vunpack.c.l.b16 %v3545
      %v3815 = vunpack.c.l.b16 %v3559
      %v3816 = vunpack.c.l.b16 %v3569
      %v3817 = vunpack.c.l.b16 %v3583
      %v3818 = vunpack.c.l.b16 %v3593
      %v3819 = vunpack.c.l.b16 %v3607
      %v3820 = vunpack.c.l.b16 %v3617
      %v3821 = vunpack.c.l.b16 %v3631
      %v3822 = vunpack.c.l.b16 %v3641
      %v3823 = vunpack.c.l.b16 %v3655
      %v3824 = vunpack.c.l.b16 %v3665
      %v3825 = vunpack.c.l.b16 %v3679
      %v3826 = vunpack.c.l.b16 %v3689
      %v3827 = vunpack.c.l.b16 %v3703
      %v3828 = vunpack.c.l.b16 %v3713
      %v3829 = vunpack.c.l.b16 %v3727
      %v3830 = vunpack.c.l.b16 %v3737
      %v3831 = vunpack.c.l.b16 %v3751
      %v3832 = vunpack.c.l.b16 %v3761
      %v3833 = vunpack.c.l.b16 %v3775
      %v3834 = vunpack.c.l.b16 %v3785
      %v3835 = vpack.c.b16 %v3804, %v3803
      %v3836 = vpack.c.b16 %v3806, %v3805
      %v3837 = vpack.c.b16 %v3808, %v3807
      %v3838 = vpack.c.b16 %v3810, %v3809
      %v3839 = vpack.c.b16 %v3812, %v3811
      %v3840 = vpack.c.b16 %v3814, %v3813
      %v3841 = vpack.c.b16 %v3816, %v3815
      %v3842 = vpack.c.b16 %v3818, %v3817
      %v3843 = vpack.c.b16 %v3820, %v3819
      %v3844 = vpack.c.b16 %v3822, %v3821
      %v3845 = vpack.c.b16 %v3824, %v3823
      %v3846 = vpack.c.b16 %v3826, %v3825
      %v3847 = vpack.c.b16 %v3828, %v3827
      %v3848 = vpack.c.b16 %v3830, %v3829
      %v3849 = vpack.c.b16 %v3832, %v3831
      %v3850 = vpack.c.b16 %v3834, %v3833
      %v3883 = vunpack.c.l.b16 %v3787
      %v3884 = vunpack.c.l.b16 %v3788
      %v3885 = vunpack.c.l.b16 %v3789
      %v3886 = vunpack.c.l.b16 %v3790
      %v3887 = vunpack.c.l.b16 %v3791
      %v3888 = vunpack.c.l.b16 %v3792
      %v3889 = vunpack.c.l.b16 %v3793
      %v3890 = vunpack.c.l.b16 %v3794
      %v3891 = vunpack.c.l.b16 %v3795
      %v3892 = vunpack.c.l.b16 %v3796
      %v3893 = vunpack.c.l.b16 %v3797
      %v3894 = vunpack.c.l.b16 %v3798
      %v3895 = vunpack.c.l.b16 %v3799
      %v3896 = vunpack.c.l.b16 %v3800
      %v3897 = vunpack.c.l.b16 %v3801
      %v3898 = vunpack.c.l.b16 %v3802
      %v3899 = vpack.c.b16 %v3884, %v3883
      %v3900 = vpack.c.b16 %v3886, %v3885
      %v3901 = vpack.c.b16 %v3888, %v3887
      %v3902 = vpack.c.b16 %v3890, %v3889
      %v3903 = vpack.c.b16 %v3892, %v3891
      %v3904 = vpack.c.b16 %v3894, %v3893
      %v3905 = vpack.c.b16 %v3896, %v3895
      %v3906 = vpack.c.b16 %v3898, %v3897
      %3915 = vmatprep.subr.bf16.mxu0 0
      %3916 = vmatpush1.bf16.msra.mxu0 %v3906
      %3917 = vmatprep.subr.bf16.mxu0 0
      %3918 = vmatpush1.bf16.msra.mxu0 %v3905
      %3919 = vmatprep.subr.bf16.mxu0 0
      %3920 = vmatpush1.bf16.msra.mxu0 %v3904
      %3921 = vmatprep.subr.bf16.mxu0 0
      %3922 = vmatpush1.bf16.msra.mxu0 %v3903
      %3923 = vmatprep.subr.bf16.mxu0 0
      %3924 = vmatpush1.bf16.msra.mxu0 %v3902
      %3925 = vmatprep.subr.bf16.mxu0 0
      %3926 = vmatpush1.bf16.msra.mxu0 %v3901
      %3927 = vmatprep.subr.bf16.mxu0 0
      %3928 = vmatpush1.bf16.msra.mxu0 %v3900
      %3929 = vmatprep.subr.bf16.mxu0 0
      %3930 = vmatpush1.bf16.msra.mxu0 %v3899
      %3931 = vmatprep.subr.bf16.mxu0 0
      %3932 = vmatpush2.bf16.msra.mxu0 0
      %3933 = vmatprep.subr.bf16.mxu0 0
      %3934 = vmatpush2.bf16.msra.mxu0 0
      %3935 = vmatprep.subr.bf16.mxu0 0
      %3936 = vmatpush2.bf16.msra.mxu0 0
      %3937 = vmatprep.subr.bf16.mxu0 0
      %3938 = vmatpush2.bf16.msra.mxu0 0
      %3939 = vmatprep.subr.bf16.mxu0 0
      %3940 = vmatpush2.bf16.msra.mxu0 0
      %3941 = vmatprep.subr.bf16.mxu0 0
      %3942 = vmatpush2.bf16.msra.mxu0 0
      %3943 = vmatprep.subr.bf16.mxu0 0
      %3944 = vmatpush2.bf16.msra.mxu0 0
      %3945 = vmatprep.subr.bf16.mxu0 0
      %3946 = vmatpush2.bf16.msra.mxu0 0
      %3947 = vmatprep.mubr.bf16.mxu0 0
      %3948 = vmatmul.mubr.bf16.gmra.mxu0 %v3835
      %v3949 = vpop.f32.mrf.mxu0
      %v3950 = vadd.f32 0.0, %v3949
      %v3951 = vpop.f32.mrf.mxu0
      %v3952 = vpop.f32.mrf.mxu0
      %v3953 = vadd.f32 0.0, %v3952
      %v3954 = vpop.f32.mrf.mxu0
      %3955 = vmatprep.mubr.bf16.mxu0 0
      %3956 = vmatmul.mubr.bf16.gmra.mxu0 %v3836
      %v3957 = vpop.f32.mrf.mxu0
      %v3958 = vadd.f32 0.0, %v3957
      %v3959 = vpop.f32.mrf.mxu0
      %v3960 = vpop.f32.mrf.mxu0
      %v3961 = vadd.f32 0.0, %v3960
      %v3962 = vpop.f32.mrf.mxu0
      %3963 = vmatprep.mubr.bf16.mxu0 0
      %3964 = vmatmul.mubr.bf16.gmra.mxu0 %v3837
      %v3965 = vpop.f32.mrf.mxu0
      %v3966 = vadd.f32 0.0, %v3965
      %v3967 = vpop.f32.mrf.mxu0
      %v3968 = vpop.f32.mrf.mxu0
      %v3969 = vadd.f32 0.0, %v3968
      %v3970 = vpop.f32.mrf.mxu0
      %3971 = vmatprep.mubr.bf16.mxu0 0
      %3972 = vmatmul.mubr.bf16.gmra.mxu0 %v3838
      %v3973 = vpop.f32.mrf.mxu0
      %v3974 = vadd.f32 0.0, %v3973
      %v3975 = vpop.f32.mrf.mxu0
      %v3976 = vpop.f32.mrf.mxu0
      %v3977 = vadd.f32 0.0, %v3976
      %v3978 = vpop.f32.mrf.mxu0
      %3979 = vmatprep.mubr.bf16.mxu0 0
      %3980 = vmatmul.mubr.bf16.gmra.mxu0 %v3839
      %v3981 = vpop.f32.mrf.mxu0
      %v3982 = vadd.f32 0.0, %v3981
      %v3983 = vpop.f32.mrf.mxu0
      %v3984 = vpop.f32.mrf.mxu0
      %v3985 = vadd.f32 0.0, %v3984
      %v3986 = vpop.f32.mrf.mxu0
      %3987 = vmatprep.mubr.bf16.mxu0 0
      %3988 = vmatmul.mubr.bf16.gmra.mxu0 %v3840
      %v3989 = vpop.f32.mrf.mxu0
      %v3990 = vadd.f32 0.0, %v3989
      %v3991 = vpop.f32.mrf.mxu0
      %v3992 = vpop.f32.mrf.mxu0
      %v3993 = vadd.f32 0.0, %v3992
      %v3994 = vpop.f32.mrf.mxu0
      %3995 = vmatprep.mubr.bf16.mxu0 0
      %3996 = vmatmul.mubr.bf16.gmra.mxu0 %v3841
      %v3997 = vpop.f32.mrf.mxu0
      %v3998 = vadd.f32 0.0, %v3997
      %v3999 = vpop.f32.mrf.mxu0
      %v4000 = vpop.f32.mrf.mxu0
      %v4001 = vadd.f32 0.0, %v4000
      %v4002 = vpop.f32.mrf.mxu0
      %4003 = vmatprep.mubr.bf16.mxu0 0
      %4004 = vmatmul.mubr.bf16.gmra.mxu0 %v3842
      %v4005 = vpop.f32.mrf.mxu0
      %v4006 = vadd.f32 0.0, %v4005
      %v4007 = vpop.f32.mrf.mxu0
      %v4008 = vpop.f32.mrf.mxu0
      %v4009 = vadd.f32 0.0, %v4008
      %v4010 = vpop.f32.mrf.mxu0
      %4011 = vmatprep.mubr.bf16.mxu0 0
      %4012 = vmatmul.mubr.bf16.gmra.mxu0 %v3843
      %v4013 = vpop.f32.mrf.mxu0
      %v4014 = vadd.f32 0.0, %v4013
      %v4015 = vpop.f32.mrf.mxu0
      %v4016 = vpop.f32.mrf.mxu0
      %v4017 = vadd.f32 0.0, %v4016
      %v4018 = vpop.f32.mrf.mxu0
      %4019 = vmatprep.mubr.bf16.mxu0 0
      %4020 = vmatmul.mubr.bf16.gmra.mxu0 %v3844
      %v4021 = vpop.f32.mrf.mxu0
      %v4022 = vadd.f32 0.0, %v4021
      %v4023 = vpop.f32.mrf.mxu0
      %v4024 = vpop.f32.mrf.mxu0
      %v4025 = vadd.f32 0.0, %v4024
      %v4026 = vpop.f32.mrf.mxu0
      %4027 = vmatprep.mubr.bf16.mxu0 0
      %4028 = vmatmul.mubr.bf16.gmra.mxu0 %v3845
      %v4029 = vpop.f32.mrf.mxu0
      %v4030 = vadd.f32 0.0, %v4029
      %v4031 = vpop.f32.mrf.mxu0
      %v4032 = vpop.f32.mrf.mxu0
      %v4033 = vadd.f32 0.0, %v4032
      %v4034 = vpop.f32.mrf.mxu0
      %4035 = vmatprep.mubr.bf16.mxu0 0
      %4036 = vmatmul.mubr.bf16.gmra.mxu0 %v3846
      %v4037 = vpop.f32.mrf.mxu0
      %v4038 = vadd.f32 0.0, %v4037
      %v4039 = vpop.f32.mrf.mxu0
      %v4040 = vpop.f32.mrf.mxu0
      %v4041 = vadd.f32 0.0, %v4040
      %v4042 = vpop.f32.mrf.mxu0
      %4043 = vmatprep.mubr.bf16.mxu0 0
      %4044 = vmatmul.mubr.bf16.gmra.mxu0 %v3847
      %v4045 = vpop.f32.mrf.mxu0
      %v4046 = vadd.f32 0.0, %v4045
      %v4047 = vpop.f32.mrf.mxu0
      %v4048 = vpop.f32.mrf.mxu0
      %v4049 = vadd.f32 0.0, %v4048
      %v4050 = vpop.f32.mrf.mxu0
      %4051 = vmatprep.mubr.bf16.mxu0 0
      %4052 = vmatmul.mubr.bf16.gmra.mxu0 %v3848
      %v4053 = vpop.f32.mrf.mxu0
      %v4054 = vadd.f32 0.0, %v4053
      %v4055 = vpop.f32.mrf.mxu0
      %v4056 = vpop.f32.mrf.mxu0
      %v4057 = vadd.f32 0.0, %v4056
      %v4058 = vpop.f32.mrf.mxu0
      %4059 = vmatprep.mubr.bf16.mxu0 0
      %4060 = vmatmul.mubr.bf16.gmra.mxu0 %v3849
      %v4061 = vpop.f32.mrf.mxu0
      %v4062 = vadd.f32 0.0, %v4061
      %v4063 = vpop.f32.mrf.mxu0
      %v4064 = vpop.f32.mrf.mxu0
      %v4065 = vadd.f32 0.0, %v4064
      %v4066 = vpop.f32.mrf.mxu0
      %4067 = vmatprep.mubr.bf16.mxu0 0
      %4068 = vmatmul.mubr.bf16.gmra.mxu0 %v3850
      %v4069 = vpop.f32.mrf.mxu0
      %v4070 = vadd.f32 0.0, %v4069
      %v4071 = vpop.f32.mrf.mxu0
      %v4072 = vpop.f32.mrf.mxu0
      %v4073 = vadd.f32 0.0, %v4072
      %v4074 = vpop.f32.mrf.mxu0
      %4075 = vdwg.mxu0
      %v4076 = vadd.f32 %v3370, %v3950
      %v4077 = vadd.f32 %v3371, %v3953
      %v4078 = vadd.f32 %v3372, %v3958
      %v4079 = vadd.f32 %v3373, %v3961
      %v4080 = vadd.f32 %v3374, %v3966
      %v4081 = vadd.f32 %v3375, %v3969
      %v4082 = vadd.f32 %v3376, %v3974
      %v4083 = vadd.f32 %v3377, %v3977
      %v4084 = vadd.f32 %v3378, %v3982
      %v4085 = vadd.f32 %v3379, %v3985
      %v4086 = vadd.f32 %v3380, %v3990
      %v4087 = vadd.f32 %v3381, %v3993
      %v4088 = vadd.f32 %v3382, %v3998
      %v4089 = vadd.f32 %v3383, %v4001
      %v4090 = vadd.f32 %v3384, %v4006
      %v4091 = vadd.f32 %v3385, %v4009
      %v4092 = vadd.f32 %v3386, %v4014
      %v4093 = vadd.f32 %v3387, %v4017
      %v4094 = vadd.f32 %v3388, %v4022
      %v4095 = vadd.f32 %v3389, %v4025
      %v4096 = vadd.f32 %v3390, %v4030
      %v4097 = vadd.f32 %v3391, %v4033
      %v4098 = vadd.f32 %v3392, %v4038
      %v4099 = vadd.f32 %v3393, %v4041
      %v4100 = vadd.f32 %v3394, %v4046
      %v4101 = vadd.f32 %v3395, %v4049
      %v4102 = vadd.f32 %v3396, %v4054
      %v4103 = vadd.f32 %v3397, %v4057
      %v4104 = vadd.f32 %v3398, %v4062
      %v4105 = vadd.f32 %v3399, %v4065
      %v4106 = vadd.f32 %v3400, %v4070
      %v4107 = vadd.f32 %v3401, %v4073
      %4108 = vst [vmem:[#allocation3] sm:$0xff] %v4076
      %4109 = vst [vmem:[#allocation3 + $0x8] sm:$0xff] %v4077
      %4110 = vst [vmem:[#allocation3 + $0x10] sm:$0xff] %v4078
      %4111 = vst [vmem:[#allocation3 + $0x18] sm:$0xff] %v4079
      %4112 = vst [vmem:[#allocation3 + $0x20] sm:$0xff] %v4080
      %4113 = vst [vmem:[#allocation3 + $0x28] sm:$0xff] %v4081
      %4114 = vst [vmem:[#allocation3 + $0x30] sm:$0xff] %v4082
      %4115 = vst [vmem:[#allocation3 + $0x38] sm:$0xff] %v4083
      %4116 = vst [vmem:[#allocation3 + $0x40] sm:$0xff] %v4084
      %4117 = vst [vmem:[#allocation3 + $0x48] sm:$0xff] %v4085
      %4118 = vst [vmem:[#allocation3 + $0x50] sm:$0xff] %v4086
      %4119 = vst [vmem:[#allocation3 + $0x58] sm:$0xff] %v4087
      %4120 = vst [vmem:[#allocation3 + $0x60] sm:$0xff] %v4088
      %4121 = vst [vmem:[#allocation3 + $0x68] sm:$0xff] %v4089
      %4122 = vst [vmem:[#allocation3 + $0x70] sm:$0xff] %v4090
      %4123 = vst [vmem:[#allocation3 + $0x78] sm:$0xff] %v4091
      %4124 = vst [vmem:[#allocation3 + $0x80] sm:$0xff] %v4092
      %4125 = vst [vmem:[#allocation3 + $0x88] sm:$0xff] %v4093
      %4126 = vst [vmem:[#allocation3 + $0x90] sm:$0xff] %v4094
      %4127 = vst [vmem:[#allocation3 + $0x98] sm:$0xff] %v4095
      %4128 = vst [vmem:[#allocation3 + $0xa0] sm:$0xff] %v4096
      %4129 = vst [vmem:[#allocation3 + $0xa8] sm:$0xff] %v4097
      %4130 = vst [vmem:[#allocation3 + $0xb0] sm:$0xff] %v4098
      %4131 = vst [vmem:[#allocation3 + $0xb8] sm:$0xff] %v4099
      %4132 = vst [vmem:[#allocation3 + $0xc0] sm:$0xff] %v4100
      %4133 = vst [vmem:[#allocation3 + $0xc8] sm:$0xff] %v4101
      %4134 = vst [vmem:[#allocation3 + $0xd0] sm:$0xff] %v4102
      %4135 = vst [vmem:[#allocation3 + $0xd8] sm:$0xff] %v4103
      %4136 = vst [vmem:[#allocation3 + $0xe0] sm:$0xff] %v4104
      %4137 = vst [vmem:[#allocation3 + $0xe8] sm:$0xff] %v4105
      %4138 = vst [vmem:[#allocation3 + $0xf0] sm:$0xff] %v4106
      %4139 = vst [vmem:[#allocation3 + $0xf8] sm:$0xff] %v4107
      %v4140 = vld [vmem:[%s855] sm:$0xe]
      %v4141 = vld [vmem:[%s855 + $0x4] sm:$0xf]
      %v4142 = vld [vmem:[%s855 + $0x8] sm:$0x1]
      %v4143 = vld [vmem:[%s855 + $0xc] sm:$0xe]
      %v4144 = vld [vmem:[%s855 + $0x10] sm:$0xf]
      %v4145 = vld [vmem:[%s855 + $0x14] sm:$0x1]
      %v4146 = vld [vmem:[%s855 + $0x18] sm:$0xe]
      %v4147 = vld [vmem:[%s855 + $0x1c] sm:$0xf]
      %v4148 = vld [vmem:[%s855 + $0x20] sm:$0x1]
      %v4149 = vld [vmem:[%s855 + $0x24] sm:$0xe]
      %v4150 = vld [vmem:[%s855 + $0x28] sm:$0xf]
      %v4151 = vld [vmem:[%s855 + $0x2c] sm:$0x1]
      %v4152 = vld [vmem:[%s855 + $0x30] sm:$0xe]
      %v4153 = vld [vmem:[%s855 + $0x34] sm:$0xf]
      %v4154 = vld [vmem:[%s855 + $0x38] sm:$0x1]
      %v4155 = vld [vmem:[%s855 + $0x3c] sm:$0xe]
      %v4156 = vld [vmem:[%s855 + $0x40] sm:$0xf]
      %v4157 = vld [vmem:[%s855 + $0x44] sm:$0x1]
      %v4158 = vld [vmem:[%s855 + $0x48] sm:$0xe]
      %v4159 = vld [vmem:[%s855 + $0x4c] sm:$0xf]
      %v4160 = vld [vmem:[%s855 + $0x50] sm:$0x1]
      %v4161 = vld [vmem:[%s855 + $0x54] sm:$0xe]
      %v4162 = vld [vmem:[%s855 + $0x58] sm:$0xf]
      %v4163 = vld [vmem:[%s855 + $0x5c] sm:$0x1]
      %v4164 = vld [vmem:[%s855 + $0x60] sm:$0xe]
      %v4165 = vld [vmem:[%s855 + $0x64] sm:$0xf]
      %v4166 = vld [vmem:[%s855 + $0x68] sm:$0x1]
      %v4167 = vld [vmem:[%s855 + $0x6c] sm:$0xe]
      %v4168 = vld [vmem:[%s855 + $0x70] sm:$0xf]
      %v4169 = vld [vmem:[%s855 + $0x74] sm:$0x1]
      %v4170 = vld [vmem:[%s855 + $0x78] sm:$0xe]
      %v4171 = vld [vmem:[%s855 + $0x7c] sm:$0xf]
      %v4172 = vld [vmem:[%s855 + $0x80] sm:$0x1]
      %v4173 = vld [vmem:[%s855 + $0x84] sm:$0xe]
      %v4174 = vld [vmem:[%s855 + $0x88] sm:$0xf]
      %v4175 = vld [vmem:[%s855 + $0x8c] sm:$0x1]
      %v4176 = vld [vmem:[%s855 + $0x90] sm:$0xe]
      %v4177 = vld [vmem:[%s855 + $0x94] sm:$0xf]
      %v4178 = vld [vmem:[%s855 + $0x98] sm:$0x1]
      %v4179 = vld [vmem:[%s855 + $0x9c] sm:$0xe]
      %v4180 = vld [vmem:[%s855 + $0xa0] sm:$0xf]
      %v4181 = vld [vmem:[%s855 + $0xa4] sm:$0x1]
      %v4182 = vld [vmem:[%s855 + $0xa8] sm:$0xe]
      %v4183 = vld [vmem:[%s855 + $0xac] sm:$0xf]
      %v4184 = vld [vmem:[%s855 + $0xb0] sm:$0x1]
      %v4185 = vld [vmem:[%s855 + $0xb4] sm:$0xe]
      %v4186 = vld [vmem:[%s855 + $0xb8] sm:$0xf]
      %v4187 = vld [vmem:[%s855 + $0xbc] sm:$0x1]
      %v4188 = vld [vmem:[#allocation3] sm:$0xff]
      %v4189 = vld [vmem:[#allocation3 + $0x8] sm:$0xff]
      %v4190 = vld [vmem:[#allocation3 + $0x10] sm:$0xff]
      %v4191 = vld [vmem:[#allocation3 + $0x18] sm:$0xff]
      %v4192 = vld [vmem:[#allocation3 + $0x20] sm:$0xff]
      %v4193 = vld [vmem:[#allocation3 + $0x28] sm:$0xff]
      %v4194 = vld [vmem:[#allocation3 + $0x30] sm:$0xff]
      %v4195 = vld [vmem:[#allocation3 + $0x38] sm:$0xff]
      %v4196 = vld [vmem:[#allocation3 + $0x40] sm:$0xff]
      %v4197 = vld [vmem:[#allocation3 + $0x48] sm:$0xff]
      %v4198 = vld [vmem:[#allocation3 + $0x50] sm:$0xff]
      %v4199 = vld [vmem:[#allocation3 + $0x58] sm:$0xff]
      %v4200 = vld [vmem:[#allocation3 + $0x60] sm:$0xff]
      %v4201 = vld [vmem:[#allocation3 + $0x68] sm:$0xff]
      %v4202 = vld [vmem:[#allocation3 + $0x70] sm:$0xff]
      %v4203 = vld [vmem:[#allocation3 + $0x78] sm:$0xff]
      %v4204 = vld [vmem:[#allocation3 + $0x80] sm:$0xff]
      %v4205 = vld [vmem:[#allocation3 + $0x88] sm:$0xff]
      %v4206 = vld [vmem:[#allocation3 + $0x90] sm:$0xff]
      %v4207 = vld [vmem:[#allocation3 + $0x98] sm:$0xff]
      %v4208 = vld [vmem:[#allocation3 + $0xa0] sm:$0xff]
      %v4209 = vld [vmem:[#allocation3 + $0xa8] sm:$0xff]
      %v4210 = vld [vmem:[#allocation3 + $0xb0] sm:$0xff]
      %v4211 = vld [vmem:[#allocation3 + $0xb8] sm:$0xff]
      %v4212 = vld [vmem:[#allocation3 + $0xc0] sm:$0xff]
      %v4213 = vld [vmem:[#allocation3 + $0xc8] sm:$0xff]
      %v4214 = vld [vmem:[#allocation3 + $0xd0] sm:$0xff]
      %v4215 = vld [vmem:[#allocation3 + $0xd8] sm:$0xff]
      %v4216 = vld [vmem:[#allocation3 + $0xe0] sm:$0xff]
      %v4217 = vld [vmem:[#allocation3 + $0xe8] sm:$0xff]
      %v4218 = vld [vmem:[#allocation3 + $0xf0] sm:$0xff]
      %v4219 = vld [vmem:[#allocation3 + $0xf8] sm:$0xff]
      %v4268 = vrot.slane %v4140, 5
      %v4269 = vrot.slane %v4268, 4
      %v4270 = vrot.slane %v4141, 5
      %v4271 = vsel %vm2405, %v4269, %v4270
      %v4272 = vrot.slane %v4270, 4
      %v4273 = vrot.slane %v4142, 5
      %v4274 = vsel %vm2405, %v4272, %v4273
      %v4275 = vrot.slane %v4143, 5
      %v4276 = vrot.slane %v4275, 4
      %v4277 = vrot.slane %v4144, 5
      %v4278 = vsel %vm2405, %v4276, %v4277
      %v4279 = vrot.slane %v4277, 4
      %v4280 = vrot.slane %v4145, 5
      %v4281 = vsel %vm2405, %v4279, %v4280
      %v4282 = vrot.slane %v4146, 5
      %v4283 = vrot.slane %v4282, 4
      %v4284 = vrot.slane %v4147, 5
      %v4285 = vsel %vm2405, %v4283, %v4284
      %v4286 = vrot.slane %v4284, 4
      %v4287 = vrot.slane %v4148, 5
      %v4288 = vsel %vm2405, %v4286, %v4287
      %v4289 = vrot.slane %v4149, 5
      %v4290 = vrot.slane %v4289, 4
      %v4291 = vrot.slane %v4150, 5
      %v4292 = vsel %vm2405, %v4290, %v4291
      %v4293 = vrot.slane %v4291, 4
      %v4294 = vrot.slane %v4151, 5
      %v4295 = vsel %vm2405, %v4293, %v4294
      %v4296 = vrot.slane %v4152, 5
      %v4297 = vrot.slane %v4296, 4
      %v4298 = vrot.slane %v4153, 5
      %v4299 = vsel %vm2405, %v4297, %v4298
      %v4300 = vrot.slane %v4298, 4
      %v4301 = vrot.slane %v4154, 5
      %v4302 = vsel %vm2405, %v4300, %v4301
      %v4303 = vrot.slane %v4155, 5
      %v4304 = vrot.slane %v4303, 4
      %v4305 = vrot.slane %v4156, 5
      %v4306 = vsel %vm2405, %v4304, %v4305
      %v4307 = vrot.slane %v4305, 4
      %v4308 = vrot.slane %v4157, 5
      %v4309 = vsel %vm2405, %v4307, %v4308
      %v4310 = vrot.slane %v4158, 5
      %v4311 = vrot.slane %v4310, 4
      %v4312 = vrot.slane %v4159, 5
      %v4313 = vsel %vm2405, %v4311, %v4312
      %v4314 = vrot.slane %v4312, 4
      %v4315 = vrot.slane %v4160, 5
      %v4316 = vsel %vm2405, %v4314, %v4315
      %v4317 = vrot.slane %v4161, 5
      %v4318 = vrot.slane %v4317, 4
      %v4319 = vrot.slane %v4162, 5
      %v4320 = vsel %vm2405, %v4318, %v4319
      %v4321 = vrot.slane %v4319, 4
      %v4322 = vrot.slane %v4163, 5
      %v4323 = vsel %vm2405, %v4321, %v4322
      %v4324 = vrot.slane %v4164, 5
      %v4325 = vrot.slane %v4324, 4
      %v4326 = vrot.slane %v4165, 5
      %v4327 = vsel %vm2405, %v4325, %v4326
      %v4328 = vrot.slane %v4326, 4
      %v4329 = vrot.slane %v4166, 5
      %v4330 = vsel %vm2405, %v4328, %v4329
      %v4331 = vrot.slane %v4167, 5
      %v4332 = vrot.slane %v4331, 4
      %v4333 = vrot.slane %v4168, 5
      %v4334 = vsel %vm2405, %v4332, %v4333
      %v4335 = vrot.slane %v4333, 4
      %v4336 = vrot.slane %v4169, 5
      %v4337 = vsel %vm2405, %v4335, %v4336
      %v4338 = vrot.slane %v4170, 5
      %v4339 = vrot.slane %v4338, 4
      %v4340 = vrot.slane %v4171, 5
      %v4341 = vsel %vm2405, %v4339, %v4340
      %v4342 = vrot.slane %v4340, 4
      %v4343 = vrot.slane %v4172, 5
      %v4344 = vsel %vm2405, %v4342, %v4343
      %v4345 = vrot.slane %v4173, 5
      %v4346 = vrot.slane %v4345, 4
      %v4347 = vrot.slane %v4174, 5
      %v4348 = vsel %vm2405, %v4346, %v4347
      %v4349 = vrot.slane %v4347, 4
      %v4350 = vrot.slane %v4175, 5
      %v4351 = vsel %vm2405, %v4349, %v4350
      %v4352 = vrot.slane %v4176, 5
      %v4353 = vrot.slane %v4352, 4
      %v4354 = vrot.slane %v4177, 5
      %v4355 = vsel %vm2405, %v4353, %v4354
      %v4356 = vrot.slane %v4354, 4
      %v4357 = vrot.slane %v4178, 5
      %v4358 = vsel %vm2405, %v4356, %v4357
      %v4359 = vrot.slane %v4179, 5
      %v4360 = vrot.slane %v4359, 4
      %v4361 = vrot.slane %v4180, 5
      %v4362 = vsel %vm2405, %v4360, %v4361
      %v4363 = vrot.slane %v4361, 4
      %v4364 = vrot.slane %v4181, 5
      %v4365 = vsel %vm2405, %v4363, %v4364
      %v4366 = vrot.slane %v4182, 5
      %v4367 = vrot.slane %v4366, 4
      %v4368 = vrot.slane %v4183, 5
      %v4369 = vsel %vm2405, %v4367, %v4368
      %v4370 = vrot.slane %v4368, 4
      %v4371 = vrot.slane %v4184, 5
      %v4372 = vsel %vm2405, %v4370, %v4371
      %v4373 = vrot.slane %v4185, 5
      %v4374 = vrot.slane %v4373, 4
      %v4375 = vrot.slane %v4186, 5
      %v4376 = vsel %vm2405, %v4374, %v4375
      %v4377 = vrot.slane %v4375, 4
      %v4378 = vrot.slane %v4187, 5
      %v4379 = vsel %vm2405, %v4377, %v4378
      %s4380 = scalar_lea.vmem %s3, 320
      %v4381 = vld [vmem:[%s4380] sm:$0xf]
      %v4382 = vld [vmem:[%s4380 + $0x4] sm:$0xf]
      %v4383 = vld [vmem:[%s4380 + $0x8] sm:$0xf]
      %v4384 = vld [vmem:[%s4380 + $0xc] sm:$0xf]
      %v4385 = vld [vmem:[%s4380 + $0x10] sm:$0xf]
      %v4386 = vld [vmem:[%s4380 + $0x14] sm:$0xf]
      %v4387 = vld [vmem:[%s4380 + $0x18] sm:$0xf]
      %v4388 = vld [vmem:[%s4380 + $0x1c] sm:$0xf]
      %v4389 = vld [vmem:[%s4380 + $0x20] sm:$0xf]
      %v4390 = vld [vmem:[%s4380 + $0x24] sm:$0xf]
      %v4391 = vld [vmem:[%s4380 + $0x28] sm:$0xf]
      %v4392 = vld [vmem:[%s4380 + $0x2c] sm:$0xf]
      %v4393 = vld [vmem:[%s4380 + $0x30] sm:$0xf]
      %v4394 = vld [vmem:[%s4380 + $0x34] sm:$0xf]
      %v4395 = vld [vmem:[%s4380 + $0x38] sm:$0xf]
      %v4396 = vld [vmem:[%s4380 + $0x3c] sm:$0xf]
      %v4397 = vunpack.c.l.b16 %v4271
      %v4398 = vunpack.c.l.b16 %v4274
      %v4399 = vunpack.c.l.b16 %v4278
      %v4400 = vunpack.c.l.b16 %v4281
      %v4401 = vunpack.c.l.b16 %v4285
      %v4402 = vunpack.c.l.b16 %v4288
      %v4403 = vunpack.c.l.b16 %v4292
      %v4404 = vunpack.c.l.b16 %v4295
      %v4405 = vunpack.c.l.b16 %v4299
      %v4406 = vunpack.c.l.b16 %v4302
      %v4407 = vunpack.c.l.b16 %v4306
      %v4408 = vunpack.c.l.b16 %v4309
      %v4409 = vunpack.c.l.b16 %v4313
      %v4410 = vunpack.c.l.b16 %v4316
      %v4411 = vunpack.c.l.b16 %v4320
      %v4412 = vunpack.c.l.b16 %v4323
      %v4413 = vunpack.c.l.b16 %v4327
      %v4414 = vunpack.c.l.b16 %v4330
      %v4415 = vunpack.c.l.b16 %v4334
      %v4416 = vunpack.c.l.b16 %v4337
      %v4417 = vunpack.c.l.b16 %v4341
      %v4418 = vunpack.c.l.b16 %v4344
      %v4419 = vunpack.c.l.b16 %v4348
      %v4420 = vunpack.c.l.b16 %v4351
      %v4421 = vunpack.c.l.b16 %v4355
      %v4422 = vunpack.c.l.b16 %v4358
      %v4423 = vunpack.c.l.b16 %v4362
      %v4424 = vunpack.c.l.b16 %v4365
      %v4425 = vunpack.c.l.b16 %v4369
      %v4426 = vunpack.c.l.b16 %v4372
      %v4427 = vunpack.c.l.b16 %v4376
      %v4428 = vunpack.c.l.b16 %v4379
      %v4429 = vpack.c.b16 %v4398, %v4397
      %v4430 = vpack.c.b16 %v4400, %v4399
      %v4431 = vpack.c.b16 %v4402, %v4401
      %v4432 = vpack.c.b16 %v4404, %v4403
      %v4433 = vpack.c.b16 %v4406, %v4405
      %v4434 = vpack.c.b16 %v4408, %v4407
      %v4435 = vpack.c.b16 %v4410, %v4409
      %v4436 = vpack.c.b16 %v4412, %v4411
      %v4437 = vpack.c.b16 %v4414, %v4413
      %v4438 = vpack.c.b16 %v4416, %v4415
      %v4439 = vpack.c.b16 %v4418, %v4417
      %v4440 = vpack.c.b16 %v4420, %v4419
      %v4441 = vpack.c.b16 %v4422, %v4421
      %v4442 = vpack.c.b16 %v4424, %v4423
      %v4443 = vpack.c.b16 %v4426, %v4425
      %v4444 = vpack.c.b16 %v4428, %v4427
      %v4477 = vunpack.c.l.b16 %v4381
      %v4478 = vunpack.c.l.b16 %v4382
      %v4479 = vunpack.c.l.b16 %v4383
      %v4480 = vunpack.c.l.b16 %v4384
      %v4481 = vunpack.c.l.b16 %v4385
      %v4482 = vunpack.c.l.b16 %v4386
      %v4483 = vunpack.c.l.b16 %v4387
      %v4484 = vunpack.c.l.b16 %v4388
      %v4485 = vunpack.c.l.b16 %v4389
      %v4486 = vunpack.c.l.b16 %v4390
      %v4487 = vunpack.c.l.b16 %v4391
      %v4488 = vunpack.c.l.b16 %v4392
      %v4489 = vunpack.c.l.b16 %v4393
      %v4490 = vunpack.c.l.b16 %v4394
      %v4491 = vunpack.c.l.b16 %v4395
      %v4492 = vunpack.c.l.b16 %v4396
      %v4493 = vpack.c.b16 %v4478, %v4477
      %v4494 = vpack.c.b16 %v4480, %v4479
      %v4495 = vpack.c.b16 %v4482, %v4481
      %v4496 = vpack.c.b16 %v4484, %v4483
      %v4497 = vpack.c.b16 %v4486, %v4485
      %v4498 = vpack.c.b16 %v4488, %v4487
      %v4499 = vpack.c.b16 %v4490, %v4489
      %v4500 = vpack.c.b16 %v4492, %v4491
      %4509 = vmatprep.subr.bf16.mxu0 0
      %4510 = vmatpush1.bf16.msra.mxu0 %v4500
      %4511 = vmatprep.subr.bf16.mxu0 0
      %4512 = vmatpush1.bf16.msra.mxu0 %v4499
      %4513 = vmatprep.subr.bf16.mxu0 0
      %4514 = vmatpush1.bf16.msra.mxu0 %v4498
      %4515 = vmatprep.subr.bf16.mxu0 0
      %4516 = vmatpush1.bf16.msra.mxu0 %v4497
      %4517 = vmatprep.subr.bf16.mxu0 0
      %4518 = vmatpush1.bf16.msra.mxu0 %v4496
      %4519 = vmatprep.subr.bf16.mxu0 0
      %4520 = vmatpush1.bf16.msra.mxu0 %v4495
      %4521 = vmatprep.subr.bf16.mxu0 0
      %4522 = vmatpush1.bf16.msra.mxu0 %v4494
      %4523 = vmatprep.subr.bf16.mxu0 0
      %4524 = vmatpush1.bf16.msra.mxu0 %v4493
      %4525 = vmatprep.subr.bf16.mxu0 0
      %4526 = vmatpush2.bf16.msra.mxu0 0
      %4527 = vmatprep.subr.bf16.mxu0 0
      %4528 = vmatpush2.bf16.msra.mxu0 0
      %4529 = vmatprep.subr.bf16.mxu0 0
      %4530 = vmatpush2.bf16.msra.mxu0 0
      %4531 = vmatprep.subr.bf16.mxu0 0
      %4532 = vmatpush2.bf16.msra.mxu0 0
      %4533 = vmatprep.subr.bf16.mxu0 0
      %4534 = vmatpush2.bf16.msra.mxu0 0
      %4535 = vmatprep.subr.bf16.mxu0 0
      %4536 = vmatpush2.bf16.msra.mxu0 0
      %4537 = vmatprep.subr.bf16.mxu0 0
      %4538 = vmatpush2.bf16.msra.mxu0 0
      %4539 = vmatprep.subr.bf16.mxu0 0
      %4540 = vmatpush2.bf16.msra.mxu0 0
      %4541 = vmatprep.mubr.bf16.mxu0 0
      %4542 = vmatmul.mubr.bf16.gmra.mxu0 %v4429
      %v4543 = vpop.f32.mrf.mxu0
      %v4544 = vadd.f32 0.0, %v4543
      %v4545 = vpop.f32.mrf.mxu0
      %v4546 = vpop.f32.mrf.mxu0
      %v4547 = vadd.f32 0.0, %v4546
      %v4548 = vpop.f32.mrf.mxu0
      %4549 = vmatprep.mubr.bf16.mxu0 0
      %4550 = vmatmul.mubr.bf16.gmra.mxu0 %v4430
      %v4551 = vpop.f32.mrf.mxu0
      %v4552 = vadd.f32 0.0, %v4551
      %v4553 = vpop.f32.mrf.mxu0
      %v4554 = vpop.f32.mrf.mxu0
      %v4555 = vadd.f32 0.0, %v4554
      %v4556 = vpop.f32.mrf.mxu0
      %4557 = vmatprep.mubr.bf16.mxu0 0
      %4558 = vmatmul.mubr.bf16.gmra.mxu0 %v4431
      %v4559 = vpop.f32.mrf.mxu0
      %v4560 = vadd.f32 0.0, %v4559
      %v4561 = vpop.f32.mrf.mxu0
      %v4562 = vpop.f32.mrf.mxu0
      %v4563 = vadd.f32 0.0, %v4562
      %v4564 = vpop.f32.mrf.mxu0
      %4565 = vmatprep.mubr.bf16.mxu0 0
      %4566 = vmatmul.mubr.bf16.gmra.mxu0 %v4432
      %v4567 = vpop.f32.mrf.mxu0
      %v4568 = vadd.f32 0.0, %v4567
      %v4569 = vpop.f32.mrf.mxu0
      %v4570 = vpop.f32.mrf.mxu0
      %v4571 = vadd.f32 0.0, %v4570
      %v4572 = vpop.f32.mrf.mxu0
      %4573 = vmatprep.mubr.bf16.mxu0 0
      %4574 = vmatmul.mubr.bf16.gmra.mxu0 %v4433
      %v4575 = vpop.f32.mrf.mxu0
      %v4576 = vadd.f32 0.0, %v4575
      %v4577 = vpop.f32.mrf.mxu0
      %v4578 = vpop.f32.mrf.mxu0
      %v4579 = vadd.f32 0.0, %v4578
      %v4580 = vpop.f32.mrf.mxu0
      %4581 = vmatprep.mubr.bf16.mxu0 0
      %4582 = vmatmul.mubr.bf16.gmra.mxu0 %v4434
      %v4583 = vpop.f32.mrf.mxu0
      %v4584 = vadd.f32 0.0, %v4583
      %v4585 = vpop.f32.mrf.mxu0
      %v4586 = vpop.f32.mrf.mxu0
      %v4587 = vadd.f32 0.0, %v4586
      %v4588 = vpop.f32.mrf.mxu0
      %4589 = vmatprep.mubr.bf16.mxu0 0
      %4590 = vmatmul.mubr.bf16.gmra.mxu0 %v4435
      %v4591 = vpop.f32.mrf.mxu0
      %v4592 = vadd.f32 0.0, %v4591
      %v4593 = vpop.f32.mrf.mxu0
      %v4594 = vpop.f32.mrf.mxu0
      %v4595 = vadd.f32 0.0, %v4594
      %v4596 = vpop.f32.mrf.mxu0
      %4597 = vmatprep.mubr.bf16.mxu0 0
      %4598 = vmatmul.mubr.bf16.gmra.mxu0 %v4436
      %v4599 = vpop.f32.mrf.mxu0
      %v4600 = vadd.f32 0.0, %v4599
      %v4601 = vpop.f32.mrf.mxu0
      %v4602 = vpop.f32.mrf.mxu0
      %v4603 = vadd.f32 0.0, %v4602
      %v4604 = vpop.f32.mrf.mxu0
      %4605 = vmatprep.mubr.bf16.mxu0 0
      %4606 = vmatmul.mubr.bf16.gmra.mxu0 %v4437
      %v4607 = vpop.f32.mrf.mxu0
      %v4608 = vadd.f32 0.0, %v4607
      %v4609 = vpop.f32.mrf.mxu0
      %v4610 = vpop.f32.mrf.mxu0
      %v4611 = vadd.f32 0.0, %v4610
      %v4612 = vpop.f32.mrf.mxu0
      %4613 = vmatprep.mubr.bf16.mxu0 0
      %4614 = vmatmul.mubr.bf16.gmra.mxu0 %v4438
      %v4615 = vpop.f32.mrf.mxu0
      %v4616 = vadd.f32 0.0, %v4615
      %v4617 = vpop.f32.mrf.mxu0
      %v4618 = vpop.f32.mrf.mxu0
      %v4619 = vadd.f32 0.0, %v4618
      %v4620 = vpop.f32.mrf.mxu0
      %4621 = vmatprep.mubr.bf16.mxu0 0
      %4622 = vmatmul.mubr.bf16.gmra.mxu0 %v4439
      %v4623 = vpop.f32.mrf.mxu0
      %v4624 = vadd.f32 0.0, %v4623
      %v4625 = vpop.f32.mrf.mxu0
      %v4626 = vpop.f32.mrf.mxu0
      %v4627 = vadd.f32 0.0, %v4626
      %v4628 = vpop.f32.mrf.mxu0
      %4629 = vmatprep.mubr.bf16.mxu0 0
      %4630 = vmatmul.mubr.bf16.gmra.mxu0 %v4440
      %v4631 = vpop.f32.mrf.mxu0
      %v4632 = vadd.f32 0.0, %v4631
      %v4633 = vpop.f32.mrf.mxu0
      %v4634 = vpop.f32.mrf.mxu0
      %v4635 = vadd.f32 0.0, %v4634
      %v4636 = vpop.f32.mrf.mxu0
      %4637 = vmatprep.mubr.bf16.mxu0 0
      %4638 = vmatmul.mubr.bf16.gmra.mxu0 %v4441
      %v4639 = vpop.f32.mrf.mxu0
      %v4640 = vadd.f32 0.0, %v4639
      %v4641 = vpop.f32.mrf.mxu0
      %v4642 = vpop.f32.mrf.mxu0
      %v4643 = vadd.f32 0.0, %v4642
      %v4644 = vpop.f32.mrf.mxu0
      %4645 = vmatprep.mubr.bf16.mxu0 0
      %4646 = vmatmul.mubr.bf16.gmra.mxu0 %v4442
      %v4647 = vpop.f32.mrf.mxu0
      %v4648 = vadd.f32 0.0, %v4647
      %v4649 = vpop.f32.mrf.mxu0
      %v4650 = vpop.f32.mrf.mxu0
      %v4651 = vadd.f32 0.0, %v4650
      %v4652 = vpop.f32.mrf.mxu0
      %4653 = vmatprep.mubr.bf16.mxu0 0
      %4654 = vmatmul.mubr.bf16.gmra.mxu0 %v4443
      %v4655 = vpop.f32.mrf.mxu0
      %v4656 = vadd.f32 0.0, %v4655
      %v4657 = vpop.f32.mrf.mxu0
      %v4658 = vpop.f32.mrf.mxu0
      %v4659 = vadd.f32 0.0, %v4658
      %v4660 = vpop.f32.mrf.mxu0
      %4661 = vmatprep.mubr.bf16.mxu0 0
      %4662 = vmatmul.mubr.bf16.gmra.mxu0 %v4444
      %v4663 = vpop.f32.mrf.mxu0
      %v4664 = vadd.f32 0.0, %v4663
      %v4665 = vpop.f32.mrf.mxu0
      %v4666 = vpop.f32.mrf.mxu0
      %v4667 = vadd.f32 0.0, %v4666
      %v4668 = vpop.f32.mrf.mxu0
      %4669 = vdwg.mxu0
      %v4670 = vadd.f32 %v4188, %v4544
      %v4671 = vadd.f32 %v4189, %v4547
      %v4672 = vadd.f32 %v4190, %v4552
      %v4673 = vadd.f32 %v4191, %v4555
      %v4674 = vadd.f32 %v4192, %v4560
      %v4675 = vadd.f32 %v4193, %v4563
      %v4676 = vadd.f32 %v4194, %v4568
      %v4677 = vadd.f32 %v4195, %v4571
      %v4678 = vadd.f32 %v4196, %v4576
      %v4679 = vadd.f32 %v4197, %v4579
      %v4680 = vadd.f32 %v4198, %v4584
      %v4681 = vadd.f32 %v4199, %v4587
      %v4682 = vadd.f32 %v4200, %v4592
      %v4683 = vadd.f32 %v4201, %v4595
      %v4684 = vadd.f32 %v4202, %v4600
      %v4685 = vadd.f32 %v4203, %v4603
      %v4686 = vadd.f32 %v4204, %v4608
      %v4687 = vadd.f32 %v4205, %v4611
      %v4688 = vadd.f32 %v4206, %v4616
      %v4689 = vadd.f32 %v4207, %v4619
      %v4690 = vadd.f32 %v4208, %v4624
      %v4691 = vadd.f32 %v4209, %v4627
      %v4692 = vadd.f32 %v4210, %v4632
      %v4693 = vadd.f32 %v4211, %v4635
      %v4694 = vadd.f32 %v4212, %v4640
      %v4695 = vadd.f32 %v4213, %v4643
      %v4696 = vadd.f32 %v4214, %v4648
      %v4697 = vadd.f32 %v4215, %v4651
      %v4698 = vadd.f32 %v4216, %v4656
      %v4699 = vadd.f32 %v4217, %v4659
      %v4700 = vadd.f32 %v4218, %v4664
      %v4701 = vadd.f32 %v4219, %v4667
      %4702 = vst [vmem:[#allocation3] sm:$0xff] %v4670
      %4703 = vst [vmem:[#allocation3 + $0x8] sm:$0xff] %v4671
      %4704 = vst [vmem:[#allocation3 + $0x10] sm:$0xff] %v4672
      %4705 = vst [vmem:[#allocation3 + $0x18] sm:$0xff] %v4673
      %4706 = vst [vmem:[#allocation3 + $0x20] sm:$0xff] %v4674
      %4707 = vst [vmem:[#allocation3 + $0x28] sm:$0xff] %v4675
      %4708 = vst [vmem:[#allocation3 + $0x30] sm:$0xff] %v4676
      %4709 = vst [vmem:[#allocation3 + $0x38] sm:$0xff] %v4677
      %4710 = vst [vmem:[#allocation3 + $0x40] sm:$0xff] %v4678
      %4711 = vst [vmem:[#allocation3 + $0x48] sm:$0xff] %v4679
      %4712 = vst [vmem:[#allocation3 + $0x50] sm:$0xff] %v4680
      %4713 = vst [vmem:[#allocation3 + $0x58] sm:$0xff] %v4681
      %4714 = vst [vmem:[#allocation3 + $0x60] sm:$0xff] %v4682
      %4715 = vst [vmem:[#allocation3 + $0x68] sm:$0xff] %v4683
      %4716 = vst [vmem:[#allocation3 + $0x70] sm:$0xff] %v4684
      %4717 = vst [vmem:[#allocation3 + $0x78] sm:$0xff] %v4685
      %4718 = vst [vmem:[#allocation3 + $0x80] sm:$0xff] %v4686
      %4719 = vst [vmem:[#allocation3 + $0x88] sm:$0xff] %v4687
      %4720 = vst [vmem:[#allocation3 + $0x90] sm:$0xff] %v4688
      %4721 = vst [vmem:[#allocation3 + $0x98] sm:$0xff] %v4689
      %4722 = vst [vmem:[#allocation3 + $0xa0] sm:$0xff] %v4690
      %4723 = vst [vmem:[#allocation3 + $0xa8] sm:$0xff] %v4691
      %4724 = vst [vmem:[#allocation3 + $0xb0] sm:$0xff] %v4692
      %4725 = vst [vmem:[#allocation3 + $0xb8] sm:$0xff] %v4693
      %4726 = vst [vmem:[#allocation3 + $0xc0] sm:$0xff] %v4694
      %4727 = vst [vmem:[#allocation3 + $0xc8] sm:$0xff] %v4695
      %4728 = vst [vmem:[#allocation3 + $0xd0] sm:$0xff] %v4696
      %4729 = vst [vmem:[#allocation3 + $0xd8] sm:$0xff] %v4697
      %4730 = vst [vmem:[#allocation3 + $0xe0] sm:$0xff] %v4698
      %4731 = vst [vmem:[#allocation3 + $0xe8] sm:$0xff] %v4699
      %4732 = vst [vmem:[#allocation3 + $0xf0] sm:$0xff] %v4700
      %4733 = vst [vmem:[#allocation3 + $0xf8] sm:$0xff] %v4701
      %s4734 = scalar_lea.vmem [#allocation2], 24
      %v4735 = vld [vmem:[%s4734] sm:$0xf]
      %v4736 = vld [vmem:[%s4734 + $0x4] sm:$0xf]
      %v4737 = vld [vmem:[%s4734 + $0xc] sm:$0xf]
      %v4738 = vld [vmem:[%s4734 + $0x10] sm:$0xf]
      %v4739 = vld [vmem:[%s4734 + $0x18] sm:$0xf]
      %v4740 = vld [vmem:[%s4734 + $0x1c] sm:$0xf]
      %v4741 = vld [vmem:[%s4734 + $0x24] sm:$0xf]
      %v4742 = vld [vmem:[%s4734 + $0x28] sm:$0xf]
      %v4743 = vld [vmem:[%s4734 + $0x30] sm:$0xf]
      %v4744 = vld [vmem:[%s4734 + $0x34] sm:$0xf]
      %v4745 = vld [vmem:[%s4734 + $0x3c] sm:$0xf]
      %v4746 = vld [vmem:[%s4734 + $0x40] sm:$0xf]
      %v4747 = vld [vmem:[%s4734 + $0x48] sm:$0xf]
      %v4748 = vld [vmem:[%s4734 + $0x4c] sm:$0xf]
      %v4749 = vld [vmem:[%s4734 + $0x54] sm:$0xf]
      %v4750 = vld [vmem:[%s4734 + $0x58] sm:$0xf]
      %v4751 = vld [vmem:[%s4734 + $0x60] sm:$0xf]
      %v4752 = vld [vmem:[%s4734 + $0x64] sm:$0xf]
      %v4753 = vld [vmem:[%s4734 + $0x6c] sm:$0xf]
      %v4754 = vld [vmem:[%s4734 + $0x70] sm:$0xf]
      %v4755 = vld [vmem:[%s4734 + $0x78] sm:$0xf]
      %v4756 = vld [vmem:[%s4734 + $0x7c] sm:$0xf]
      %v4757 = vld [vmem:[%s4734 + $0x84] sm:$0xf]
      %v4758 = vld [vmem:[%s4734 + $0x88] sm:$0xf]
      %v4759 = vld [vmem:[%s4734 + $0x90] sm:$0xf]
      %v4760 = vld [vmem:[%s4734 + $0x94] sm:$0xf]
      %v4761 = vld [vmem:[%s4734 + $0x9c] sm:$0xf]
      %v4762 = vld [vmem:[%s4734 + $0xa0] sm:$0xf]
      %v4763 = vld [vmem:[%s4734 + $0xa8] sm:$0xf]
      %v4764 = vld [vmem:[%s4734 + $0xac] sm:$0xf]
      %v4765 = vld [vmem:[%s4734 + $0xb4] sm:$0xf]
      %v4766 = vld [vmem:[%s4734 + $0xb8] sm:$0xf]
      %v4767 = vld [vmem:[#allocation3] sm:$0xff]
      %v4768 = vld [vmem:[#allocation3 + $0x8] sm:$0xff]
      %v4769 = vld [vmem:[#allocation3 + $0x10] sm:$0xff]
      %v4770 = vld [vmem:[#allocation3 + $0x18] sm:$0xff]
      %v4771 = vld [vmem:[#allocation3 + $0x20] sm:$0xff]
      %v4772 = vld [vmem:[#allocation3 + $0x28] sm:$0xff]
      %v4773 = vld [vmem:[#allocation3 + $0x30] sm:$0xff]
      %v4774 = vld [vmem:[#allocation3 + $0x38] sm:$0xff]
      %v4775 = vld [vmem:[#allocation3 + $0x40] sm:$0xff]
      %v4776 = vld [vmem:[#allocation3 + $0x48] sm:$0xff]
      %v4777 = vld [vmem:[#allocation3 + $0x50] sm:$0xff]
      %v4778 = vld [vmem:[#allocation3 + $0x58] sm:$0xff]
      %v4779 = vld [vmem:[#allocation3 + $0x60] sm:$0xff]
      %v4780 = vld [vmem:[#allocation3 + $0x68] sm:$0xff]
      %v4781 = vld [vmem:[#allocation3 + $0x70] sm:$0xff]
      %v4782 = vld [vmem:[#allocation3 + $0x78] sm:$0xff]
      %v4783 = vld [vmem:[#allocation3 + $0x80] sm:$0xff]
      %v4784 = vld [vmem:[#allocation3 + $0x88] sm:$0xff]
      %v4785 = vld [vmem:[#allocation3 + $0x90] sm:$0xff]
      %v4786 = vld [vmem:[#allocation3 + $0x98] sm:$0xff]
      %v4787 = vld [vmem:[#allocation3 + $0xa0] sm:$0xff]
      %v4788 = vld [vmem:[#allocation3 + $0xa8] sm:$0xff]
      %v4789 = vld [vmem:[#allocation3 + $0xb0] sm:$0xff]
      %v4790 = vld [vmem:[#allocation3 + $0xb8] sm:$0xff]
      %v4791 = vld [vmem:[#allocation3 + $0xc0] sm:$0xff]
      %v4792 = vld [vmem:[#allocation3 + $0xc8] sm:$0xff]
      %v4793 = vld [vmem:[#allocation3 + $0xd0] sm:$0xff]
      %v4794 = vld [vmem:[#allocation3 + $0xd8] sm:$0xff]
      %v4795 = vld [vmem:[#allocation3 + $0xe0] sm:$0xff]
      %v4796 = vld [vmem:[#allocation3 + $0xe8] sm:$0xff]
      %v4797 = vld [vmem:[#allocation3 + $0xf0] sm:$0xff]
      %v4798 = vld [vmem:[#allocation3 + $0xf8] sm:$0xff]
      %s4799 = scalar_lea.vmem %s3, 384
      %v4800 = vld [vmem:[%s4799] sm:$0xf]
      %v4801 = vld [vmem:[%s4799 + $0x4] sm:$0xf]
      %v4802 = vld [vmem:[%s4799 + $0x8] sm:$0xf]
      %v4803 = vld [vmem:[%s4799 + $0xc] sm:$0xf]
      %v4804 = vld [vmem:[%s4799 + $0x10] sm:$0xf]
      %v4805 = vld [vmem:[%s4799 + $0x14] sm:$0xf]
      %v4806 = vld [vmem:[%s4799 + $0x18] sm:$0xf]
      %v4807 = vld [vmem:[%s4799 + $0x1c] sm:$0xf]
      %v4808 = vld [vmem:[%s4799 + $0x20] sm:$0xf]
      %v4809 = vld [vmem:[%s4799 + $0x24] sm:$0xf]
      %v4810 = vld [vmem:[%s4799 + $0x28] sm:$0xf]
      %v4811 = vld [vmem:[%s4799 + $0x2c] sm:$0xf]
      %v4812 = vld [vmem:[%s4799 + $0x30] sm:$0xf]
      %v4813 = vld [vmem:[%s4799 + $0x34] sm:$0xf]
      %v4814 = vld [vmem:[%s4799 + $0x38] sm:$0xf]
      %v4815 = vld [vmem:[%s4799 + $0x3c] sm:$0xf]
      %v4848 = vunpack.c.l.b16 %v4735
      %v4849 = vunpack.c.l.b16 %v4736
      %v4850 = vunpack.c.l.b16 %v4737
      %v4851 = vunpack.c.l.b16 %v4738
      %v4852 = vunpack.c.l.b16 %v4739
      %v4853 = vunpack.c.l.b16 %v4740
      %v4854 = vunpack.c.l.b16 %v4741
      %v4855 = vunpack.c.l.b16 %v4742
      %v4856 = vunpack.c.l.b16 %v4743
      %v4857 = vunpack.c.l.b16 %v4744
      %v4858 = vunpack.c.l.b16 %v4745
      %v4859 = vunpack.c.l.b16 %v4746
      %v4860 = vunpack.c.l.b16 %v4747
      %v4861 = vunpack.c.l.b16 %v4748
      %v4862 = vunpack.c.l.b16 %v4749
      %v4863 = vunpack.c.l.b16 %v4750
      %v4864 = vunpack.c.l.b16 %v4751
      %v4865 = vunpack.c.l.b16 %v4752
      %v4866 = vunpack.c.l.b16 %v4753
      %v4867 = vunpack.c.l.b16 %v4754
      %v4868 = vunpack.c.l.b16 %v4755
      %v4869 = vunpack.c.l.b16 %v4756
      %v4870 = vunpack.c.l.b16 %v4757
      %v4871 = vunpack.c.l.b16 %v4758
      %v4872 = vunpack.c.l.b16 %v4759
      %v4873 = vunpack.c.l.b16 %v4760
      %v4874 = vunpack.c.l.b16 %v4761
      %v4875 = vunpack.c.l.b16 %v4762
      %v4876 = vunpack.c.l.b16 %v4763
      %v4877 = vunpack.c.l.b16 %v4764
      %v4878 = vunpack.c.l.b16 %v4765
      %v4879 = vunpack.c.l.b16 %v4766
      %v4880 = vpack.c.b16 %v4849, %v4848
      %v4881 = vpack.c.b16 %v4851, %v4850
      %v4882 = vpack.c.b16 %v4853, %v4852
      %v4883 = vpack.c.b16 %v4855, %v4854
      %v4884 = vpack.c.b16 %v4857, %v4856
      %v4885 = vpack.c.b16 %v4859, %v4858
      %v4886 = vpack.c.b16 %v4861, %v4860
      %v4887 = vpack.c.b16 %v4863, %v4862
      %v4888 = vpack.c.b16 %v4865, %v4864
      %v4889 = vpack.c.b16 %v4867, %v4866
      %v4890 = vpack.c.b16 %v4869, %v4868
      %v4891 = vpack.c.b16 %v4871, %v4870
      %v4892 = vpack.c.b16 %v4873, %v4872
      %v4893 = vpack.c.b16 %v4875, %v4874
      %v4894 = vpack.c.b16 %v4877, %v4876
      %v4895 = vpack.c.b16 %v4879, %v4878
      %v4928 = vunpack.c.l.b16 %v4800
      %v4929 = vunpack.c.l.b16 %v4801
      %v4930 = vunpack.c.l.b16 %v4802
      %v4931 = vunpack.c.l.b16 %v4803
      %v4932 = vunpack.c.l.b16 %v4804
      %v4933 = vunpack.c.l.b16 %v4805
      %v4934 = vunpack.c.l.b16 %v4806
      %v4935 = vunpack.c.l.b16 %v4807
      %v4936 = vunpack.c.l.b16 %v4808
      %v4937 = vunpack.c.l.b16 %v4809
      %v4938 = vunpack.c.l.b16 %v4810
      %v4939 = vunpack.c.l.b16 %v4811
      %v4940 = vunpack.c.l.b16 %v4812
      %v4941 = vunpack.c.l.b16 %v4813
      %v4942 = vunpack.c.l.b16 %v4814
      %v4943 = vunpack.c.l.b16 %v4815
      %v4944 = vpack.c.b16 %v4929, %v4928
      %v4945 = vpack.c.b16 %v4931, %v4930
      %v4946 = vpack.c.b16 %v4933, %v4932
      %v4947 = vpack.c.b16 %v4935, %v4934
      %v4948 = vpack.c.b16 %v4937, %v4936
      %v4949 = vpack.c.b16 %v4939, %v4938
      %v4950 = vpack.c.b16 %v4941, %v4940
      %v4951 = vpack.c.b16 %v4943, %v4942
      %4960 = vmatprep.subr.bf16.mxu0 0
      %4961 = vmatpush1.bf16.msra.mxu0 %v4951
      %4962 = vmatprep.subr.bf16.mxu0 0
      %4963 = vmatpush1.bf16.msra.mxu0 %v4950
      %4964 = vmatprep.subr.bf16.mxu0 0
      %4965 = vmatpush1.bf16.msra.mxu0 %v4949
      %4966 = vmatprep.subr.bf16.mxu0 0
      %4967 = vmatpush1.bf16.msra.mxu0 %v4948
      %4968 = vmatprep.subr.bf16.mxu0 0
      %4969 = vmatpush1.bf16.msra.mxu0 %v4947
      %4970 = vmatprep.subr.bf16.mxu0 0
      %4971 = vmatpush1.bf16.msra.mxu0 %v4946
      %4972 = vmatprep.subr.bf16.mxu0 0
      %4973 = vmatpush1.bf16.msra.mxu0 %v4945
      %4974 = vmatprep.subr.bf16.mxu0 0
      %4975 = vmatpush1.bf16.msra.mxu0 %v4944
      %4976 = vmatprep.subr.bf16.mxu0 0
      %4977 = vmatpush2.bf16.msra.mxu0 0
      %4978 = vmatprep.subr.bf16.mxu0 0
      %4979 = vmatpush2.bf16.msra.mxu0 0
      %4980 = vmatprep.subr.bf16.mxu0 0
      %4981 = vmatpush2.bf16.msra.mxu0 0
      %4982 = vmatprep.subr.bf16.mxu0 0
      %4983 = vmatpush2.bf16.msra.mxu0 0
      %4984 = vmatprep.subr.bf16.mxu0 0
      %4985 = vmatpush2.bf16.msra.mxu0 0
      %4986 = vmatprep.subr.bf16.mxu0 0
      %4987 = vmatpush2.bf16.msra.mxu0 0
      %4988 = vmatprep.subr.bf16.mxu0 0
      %4989 = vmatpush2.bf16.msra.mxu0 0
      %4990 = vmatprep.subr.bf16.mxu0 0
      %4991 = vmatpush2.bf16.msra.mxu0 0
      %4992 = vmatprep.mubr.bf16.mxu0 0
      %4993 = vmatmul.mubr.bf16.gmra.mxu0 %v4880
      %v4994 = vpop.f32.mrf.mxu0
      %v4995 = vadd.f32 0.0, %v4994
      %v4996 = vpop.f32.mrf.mxu0
      %v4997 = vpop.f32.mrf.mxu0
      %v4998 = vadd.f32 0.0, %v4997
      %v4999 = vpop.f32.mrf.mxu0
      %5000 = vmatprep.mubr.bf16.mxu0 0
      %5001 = vmatmul.mubr.bf16.gmra.mxu0 %v4881
      %v5002 = vpop.f32.mrf.mxu0
      %v5003 = vadd.f32 0.0, %v5002
      %v5004 = vpop.f32.mrf.mxu0
      %v5005 = vpop.f32.mrf.mxu0
      %v5006 = vadd.f32 0.0, %v5005
      %v5007 = vpop.f32.mrf.mxu0
      %5008 = vmatprep.mubr.bf16.mxu0 0
      %5009 = vmatmul.mubr.bf16.gmra.mxu0 %v4882
      %v5010 = vpop.f32.mrf.mxu0
      %v5011 = vadd.f32 0.0, %v5010
      %v5012 = vpop.f32.mrf.mxu0
      %v5013 = vpop.f32.mrf.mxu0
      %v5014 = vadd.f32 0.0, %v5013
      %v5015 = vpop.f32.mrf.mxu0
      %5016 = vmatprep.mubr.bf16.mxu0 0
      %5017 = vmatmul.mubr.bf16.gmra.mxu0 %v4883
      %v5018 = vpop.f32.mrf.mxu0
      %v5019 = vadd.f32 0.0, %v5018
      %v5020 = vpop.f32.mrf.mxu0
      %v5021 = vpop.f32.mrf.mxu0
      %v5022 = vadd.f32 0.0, %v5021
      %v5023 = vpop.f32.mrf.mxu0
      %5024 = vmatprep.mubr.bf16.mxu0 0
      %5025 = vmatmul.mubr.bf16.gmra.mxu0 %v4884
      %v5026 = vpop.f32.mrf.mxu0
      %v5027 = vadd.f32 0.0, %v5026
      %v5028 = vpop.f32.mrf.mxu0
      %v5029 = vpop.f32.mrf.mxu0
      %v5030 = vadd.f32 0.0, %v5029
      %v5031 = vpop.f32.mrf.mxu0
      %5032 = vmatprep.mubr.bf16.mxu0 0
      %5033 = vmatmul.mubr.bf16.gmra.mxu0 %v4885
      %v5034 = vpop.f32.mrf.mxu0
      %v5035 = vadd.f32 0.0, %v5034
      %v5036 = vpop.f32.mrf.mxu0
      %v5037 = vpop.f32.mrf.mxu0
      %v5038 = vadd.f32 0.0, %v5037
      %v5039 = vpop.f32.mrf.mxu0
      %5040 = vmatprep.mubr.bf16.mxu0 0
      %5041 = vmatmul.mubr.bf16.gmra.mxu0 %v4886
      %v5042 = vpop.f32.mrf.mxu0
      %v5043 = vadd.f32 0.0, %v5042
      %v5044 = vpop.f32.mrf.mxu0
      %v5045 = vpop.f32.mrf.mxu0
      %v5046 = vadd.f32 0.0, %v5045
      %v5047 = vpop.f32.mrf.mxu0
      %5048 = vmatprep.mubr.bf16.mxu0 0
      %5049 = vmatmul.mubr.bf16.gmra.mxu0 %v4887
      %v5050 = vpop.f32.mrf.mxu0
      %v5051 = vadd.f32 0.0, %v5050
      %v5052 = vpop.f32.mrf.mxu0
      %v5053 = vpop.f32.mrf.mxu0
      %v5054 = vadd.f32 0.0, %v5053
      %v5055 = vpop.f32.mrf.mxu0
      %5056 = vmatprep.mubr.bf16.mxu0 0
      %5057 = vmatmul.mubr.bf16.gmra.mxu0 %v4888
      %v5058 = vpop.f32.mrf.mxu0
      %v5059 = vadd.f32 0.0, %v5058
      %v5060 = vpop.f32.mrf.mxu0
      %v5061 = vpop.f32.mrf.mxu0
      %v5062 = vadd.f32 0.0, %v5061
      %v5063 = vpop.f32.mrf.mxu0
      %5064 = vmatprep.mubr.bf16.mxu0 0
      %5065 = vmatmul.mubr.bf16.gmra.mxu0 %v4889
      %v5066 = vpop.f32.mrf.mxu0
      %v5067 = vadd.f32 0.0, %v5066
      %v5068 = vpop.f32.mrf.mxu0
      %v5069 = vpop.f32.mrf.mxu0
      %v5070 = vadd.f32 0.0, %v5069
      %v5071 = vpop.f32.mrf.mxu0
      %5072 = vmatprep.mubr.bf16.mxu0 0
      %5073 = vmatmul.mubr.bf16.gmra.mxu0 %v4890
      %v5074 = vpop.f32.mrf.mxu0
      %v5075 = vadd.f32 0.0, %v5074
      %v5076 = vpop.f32.mrf.mxu0
      %v5077 = vpop.f32.mrf.mxu0
      %v5078 = vadd.f32 0.0, %v5077
      %v5079 = vpop.f32.mrf.mxu0
      %5080 = vmatprep.mubr.bf16.mxu0 0
      %5081 = vmatmul.mubr.bf16.gmra.mxu0 %v4891
      %v5082 = vpop.f32.mrf.mxu0
      %v5083 = vadd.f32 0.0, %v5082
      %v5084 = vpop.f32.mrf.mxu0
      %v5085 = vpop.f32.mrf.mxu0
      %v5086 = vadd.f32 0.0, %v5085
      %v5087 = vpop.f32.mrf.mxu0
      %5088 = vmatprep.mubr.bf16.mxu0 0
      %5089 = vmatmul.mubr.bf16.gmra.mxu0 %v4892
      %v5090 = vpop.f32.mrf.mxu0
      %v5091 = vadd.f32 0.0, %v5090
      %v5092 = vpop.f32.mrf.mxu0
      %v5093 = vpop.f32.mrf.mxu0
      %v5094 = vadd.f32 0.0, %v5093
      %v5095 = vpop.f32.mrf.mxu0
      %5096 = vmatprep.mubr.bf16.mxu0 0
      %5097 = vmatmul.mubr.bf16.gmra.mxu0 %v4893
      %v5098 = vpop.f32.mrf.mxu0
      %v5099 = vadd.f32 0.0, %v5098
      %v5100 = vpop.f32.mrf.mxu0
      %v5101 = vpop.f32.mrf.mxu0
      %v5102 = vadd.f32 0.0, %v5101
      %v5103 = vpop.f32.mrf.mxu0
      %5104 = vmatprep.mubr.bf16.mxu0 0
      %5105 = vmatmul.mubr.bf16.gmra.mxu0 %v4894
      %v5106 = vpop.f32.mrf.mxu0
      %v5107 = vadd.f32 0.0, %v5106
      %v5108 = vpop.f32.mrf.mxu0
      %v5109 = vpop.f32.mrf.mxu0
      %v5110 = vadd.f32 0.0, %v5109
      %v5111 = vpop.f32.mrf.mxu0
      %5112 = vmatprep.mubr.bf16.mxu0 0
      %5113 = vmatmul.mubr.bf16.gmra.mxu0 %v4895
      %v5114 = vpop.f32.mrf.mxu0
      %v5115 = vadd.f32 0.0, %v5114
      %v5116 = vpop.f32.mrf.mxu0
      %v5117 = vpop.f32.mrf.mxu0
      %v5118 = vadd.f32 0.0, %v5117
      %v5119 = vpop.f32.mrf.mxu0
      %5120 = vdwg.mxu0
      %v5121 = vadd.f32 %v4767, %v4995
      %v5122 = vadd.f32 %v4768, %v4998
      %v5123 = vadd.f32 %v4769, %v5003
      %v5124 = vadd.f32 %v4770, %v5006
      %v5125 = vadd.f32 %v4771, %v5011
      %v5126 = vadd.f32 %v4772, %v5014
      %v5127 = vadd.f32 %v4773, %v5019
      %v5128 = vadd.f32 %v4774, %v5022
      %v5129 = vadd.f32 %v4775, %v5027
      %v5130 = vadd.f32 %v4776, %v5030
      %v5131 = vadd.f32 %v4777, %v5035
      %v5132 = vadd.f32 %v4778, %v5038
      %v5133 = vadd.f32 %v4779, %v5043
      %v5134 = vadd.f32 %v4780, %v5046
      %v5135 = vadd.f32 %v4781, %v5051
      %v5136 = vadd.f32 %v4782, %v5054
      %v5137 = vadd.f32 %v4783, %v5059
      %v5138 = vadd.f32 %v4784, %v5062
      %v5139 = vadd.f32 %v4785, %v5067
      %v5140 = vadd.f32 %v4786, %v5070
      %v5141 = vadd.f32 %v4787, %v5075
      %v5142 = vadd.f32 %v4788, %v5078
      %v5143 = vadd.f32 %v4789, %v5083
      %v5144 = vadd.f32 %v4790, %v5086
      %v5145 = vadd.f32 %v4791, %v5091
      %v5146 = vadd.f32 %v4792, %v5094
      %v5147 = vadd.f32 %v4793, %v5099
      %v5148 = vadd.f32 %v4794, %v5102
      %v5149 = vadd.f32 %v4795, %v5107
      %v5150 = vadd.f32 %v4796, %v5110
      %v5151 = vadd.f32 %v4797, %v5115
      %v5152 = vadd.f32 %v4798, %v5118
      %5153 = vst [vmem:[#allocation3] sm:$0xff] %v5121
      %5154 = vst [vmem:[#allocation3 + $0x8] sm:$0xff] %v5122
      %5155 = vst [vmem:[#allocation3 + $0x10] sm:$0xff] %v5123
      %5156 = vst [vmem:[#allocation3 + $0x18] sm:$0xff] %v5124
      %5157 = vst [vmem:[#allocation3 + $0x20] sm:$0xff] %v5125
      %5158 = vst [vmem:[#allocation3 + $0x28] sm:$0xff] %v5126
      %5159 = vst [vmem:[#allocation3 + $0x30] sm:$0xff] %v5127
      %5160 = vst [vmem:[#allocation3 + $0x38] sm:$0xff] %v5128
      %5161 = vst [vmem:[#allocation3 + $0x40] sm:$0xff] %v5129
      %5162 = vst [vmem:[#allocation3 + $0x48] sm:$0xff] %v5130
      %5163 = vst [vmem:[#allocation3 + $0x50] sm:$0xff] %v5131
      %5164 = vst [vmem:[#allocation3 + $0x58] sm:$0xff] %v5132
      %5165 = vst [vmem:[#allocation3 + $0x60] sm:$0xff] %v5133
      %5166 = vst [vmem:[#allocation3 + $0x68] sm:$0xff] %v5134
      %5167 = vst [vmem:[#allocation3 + $0x70] sm:$0xff] %v5135
      %5168 = vst [vmem:[#allocation3 + $0x78] sm:$0xff] %v5136
      %5169 = vst [vmem:[#allocation3 + $0x80] sm:$0xff] %v5137
      %5170 = vst [vmem:[#allocation3 + $0x88] sm:$0xff] %v5138
      %5171 = vst [vmem:[#allocation3 + $0x90] sm:$0xff] %v5139
      %5172 = vst [vmem:[#allocation3 + $0x98] sm:$0xff] %v5140
      %5173 = vst [vmem:[#allocation3 + $0xa0] sm:$0xff] %v5141
      %5174 = vst [vmem:[#allocation3 + $0xa8] sm:$0xff] %v5142
      %5175 = vst [vmem:[#allocation3 + $0xb0] sm:$0xff] %v5143
      %5176 = vst [vmem:[#allocation3 + $0xb8] sm:$0xff] %v5144
      %5177 = vst [vmem:[#allocation3 + $0xc0] sm:$0xff] %v5145
      %5178 = vst [vmem:[#allocation3 + $0xc8] sm:$0xff] %v5146
      %5179 = vst [vmem:[#allocation3 + $0xd0] sm:$0xff] %v5147
      %5180 = vst [vmem:[#allocation3 + $0xd8] sm:$0xff] %v5148
      %5181 = vst [vmem:[#allocation3 + $0xe0] sm:$0xff] %v5149
      %5182 = vst [vmem:[#allocation3 + $0xe8] sm:$0xff] %v5150
      %5183 = vst [vmem:[#allocation3 + $0xf0] sm:$0xff] %v5151
      %5184 = vst [vmem:[#allocation3 + $0xf8] sm:$0xff] %v5152
      %v5185 = vld [vmem:[%s4734] sm:$0xf]
      %v5186 = vld [vmem:[%s4734 + $0x4] sm:$0xf]
      %v5187 = vld [vmem:[%s4734 + $0x8] sm:$0x1]
      %v5188 = vld [vmem:[%s4734 + $0xc] sm:$0xf]
      %v5189 = vld [vmem:[%s4734 + $0x10] sm:$0xf]
      %v5190 = vld [vmem:[%s4734 + $0x14] sm:$0x1]
      %v5191 = vld [vmem:[%s4734 + $0x18] sm:$0xf]
      %v5192 = vld [vmem:[%s4734 + $0x1c] sm:$0xf]
      %v5193 = vld [vmem:[%s4734 + $0x20] sm:$0x1]
      %v5194 = vld [vmem:[%s4734 + $0x24] sm:$0xf]
      %v5195 = vld [vmem:[%s4734 + $0x28] sm:$0xf]
      %v5196 = vld [vmem:[%s4734 + $0x2c] sm:$0x1]
      %v5197 = vld [vmem:[%s4734 + $0x30] sm:$0xf]
      %v5198 = vld [vmem:[%s4734 + $0x34] sm:$0xf]
      %v5199 = vld [vmem:[%s4734 + $0x38] sm:$0x1]
      %v5200 = vld [vmem:[%s4734 + $0x3c] sm:$0xf]
      %v5201 = vld [vmem:[%s4734 + $0x40] sm:$0xf]
      %v5202 = vld [vmem:[%s4734 + $0x44] sm:$0x1]
      %v5203 = vld [vmem:[%s4734 + $0x48] sm:$0xf]
      %v5204 = vld [vmem:[%s4734 + $0x4c] sm:$0xf]
      %v5205 = vld [vmem:[%s4734 + $0x50] sm:$0x1]
      %v5206 = vld [vmem:[%s4734 + $0x54] sm:$0xf]
      %v5207 = vld [vmem:[%s4734 + $0x58] sm:$0xf]
      %v5208 = vld [vmem:[%s4734 + $0x5c] sm:$0x1]
      %v5209 = vld [vmem:[%s4734 + $0x60] sm:$0xf]
      %v5210 = vld [vmem:[%s4734 + $0x64] sm:$0xf]
      %v5211 = vld [vmem:[%s4734 + $0x68] sm:$0x1]
      %v5212 = vld [vmem:[%s4734 + $0x6c] sm:$0xf]
      %v5213 = vld [vmem:[%s4734 + $0x70] sm:$0xf]
      %v5214 = vld [vmem:[%s4734 + $0x74] sm:$0x1]
      %v5215 = vld [vmem:[%s4734 + $0x78] sm:$0xf]
      %v5216 = vld [vmem:[%s4734 + $0x7c] sm:$0xf]
      %v5217 = vld [vmem:[%s4734 + $0x80] sm:$0x1]
      %v5218 = vld [vmem:[%s4734 + $0x84] sm:$0xf]
      %v5219 = vld [vmem:[%s4734 + $0x88] sm:$0xf]
      %v5220 = vld [vmem:[%s4734 + $0x8c] sm:$0x1]
      %v5221 = vld [vmem:[%s4734 + $0x90] sm:$0xf]
      %v5222 = vld [vmem:[%s4734 + $0x94] sm:$0xf]
      %v5223 = vld [vmem:[%s4734 + $0x98] sm:$0x1]
      %v5224 = vld [vmem:[%s4734 + $0x9c] sm:$0xf]
      %v5225 = vld [vmem:[%s4734 + $0xa0] sm:$0xf]
      %v5226 = vld [vmem:[%s4734 + $0xa4] sm:$0x1]
      %v5227 = vld [vmem:[%s4734 + $0xa8] sm:$0xf]
      %v5228 = vld [vmem:[%s4734 + $0xac] sm:$0xf]
      %v5229 = vld [vmem:[%s4734 + $0xb0] sm:$0x1]
      %v5230 = vld [vmem:[%s4734 + $0xb4] sm:$0xf]
      %v5231 = vld [vmem:[%s4734 + $0xb8] sm:$0xf]
      %v5232 = vld [vmem:[%s4734 + $0xbc] sm:$0x1]
      %v5233 = vld [vmem:[#allocation3] sm:$0xff]
      %v5234 = vld [vmem:[#allocation3 + $0x8] sm:$0xff]
      %v5235 = vld [vmem:[#allocation3 + $0x10] sm:$0xff]
      %v5236 = vld [vmem:[#allocation3 + $0x18] sm:$0xff]
      %v5237 = vld [vmem:[#allocation3 + $0x20] sm:$0xff]
      %v5238 = vld [vmem:[#allocation3 + $0x28] sm:$0xff]
      %v5239 = vld [vmem:[#allocation3 + $0x30] sm:$0xff]
      %v5240 = vld [vmem:[#allocation3 + $0x38] sm:$0xff]
      %v5241 = vld [vmem:[#allocation3 + $0x40] sm:$0xff]
      %v5242 = vld [vmem:[#allocation3 + $0x48] sm:$0xff]
      %v5243 = vld [vmem:[#allocation3 + $0x50] sm:$0xff]
      %v5244 = vld [vmem:[#allocation3 + $0x58] sm:$0xff]
      %v5245 = vld [vmem:[#allocation3 + $0x60] sm:$0xff]
      %v5246 = vld [vmem:[#allocation3 + $0x68] sm:$0xff]
      %v5247 = vld [vmem:[#allocation3 + $0x70] sm:$0xff]
      %v5248 = vld [vmem:[#allocation3 + $0x78] sm:$0xff]
      %v5249 = vld [vmem:[#allocation3 + $0x80] sm:$0xff]
      %v5250 = vld [vmem:[#allocation3 + $0x88] sm:$0xff]
      %v5251 = vld [vmem:[#allocation3 + $0x90] sm:$0xff]
      %v5252 = vld [vmem:[#allocation3 + $0x98] sm:$0xff]
      %v5253 = vld [vmem:[#allocation3 + $0xa0] sm:$0xff]
      %v5254 = vld [vmem:[#allocation3 + $0xa8] sm:$0xff]
      %v5255 = vld [vmem:[#allocation3 + $0xb0] sm:$0xff]
      %v5256 = vld [vmem:[#allocation3 + $0xb8] sm:$0xff]
      %v5257 = vld [vmem:[#allocation3 + $0xc0] sm:$0xff]
      %v5258 = vld [vmem:[#allocation3 + $0xc8] sm:$0xff]
      %v5259 = vld [vmem:[#allocation3 + $0xd0] sm:$0xff]
      %v5260 = vld [vmem:[#allocation3 + $0xd8] sm:$0xff]
      %v5261 = vld [vmem:[#allocation3 + $0xe0] sm:$0xff]
      %v5262 = vld [vmem:[#allocation3 + $0xe8] sm:$0xff]
      %v5263 = vld [vmem:[#allocation3 + $0xf0] sm:$0xff]
      %v5264 = vld [vmem:[#allocation3 + $0xf8] sm:$0xff]
      %v5266 = vshrl.u32 %v5185, 16
      %v5268 = vrot.slane %v5266, 4
      %v5269 = vshll.u32 %v5185, 16
      %v5271 = vrot.slane %v5269, 5
      %v5272 = vor.u32 %v5268, %v5271
      %v5273 = vrot.slane %v5272, 4
      %v5275 = vshll.u32 %v5186, 16
      %v5277 = vrot.slane %v5275, 5
      %v5278 = vsel %vm1536, %v5273, %v5277
      %v5279 = vshrl.u32 %v5186, 16
      %v5281 = vrot.slane %v5279, 4
      %v5282 = vor.u32 %v5281, %v5277
      %v5283 = vrot.slane %v5282, 4
      %v5285 = vshll.u32 %v5187, 16
      %v5287 = vrot.slane %v5285, 5
      %v5288 = vsel %vm1536, %v5283, %v5287
      %v5290 = vshrl.u32 %v5188, 16
      %v5292 = vrot.slane %v5290, 4
      %v5293 = vshll.u32 %v5188, 16
      %v5295 = vrot.slane %v5293, 5
      %v5296 = vor.u32 %v5292, %v5295
      %v5297 = vrot.slane %v5296, 4
      %v5299 = vshll.u32 %v5189, 16
      %v5301 = vrot.slane %v5299, 5
      %v5302 = vsel %vm1536, %v5297, %v5301
      %v5303 = vshrl.u32 %v5189, 16
      %v5305 = vrot.slane %v5303, 4
      %v5306 = vor.u32 %v5305, %v5301
      %v5307 = vrot.slane %v5306, 4
      %v5309 = vshll.u32 %v5190, 16
      %v5311 = vrot.slane %v5309, 5
      %v5312 = vsel %vm1536, %v5307, %v5311
      %v5314 = vshrl.u32 %v5191, 16
      %v5316 = vrot.slane %v5314, 4
      %v5317 = vshll.u32 %v5191, 16
      %v5319 = vrot.slane %v5317, 5
      %v5320 = vor.u32 %v5316, %v5319
      %v5321 = vrot.slane %v5320, 4
      %v5323 = vshll.u32 %v5192, 16
      %v5325 = vrot.slane %v5323, 5
      %v5326 = vsel %vm1536, %v5321, %v5325
      %v5327 = vshrl.u32 %v5192, 16
      %v5329 = vrot.slane %v5327, 4
      %v5330 = vor.u32 %v5329, %v5325
      %v5331 = vrot.slane %v5330, 4
      %v5333 = vshll.u32 %v5193, 16
      %v5335 = vrot.slane %v5333, 5
      %v5336 = vsel %vm1536, %v5331, %v5335
      %v5338 = vshrl.u32 %v5194, 16
      %v5340 = vrot.slane %v5338, 4
      %v5341 = vshll.u32 %v5194, 16
      %v5343 = vrot.slane %v5341, 5
      %v5344 = vor.u32 %v5340, %v5343
      %v5345 = vrot.slane %v5344, 4
      %v5347 = vshll.u32 %v5195, 16
      %v5349 = vrot.slane %v5347, 5
      %v5350 = vsel %vm1536, %v5345, %v5349
      %v5351 = vshrl.u32 %v5195, 16
      %v5353 = vrot.slane %v5351, 4
      %v5354 = vor.u32 %v5353, %v5349
      %v5355 = vrot.slane %v5354, 4
      %v5357 = vshll.u32 %v5196, 16
      %v5359 = vrot.slane %v5357, 5
      %v5360 = vsel %vm1536, %v5355, %v5359
      %v5362 = vshrl.u32 %v5197, 16
      %v5364 = vrot.slane %v5362, 4
      %v5365 = vshll.u32 %v5197, 16
      %v5367 = vrot.slane %v5365, 5
      %v5368 = vor.u32 %v5364, %v5367
      %v5369 = vrot.slane %v5368, 4
      %v5371 = vshll.u32 %v5198, 16
      %v5373 = vrot.slane %v5371, 5
      %v5374 = vsel %vm1536, %v5369, %v5373
      %v5375 = vshrl.u32 %v5198, 16
      %v5377 = vrot.slane %v5375, 4
      %v5378 = vor.u32 %v5377, %v5373
      %v5379 = vrot.slane %v5378, 4
      %v5381 = vshll.u32 %v5199, 16
      %v5383 = vrot.slane %v5381, 5
      %v5384 = vsel %vm1536, %v5379, %v5383
      %v5386 = vshrl.u32 %v5200, 16
      %v5388 = vrot.slane %v5386, 4
      %v5389 = vshll.u32 %v5200, 16
      %v5391 = vrot.slane %v5389, 5
      %v5392 = vor.u32 %v5388, %v5391
      %v5393 = vrot.slane %v5392, 4
      %v5395 = vshll.u32 %v5201, 16
      %v5397 = vrot.slane %v5395, 5
      %v5398 = vsel %vm1536, %v5393, %v5397
      %v5399 = vshrl.u32 %v5201, 16
      %v5401 = vrot.slane %v5399, 4
      %v5402 = vor.u32 %v5401, %v5397
      %v5403 = vrot.slane %v5402, 4
      %v5405 = vshll.u32 %v5202, 16
      %v5407 = vrot.slane %v5405, 5
      %v5408 = vsel %vm1536, %v5403, %v5407
      %v5410 = vshrl.u32 %v5203, 16
      %v5412 = vrot.slane %v5410, 4
      %v5413 = vshll.u32 %v5203, 16
      %v5415 = vrot.slane %v5413, 5
      %v5416 = vor.u32 %v5412, %v5415
      %v5417 = vrot.slane %v5416, 4
      %v5419 = vshll.u32 %v5204, 16
      %v5421 = vrot.slane %v5419, 5
      %v5422 = vsel %vm1536, %v5417, %v5421
      %v5423 = vshrl.u32 %v5204, 16
      %v5425 = vrot.slane %v5423, 4
      %v5426 = vor.u32 %v5425, %v5421
      %v5427 = vrot.slane %v5426, 4
      %v5429 = vshll.u32 %v5205, 16
      %v5431 = vrot.slane %v5429, 5
      %v5432 = vsel %vm1536, %v5427, %v5431
      %v5434 = vshrl.u32 %v5206, 16
      %v5436 = vrot.slane %v5434, 4
      %v5437 = vshll.u32 %v5206, 16
      %v5439 = vrot.slane %v5437, 5
      %v5440 = vor.u32 %v5436, %v5439
      %v5441 = vrot.slane %v5440, 4
      %v5443 = vshll.u32 %v5207, 16
      %v5445 = vrot.slane %v5443, 5
      %v5446 = vsel %vm1536, %v5441, %v5445
      %v5447 = vshrl.u32 %v5207, 16
      %v5449 = vrot.slane %v5447, 4
      %v5450 = vor.u32 %v5449, %v5445
      %v5451 = vrot.slane %v5450, 4
      %v5453 = vshll.u32 %v5208, 16
      %v5455 = vrot.slane %v5453, 5
      %v5456 = vsel %vm1536, %v5451, %v5455
      %v5458 = vshrl.u32 %v5209, 16
      %v5460 = vrot.slane %v5458, 4
      %v5461 = vshll.u32 %v5209, 16
      %v5463 = vrot.slane %v5461, 5
      %v5464 = vor.u32 %v5460, %v5463
      %v5465 = vrot.slane %v5464, 4
      %v5467 = vshll.u32 %v5210, 16
      %v5469 = vrot.slane %v5467, 5
      %v5470 = vsel %vm1536, %v5465, %v5469
      %v5471 = vshrl.u32 %v5210, 16
      %v5473 = vrot.slane %v5471, 4
      %v5474 = vor.u32 %v5473, %v5469
      %v5475 = vrot.slane %v5474, 4
      %v5477 = vshll.u32 %v5211, 16
      %v5479 = vrot.slane %v5477, 5
      %v5480 = vsel %vm1536, %v5475, %v5479
      %v5482 = vshrl.u32 %v5212, 16
      %v5484 = vrot.slane %v5482, 4
      %v5485 = vshll.u32 %v5212, 16
      %v5487 = vrot.slane %v5485, 5
      %v5488 = vor.u32 %v5484, %v5487
      %v5489 = vrot.slane %v5488, 4
      %v5491 = vshll.u32 %v5213, 16
      %v5493 = vrot.slane %v5491, 5
      %v5494 = vsel %vm1536, %v5489, %v5493
      %v5495 = vshrl.u32 %v5213, 16
      %v5497 = vrot.slane %v5495, 4
      %v5498 = vor.u32 %v5497, %v5493
      %v5499 = vrot.slane %v5498, 4
      %v5501 = vshll.u32 %v5214, 16
      %v5503 = vrot.slane %v5501, 5
      %v5504 = vsel %vm1536, %v5499, %v5503
      %v5506 = vshrl.u32 %v5215, 16
      %v5508 = vrot.slane %v5506, 4
      %v5509 = vshll.u32 %v5215, 16
      %v5511 = vrot.slane %v5509, 5
      %v5512 = vor.u32 %v5508, %v5511
      %v5513 = vrot.slane %v5512, 4
      %v5515 = vshll.u32 %v5216, 16
      %v5517 = vrot.slane %v5515, 5
      %v5518 = vsel %vm1536, %v5513, %v5517
      %v5519 = vshrl.u32 %v5216, 16
      %v5521 = vrot.slane %v5519, 4
      %v5522 = vor.u32 %v5521, %v5517
      %v5523 = vrot.slane %v5522, 4
      %v5525 = vshll.u32 %v5217, 16
      %v5527 = vrot.slane %v5525, 5
      %v5528 = vsel %vm1536, %v5523, %v5527
      %v5530 = vshrl.u32 %v5218, 16
      %v5532 = vrot.slane %v5530, 4
      %v5533 = vshll.u32 %v5218, 16
      %v5535 = vrot.slane %v5533, 5
      %v5536 = vor.u32 %v5532, %v5535
      %v5537 = vrot.slane %v5536, 4
      %v5539 = vshll.u32 %v5219, 16
      %v5541 = vrot.slane %v5539, 5
      %v5542 = vsel %vm1536, %v5537, %v5541
      %v5543 = vshrl.u32 %v5219, 16
      %v5545 = vrot.slane %v5543, 4
      %v5546 = vor.u32 %v5545, %v5541
      %v5547 = vrot.slane %v5546, 4
      %v5549 = vshll.u32 %v5220, 16
      %v5551 = vrot.slane %v5549, 5
      %v5552 = vsel %vm1536, %v5547, %v5551
      %v5554 = vshrl.u32 %v5221, 16
      %v5556 = vrot.slane %v5554, 4
      %v5557 = vshll.u32 %v5221, 16
      %v5559 = vrot.slane %v5557, 5
      %v5560 = vor.u32 %v5556, %v5559
      %v5561 = vrot.slane %v5560, 4
      %v5563 = vshll.u32 %v5222, 16
      %v5565 = vrot.slane %v5563, 5
      %v5566 = vsel %vm1536, %v5561, %v5565
      %v5567 = vshrl.u32 %v5222, 16
      %v5569 = vrot.slane %v5567, 4
      %v5570 = vor.u32 %v5569, %v5565
      %v5571 = vrot.slane %v5570, 4
      %v5573 = vshll.u32 %v5223, 16
      %v5575 = vrot.slane %v5573, 5
      %v5576 = vsel %vm1536, %v5571, %v5575
      %v5578 = vshrl.u32 %v5224, 16
      %v5580 = vrot.slane %v5578, 4
      %v5581 = vshll.u32 %v5224, 16
      %v5583 = vrot.slane %v5581, 5
      %v5584 = vor.u32 %v5580, %v5583
      %v5585 = vrot.slane %v5584, 4
      %v5587 = vshll.u32 %v5225, 16
      %v5589 = vrot.slane %v5587, 5
      %v5590 = vsel %vm1536, %v5585, %v5589
      %v5591 = vshrl.u32 %v5225, 16
      %v5593 = vrot.slane %v5591, 4
      %v5594 = vor.u32 %v5593, %v5589
      %v5595 = vrot.slane %v5594, 4
      %v5597 = vshll.u32 %v5226, 16
      %v5599 = vrot.slane %v5597, 5
      %v5600 = vsel %vm1536, %v5595, %v5599
      %v5602 = vshrl.u32 %v5227, 16
      %v5604 = vrot.slane %v5602, 4
      %v5605 = vshll.u32 %v5227, 16
      %v5607 = vrot.slane %v5605, 5
      %v5608 = vor.u32 %v5604, %v5607
      %v5609 = vrot.slane %v5608, 4
      %v5611 = vshll.u32 %v5228, 16
      %v5613 = vrot.slane %v5611, 5
      %v5614 = vsel %vm1536, %v5609, %v5613
      %v5615 = vshrl.u32 %v5228, 16
      %v5617 = vrot.slane %v5615, 4
      %v5618 = vor.u32 %v5617, %v5613
      %v5619 = vrot.slane %v5618, 4
      %v5621 = vshll.u32 %v5229, 16
      %v5623 = vrot.slane %v5621, 5
      %v5624 = vsel %vm1536, %v5619, %v5623
      %v5626 = vshrl.u32 %v5230, 16
      %v5628 = vrot.slane %v5626, 4
      %v5629 = vshll.u32 %v5230, 16
      %v5631 = vrot.slane %v5629, 5
      %v5632 = vor.u32 %v5628, %v5631
      %v5633 = vrot.slane %v5632, 4
      %v5635 = vshll.u32 %v5231, 16
      %v5637 = vrot.slane %v5635, 5
      %v5638 = vsel %vm1536, %v5633, %v5637
      %v5639 = vshrl.u32 %v5231, 16
      %v5641 = vrot.slane %v5639, 4
      %v5642 = vor.u32 %v5641, %v5637
      %v5643 = vrot.slane %v5642, 4
      %v5645 = vshll.u32 %v5232, 16
      %v5647 = vrot.slane %v5645, 5
      %v5648 = vsel %vm1536, %v5643, %v5647
      %s5649 = scalar_lea.vmem %s3, 448
      %v5650 = vld [vmem:[%s5649] sm:$0xf]
      %v5651 = vld [vmem:[%s5649 + $0x4] sm:$0xf]
      %v5652 = vld [vmem:[%s5649 + $0x8] sm:$0xf]
      %v5653 = vld [vmem:[%s5649 + $0xc] sm:$0xf]
      %v5654 = vld [vmem:[%s5649 + $0x10] sm:$0xf]
      %v5655 = vld [vmem:[%s5649 + $0x14] sm:$0xf]
      %v5656 = vld [vmem:[%s5649 + $0x18] sm:$0xf]
      %v5657 = vld [vmem:[%s5649 + $0x1c] sm:$0xf]
      %v5658 = vld [vmem:[%s5649 + $0x20] sm:$0xf]
      %v5659 = vld [vmem:[%s5649 + $0x24] sm:$0xf]
      %v5660 = vld [vmem:[%s5649 + $0x28] sm:$0xf]
      %v5661 = vld [vmem:[%s5649 + $0x2c] sm:$0xf]
      %v5662 = vld [vmem:[%s5649 + $0x30] sm:$0xf]
      %v5663 = vld [vmem:[%s5649 + $0x34] sm:$0xf]
      %v5664 = vld [vmem:[%s5649 + $0x38] sm:$0xf]
      %v5665 = vld [vmem:[%s5649 + $0x3c] sm:$0xf]
      %v5666 = vunpack.c.l.b16 %v5278
      %v5667 = vunpack.c.l.b16 %v5288
      %v5668 = vunpack.c.l.b16 %v5302
      %v5669 = vunpack.c.l.b16 %v5312
      %v5670 = vunpack.c.l.b16 %v5326
      %v5671 = vunpack.c.l.b16 %v5336
      %v5672 = vunpack.c.l.b16 %v5350
      %v5673 = vunpack.c.l.b16 %v5360
      %v5674 = vunpack.c.l.b16 %v5374
      %v5675 = vunpack.c.l.b16 %v5384
      %v5676 = vunpack.c.l.b16 %v5398
      %v5677 = vunpack.c.l.b16 %v5408
      %v5678 = vunpack.c.l.b16 %v5422
      %v5679 = vunpack.c.l.b16 %v5432
      %v5680 = vunpack.c.l.b16 %v5446
      %v5681 = vunpack.c.l.b16 %v5456
      %v5682 = vunpack.c.l.b16 %v5470
      %v5683 = vunpack.c.l.b16 %v5480
      %v5684 = vunpack.c.l.b16 %v5494
      %v5685 = vunpack.c.l.b16 %v5504
      %v5686 = vunpack.c.l.b16 %v5518
      %v5687 = vunpack.c.l.b16 %v5528
      %v5688 = vunpack.c.l.b16 %v5542
      %v5689 = vunpack.c.l.b16 %v5552
      %v5690 = vunpack.c.l.b16 %v5566
      %v5691 = vunpack.c.l.b16 %v5576
      %v5692 = vunpack.c.l.b16 %v5590
      %v5693 = vunpack.c.l.b16 %v5600
      %v5694 = vunpack.c.l.b16 %v5614
      %v5695 = vunpack.c.l.b16 %v5624
      %v5696 = vunpack.c.l.b16 %v5638
      %v5697 = vunpack.c.l.b16 %v5648
      %v5698 = vpack.c.b16 %v5667, %v5666
      %v5699 = vpack.c.b16 %v5669, %v5668
      %v5700 = vpack.c.b16 %v5671, %v5670
      %v5701 = vpack.c.b16 %v5673, %v5672
      %v5702 = vpack.c.b16 %v5675, %v5674
      %v5703 = vpack.c.b16 %v5677, %v5676
      %v5704 = vpack.c.b16 %v5679, %v5678
      %v5705 = vpack.c.b16 %v5681, %v5680
      %v5706 = vpack.c.b16 %v5683, %v5682
      %v5707 = vpack.c.b16 %v5685, %v5684
      %v5708 = vpack.c.b16 %v5687, %v5686
      %v5709 = vpack.c.b16 %v5689, %v5688
      %v5710 = vpack.c.b16 %v5691, %v5690
      %v5711 = vpack.c.b16 %v5693, %v5692
      %v5712 = vpack.c.b16 %v5695, %v5694
      %v5713 = vpack.c.b16 %v5697, %v5696
      %v5746 = vunpack.c.l.b16 %v5650
      %v5747 = vunpack.c.l.b16 %v5651
      %v5748 = vunpack.c.l.b16 %v5652
      %v5749 = vunpack.c.l.b16 %v5653
      %v5750 = vunpack.c.l.b16 %v5654
      %v5751 = vunpack.c.l.b16 %v5655
      %v5752 = vunpack.c.l.b16 %v5656
      %v5753 = vunpack.c.l.b16 %v5657
      %v5754 = vunpack.c.l.b16 %v5658
      %v5755 = vunpack.c.l.b16 %v5659
      %v5756 = vunpack.c.l.b16 %v5660
      %v5757 = vunpack.c.l.b16 %v5661
      %v5758 = vunpack.c.l.b16 %v5662
      %v5759 = vunpack.c.l.b16 %v5663
      %v5760 = vunpack.c.l.b16 %v5664
      %v5761 = vunpack.c.l.b16 %v5665
      %v5762 = vpack.c.b16 %v5747, %v5746
      %v5763 = vpack.c.b16 %v5749, %v5748
      %v5764 = vpack.c.b16 %v5751, %v5750
      %v5765 = vpack.c.b16 %v5753, %v5752
      %v5766 = vpack.c.b16 %v5755, %v5754
      %v5767 = vpack.c.b16 %v5757, %v5756
      %v5768 = vpack.c.b16 %v5759, %v5758
      %v5769 = vpack.c.b16 %v5761, %v5760
      %5778 = vmatprep.subr.bf16.mxu0 0
      %5779 = vmatpush1.bf16.msra.mxu0 %v5769
      %5780 = vmatprep.subr.bf16.mxu0 0
      %5781 = vmatpush1.bf16.msra.mxu0 %v5768
      %5782 = vmatprep.subr.bf16.mxu0 0
      %5783 = vmatpush1.bf16.msra.mxu0 %v5767
      %5784 = vmatprep.subr.bf16.mxu0 0
      %5785 = vmatpush1.bf16.msra.mxu0 %v5766
      %5786 = vmatprep.subr.bf16.mxu0 0
      %5787 = vmatpush1.bf16.msra.mxu0 %v5765
      %5788 = vmatprep.subr.bf16.mxu0 0
      %5789 = vmatpush1.bf16.msra.mxu0 %v5764
      %5790 = vmatprep.subr.bf16.mxu0 0
      %5791 = vmatpush1.bf16.msra.mxu0 %v5763
      %5792 = vmatprep.subr.bf16.mxu0 0
      %5793 = vmatpush1.bf16.msra.mxu0 %v5762
      %5794 = vmatprep.subr.bf16.mxu0 0
      %5795 = vmatpush2.bf16.msra.mxu0 0
      %5796 = vmatprep.subr.bf16.mxu0 0
      %5797 = vmatpush2.bf16.msra.mxu0 0
      %5798 = vmatprep.subr.bf16.mxu0 0
      %5799 = vmatpush2.bf16.msra.mxu0 0
      %5800 = vmatprep.subr.bf16.mxu0 0
      %5801 = vmatpush2.bf16.msra.mxu0 0
      %5802 = vmatprep.subr.bf16.mxu0 0
      %5803 = vmatpush2.bf16.msra.mxu0 0
      %5804 = vmatprep.subr.bf16.mxu0 0
      %5805 = vmatpush2.bf16.msra.mxu0 0
      %5806 = vmatprep.subr.bf16.mxu0 0
      %5807 = vmatpush2.bf16.msra.mxu0 0
      %5808 = vmatprep.subr.bf16.mxu0 0
      %5809 = vmatpush2.bf16.msra.mxu0 0
      %5810 = vmatprep.mubr.bf16.mxu0 0
      %5811 = vmatmul.mubr.bf16.gmra.mxu0 %v5698
      %v5812 = vpop.f32.mrf.mxu0
      %v5813 = vadd.f32 0.0, %v5812
      %v5814 = vpop.f32.mrf.mxu0
      %v5815 = vpop.f32.mrf.mxu0
      %v5816 = vadd.f32 0.0, %v5815
      %v5817 = vpop.f32.mrf.mxu0
      %5818 = vmatprep.mubr.bf16.mxu0 0
      %5819 = vmatmul.mubr.bf16.gmra.mxu0 %v5699
      %v5820 = vpop.f32.mrf.mxu0
      %v5821 = vadd.f32 0.0, %v5820
      %v5822 = vpop.f32.mrf.mxu0
      %v5823 = vpop.f32.mrf.mxu0
      %v5824 = vadd.f32 0.0, %v5823
      %v5825 = vpop.f32.mrf.mxu0
      %5826 = vmatprep.mubr.bf16.mxu0 0
      %5827 = vmatmul.mubr.bf16.gmra.mxu0 %v5700
      %v5828 = vpop.f32.mrf.mxu0
      %v5829 = vadd.f32 0.0, %v5828
      %v5830 = vpop.f32.mrf.mxu0
      %v5831 = vpop.f32.mrf.mxu0
      %v5832 = vadd.f32 0.0, %v5831
      %v5833 = vpop.f32.mrf.mxu0
      %5834 = vmatprep.mubr.bf16.mxu0 0
      %5835 = vmatmul.mubr.bf16.gmra.mxu0 %v5701
      %v5836 = vpop.f32.mrf.mxu0
      %v5837 = vadd.f32 0.0, %v5836
      %v5838 = vpop.f32.mrf.mxu0
      %v5839 = vpop.f32.mrf.mxu0
      %v5840 = vadd.f32 0.0, %v5839
      %v5841 = vpop.f32.mrf.mxu0
      %5842 = vmatprep.mubr.bf16.mxu0 0
      %5843 = vmatmul.mubr.bf16.gmra.mxu0 %v5702
      %v5844 = vpop.f32.mrf.mxu0
      %v5845 = vadd.f32 0.0, %v5844
      %v5846 = vpop.f32.mrf.mxu0
      %v5847 = vpop.f32.mrf.mxu0
      %v5848 = vadd.f32 0.0, %v5847
      %v5849 = vpop.f32.mrf.mxu0
      %5850 = vmatprep.mubr.bf16.mxu0 0
      %5851 = vmatmul.mubr.bf16.gmra.mxu0 %v5703
      %v5852 = vpop.f32.mrf.mxu0
      %v5853 = vadd.f32 0.0, %v5852
      %v5854 = vpop.f32.mrf.mxu0
      %v5855 = vpop.f32.mrf.mxu0
      %v5856 = vadd.f32 0.0, %v5855
      %v5857 = vpop.f32.mrf.mxu0
      %5858 = vmatprep.mubr.bf16.mxu0 0
      %5859 = vmatmul.mubr.bf16.gmra.mxu0 %v5704
      %v5860 = vpop.f32.mrf.mxu0
      %v5861 = vadd.f32 0.0, %v5860
      %v5862 = vpop.f32.mrf.mxu0
      %v5863 = vpop.f32.mrf.mxu0
      %v5864 = vadd.f32 0.0, %v5863
      %v5865 = vpop.f32.mrf.mxu0
      %5866 = vmatprep.mubr.bf16.mxu0 0
      %5867 = vmatmul.mubr.bf16.gmra.mxu0 %v5705
      %v5868 = vpop.f32.mrf.mxu0
      %v5869 = vadd.f32 0.0, %v5868
      %v5870 = vpop.f32.mrf.mxu0
      %v5871 = vpop.f32.mrf.mxu0
      %v5872 = vadd.f32 0.0, %v5871
      %v5873 = vpop.f32.mrf.mxu0
      %5874 = vmatprep.mubr.bf16.mxu0 0
      %5875 = vmatmul.mubr.bf16.gmra.mxu0 %v5706
      %v5876 = vpop.f32.mrf.mxu0
      %v5877 = vadd.f32 0.0, %v5876
      %v5878 = vpop.f32.mrf.mxu0
      %v5879 = vpop.f32.mrf.mxu0
      %v5880 = vadd.f32 0.0, %v5879
      %v5881 = vpop.f32.mrf.mxu0
      %5882 = vmatprep.mubr.bf16.mxu0 0
      %5883 = vmatmul.mubr.bf16.gmra.mxu0 %v5707
      %v5884 = vpop.f32.mrf.mxu0
      %v5885 = vadd.f32 0.0, %v5884
      %v5886 = vpop.f32.mrf.mxu0
      %v5887 = vpop.f32.mrf.mxu0
      %v5888 = vadd.f32 0.0, %v5887
      %v5889 = vpop.f32.mrf.mxu0
      %5890 = vmatprep.mubr.bf16.mxu0 0
      %5891 = vmatmul.mubr.bf16.gmra.mxu0 %v5708
      %v5892 = vpop.f32.mrf.mxu0
      %v5893 = vadd.f32 0.0, %v5892
      %v5894 = vpop.f32.mrf.mxu0
      %v5895 = vpop.f32.mrf.mxu0
      %v5896 = vadd.f32 0.0, %v5895
      %v5897 = vpop.f32.mrf.mxu0
      %5898 = vmatprep.mubr.bf16.mxu0 0
      %5899 = vmatmul.mubr.bf16.gmra.mxu0 %v5709
      %v5900 = vpop.f32.mrf.mxu0
      %v5901 = vadd.f32 0.0, %v5900
      %v5902 = vpop.f32.mrf.mxu0
      %v5903 = vpop.f32.mrf.mxu0
      %v5904 = vadd.f32 0.0, %v5903
      %v5905 = vpop.f32.mrf.mxu0
      %5906 = vmatprep.mubr.bf16.mxu0 0
      %5907 = vmatmul.mubr.bf16.gmra.mxu0 %v5710
      %v5908 = vpop.f32.mrf.mxu0
      %v5909 = vadd.f32 0.0, %v5908
      %v5910 = vpop.f32.mrf.mxu0
      %v5911 = vpop.f32.mrf.mxu0
      %v5912 = vadd.f32 0.0, %v5911
      %v5913 = vpop.f32.mrf.mxu0
      %5914 = vmatprep.mubr.bf16.mxu0 0
      %5915 = vmatmul.mubr.bf16.gmra.mxu0 %v5711
      %v5916 = vpop.f32.mrf.mxu0
      %v5917 = vadd.f32 0.0, %v5916
      %v5918 = vpop.f32.mrf.mxu0
      %v5919 = vpop.f32.mrf.mxu0
      %v5920 = vadd.f32 0.0, %v5919
      %v5921 = vpop.f32.mrf.mxu0
      %5922 = vmatprep.mubr.bf16.mxu0 0
      %5923 = vmatmul.mubr.bf16.gmra.mxu0 %v5712
      %v5924 = vpop.f32.mrf.mxu0
      %v5925 = vadd.f32 0.0, %v5924
      %v5926 = vpop.f32.mrf.mxu0
      %v5927 = vpop.f32.mrf.mxu0
      %v5928 = vadd.f32 0.0, %v5927
      %v5929 = vpop.f32.mrf.mxu0
      %5930 = vmatprep.mubr.bf16.mxu0 0
      %5931 = vmatmul.mubr.bf16.gmra.mxu0 %v5713
      %v5932 = vpop.f32.mrf.mxu0
      %v5933 = vadd.f32 0.0, %v5932
      %v5934 = vpop.f32.mrf.mxu0
      %v5935 = vpop.f32.mrf.mxu0
      %v5936 = vadd.f32 0.0, %v5935
      %v5937 = vpop.f32.mrf.mxu0
      %5938 = vdwg.mxu0
      %v5939 = vadd.f32 %v5233, %v5813
      %v5940 = vadd.f32 %v5234, %v5816
      %v5941 = vadd.f32 %v5235, %v5821
      %v5942 = vadd.f32 %v5236, %v5824
      %v5943 = vadd.f32 %v5237, %v5829
      %v5944 = vadd.f32 %v5238, %v5832
      %v5945 = vadd.f32 %v5239, %v5837
      %v5946 = vadd.f32 %v5240, %v5840
      %v5947 = vadd.f32 %v5241, %v5845
      %v5948 = vadd.f32 %v5242, %v5848
      %v5949 = vadd.f32 %v5243, %v5853
      %v5950 = vadd.f32 %v5244, %v5856
      %v5951 = vadd.f32 %v5245, %v5861
      %v5952 = vadd.f32 %v5246, %v5864
      %v5953 = vadd.f32 %v5247, %v5869
      %v5954 = vadd.f32 %v5248, %v5872
      %v5955 = vadd.f32 %v5249, %v5877
      %v5956 = vadd.f32 %v5250, %v5880
      %v5957 = vadd.f32 %v5251, %v5885
      %v5958 = vadd.f32 %v5252, %v5888
      %v5959 = vadd.f32 %v5253, %v5893
      %v5960 = vadd.f32 %v5254, %v5896
      %v5961 = vadd.f32 %v5255, %v5901
      %v5962 = vadd.f32 %v5256, %v5904
      %v5963 = vadd.f32 %v5257, %v5909
      %v5964 = vadd.f32 %v5258, %v5912
      %v5965 = vadd.f32 %v5259, %v5917
      %v5966 = vadd.f32 %v5260, %v5920
      %v5967 = vadd.f32 %v5261, %v5925
      %v5968 = vadd.f32 %v5262, %v5928
      %v5969 = vadd.f32 %v5263, %v5933
      %v5970 = vadd.f32 %v5264, %v5936
      %5971 = vst [vmem:[#allocation3] sm:$0xff] %v5939
      %5972 = vst [vmem:[#allocation3 + $0x8] sm:$0xff] %v5940
      %5973 = vst [vmem:[#allocation3 + $0x10] sm:$0xff] %v5941
      %5974 = vst [vmem:[#allocation3 + $0x18] sm:$0xff] %v5942
      %5975 = vst [vmem:[#allocation3 + $0x20] sm:$0xff] %v5943
      %5976 = vst [vmem:[#allocation3 + $0x28] sm:$0xff] %v5944
      %5977 = vst [vmem:[#allocation3 + $0x30] sm:$0xff] %v5945
      %5978 = vst [vmem:[#allocation3 + $0x38] sm:$0xff] %v5946
      %5979 = vst [vmem:[#allocation3 + $0x40] sm:$0xff] %v5947
      %5980 = vst [vmem:[#allocation3 + $0x48] sm:$0xff] %v5948
      %5981 = vst [vmem:[#allocation3 + $0x50] sm:$0xff] %v5949
      %5982 = vst [vmem:[#allocation3 + $0x58] sm:$0xff] %v5950
      %5983 = vst [vmem:[#allocation3 + $0x60] sm:$0xff] %v5951
      %5984 = vst [vmem:[#allocation3 + $0x68] sm:$0xff] %v5952
      %5985 = vst [vmem:[#allocation3 + $0x70] sm:$0xff] %v5953
      %5986 = vst [vmem:[#allocation3 + $0x78] sm:$0xff] %v5954
      %5987 = vst [vmem:[#allocation3 + $0x80] sm:$0xff] %v5955
      %5988 = vst [vmem:[#allocation3 + $0x88] sm:$0xff] %v5956
      %5989 = vst [vmem:[#allocation3 + $0x90] sm:$0xff] %v5957
      %5990 = vst [vmem:[#allocation3 + $0x98] sm:$0xff] %v5958
      %5991 = vst [vmem:[#allocation3 + $0xa0] sm:$0xff] %v5959
      %5992 = vst [vmem:[#allocation3 + $0xa8] sm:$0xff] %v5960
      %5993 = vst [vmem:[#allocation3 + $0xb0] sm:$0xff] %v5961
      %5994 = vst [vmem:[#allocation3 + $0xb8] sm:$0xff] %v5962
      %5995 = vst [vmem:[#allocation3 + $0xc0] sm:$0xff] %v5963
      %5996 = vst [vmem:[#allocation3 + $0xc8] sm:$0xff] %v5964
      %5997 = vst [vmem:[#allocation3 + $0xd0] sm:$0xff] %v5965
      %5998 = vst [vmem:[#allocation3 + $0xd8] sm:$0xff] %v5966
      %5999 = vst [vmem:[#allocation3 + $0xe0] sm:$0xff] %v5967
      %6000 = vst [vmem:[#allocation3 + $0xe8] sm:$0xff] %v5968
      %6001 = vst [vmem:[#allocation3 + $0xf0] sm:$0xff] %v5969
      %6002 = vst [vmem:[#allocation3 + $0xf8] sm:$0xff] %v5970
      %v6003 = vld [vmem:[%s4734] sm:$0xe]
      %v6004 = vld [vmem:[%s4734 + $0x4] sm:$0xf]
      %v6005 = vld [vmem:[%s4734 + $0x8] sm:$0x1]
      %v6006 = vld [vmem:[%s4734 + $0xc] sm:$0xe]
      %v6007 = vld [vmem:[%s4734 + $0x10] sm:$0xf]
      %v6008 = vld [vmem:[%s4734 + $0x14] sm:$0x1]
      %v6009 = vld [vmem:[%s4734 + $0x18] sm:$0xe]
      %v6010 = vld [vmem:[%s4734 + $0x1c] sm:$0xf]
      %v6011 = vld [vmem:[%s4734 + $0x20] sm:$0x1]
      %v6012 = vld [vmem:[%s4734 + $0x24] sm:$0xe]
      %v6013 = vld [vmem:[%s4734 + $0x28] sm:$0xf]
      %v6014 = vld [vmem:[%s4734 + $0x2c] sm:$0x1]
      %v6015 = vld [vmem:[%s4734 + $0x30] sm:$0xe]
      %v6016 = vld [vmem:[%s4734 + $0x34] sm:$0xf]
      %v6017 = vld [vmem:[%s4734 + $0x38] sm:$0x1]
      %v6018 = vld [vmem:[%s4734 + $0x3c] sm:$0xe]
      %v6019 = vld [vmem:[%s4734 + $0x40] sm:$0xf]
      %v6020 = vld [vmem:[%s4734 + $0x44] sm:$0x1]
      %v6021 = vld [vmem:[%s4734 + $0x48] sm:$0xe]
      %v6022 = vld [vmem:[%s4734 + $0x4c] sm:$0xf]
      %v6023 = vld [vmem:[%s4734 + $0x50] sm:$0x1]
      %v6024 = vld [vmem:[%s4734 + $0x54] sm:$0xe]
      %v6025 = vld [vmem:[%s4734 + $0x58] sm:$0xf]
      %v6026 = vld [vmem:[%s4734 + $0x5c] sm:$0x1]
      %v6027 = vld [vmem:[%s4734 + $0x60] sm:$0xe]
      %v6028 = vld [vmem:[%s4734 + $0x64] sm:$0xf]
      %v6029 = vld [vmem:[%s4734 + $0x68] sm:$0x1]
      %v6030 = vld [vmem:[%s4734 + $0x6c] sm:$0xe]
      %v6031 = vld [vmem:[%s4734 + $0x70] sm:$0xf]
      %v6032 = vld [vmem:[%s4734 + $0x74] sm:$0x1]
      %v6033 = vld [vmem:[%s4734 + $0x78] sm:$0xe]
      %v6034 = vld [vmem:[%s4734 + $0x7c] sm:$0xf]
      %v6035 = vld [vmem:[%s4734 + $0x80] sm:$0x1]
      %v6036 = vld [vmem:[%s4734 + $0x84] sm:$0xe]
      %v6037 = vld [vmem:[%s4734 + $0x88] sm:$0xf]
      %v6038 = vld [vmem:[%s4734 + $0x8c] sm:$0x1]
      %v6039 = vld [vmem:[%s4734 + $0x90] sm:$0xe]
      %v6040 = vld [vmem:[%s4734 + $0x94] sm:$0xf]
      %v6041 = vld [vmem:[%s4734 + $0x98] sm:$0x1]
      %v6042 = vld [vmem:[%s4734 + $0x9c] sm:$0xe]
      %v6043 = vld [vmem:[%s4734 + $0xa0] sm:$0xf]
      %v6044 = vld [vmem:[%s4734 + $0xa4] sm:$0x1]
      %v6045 = vld [vmem:[%s4734 + $0xa8] sm:$0xe]
      %v6046 = vld [vmem:[%s4734 + $0xac] sm:$0xf]
      %v6047 = vld [vmem:[%s4734 + $0xb0] sm:$0x1]
      %v6048 = vld [vmem:[%s4734 + $0xb4] sm:$0xe]
      %v6049 = vld [vmem:[%s4734 + $0xb8] sm:$0xf]
      %v6050 = vld [vmem:[%s4734 + $0xbc] sm:$0x1]
      %v6051 = vld [vmem:[#allocation3] sm:$0xff]
      %v6052 = vld [vmem:[#allocation3 + $0x8] sm:$0xff]
      %v6053 = vld [vmem:[#allocation3 + $0x10] sm:$0xff]
      %v6054 = vld [vmem:[#allocation3 + $0x18] sm:$0xff]
      %v6055 = vld [vmem:[#allocation3 + $0x20] sm:$0xff]
      %v6056 = vld [vmem:[#allocation3 + $0x28] sm:$0xff]
      %v6057 = vld [vmem:[#allocation3 + $0x30] sm:$0xff]
      %v6058 = vld [vmem:[#allocation3 + $0x38] sm:$0xff]
      %v6059 = vld [vmem:[#allocation3 + $0x40] sm:$0xff]
      %v6060 = vld [vmem:[#allocation3 + $0x48] sm:$0xff]
      %v6061 = vld [vmem:[#allocation3 + $0x50] sm:$0xff]
      %v6062 = vld [vmem:[#allocation3 + $0x58] sm:$0xff]
      %v6063 = vld [vmem:[#allocation3 + $0x60] sm:$0xff]
      %v6064 = vld [vmem:[#allocation3 + $0x68] sm:$0xff]
      %v6065 = vld [vmem:[#allocation3 + $0x70] sm:$0xff]
      %v6066 = vld [vmem:[#allocation3 + $0x78] sm:$0xff]
      %v6067 = vld [vmem:[#allocation3 + $0x80] sm:$0xff]
      %v6068 = vld [vmem:[#allocation3 + $0x88] sm:$0xff]
      %v6069 = vld [vmem:[#allocation3 + $0x90] sm:$0xff]
      %v6070 = vld [vmem:[#allocation3 + $0x98] sm:$0xff]
      %v6071 = vld [vmem:[#allocation3 + $0xa0] sm:$0xff]
      %v6072 = vld [vmem:[#allocation3 + $0xa8] sm:$0xff]
      %v6073 = vld [vmem:[#allocation3 + $0xb0] sm:$0xff]
      %v6074 = vld [vmem:[#allocation3 + $0xb8] sm:$0xff]
      %v6075 = vld [vmem:[#allocation3 + $0xc0] sm:$0xff]
      %v6076 = vld [vmem:[#allocation3 + $0xc8] sm:$0xff]
      %v6077 = vld [vmem:[#allocation3 + $0xd0] sm:$0xff]
      %v6078 = vld [vmem:[#allocation3 + $0xd8] sm:$0xff]
      %v6079 = vld [vmem:[#allocation3 + $0xe0] sm:$0xff]
      %v6080 = vld [vmem:[#allocation3 + $0xe8] sm:$0xff]
      %v6081 = vld [vmem:[#allocation3 + $0xf0] sm:$0xff]
      %v6082 = vld [vmem:[#allocation3 + $0xf8] sm:$0xff]
      %v6131 = vrot.slane %v6003, 5
      %v6132 = vrot.slane %v6131, 4
      %v6133 = vrot.slane %v6004, 5
      %v6134 = vsel %vm2405, %v6132, %v6133
      %v6135 = vrot.slane %v6133, 4
      %v6136 = vrot.slane %v6005, 5
      %v6137 = vsel %vm2405, %v6135, %v6136
      %v6138 = vrot.slane %v6006, 5
      %v6139 = vrot.slane %v6138, 4
      %v6140 = vrot.slane %v6007, 5
      %v6141 = vsel %vm2405, %v6139, %v6140
      %v6142 = vrot.slane %v6140, 4
      %v6143 = vrot.slane %v6008, 5
      %v6144 = vsel %vm2405, %v6142, %v6143
      %v6145 = vrot.slane %v6009, 5
      %v6146 = vrot.slane %v6145, 4
      %v6147 = vrot.slane %v6010, 5
      %v6148 = vsel %vm2405, %v6146, %v6147
      %v6149 = vrot.slane %v6147, 4
      %v6150 = vrot.slane %v6011, 5
      %v6151 = vsel %vm2405, %v6149, %v6150
      %v6152 = vrot.slane %v6012, 5
      %v6153 = vrot.slane %v6152, 4
      %v6154 = vrot.slane %v6013, 5
      %v6155 = vsel %vm2405, %v6153, %v6154
      %v6156 = vrot.slane %v6154, 4
      %v6157 = vrot.slane %v6014, 5
      %v6158 = vsel %vm2405, %v6156, %v6157
      %v6159 = vrot.slane %v6015, 5
      %v6160 = vrot.slane %v6159, 4
      %v6161 = vrot.slane %v6016, 5
      %v6162 = vsel %vm2405, %v6160, %v6161
      %v6163 = vrot.slane %v6161, 4
      %v6164 = vrot.slane %v6017, 5
      %v6165 = vsel %vm2405, %v6163, %v6164
      %v6166 = vrot.slane %v6018, 5
      %v6167 = vrot.slane %v6166, 4
      %v6168 = vrot.slane %v6019, 5
      %v6169 = vsel %vm2405, %v6167, %v6168
      %v6170 = vrot.slane %v6168, 4
      %v6171 = vrot.slane %v6020, 5
      %v6172 = vsel %vm2405, %v6170, %v6171
      %v6173 = vrot.slane %v6021, 5
      %v6174 = vrot.slane %v6173, 4
      %v6175 = vrot.slane %v6022, 5
      %v6176 = vsel %vm2405, %v6174, %v6175
      %v6177 = vrot.slane %v6175, 4
      %v6178 = vrot.slane %v6023, 5
      %v6179 = vsel %vm2405, %v6177, %v6178
      %v6180 = vrot.slane %v6024, 5
      %v6181 = vrot.slane %v6180, 4
      %v6182 = vrot.slane %v6025, 5
      %v6183 = vsel %vm2405, %v6181, %v6182
      %v6184 = vrot.slane %v6182, 4
      %v6185 = vrot.slane %v6026, 5
      %v6186 = vsel %vm2405, %v6184, %v6185
      %v6187 = vrot.slane %v6027, 5
      %v6188 = vrot.slane %v6187, 4
      %v6189 = vrot.slane %v6028, 5
      %v6190 = vsel %vm2405, %v6188, %v6189
      %v6191 = vrot.slane %v6189, 4
      %v6192 = vrot.slane %v6029, 5
      %v6193 = vsel %vm2405, %v6191, %v6192
      %v6194 = vrot.slane %v6030, 5
      %v6195 = vrot.slane %v6194, 4
      %v6196 = vrot.slane %v6031, 5
      %v6197 = vsel %vm2405, %v6195, %v6196
      %v6198 = vrot.slane %v6196, 4
      %v6199 = vrot.slane %v6032, 5
      %v6200 = vsel %vm2405, %v6198, %v6199
      %v6201 = vrot.slane %v6033, 5
      %v6202 = vrot.slane %v6201, 4
      %v6203 = vrot.slane %v6034, 5
      %v6204 = vsel %vm2405, %v6202, %v6203
      %v6205 = vrot.slane %v6203, 4
      %v6206 = vrot.slane %v6035, 5
      %v6207 = vsel %vm2405, %v6205, %v6206
      %v6208 = vrot.slane %v6036, 5
      %v6209 = vrot.slane %v6208, 4
      %v6210 = vrot.slane %v6037, 5
      %v6211 = vsel %vm2405, %v6209, %v6210
      %v6212 = vrot.slane %v6210, 4
      %v6213 = vrot.slane %v6038, 5
      %v6214 = vsel %vm2405, %v6212, %v6213
      %v6215 = vrot.slane %v6039, 5
      %v6216 = vrot.slane %v6215, 4
      %v6217 = vrot.slane %v6040, 5
      %v6218 = vsel %vm2405, %v6216, %v6217
      %v6219 = vrot.slane %v6217, 4
      %v6220 = vrot.slane %v6041, 5
      %v6221 = vsel %vm2405, %v6219, %v6220
      %v6222 = vrot.slane %v6042, 5
      %v6223 = vrot.slane %v6222, 4
      %v6224 = vrot.slane %v6043, 5
      %v6225 = vsel %vm2405, %v6223, %v6224
      %v6226 = vrot.slane %v6224, 4
      %v6227 = vrot.slane %v6044, 5
      %v6228 = vsel %vm2405, %v6226, %v6227
      %v6229 = vrot.slane %v6045, 5
      %v6230 = vrot.slane %v6229, 4
      %v6231 = vrot.slane %v6046, 5
      %v6232 = vsel %vm2405, %v6230, %v6231
      %v6233 = vrot.slane %v6231, 4
      %v6234 = vrot.slane %v6047, 5
      %v6235 = vsel %vm2405, %v6233, %v6234
      %v6236 = vrot.slane %v6048, 5
      %v6237 = vrot.slane %v6236, 4
      %v6238 = vrot.slane %v6049, 5
      %v6239 = vsel %vm2405, %v6237, %v6238
      %v6240 = vrot.slane %v6238, 4
      %v6241 = vrot.slane %v6050, 5
      %v6242 = vsel %vm2405, %v6240, %v6241
      %s6243 = scalar_lea.vmem %s3, 512
      %v6244 = vld [vmem:[%s6243] sm:$0xf]
      %v6245 = vld [vmem:[%s6243 + $0x4] sm:$0xf]
      %v6246 = vld [vmem:[%s6243 + $0x8] sm:$0xf]
      %v6247 = vld [vmem:[%s6243 + $0xc] sm:$0xf]
      %v6248 = vld [vmem:[%s6243 + $0x10] sm:$0xf]
      %v6249 = vld [vmem:[%s6243 + $0x14] sm:$0xf]
      %v6250 = vld [vmem:[%s6243 + $0x18] sm:$0xf]
      %v6251 = vld [vmem:[%s6243 + $0x1c] sm:$0xf]
      %v6252 = vld [vmem:[%s6243 + $0x20] sm:$0xf]
      %v6253 = vld [vmem:[%s6243 + $0x24] sm:$0xf]
      %v6254 = vld [vmem:[%s6243 + $0x28] sm:$0xf]
      %v6255 = vld [vmem:[%s6243 + $0x2c] sm:$0xf]
      %v6256 = vld [vmem:[%s6243 + $0x30] sm:$0xf]
      %v6257 = vld [vmem:[%s6243 + $0x34] sm:$0xf]
      %v6258 = vld [vmem:[%s6243 + $0x38] sm:$0xf]
      %v6259 = vld [vmem:[%s6243 + $0x3c] sm:$0xf]
      %v6260 = vunpack.c.l.b16 %v6134
      %v6261 = vunpack.c.l.b16 %v6137
      %v6262 = vunpack.c.l.b16 %v6141
      %v6263 = vunpack.c.l.b16 %v6144
      %v6264 = vunpack.c.l.b16 %v6148
      %v6265 = vunpack.c.l.b16 %v6151
      %v6266 = vunpack.c.l.b16 %v6155
      %v6267 = vunpack.c.l.b16 %v6158
      %v6268 = vunpack.c.l.b16 %v6162
      %v6269 = vunpack.c.l.b16 %v6165
      %v6270 = vunpack.c.l.b16 %v6169
      %v6271 = vunpack.c.l.b16 %v6172
      %v6272 = vunpack.c.l.b16 %v6176
      %v6273 = vunpack.c.l.b16 %v6179
      %v6274 = vunpack.c.l.b16 %v6183
      %v6275 = vunpack.c.l.b16 %v6186
      %v6276 = vunpack.c.l.b16 %v6190
      %v6277 = vunpack.c.l.b16 %v6193
      %v6278 = vunpack.c.l.b16 %v6197
      %v6279 = vunpack.c.l.b16 %v6200
      %v6280 = vunpack.c.l.b16 %v6204
      %v6281 = vunpack.c.l.b16 %v6207
      %v6282 = vunpack.c.l.b16 %v6211
      %v6283 = vunpack.c.l.b16 %v6214
      %v6284 = vunpack.c.l.b16 %v6218
      %v6285 = vunpack.c.l.b16 %v6221
      %v6286 = vunpack.c.l.b16 %v6225
      %v6287 = vunpack.c.l.b16 %v6228
      %v6288 = vunpack.c.l.b16 %v6232
      %v6289 = vunpack.c.l.b16 %v6235
      %v6290 = vunpack.c.l.b16 %v6239
      %v6291 = vunpack.c.l.b16 %v6242
      %v6292 = vpack.c.b16 %v6261, %v6260
      %v6293 = vpack.c.b16 %v6263, %v6262
      %v6294 = vpack.c.b16 %v6265, %v6264
      %v6295 = vpack.c.b16 %v6267, %v6266
      %v6296 = vpack.c.b16 %v6269, %v6268
      %v6297 = vpack.c.b16 %v6271, %v6270
      %v6298 = vpack.c.b16 %v6273, %v6272
      %v6299 = vpack.c.b16 %v6275, %v6274
      %v6300 = vpack.c.b16 %v6277, %v6276
      %v6301 = vpack.c.b16 %v6279, %v6278
      %v6302 = vpack.c.b16 %v6281, %v6280
      %v6303 = vpack.c.b16 %v6283, %v6282
      %v6304 = vpack.c.b16 %v6285, %v6284
      %v6305 = vpack.c.b16 %v6287, %v6286
      %v6306 = vpack.c.b16 %v6289, %v6288
      %v6307 = vpack.c.b16 %v6291, %v6290
      %v6340 = vunpack.c.l.b16 %v6244
      %v6341 = vunpack.c.l.b16 %v6245
      %v6342 = vunpack.c.l.b16 %v6246
      %v6343 = vunpack.c.l.b16 %v6247
      %v6344 = vunpack.c.l.b16 %v6248
      %v6345 = vunpack.c.l.b16 %v6249
      %v6346 = vunpack.c.l.b16 %v6250
      %v6347 = vunpack.c.l.b16 %v6251
      %v6348 = vunpack.c.l.b16 %v6252
      %v6349 = vunpack.c.l.b16 %v6253
      %v6350 = vunpack.c.l.b16 %v6254
      %v6351 = vunpack.c.l.b16 %v6255
      %v6352 = vunpack.c.l.b16 %v6256
      %v6353 = vunpack.c.l.b16 %v6257
      %v6354 = vunpack.c.l.b16 %v6258
      %v6355 = vunpack.c.l.b16 %v6259
      %v6356 = vpack.c.b16 %v6341, %v6340
      %v6357 = vpack.c.b16 %v6343, %v6342
      %v6358 = vpack.c.b16 %v6345, %v6344
      %v6359 = vpack.c.b16 %v6347, %v6346
      %v6360 = vpack.c.b16 %v6349, %v6348
      %v6361 = vpack.c.b16 %v6351, %v6350
      %v6362 = vpack.c.b16 %v6353, %v6352
      %v6363 = vpack.c.b16 %v6355, %v6354
      %6372 = vmatprep.subr.bf16.mxu0 0
      %6373 = vmatpush1.bf16.msra.mxu0 %v6363
      %6374 = vmatprep.subr.bf16.mxu0 0
      %6375 = vmatpush1.bf16.msra.mxu0 %v6362
      %6376 = vmatprep.subr.bf16.mxu0 0
      %6377 = vmatpush1.bf16.msra.mxu0 %v6361
      %6378 = vmatprep.subr.bf16.mxu0 0
      %6379 = vmatpush1.bf16.msra.mxu0 %v6360
      %6380 = vmatprep.subr.bf16.mxu0 0
      %6381 = vmatpush1.bf16.msra.mxu0 %v6359
      %6382 = vmatprep.subr.bf16.mxu0 0
      %6383 = vmatpush1.bf16.msra.mxu0 %v6358
      %6384 = vmatprep.subr.bf16.mxu0 0
      %6385 = vmatpush1.bf16.msra.mxu0 %v6357
      %6386 = vmatprep.subr.bf16.mxu0 0
      %6387 = vmatpush1.bf16.msra.mxu0 %v6356
      %6388 = vmatprep.subr.bf16.mxu0 0
      %6389 = vmatpush2.bf16.msra.mxu0 0
      %6390 = vmatprep.subr.bf16.mxu0 0
      %6391 = vmatpush2.bf16.msra.mxu0 0
      %6392 = vmatprep.subr.bf16.mxu0 0
      %6393 = vmatpush2.bf16.msra.mxu0 0
      %6394 = vmatprep.subr.bf16.mxu0 0
      %6395 = vmatpush2.bf16.msra.mxu0 0
      %6396 = vmatprep.subr.bf16.mxu0 0
      %6397 = vmatpush2.bf16.msra.mxu0 0
      %6398 = vmatprep.subr.bf16.mxu0 0
      %6399 = vmatpush2.bf16.msra.mxu0 0
      %6400 = vmatprep.subr.bf16.mxu0 0
      %6401 = vmatpush2.bf16.msra.mxu0 0
      %6402 = vmatprep.subr.bf16.mxu0 0
      %6403 = vmatpush2.bf16.msra.mxu0 0
      %6404 = vmatprep.mubr.bf16.mxu0 0
      %6405 = vmatmul.mubr.bf16.gmra.mxu0 %v6292
      %v6406 = vpop.f32.mrf.mxu0
      %v6407 = vadd.f32 0.0, %v6406
      %v6408 = vpop.f32.mrf.mxu0
      %v6409 = vpop.f32.mrf.mxu0
      %v6410 = vadd.f32 0.0, %v6409
      %v6411 = vpop.f32.mrf.mxu0
      %6412 = vmatprep.mubr.bf16.mxu0 0
      %6413 = vmatmul.mubr.bf16.gmra.mxu0 %v6293
      %v6414 = vpop.f32.mrf.mxu0
      %v6415 = vadd.f32 0.0, %v6414
      %v6416 = vpop.f32.mrf.mxu0
      %v6417 = vpop.f32.mrf.mxu0
      %v6418 = vadd.f32 0.0, %v6417
      %v6419 = vpop.f32.mrf.mxu0
      %6420 = vmatprep.mubr.bf16.mxu0 0
      %6421 = vmatmul.mubr.bf16.gmra.mxu0 %v6294
      %v6422 = vpop.f32.mrf.mxu0
      %v6423 = vadd.f32 0.0, %v6422
      %v6424 = vpop.f32.mrf.mxu0
      %v6425 = vpop.f32.mrf.mxu0
      %v6426 = vadd.f32 0.0, %v6425
      %v6427 = vpop.f32.mrf.mxu0
      %6428 = vmatprep.mubr.bf16.mxu0 0
      %6429 = vmatmul.mubr.bf16.gmra.mxu0 %v6295
      %v6430 = vpop.f32.mrf.mxu0
      %v6431 = vadd.f32 0.0, %v6430
      %v6432 = vpop.f32.mrf.mxu0
      %v6433 = vpop.f32.mrf.mxu0
      %v6434 = vadd.f32 0.0, %v6433
      %v6435 = vpop.f32.mrf.mxu0
      %6436 = vmatprep.mubr.bf16.mxu0 0
      %6437 = vmatmul.mubr.bf16.gmra.mxu0 %v6296
      %v6438 = vpop.f32.mrf.mxu0
      %v6439 = vadd.f32 0.0, %v6438
      %v6440 = vpop.f32.mrf.mxu0
      %v6441 = vpop.f32.mrf.mxu0
      %v6442 = vadd.f32 0.0, %v6441
      %v6443 = vpop.f32.mrf.mxu0
      %6444 = vmatprep.mubr.bf16.mxu0 0
      %6445 = vmatmul.mubr.bf16.gmra.mxu0 %v6297
      %v6446 = vpop.f32.mrf.mxu0
      %v6447 = vadd.f32 0.0, %v6446
      %v6448 = vpop.f32.mrf.mxu0
      %v6449 = vpop.f32.mrf.mxu0
      %v6450 = vadd.f32 0.0, %v6449
      %v6451 = vpop.f32.mrf.mxu0
      %6452 = vmatprep.mubr.bf16.mxu0 0
      %6453 = vmatmul.mubr.bf16.gmra.mxu0 %v6298
      %v6454 = vpop.f32.mrf.mxu0
      %v6455 = vadd.f32 0.0, %v6454
      %v6456 = vpop.f32.mrf.mxu0
      %v6457 = vpop.f32.mrf.mxu0
      %v6458 = vadd.f32 0.0, %v6457
      %v6459 = vpop.f32.mrf.mxu0
      %6460 = vmatprep.mubr.bf16.mxu0 0
      %6461 = vmatmul.mubr.bf16.gmra.mxu0 %v6299
      %v6462 = vpop.f32.mrf.mxu0
      %v6463 = vadd.f32 0.0, %v6462
      %v6464 = vpop.f32.mrf.mxu0
      %v6465 = vpop.f32.mrf.mxu0
      %v6466 = vadd.f32 0.0, %v6465
      %v6467 = vpop.f32.mrf.mxu0
      %6468 = vmatprep.mubr.bf16.mxu0 0
      %6469 = vmatmul.mubr.bf16.gmra.mxu0 %v6300
      %v6470 = vpop.f32.mrf.mxu0
      %v6471 = vadd.f32 0.0, %v6470
      %v6472 = vpop.f32.mrf.mxu0
      %v6473 = vpop.f32.mrf.mxu0
      %v6474 = vadd.f32 0.0, %v6473
      %v6475 = vpop.f32.mrf.mxu0
      %6476 = vmatprep.mubr.bf16.mxu0 0
      %6477 = vmatmul.mubr.bf16.gmra.mxu0 %v6301
      %v6478 = vpop.f32.mrf.mxu0
      %v6479 = vadd.f32 0.0, %v6478
      %v6480 = vpop.f32.mrf.mxu0
      %v6481 = vpop.f32.mrf.mxu0
      %v6482 = vadd.f32 0.0, %v6481
      %v6483 = vpop.f32.mrf.mxu0
      %6484 = vmatprep.mubr.bf16.mxu0 0
      %6485 = vmatmul.mubr.bf16.gmra.mxu0 %v6302
      %v6486 = vpop.f32.mrf.mxu0
      %v6487 = vadd.f32 0.0, %v6486
      %v6488 = vpop.f32.mrf.mxu0
      %v6489 = vpop.f32.mrf.mxu0
      %v6490 = vadd.f32 0.0, %v6489
      %v6491 = vpop.f32.mrf.mxu0
      %6492 = vmatprep.mubr.bf16.mxu0 0
      %6493 = vmatmul.mubr.bf16.gmra.mxu0 %v6303
      %v6494 = vpop.f32.mrf.mxu0
      %v6495 = vadd.f32 0.0, %v6494
      %v6496 = vpop.f32.mrf.mxu0
      %v6497 = vpop.f32.mrf.mxu0
      %v6498 = vadd.f32 0.0, %v6497
      %v6499 = vpop.f32.mrf.mxu0
      %6500 = vmatprep.mubr.bf16.mxu0 0
      %6501 = vmatmul.mubr.bf16.gmra.mxu0 %v6304
      %v6502 = vpop.f32.mrf.mxu0
      %v6503 = vadd.f32 0.0, %v6502
      %v6504 = vpop.f32.mrf.mxu0
      %v6505 = vpop.f32.mrf.mxu0
      %v6506 = vadd.f32 0.0, %v6505
      %v6507 = vpop.f32.mrf.mxu0
      %6508 = vmatprep.mubr.bf16.mxu0 0
      %6509 = vmatmul.mubr.bf16.gmra.mxu0 %v6305
      %v6510 = vpop.f32.mrf.mxu0
      %v6511 = vadd.f32 0.0, %v6510
      %v6512 = vpop.f32.mrf.mxu0
      %v6513 = vpop.f32.mrf.mxu0
      %v6514 = vadd.f32 0.0, %v6513
      %v6515 = vpop.f32.mrf.mxu0
      %6516 = vmatprep.mubr.bf16.mxu0 0
      %6517 = vmatmul.mubr.bf16.gmra.mxu0 %v6306
      %v6518 = vpop.f32.mrf.mxu0
      %v6519 = vadd.f32 0.0, %v6518
      %v6520 = vpop.f32.mrf.mxu0
      %v6521 = vpop.f32.mrf.mxu0
      %v6522 = vadd.f32 0.0, %v6521
      %v6523 = vpop.f32.mrf.mxu0
      %6524 = vmatprep.mubr.bf16.mxu0 0
      %6525 = vmatmul.mubr.bf16.gmra.mxu0 %v6307
      %v6526 = vpop.f32.mrf.mxu0
      %v6527 = vadd.f32 0.0, %v6526
      %v6528 = vpop.f32.mrf.mxu0
      %v6529 = vpop.f32.mrf.mxu0
      %v6530 = vadd.f32 0.0, %v6529
      %v6531 = vpop.f32.mrf.mxu0
      %6532 = vdwg.mxu0
      %v6533 = vadd.f32 %v6051, %v6407
      %v6534 = vadd.f32 %v6052, %v6410
      %v6535 = vadd.f32 %v6053, %v6415
      %v6536 = vadd.f32 %v6054, %v6418
      %v6537 = vadd.f32 %v6055, %v6423
      %v6538 = vadd.f32 %v6056, %v6426
      %v6539 = vadd.f32 %v6057, %v6431
      %v6540 = vadd.f32 %v6058, %v6434
      %v6541 = vadd.f32 %v6059, %v6439
      %v6542 = vadd.f32 %v6060, %v6442
      %v6543 = vadd.f32 %v6061, %v6447
      %v6544 = vadd.f32 %v6062, %v6450
      %v6545 = vadd.f32 %v6063, %v6455
      %v6546 = vadd.f32 %v6064, %v6458
      %v6547 = vadd.f32 %v6065, %v6463
      %v6548 = vadd.f32 %v6066, %v6466
      %v6549 = vadd.f32 %v6067, %v6471
      %v6550 = vadd.f32 %v6068, %v6474
      %v6551 = vadd.f32 %v6069, %v6479
      %v6552 = vadd.f32 %v6070, %v6482
      %v6553 = vadd.f32 %v6071, %v6487
      %v6554 = vadd.f32 %v6072, %v6490
      %v6555 = vadd.f32 %v6073, %v6495
      %v6556 = vadd.f32 %v6074, %v6498
      %v6557 = vadd.f32 %v6075, %v6503
      %v6558 = vadd.f32 %v6076, %v6506
      %v6559 = vadd.f32 %v6077, %v6511
      %v6560 = vadd.f32 %v6078, %v6514
      %v6561 = vadd.f32 %v6079, %v6519
      %v6562 = vadd.f32 %v6080, %v6522
      %v6563 = vadd.f32 %v6081, %v6527
      %v6564 = vadd.f32 %v6082, %v6530
      %6565 = vst [vmem:[#allocation3] sm:$0xff] %v6533
      %6566 = vst [vmem:[#allocation3 + $0x8] sm:$0xff] %v6534
      %6567 = vst [vmem:[#allocation3 + $0x10] sm:$0xff] %v6535
      %6568 = vst [vmem:[#allocation3 + $0x18] sm:$0xff] %v6536
      %6569 = vst [vmem:[#allocation3 + $0x20] sm:$0xff] %v6537
      %6570 = vst [vmem:[#allocation3 + $0x28] sm:$0xff] %v6538
      %6571 = vst [vmem:[#allocation3 + $0x30] sm:$0xff] %v6539
      %6572 = vst [vmem:[#allocation3 + $0x38] sm:$0xff] %v6540
      %6573 = vst [vmem:[#allocation3 + $0x40] sm:$0xff] %v6541
      %6574 = vst [vmem:[#allocation3 + $0x48] sm:$0xff] %v6542
      %6575 = vst [vmem:[#allocation3 + $0x50] sm:$0xff] %v6543
      %6576 = vst [vmem:[#allocation3 + $0x58] sm:$0xff] %v6544
      %6577 = vst [vmem:[#allocation3 + $0x60] sm:$0xff] %v6545
      %6578 = vst [vmem:[#allocation3 + $0x68] sm:$0xff] %v6546
      %6579 = vst [vmem:[#allocation3 + $0x70] sm:$0xff] %v6547
      %6580 = vst [vmem:[#allocation3 + $0x78] sm:$0xff] %v6548
      %6581 = vst [vmem:[#allocation3 + $0x80] sm:$0xff] %v6549
      %6582 = vst [vmem:[#allocation3 + $0x88] sm:$0xff] %v6550
      %6583 = vst [vmem:[#allocation3 + $0x90] sm:$0xff] %v6551
      %6584 = vst [vmem:[#allocation3 + $0x98] sm:$0xff] %v6552
      %6585 = vst [vmem:[#allocation3 + $0xa0] sm:$0xff] %v6553
      %6586 = vst [vmem:[#allocation3 + $0xa8] sm:$0xff] %v6554
      %6587 = vst [vmem:[#allocation3 + $0xb0] sm:$0xff] %v6555
      %6588 = vst [vmem:[#allocation3 + $0xb8] sm:$0xff] %v6556
      %6589 = vst [vmem:[#allocation3 + $0xc0] sm:$0xff] %v6557
      %6590 = vst [vmem:[#allocation3 + $0xc8] sm:$0xff] %v6558
      %6591 = vst [vmem:[#allocation3 + $0xd0] sm:$0xff] %v6559
      %6592 = vst [vmem:[#allocation3 + $0xd8] sm:$0xff] %v6560
      %6593 = vst [vmem:[#allocation3 + $0xe0] sm:$0xff] %v6561
      %6594 = vst [vmem:[#allocation3 + $0xe8] sm:$0xff] %v6562
      %6595 = vst [vmem:[#allocation3 + $0xf0] sm:$0xff] %v6563
      %6596 = vst [vmem:[#allocation3 + $0xf8] sm:$0xff] %v6564
      %v6597 = vld [vmem:[#allocation3] sm:$0xff]
      %v6598 = vld [vmem:[#allocation3 + $0x8] sm:$0xff]
      %v6599 = vld [vmem:[#allocation3 + $0x10] sm:$0xff]
      %v6600 = vld [vmem:[#allocation3 + $0x18] sm:$0xff]
      %v6601 = vld [vmem:[#allocation3 + $0x20] sm:$0xff]
      %v6602 = vld [vmem:[#allocation3 + $0x28] sm:$0xff]
      %v6603 = vld [vmem:[#allocation3 + $0x30] sm:$0xff]
      %v6604 = vld [vmem:[#allocation3 + $0x38] sm:$0xff]
      %v6605 = vld [vmem:[#allocation3 + $0x40] sm:$0xff]
      %v6606 = vld [vmem:[#allocation3 + $0x48] sm:$0xff]
      %v6607 = vld [vmem:[#allocation3 + $0x50] sm:$0xff]
      %v6608 = vld [vmem:[#allocation3 + $0x58] sm:$0xff]
      %v6609 = vld [vmem:[#allocation3 + $0x60] sm:$0xff]
      %v6610 = vld [vmem:[#allocation3 + $0x68] sm:$0xff]
      %v6611 = vld [vmem:[#allocation3 + $0x70] sm:$0xff]
      %v6612 = vld [vmem:[#allocation3 + $0x78] sm:$0xff]
      %v6613 = vld [vmem:[#allocation3 + $0x80] sm:$0xff]
      %v6614 = vld [vmem:[#allocation3 + $0x88] sm:$0xff]
      %v6615 = vld [vmem:[#allocation3 + $0x90] sm:$0xff]
      %v6616 = vld [vmem:[#allocation3 + $0x98] sm:$0xff]
      %v6617 = vld [vmem:[#allocation3 + $0xa0] sm:$0xff]
      %v6618 = vld [vmem:[#allocation3 + $0xa8] sm:$0xff]
      %v6619 = vld [vmem:[#allocation3 + $0xb0] sm:$0xff]
      %v6620 = vld [vmem:[#allocation3 + $0xb8] sm:$0xff]
      %v6621 = vld [vmem:[#allocation3 + $0xc0] sm:$0xff]
      %v6622 = vld [vmem:[#allocation3 + $0xc8] sm:$0xff]
      %v6623 = vld [vmem:[#allocation3 + $0xd0] sm:$0xff]
      %v6624 = vld [vmem:[#allocation3 + $0xd8] sm:$0xff]
      %v6625 = vld [vmem:[#allocation3 + $0xe0] sm:$0xff]
      %v6626 = vld [vmem:[#allocation3 + $0xe8] sm:$0xff]
      %v6627 = vld [vmem:[#allocation3 + $0xf0] sm:$0xff]
      %v6628 = vld [vmem:[#allocation3 + $0xf8] sm:$0xff]
      %6629 = vst [vmem:[%s233] sm:$0xff] %v6597
      %6630 = vst [vmem:[%s233 + $0x8] sm:$0xff] %v6598
      %6631 = vst [vmem:[%s233 + $0x10] sm:$0xff] %v6599
      %6632 = vst [vmem:[%s233 + $0x18] sm:$0xff] %v6600
      %6633 = vst [vmem:[%s233 + $0x20] sm:$0xff] %v6601
      %6634 = vst [vmem:[%s233 + $0x28] sm:$0xff] %v6602
      %6635 = vst [vmem:[%s233 + $0x30] sm:$0xff] %v6603
      %6636 = vst [vmem:[%s233 + $0x38] sm:$0xff] %v6604
      %6637 = vst [vmem:[%s233 + $0x40] sm:$0xff] %v6605
      %6638 = vst [vmem:[%s233 + $0x48] sm:$0xff] %v6606
      %6639 = vst [vmem:[%s233 + $0x50] sm:$0xff] %v6607
      %6640 = vst [vmem:[%s233 + $0x58] sm:$0xff] %v6608
      %6641 = vst [vmem:[%s233 + $0x60] sm:$0xff] %v6609
      %6642 = vst [vmem:[%s233 + $0x68] sm:$0xff] %v6610
      %6643 = vst [vmem:[%s233 + $0x70] sm:$0xff] %v6611
      %6644 = vst [vmem:[%s233 + $0x78] sm:$0xff] %v6612
      %6645 = vst [vmem:[%s233 + $0x80] sm:$0xff] %v6613
      %6646 = vst [vmem:[%s233 + $0x88] sm:$0xff] %v6614
      %6647 = vst [vmem:[%s233 + $0x90] sm:$0xff] %v6615
      %6648 = vst [vmem:[%s233 + $0x98] sm:$0xff] %v6616
      %6649 = vst [vmem:[%s233 + $0xa0] sm:$0xff] %v6617
      %6650 = vst [vmem:[%s233 + $0xa8] sm:$0xff] %v6618
      %6651 = vst [vmem:[%s233 + $0xb0] sm:$0xff] %v6619
      %6652 = vst [vmem:[%s233 + $0xb8] sm:$0xff] %v6620
      %6653 = vst [vmem:[%s233 + $0xc0] sm:$0xff] %v6621
      %6654 = vst [vmem:[%s233 + $0xc8] sm:$0xff] %v6622
      %6655 = vst [vmem:[%s233 + $0xd0] sm:$0xff] %v6623
      %6656 = vst [vmem:[%s233 + $0xd8] sm:$0xff] %v6624
      %6657 = vst [vmem:[%s233 + $0xe0] sm:$0xff] %v6625
      %6658 = vst [vmem:[%s233 + $0xe8] sm:$0xff] %v6626
      %6659 = vst [vmem:[%s233 + $0xf0] sm:$0xff] %v6627
      %6660 = vst [vmem:[%s233 + $0xf8] sm:$0xff] %v6628
      %v6661 = vadd.f32 %v6597, %v6598
      %v6662 = vadd.f32 %v6661, %v6599
      %v6663 = vadd.f32 %v6662, %v6600
      %v6664 = vadd.f32 %v6663, %v6601
      %v6665 = vadd.f32 %v6664, %v6602
      %v6666 = vadd.f32 %v6665, %v6603
      %v6667 = vadd.f32 %v6666, %v6604
      %v6668 = vadd.f32 %v6667, %v6605
      %v6669 = vadd.f32 %v6668, %v6606
      %v6670 = vadd.f32 %v6669, %v6607
      %v6671 = vadd.f32 %v6670, %v6608
      %v6672 = vadd.f32 %v6671, %v6609
      %v6673 = vadd.f32 %v6672, %v6610
      %v6674 = vadd.f32 %v6673, %v6611
      %v6675 = vadd.f32 %v6674, %v6612
      %v6676 = vadd.f32 %v6675, %v6613
      %v6677 = vadd.f32 %v6676, %v6614
      %v6678 = vadd.f32 %v6677, %v6615
      %v6679 = vadd.f32 %v6678, %v6616
      %v6680 = vadd.f32 %v6679, %v6617
      %v6681 = vadd.f32 %v6680, %v6618
      %v6682 = vadd.f32 %v6681, %v6619
      %v6683 = vadd.f32 %v6682, %v6620
      %v6684 = vadd.f32 %v6683, %v6621
      %v6685 = vadd.f32 %v6684, %v6622
      %v6686 = vadd.f32 %v6685, %v6623
      %v6687 = vadd.f32 %v6686, %v6624
      %v6688 = vadd.f32 %v6687, %v6625
      %v6689 = vadd.f32 %v6688, %v6626
      %v6690 = vadd.f32 %v6689, %v6627
      %v6691 = vadd.f32 %v6690, %v6628
      %v6692 = vrot.slane %v6691, 4
      %v6693 = vadd.f32 %v6691, %v6692
      %v6694 = vrot.slane %v6693, 2
      %v6695 = vadd.f32 %v6693, %v6694
      %v6696 = vrot.slane %v6695, 1
      %v6697 = vadd.f32 %v6695, %v6696
      %v6698 = vmul.f32 %v6597, %v6597
      %v6699 = vmul.f32 %v6598, %v6598
      %v6700 = vmul.f32 %v6599, %v6599
      %v6701 = vmul.f32 %v6600, %v6600
      %v6702 = vmul.f32 %v6601, %v6601
      %v6703 = vmul.f32 %v6602, %v6602
      %v6704 = vmul.f32 %v6603, %v6603
      %v6705 = vmul.f32 %v6604, %v6604
      %v6706 = vmul.f32 %v6605, %v6605
      %v6707 = vmul.f32 %v6606, %v6606
      %v6708 = vmul.f32 %v6607, %v6607
      %v6709 = vmul.f32 %v6608, %v6608
      %v6710 = vmul.f32 %v6609, %v6609
      %v6711 = vmul.f32 %v6610, %v6610
      %v6712 = vmul.f32 %v6611, %v6611
      %v6713 = vmul.f32 %v6612, %v6612
      %v6714 = vmul.f32 %v6613, %v6613
      %v6715 = vmul.f32 %v6614, %v6614
      %v6716 = vmul.f32 %v6615, %v6615
      %v6717 = vmul.f32 %v6616, %v6616
      %v6718 = vmul.f32 %v6617, %v6617
      %v6719 = vmul.f32 %v6618, %v6618
      %v6720 = vmul.f32 %v6619, %v6619
      %v6721 = vmul.f32 %v6620, %v6620
      %v6722 = vmul.f32 %v6621, %v6621
      %v6723 = vmul.f32 %v6622, %v6622
      %v6724 = vmul.f32 %v6623, %v6623
      %v6725 = vmul.f32 %v6624, %v6624
      %v6726 = vmul.f32 %v6625, %v6625
      %v6727 = vmul.f32 %v6626, %v6626
      %v6728 = vmul.f32 %v6627, %v6627
      %v6729 = vmul.f32 %v6628, %v6628
      %v6730 = vadd.f32 %v6698, %v6699
      %v6731 = vadd.f32 %v6730, %v6700
      %v6732 = vadd.f32 %v6731, %v6701
      %v6733 = vadd.f32 %v6732, %v6702
      %v6734 = vadd.f32 %v6733, %v6703
      %v6735 = vadd.f32 %v6734, %v6704
      %v6736 = vadd.f32 %v6735, %v6705
      %v6737 = vadd.f32 %v6736, %v6706
      %v6738 = vadd.f32 %v6737, %v6707
      %v6739 = vadd.f32 %v6738, %v6708
      %v6740 = vadd.f32 %v6739, %v6709
      %v6741 = vadd.f32 %v6740, %v6710
      %v6742 = vadd.f32 %v6741, %v6711
      %v6743 = vadd.f32 %v6742, %v6712
      %v6744 = vadd.f32 %v6743, %v6713
      %v6745 = vadd.f32 %v6744, %v6714
      %v6746 = vadd.f32 %v6745, %v6715
      %v6747 = vadd.f32 %v6746, %v6716
      %v6748 = vadd.f32 %v6747, %v6717
      %v6749 = vadd.f32 %v6748, %v6718
      %v6750 = vadd.f32 %v6749, %v6719
      %v6751 = vadd.f32 %v6750, %v6720
      %v6752 = vadd.f32 %v6751, %v6721
      %v6753 = vadd.f32 %v6752, %v6722
      %v6754 = vadd.f32 %v6753, %v6723
      %v6755 = vadd.f32 %v6754, %v6724
      %v6756 = vadd.f32 %v6755, %v6725
      %v6757 = vadd.f32 %v6756, %v6726
      %v6758 = vadd.f32 %v6757, %v6727
      %v6759 = vadd.f32 %v6758, %v6728
      %v6760 = vadd.f32 %v6759, %v6729
      %v6761 = vrot.slane %v6760, 4
      %v6762 = vadd.f32 %v6760, %v6761
      %v6763 = vrot.slane %v6762, 2
      %v6764 = vadd.f32 %v6762, %v6763
      %v6765 = vrot.slane %v6764, 1
      %v6766 = vadd.f32 %v6764, %v6765
      %vm6767 = vcmask 1040384
      %v6768 = vsel %vm6767, %v6697, %v6766
      %vm6769 = vcmask 1041408
      %v6770 = vsel %vm6769, %v6768, 0.0
      %6771 = vst [vmem:[%s238] sm:$0xff] %v6770
      %s6772 = smul.u32 32, %s17
      %p6773 = scmp.lt.s32.totalorder %s6772, 63
      %s6774 = scalar_select %p6773, %s6772, 63
      %s6775 = smul.addr %s6774, 8
      %s6776 = scalar_lea.vmem %s4, %s6775
      %p6777 = scmp.lt.s32.totalorder %s17, 1
      %s6778 = scalar_select %p6777, %s17, 1
      %s6779 = smul.addr %s6778, 8
      %s6780 = scalar_lea.vmem %s5, %s6779
      // Predicated region
      $region37: #{bottleneck_pallas.5} parent=35 // pred_check
        %p6781 = pneg %p124
      $region38: #{bottleneck_pallas.5} parent=35 // pred_check_branch
        %6783 = sbr.rel (%p6781) target = $region40
      $region39: #{bottleneck_pallas.5} parent=35 // pred_region
        %s6784 = smul.u32 32, %s17
      $region40: #{bottleneck_pallas.5} parent=35 // pred_fallthru
        _
      // Predicated region
      $region41: #{bottleneck_pallas.5} parent=35 // pred_check
        %p6785 = pneg %p150
      $region42: #{bottleneck_pallas.5} parent=35 // pred_check_branch
        %6787 = sbr.rel (%p6785) target = $region44
      $region43: #{bottleneck_pallas.5} parent=35 // pred_region
        _
      $region44: #{bottleneck_pallas.5} parent=35 // pred_fallthru
        _
    $region36: #{bottleneck_pallas.5} parent=5 // pred_fallthru
      _
    %p6788 = scmp.le.s32.totalorder 2, %s12
    // Predicated region
    $region45: #{bottleneck_pallas.5} parent=5 // pred_check
      %p6789 = pneg %p6788
    $region46: #{bottleneck_pallas.5} parent=5 // pred_check_branch
      %6791 = sbr.rel (%p6789) target = $region48
    $region47: #{bottleneck_pallas.5} parent=5 // pred_region
      %s6792 = ssub.s32 %s12, 2
      // Predicated region
      $region49: #{bottleneck_pallas.5} parent=47 // pred_check
        %p6793 = pneg %p130
      $region50: #{bottleneck_pallas.5} parent=47 // pred_check_branch
        %6795 = sbr.rel (%p6793) target = $region52
      $region51: #{bottleneck_pallas.5} parent=47 // pred_region
        %s6796 = smul.u32 32, %s18
        %p6797 = scmp.lt.s32.totalorder %s6796, 63
        %s6798 = scalar_select %p6797, %s6796, 63
        %s6799 = smul.addr %s6798, 8
        %s6800 = scalar_lea.vmem %s4, %s6799
      $region52: #{bottleneck_pallas.5} parent=47 // pred_fallthru
        _
      // Predicated region
      $region53: #{bottleneck_pallas.5} parent=47 // pred_check
        %p6801 = pneg %p156
      $region54: #{bottleneck_pallas.5} parent=47 // pred_check_branch
        %6803 = sbr.rel (%p6801) target = $region56
      $region55: #{bottleneck_pallas.5} parent=47 // pred_region
        %p6804 = scmp.lt.s32.totalorder %s18, 1
        %s6805 = scalar_select %p6804, %s18, 1
        %s6806 = smul.addr %s6805, 8
        %s6807 = scalar_lea.vmem %s5, %s6806
      $region56: #{bottleneck_pallas.5} parent=47 // pred_fallthru
        _
    $region48: #{bottleneck_pallas.5} parent=5 // pred_fallthru
      _
  $region6: #{bottleneck_pallas.5} parent=0 // loop_footer
    %s16 = sadd.s32 1, %s12
  $region7: #{bottleneck_pallas.5} parent=0 // loop_footer_branch
    %11 = sbr.rel target = $region3
  $region8: #{bottleneck_pallas.5} parent=0 // loop_exit
    _

</llo_original>
